<compile_context>
chip_gen: v6e
topology: v6e:2x2x1
jax: 0.10.0
libtpu: 0.0.40
codegen_flags: <defaults>
</compile_context>

<pallas_src>
import jax
import jax.numpy as jnp
from jax.experimental import pallas as pl
from jax.experimental.pallas import tpu as pltpu

K_LATENT = 256          # self.k in the PyTorch module
FEAT_DIM = 768          # CLIP ViT-L/14 image feature dim
H1 = 1024
H2 = 1024
H3 = 2 * K_LATENT       # 512


def _softplus(x):
    # Numerically stable softplus (beta=1), single exp + single log1p.
    return jnp.maximum(x, 0.0) + jnp.log1p(jnp.exp(-jnp.abs(x)))


def clip_head_kernel(feat_ref, w_enc_ref, b_enc_ref,
                     w1_ref, b1_ref, w2_ref, b2_ref, w3_ref, b3_ref,
                     wd_ref, bd_ref, eps_ref,
                     mu_ref, std_ref, logit_ref):
    # Stand-in encoder projection: pooled patches -> 768-d "CLIP features".
    # bf16 MXU operands, f32 accumulation; bias add and all elementwise in f32.
    feats = (jnp.dot(feat_ref[...].astype(jnp.bfloat16), w_enc_ref[...],
                     preferred_element_type=jnp.float32) + b_enc_ref[...])

    # TODO(synk): nn.Dropout(0.5) is treated as inference-mode identity.

    # fc_1 -> ReLU
    h = (jnp.dot(feats.astype(jnp.bfloat16), w1_ref[...],
                 preferred_element_type=jnp.float32) + b1_ref[...])
    h = jnp.maximum(h, 0.0)

    # fc_2 -> ReLU
    h = (jnp.dot(h.astype(jnp.bfloat16), w2_ref[...],
                 preferred_element_type=jnp.float32) + b2_ref[...])
    h = jnp.maximum(h, 0.0)

    # fc_3 -> statistics
    stats = (jnp.dot(h.astype(jnp.bfloat16), w3_ref[...],
                     preferred_element_type=jnp.float32) + b3_ref[...])

    mu = stats[:, :K_LATENT]                       # 128-aligned lane split
    std = _softplus(stats[:, K_LATENT:] - 5.0)

    # reparametrize_n with n == 1: encoding = mu + eps * std  (f32 VPU)
    encoding = mu + eps_ref[...] * std

    # decode: Linear(256 -> 1) as a VPU multiply + XLU lane reduction
    # (avoids a 1-column MXU matmul; both units are otherwise idle here).
    logit = jnp.sum(encoding * wd_ref[...], axis=-1, keepdims=True) + bd_ref[...]

    mu_ref[...] = mu
    std_ref[...] = std
    logit_ref[...] = logit


def clip_model_forward(x_nchw, params, eps):
    """x_nchw: [B, 3, H, W] float32 image (PyTorch NCHW convention)."""
    B, C, H, W = x_nchw.shape
    P = 8  # patch size of the stand-in encoder
    gh, gw = H // P, W // P
    # patch extraction (glue, plain JAX): [B, C, H, W] -> [B, n_patches, C*P*P]
    patches = x_nchw.reshape(B, C, gh, P, gw, P)
    patches = jnp.transpose(patches, (0, 2, 4, 1, 3, 5)).reshape(B, gh * gw, C * P * P)
    pooled = jnp.mean(patches, axis=1)  # [B, C*P*P]

    # Zero-pad the encoder input feature dim (192 -> 256) so the contraction
    # dim is a multiple of 128 (clean (8,128) layout for the w_enc DMA / MXU).
    padded_in = params["w_enc"].shape[0]
    pad = padded_in - pooled.shape[1]
    if pad > 0:
        pooled = jnp.pad(pooled, ((0, 0), (0, pad)))

    vmem = pl.BlockSpec(memory_space=pltpu.MemorySpace.VMEM)
    n_in = 12
    out = pl.pallas_call(
        clip_head_kernel,
        out_shape=(
            jax.ShapeDtypeStruct((B, K_LATENT), jnp.float32),  # mu
            jax.ShapeDtypeStruct((B, K_LATENT), jnp.float32),  # std
            jax.ShapeDtypeStruct((B, 1), jnp.float32),          # logit
        ),
        in_specs=[vmem] * n_in,
        out_specs=(vmem, vmem, vmem),
        # bf16 weights + f32 activations/bias/outputs total ~5 MiB; give 16 MiB
        # scoped VMEM so the budget is explicit on every generation (incl. v7x).
        compiler_params=pltpu.CompilerParams(vmem_limit_bytes=16 * 1024 * 1024),
    )(pooled,
      params["w_enc"], params["b_enc"],
      params["w1"], params["b1"],
      params["w2"], params["b2"],
      params["w3"], params["b3"],
      params["wd"], params["bd"],
      eps)
    mu, std, logit = out
    return (mu, std), logit


def init_params(key, patch_dim):
    ks = jax.random.split(key, 10)
    patch_dim_padded = ((patch_dim + 127) // 128) * 128  # 192 -> 256

    def lin(kw, fan_in, fan_out):
        scale = 1.0 / jnp.sqrt(jnp.float32(fan_in))
        w = jax.random.normal(kw, (fan_in, fan_out), jnp.float32) * scale
        # Weights live in HBM / are DMA'd as bf16; matmuls accumulate in f32.
        return w.astype(jnp.bfloat16)

    # Rows of w_enc beyond patch_dim only ever see zero-padded inputs.
    return {
        "w_enc": lin(ks[0], patch_dim_padded, FEAT_DIM),
        "b_enc": jnp.zeros((1, FEAT_DIM), jnp.float32),
        "w1": lin(ks[1], FEAT_DIM, H1),
        "b1": jax.random.normal(ks[2], (1, H1), jnp.float32) * 0.01,
        "w2": lin(ks[3], H1, H2),
        "b2": jax.random.normal(ks[4], (1, H2), jnp.float32) * 0.01,
        "w3": lin(ks[5], H2, H3),
        "b3": jax.random.normal(ks[6], (1, H3), jnp.float32) * 0.01,
        # decode weight stored as a lane-major f32 row for the VPU reduction.
        "wd": (jax.random.normal(ks[7], (1, K_LATENT), jnp.float32)
               * (1.0 / jnp.sqrt(jnp.float32(K_LATENT)))),
        "bd": jax.random.normal(ks[8], (1, 1), jnp.float32) * 0.01,
    }


if __name__ == "__main__":
    key = jax.random.PRNGKey(0)
    k_x, k_p, k_eps = jax.random.split(key, 3)

    B, C, H, W = 2, 3, 16, 16
    x = jax.random.normal(k_x, (B, C, H, W), jnp.float32)

    patch_dim = C * 8 * 8  # 192
    params = init_params(k_p, patch_dim)
    eps = jax.random.normal(k_eps, (B, K_LATENT), jnp.float32)

    (mu, std), logit = clip_model_forward(x, params, eps)
    jax.block_until_ready((mu, std, logit))

    assert mu.shape == (B, K_LATENT)
    assert std.shape == (B, K_LATENT)
    assert logit.shape == (B, 1)
    assert bool(jnp.all(std > 0))
    assert bool(jnp.all(jnp.isfinite(mu)))
    assert bool(jnp.all(jnp.isfinite(logit)))
    print("KERNEL_OK")
</pallas_src>

<mosaic_0001>
module attributes {stable_mosaic.version = 11 : i64} {
  func.func @clip_head_kernel(%arg0: memref<2x256xf32, #tpu.memory_space<vmem>>, %arg1: memref<256x768xbf16, #tpu.memory_space<vmem>>, %arg2: memref<1x768xf32, #tpu.memory_space<vmem>>, %arg3: memref<768x1024xbf16, #tpu.memory_space<vmem>>, %arg4: memref<1x1024xf32, #tpu.memory_space<vmem>>, %arg5: memref<1024x1024xbf16, #tpu.memory_space<vmem>>, %arg6: memref<1x1024xf32, #tpu.memory_space<vmem>>, %arg7: memref<1024x512xbf16, #tpu.memory_space<vmem>>, %arg8: memref<1x512xf32, #tpu.memory_space<vmem>>, %arg9: memref<1x256xf32, #tpu.memory_space<vmem>>, %arg10: memref<1x1xf32, #tpu.memory_space<vmem>>, %arg11: memref<2x256xf32, #tpu.memory_space<vmem>>, %arg12: memref<2x256xf32, #tpu.memory_space<vmem>>, %arg13: memref<2x256xf32, #tpu.memory_space<vmem>>, %arg14: memref<2x1xf32, #tpu.memory_space<vmem>>) attributes {dimension_semantics = [], scalar_prefetch = 0 : i64, scratch_operands = 0 : i64, tpu.core_type = #tpu.core_type<tc>} {
    %c0 = arith.constant 0 : index
    %c0_0 = arith.constant 0 : index
    %0 = vector.load %arg0[%c0, %c0_0] : memref<2x256xf32, #tpu.memory_space<vmem>>, vector<2x256xf32>
    %1 = arith.truncf %0 : vector<2x256xf32> to vector<2x256xbf16>
    %c0_1 = arith.constant 0 : index
    %c0_2 = arith.constant 0 : index
    %2 = vector.load %arg1[%c0_1, %c0_2] : memref<256x768xbf16, #tpu.memory_space<vmem>>, vector<256x768xbf16>
    %cst = arith.constant dense<0.000000e+00> : vector<2x768xf32>
    %3 = tpu.matmul %1, %2, %cst {dimension_numbers = #tpu.dot_dimension_numbers<[1], [0], [0], [1], [0, 0, 1, 1], [], []>} : vector<2x256xbf16>, vector<256x768xbf16>, vector<2x768xf32> -> vector<2x768xf32>
    %c0_3 = arith.constant 0 : index
    %c0_4 = arith.constant 0 : index
    %4 = vector.load %arg2[%c0_3, %c0_4] : memref<1x768xf32, #tpu.memory_space<vmem>>, vector<1x768xf32>
    %5 = vector.broadcast %4 : vector<1x768xf32> to vector<2x768xf32>
    %6 = arith.addf %3, %5 : vector<2x768xf32>
    %7 = arith.truncf %6 : vector<2x768xf32> to vector<2x768xbf16>
    %c0_5 = arith.constant 0 : index
    %c0_6 = arith.constant 0 : index
    %8 = vector.load %arg3[%c0_5, %c0_6] : memref<768x1024xbf16, #tpu.memory_space<vmem>>, vector<768x1024xbf16>
    %cst_7 = arith.constant dense<0.000000e+00> : vector<2x1024xf32>
    %9 = tpu.matmul %7, %8, %cst_7 {dimension_numbers = #tpu.dot_dimension_numbers<[1], [0], [0], [1], [0, 0, 1, 1], [], []>} : vector<2x768xbf16>, vector<768x1024xbf16>, vector<2x1024xf32> -> vector<2x1024xf32>
    %c0_8 = arith.constant 0 : index
    %c0_9 = arith.constant 0 : index
    %10 = vector.load %arg4[%c0_8, %c0_9] : memref<1x1024xf32, #tpu.memory_space<vmem>>, vector<1x1024xf32>
    %11 = vector.broadcast %10 : vector<1x1024xf32> to vector<2x1024xf32>
    %12 = arith.addf %9, %11 : vector<2x1024xf32>
    %cst_10 = arith.constant 0.000000e+00 : f32
    %13 = vector.broadcast %cst_10 : f32 to vector<2x1024xf32>
    %14 = arith.maximumf %12, %13 : vector<2x1024xf32>
    %15 = arith.truncf %14 : vector<2x1024xf32> to vector<2x1024xbf16>
    %c0_11 = arith.constant 0 : index
    %c0_12 = arith.constant 0 : index
    %16 = vector.load %arg5[%c0_11, %c0_12] : memref<1024x1024xbf16, #tpu.memory_space<vmem>>, vector<1024x1024xbf16>
    %cst_13 = arith.constant dense<0.000000e+00> : vector<2x1024xf32>
    %17 = tpu.matmul %15, %16, %cst_13 {dimension_numbers = #tpu.dot_dimension_numbers<[1], [0], [0], [1], [0, 0, 1, 1], [], []>} : vector<2x1024xbf16>, vector<1024x1024xbf16>, vector<2x1024xf32> -> vector<2x1024xf32>
    %c0_14 = arith.constant 0 : index
    %c0_15 = arith.constant 0 : index
    %18 = vector.load %arg6[%c0_14, %c0_15] : memref<1x1024xf32, #tpu.memory_space<vmem>>, vector<1x1024xf32>
    %19 = vector.broadcast %18 : vector<1x1024xf32> to vector<2x1024xf32>
    %20 = arith.addf %17, %19 : vector<2x1024xf32>
    %cst_16 = arith.constant 0.000000e+00 : f32
    %21 = vector.broadcast %cst_16 : f32 to vector<2x1024xf32>
    %22 = arith.maximumf %20, %21 : vector<2x1024xf32>
    %23 = arith.truncf %22 : vector<2x1024xf32> to vector<2x1024xbf16>
    %c0_17 = arith.constant 0 : index
    %c0_18 = arith.constant 0 : index
    %24 = vector.load %arg7[%c0_17, %c0_18] : memref<1024x512xbf16, #tpu.memory_space<vmem>>, vector<1024x512xbf16>
    %cst_19 = arith.constant dense<0.000000e+00> : vector<2x512xf32>
    %25 = tpu.matmul %23, %24, %cst_19 {dimension_numbers = #tpu.dot_dimension_numbers<[1], [0], [0], [1], [0, 0, 1, 1], [], []>} : vector<2x1024xbf16>, vector<1024x512xbf16>, vector<2x512xf32> -> vector<2x512xf32>
    %c0_20 = arith.constant 0 : index
    %c0_21 = arith.constant 0 : index
    %26 = vector.load %arg8[%c0_20, %c0_21] : memref<1x512xf32, #tpu.memory_space<vmem>>, vector<1x512xf32>
    %27 = vector.broadcast %26 : vector<1x512xf32> to vector<2x512xf32>
    %28 = arith.addf %25, %27 : vector<2x512xf32>
    %29 = vector.extract_strided_slice %28 {offsets = [0, 0], sizes = [2, 256], strides = [1, 1]} : vector<2x512xf32> to vector<2x256xf32>
    %30 = vector.extract_strided_slice %28 {offsets = [0, 256], sizes = [2, 256], strides = [1, 1]} : vector<2x512xf32> to vector<2x256xf32>
    %cst_22 = arith.constant 5.000000e+00 : f32
    %31 = vector.broadcast %cst_22 : f32 to vector<2x256xf32>
    %32 = arith.subf %30, %31 : vector<2x256xf32>
    %cst_23 = arith.constant 0.000000e+00 : f32
    %33 = vector.broadcast %cst_23 : f32 to vector<2x256xf32>
    %34 = arith.maximumf %32, %33 : vector<2x256xf32>
    %35 = math.absf %32 : vector<2x256xf32>
    %cst_24 = arith.constant 0.000000e+00 : f32
    %36 = vector.broadcast %cst_24 : f32 to vector<2x256xf32>
    %37 = arith.subf %36, %35 : vector<2x256xf32>
    %38 = math.exp %37 : vector<2x256xf32>
    %39 = math.log1p %38 : vector<2x256xf32>
    %40 = arith.addf %34, %39 : vector<2x256xf32>
    %c0_25 = arith.constant 0 : index
    %c0_26 = arith.constant 0 : index
    %41 = vector.load %arg11[%c0_25, %c0_26] : memref<2x256xf32, #tpu.memory_space<vmem>>, vector<2x256xf32>
    %42 = arith.mulf %41, %40 : vector<2x256xf32>
    %43 = arith.addf %29, %42 : vector<2x256xf32>
    %c0_27 = arith.constant 0 : index
    %c0_28 = arith.constant 0 : index
    %44 = vector.load %arg9[%c0_27, %c0_28] : memref<1x256xf32, #tpu.memory_space<vmem>>, vector<1x256xf32>
    %45 = vector.broadcast %44 : vector<1x256xf32> to vector<2x256xf32>
    %46 = arith.mulf %43, %45 : vector<2x256xf32>
    %cst_29 = arith.constant dense<0.000000e+00> : vector<2xf32>
    %47 = vector.multi_reduction <add>, %46, %cst_29 [1] : vector<2x256xf32> to vector<2xf32>
    %48 = vector.shape_cast %47 : vector<2xf32> to vector<2x1xf32>
    %c0_30 = arith.constant 0 : index
    %c0_31 = arith.constant 0 : index
    %49 = vector.load %arg10[%c0_30, %c0_31] : memref<1x1xf32, #tpu.memory_space<vmem>>, vector<1x1xf32>
    %50 = vector.broadcast %49 : vector<1x1xf32> to vector<2x1xf32>
    %51 = arith.addf %48, %50 : vector<2x1xf32>
    %c0_32 = arith.constant 0 : index
    %c0_33 = arith.constant 0 : index
    %52 = vector.load %arg12[%c0_32, %c0_33] : memref<2x256xf32, #tpu.memory_space<vmem>>, vector<2x256xf32>
    tpu.vector_store %arg12[%c0_32, %c0_33], %29 {strides = array<i32>} : memref<2x256xf32, #tpu.memory_space<vmem>>, vector<2x256xf32>,
    %c0_34 = arith.constant 0 : index
    %c0_35 = arith.constant 0 : index
    %53 = vector.load %arg13[%c0_34, %c0_35] : memref<2x256xf32, #tpu.memory_space<vmem>>, vector<2x256xf32>
    tpu.vector_store %arg13[%c0_34, %c0_35], %40 {strides = array<i32>} : memref<2x256xf32, #tpu.memory_space<vmem>>, vector<2x256xf32>,
    %c0_36 = arith.constant 0 : index
    %c0_37 = arith.constant 0 : index
    %54 = vector.load %arg14[%c0_36, %c0_37] : memref<2x1xf32, #tpu.memory_space<vmem>>, vector<2x1xf32>
    tpu.vector_store %arg14[%c0_36, %c0_37], %51 {strides = array<i32>} : memref<2x1xf32, #tpu.memory_space<vmem>>, vector<2x1xf32>,
    return
  }
}

</mosaic_0001>

<llo_original>
// kernel: tpu_custom_call.1
$region0: #{tpu_custom_call.1}
  #allocation0 [shape = 'u32[]', space=smem, size = 0x4, offset = 0x4, fixed_abs, tag = 'smem constant byte address 0x4 - core index']
  #allocation1 [shape = 'u32[144,128]{1,0:T(1,128)}', space=vmem, size = 0x12000, scoped, tag = 'internal scratch']
  #allocation2 [shape = 'f32[1,1]{1,0:T(1,128)S(1)}', space=vmem, size = 0x200, scoped, tag = 'scoped memory for tpu_custom_call.1']
  %s0 = inlined_call_operand.hbm [shape: f32[2,256], index: 0, kind: input, shape index: {}]
  %s1 = inlined_call_operand.hbm [shape: bf16[256,768], index: 1, kind: input, shape index: {}]
  %s2 = inlined_call_operand.hbm [shape: f32[1,768], index: 2, kind: input, shape index: {}]
  %s3 = inlined_call_operand.hbm [shape: bf16[768,1024], index: 3, kind: input, shape index: {}]
  %s4 = inlined_call_operand.hbm [shape: f32[1,1024], index: 4, kind: input, shape index: {}]
  %s5 = inlined_call_operand.hbm [shape: bf16[1024,1024], index: 5, kind: input, shape index: {}]
  %s6 = inlined_call_operand.hbm [shape: f32[1,1024], index: 6, kind: input, shape index: {}]
  %s7 = inlined_call_operand.hbm [shape: bf16[1024,512], index: 7, kind: input, shape index: {}]
  %s8 = inlined_call_operand.hbm [shape: f32[1,512], index: 8, kind: input, shape index: {}]
  %s9 = inlined_call_operand.hbm [shape: f32[1,256], index: 9, kind: input, shape index: {}]
  %s10 = inlined_call_operand.<no memory space> [shape: f32[1,1], index: 10, kind: input, shape index: {}]
  %s11 = inlined_call_operand.hbm [shape: f32[2,256], index: 11, kind: input, shape index: {}]
  %s12 = inlined_call_operand.hbm [shape: f32[2,256], index: 12, kind: output, shape index: {0}]
  %s13 = inlined_call_operand.hbm [shape: f32[2,256], index: 13, kind: output, shape index: {1}]
  %s14 = inlined_call_operand.vmem [shape: f32[2,1], index: 14, kind: output, shape index: {2}]
  %15 = xla_tuple %s12, %s13, %s14
  %s16 = sld [smem:[#allocation0]]
  $region118: #{tpu_custom_call.1} parent=0
    _
  %s18 = ssub.s32 1, %s16
  %s19 = scalar_select 0, %s18, %s16
  %v20 = vstv %s10
  %21 = vst [vmem:[#allocation2] sm:$0x1] %v20
  $region1: #{tpu_custom_call.1} parent=0
    #allocation3 [shape = 'u8[2048]{0}', space=vmem, size = 0x800, scoped, tag = 'input window, operand 0, single buffered']
    #allocation4 [shape = 's32[1]{0}', space=sflag, size = 0x4, scoped, tag = 'scoped memory for tpu_custom_call.1']
    #allocation5 [shape = 's32[1]{0}', space=sflag, size = 0x4, scoped, tag = 'scoped memory for tpu_custom_call.1']
    #allocation6 [shape = 'u8[393216]{0}', space=vmem, size = 0x60000, scoped, tag = 'input window, operand 1, single buffered']
    #allocation7 [shape = 's32[1]{0}', space=sflag, size = 0x4, scoped, tag = 'scoped memory for tpu_custom_call.1']
    #allocation8 [shape = 'u8[3072]{0}', space=vmem, size = 0xc00, scoped, tag = 'input window, operand 2, single buffered']
    #allocation9 [shape = 'u8[1572864]{0}', space=vmem, size = 0x180000, scoped, tag = 'input window, operand 3, single buffered']
    #allocation10 [shape = 's32[1]{0}', space=sflag, size = 0x4, scoped, tag = 'scoped memory for tpu_custom_call.1']
    #allocation11 [shape = 'u8[4096]{0}', space=vmem, size = 0x1000, scoped, tag = 'input window, operand 4, single buffered']
    #allocation12 [shape = 'u8[2097152]{0}', space=vmem, size = 0x200000, scoped, tag = 'input window, operand 5, single buffered']
    #allocation13 [shape = 's32[1]{0}', space=sflag, size = 0x4, scoped, tag = 'scoped memory for tpu_custom_call.1']
    #allocation14 [shape = 'u8[4096]{0}', space=vmem, size = 0x1000, scoped, tag = 'input window, operand 6, single buffered']
    #allocation15 [shape = 'u8[1048576]{0}', space=vmem, size = 0x100000, scoped, tag = 'input window, operand 7, single buffered']
    #allocation16 [shape = 's32[1]{0}', space=sflag, size = 0x4, scoped, tag = 'scoped memory for tpu_custom_call.1']
    #allocation17 [shape = 'u8[2048]{0}', space=vmem, size = 0x800, scoped, tag = 'input window, operand 8, single buffered']
    #allocation18 [shape = 'u8[1024]{0}', space=vmem, size = 0x400, scoped, tag = 'input window, operand 9, single buffered']
    #allocation19 [shape = 's32[1]{0}', space=sflag, size = 0x4, scoped, tag = 'scoped memory for tpu_custom_call.1']
    #allocation20 [shape = 'u8[2048]{0}', space=vmem, size = 0x800, scoped, tag = 'input window, operand 11, single buffered']
    #allocation21 [shape = 'u8[2048]{0}', space=vmem, size = 0x800, scoped, tag = 'output window, operand 0, single buffered']
    #allocation22 [shape = 'u8[2048]{0}', space=vmem, size = 0x800, scoped, tag = 'output window, operand 1, single buffered']
    #allocation23 [shape = 's32[1]{0}', space=sflag, size = 0x4, scoped, tag = 'scoped memory for tpu_custom_call.1']
    %22 = vsyncpa [#allocation4], 0
    %23 = vsyncpa [#allocation7], 0
    %24 = vsyncpa [#allocation10], 0
    %25 = vsyncpa [#allocation13], 0
    %26 = vsyncpa [#allocation16], 0
    %27 = vsyncpa [#allocation19], 0
    %28 = vsyncpa [#allocation5], 0
    %29 = vsyncpa [#allocation23], 0
    // Predicated region
    $region2: #{tpu_custom_call.1} parent=1 // pred_check
      _
    $region3: #{tpu_custom_call.1} parent=1 // pred_check_branch
      %31 = sbr.rel (0) target = $region5
    $region4: #{tpu_custom_call.1} parent=1 // pred_region
      %s33 = ssub.s32 64, 64
      %34 = vsyncadd [#allocation4], %s33
      %s36 = sshll.u32 [#allocation3], 4
      %s37 = int_to_ptr.vmem [resolvable:$true] %s36
      %39 = dma.hbm_to_vmem [thread:$0]  %s0, 64, %s37, [#allocation4]
    $region5: #{tpu_custom_call.1} parent=1 // pred_fallthru
      _
    // Predicated region
    $region6: #{tpu_custom_call.1} parent=1 // pred_check
      _
    $region7: #{tpu_custom_call.1} parent=1 // pred_check_branch
      %41 = sbr.rel (0) target = $region9
    $region8: #{tpu_custom_call.1} parent=1 // pred_region
      %s43 = ssub.s32 12288, 12288
      %44 = vsyncadd [#allocation7], %s43
      %s45 = sshll.u32 [#allocation6], 4
      %s46 = int_to_ptr.vmem [resolvable:$true] %s45
      %51 = dma.hbm_to_vmem [thread:$0]  %s1, 12288, %s46, [#allocation7], 384, 384, 24
    $region9: #{tpu_custom_call.1} parent=1 // pred_fallthru
      _
    // Predicated region
    $region10: #{tpu_custom_call.1} parent=1 // pred_check
      _
    $region11: #{tpu_custom_call.1} parent=1 // pred_check_branch
      %53 = sbr.rel (0) target = $region13
    $region12: #{tpu_custom_call.1} parent=1 // pred_region
      %s55 = ssub.s32 96, 96
      %56 = vsyncadd [#allocation7], %s55
      %s58 = sshll.u32 [#allocation8], 4
      %s59 = int_to_ptr.vmem [resolvable:$true] %s58
      %61 = dma.hbm_to_vmem [thread:$0]  %s2, 96, %s59, [#allocation7]
    $region13: #{tpu_custom_call.1} parent=1 // pred_fallthru
      _
    // Predicated region
    $region14: #{tpu_custom_call.1} parent=1 // pred_check
      _
    $region15: #{tpu_custom_call.1} parent=1 // pred_check_branch
      %63 = sbr.rel (0) target = $region17
    $region16: #{tpu_custom_call.1} parent=1 // pred_region
      %s65 = ssub.s32 49152, 49152
      %66 = vsyncadd [#allocation10], %s65
      %s67 = sshll.u32 [#allocation9], 4
      %s68 = int_to_ptr.vmem [resolvable:$true] %s67
      %73 = dma.hbm_to_vmem [thread:$0]  %s3, 49152, %s68, [#allocation10], 512, 512, 32
    $region17: #{tpu_custom_call.1} parent=1 // pred_fallthru
      _
    // Predicated region
    $region18: #{tpu_custom_call.1} parent=1 // pred_check
      _
    $region19: #{tpu_custom_call.1} parent=1 // pred_check_branch
      %75 = sbr.rel (0) target = $region21
    $region20: #{tpu_custom_call.1} parent=1 // pred_region
      %s77 = ssub.s32 128, 128
      %78 = vsyncadd [#allocation10], %s77
      %s80 = sshll.u32 [#allocation11], 4
      %s81 = int_to_ptr.vmem [resolvable:$true] %s80
      %83 = dma.hbm_to_vmem [thread:$0]  %s4, 128, %s81, [#allocation10]
    $region21: #{tpu_custom_call.1} parent=1 // pred_fallthru
      _
    // Predicated region
    $region22: #{tpu_custom_call.1} parent=1 // pred_check
      _
    $region23: #{tpu_custom_call.1} parent=1 // pred_check_branch
      %85 = sbr.rel (0) target = $region25
    $region24: #{tpu_custom_call.1} parent=1 // pred_region
      %s87 = ssub.s32 65536, 65536
      %88 = vsyncadd [#allocation13], %s87
      %s89 = sshll.u32 [#allocation12], 4
      %s90 = int_to_ptr.vmem [resolvable:$true] %s89
      %95 = dma.hbm_to_vmem [thread:$0]  %s5, 65536, %s90, [#allocation13], 512, 512, 32
    $region25: #{tpu_custom_call.1} parent=1 // pred_fallthru
      _
    // Predicated region
    $region26: #{tpu_custom_call.1} parent=1 // pred_check
      _
    $region27: #{tpu_custom_call.1} parent=1 // pred_check_branch
      %97 = sbr.rel (0) target = $region29
    $region28: #{tpu_custom_call.1} parent=1 // pred_region
      %s99 = ssub.s32 128, 128
      %100 = vsyncadd [#allocation13], %s99
      %s102 = sshll.u32 [#allocation14], 4
      %s103 = int_to_ptr.vmem [resolvable:$true] %s102
      %105 = dma.hbm_to_vmem [thread:$0]  %s6, 128, %s103, [#allocation13]
    $region29: #{tpu_custom_call.1} parent=1 // pred_fallthru
      _
    // Predicated region
    $region30: #{tpu_custom_call.1} parent=1 // pred_check
      _
    $region31: #{tpu_custom_call.1} parent=1 // pred_check_branch
      %107 = sbr.rel (0) target = $region33
    $region32: #{tpu_custom_call.1} parent=1 // pred_region
      %s109 = ssub.s32 32768, 32768
      %110 = vsyncadd [#allocation16], %s109
      %s111 = sshll.u32 [#allocation15], 4
      %s112 = int_to_ptr.vmem [resolvable:$true] %s111
      %117 = dma.hbm_to_vmem [thread:$0]  %s7, 32768, %s112, [#allocation16], 256, 256, 16
    $region33: #{tpu_custom_call.1} parent=1 // pred_fallthru
      _
    // Predicated region
    $region34: #{tpu_custom_call.1} parent=1 // pred_check
      _
    $region35: #{tpu_custom_call.1} parent=1 // pred_check_branch
      %119 = sbr.rel (0) target = $region37
    $region36: #{tpu_custom_call.1} parent=1 // pred_region
      %s121 = ssub.s32 64, 64
      %122 = vsyncadd [#allocation16], %s121
      %s124 = sshll.u32 [#allocation17], 4
      %s125 = int_to_ptr.vmem [resolvable:$true] %s124
      %127 = dma.hbm_to_vmem [thread:$0]  %s8, 64, %s125, [#allocation16]
    $region37: #{tpu_custom_call.1} parent=1 // pred_fallthru
      _
    // Predicated region
    $region38: #{tpu_custom_call.1} parent=1 // pred_check
      _
    $region39: #{tpu_custom_call.1} parent=1 // pred_check_branch
      %129 = sbr.rel (0) target = $region41
    $region40: #{tpu_custom_call.1} parent=1 // pred_region
      %s131 = ssub.s32 32, 32
      %132 = vsyncadd [#allocation19], %s131
      %s134 = sshll.u32 [#allocation18], 4
      %s135 = int_to_ptr.vmem [resolvable:$true] %s134
      %137 = dma.hbm_to_vmem [thread:$0]  %s9, 32, %s135, [#allocation19]
    $region41: #{tpu_custom_call.1} parent=1 // pred_fallthru
      _
    // Predicated region
    $region42: #{tpu_custom_call.1} parent=1 // pred_check
      _
    $region43: #{tpu_custom_call.1} parent=1 // pred_check_branch
      %139 = sbr.rel (0) target = $region45
    $region44: #{tpu_custom_call.1} parent=1 // pred_region
      _
    $region45: #{tpu_custom_call.1} parent=1 // pred_fallthru
      _
    // Predicated region
    $region46: #{tpu_custom_call.1} parent=1 // pred_check
      _
    $region47: #{tpu_custom_call.1} parent=1 // pred_check_branch
      %141 = sbr.rel (0) target = $region49
    $region48: #{tpu_custom_call.1} parent=1 // pred_region
      %s143 = ssub.s32 64, 64
      %144 = vsyncadd [#allocation19], %s143
      %s146 = sshll.u32 [#allocation20], 4
      %s147 = int_to_ptr.vmem [resolvable:$true] %s146
      %149 = dma.hbm_to_vmem [thread:$0]  %s11, 64, %s147, [#allocation19]
    $region49: #{tpu_custom_call.1} parent=1 // pred_fallthru
      _
    // Predicated region
    $region50: #{tpu_custom_call.1} parent=1 // pred_check
      _
    $region51: #{tpu_custom_call.1} parent=1 // pred_check_branch
      %151 = sbr.rel (0) target = $region53
    $region52: #{tpu_custom_call.1} parent=1 // pred_region
      %152 = dma.done [#allocation4], 64
    $region53: #{tpu_custom_call.1} parent=1 // pred_fallthru
      _
    // Predicated region
    $region54: #{tpu_custom_call.1} parent=1 // pred_check
      _
    $region55: #{tpu_custom_call.1} parent=1 // pred_check_branch
      %154 = sbr.rel (0) target = $region57
    $region56: #{tpu_custom_call.1} parent=1 // pred_region
      %155 = dma.done [#allocation7], 12288
    $region57: #{tpu_custom_call.1} parent=1 // pred_fallthru
      _
    // Predicated region
    $region58: #{tpu_custom_call.1} parent=1 // pred_check
      _
    $region59: #{tpu_custom_call.1} parent=1 // pred_check_branch
      %157 = sbr.rel (0) target = $region61
    $region60: #{tpu_custom_call.1} parent=1 // pred_region
      %158 = dma.done [#allocation7], 96
    $region61: #{tpu_custom_call.1} parent=1 // pred_fallthru
      _
    // Predicated region
    $region62: #{tpu_custom_call.1} parent=1 // pred_check
      _
    $region63: #{tpu_custom_call.1} parent=1 // pred_check_branch
      %160 = sbr.rel (0) target = $region65
    $region64: #{tpu_custom_call.1} parent=1 // pred_region
      %161 = dma.done [#allocation10], 49152
    $region65: #{tpu_custom_call.1} parent=1 // pred_fallthru
      _
    // Predicated region
    $region66: #{tpu_custom_call.1} parent=1 // pred_check
      _
    $region67: #{tpu_custom_call.1} parent=1 // pred_check_branch
      %163 = sbr.rel (0) target = $region69
    $region68: #{tpu_custom_call.1} parent=1 // pred_region
      %164 = dma.done [#allocation10], 128
    $region69: #{tpu_custom_call.1} parent=1 // pred_fallthru
      _
    // Predicated region
    $region70: #{tpu_custom_call.1} parent=1 // pred_check
      _
    $region71: #{tpu_custom_call.1} parent=1 // pred_check_branch
      %166 = sbr.rel (0) target = $region73
    $region72: #{tpu_custom_call.1} parent=1 // pred_region
      %167 = dma.done [#allocation13], 65536
    $region73: #{tpu_custom_call.1} parent=1 // pred_fallthru
      _
    // Predicated region
    $region74: #{tpu_custom_call.1} parent=1 // pred_check
      _
    $region75: #{tpu_custom_call.1} parent=1 // pred_check_branch
      %169 = sbr.rel (0) target = $region77
    $region76: #{tpu_custom_call.1} parent=1 // pred_region
      %170 = dma.done [#allocation13], 128
    $region77: #{tpu_custom_call.1} parent=1 // pred_fallthru
      _
    // Predicated region
    $region78: #{tpu_custom_call.1} parent=1 // pred_check
      _
    $region79: #{tpu_custom_call.1} parent=1 // pred_check_branch
      %172 = sbr.rel (0) target = $region81
    $region80: #{tpu_custom_call.1} parent=1 // pred_region
      %173 = dma.done [#allocation16], 32768
    $region81: #{tpu_custom_call.1} parent=1 // pred_fallthru
      _
    // Predicated region
    $region82: #{tpu_custom_call.1} parent=1 // pred_check
      _
    $region83: #{tpu_custom_call.1} parent=1 // pred_check_branch
      %175 = sbr.rel (0) target = $region85
    $region84: #{tpu_custom_call.1} parent=1 // pred_region
      %176 = dma.done [#allocation16], 64
    $region85: #{tpu_custom_call.1} parent=1 // pred_fallthru
      _
    // Predicated region
    $region86: #{tpu_custom_call.1} parent=1 // pred_check
      _
    $region87: #{tpu_custom_call.1} parent=1 // pred_check_branch
      %178 = sbr.rel (0) target = $region89
    $region88: #{tpu_custom_call.1} parent=1 // pred_region
      %179 = dma.done [#allocation19], 32
    $region89: #{tpu_custom_call.1} parent=1 // pred_fallthru
      _
    // Predicated region
    $region90: #{tpu_custom_call.1} parent=1 // pred_check
      _
    $region91: #{tpu_custom_call.1} parent=1 // pred_check_branch
      %181 = sbr.rel (0) target = $region93
    $region92: #{tpu_custom_call.1} parent=1 // pred_region
      %182 = dma.done [#allocation19], 64
    $region93: #{tpu_custom_call.1} parent=1 // pred_fallthru
      _
    %v183 = vld [vmem:[#allocation3] sm:$0xf]
    %v186 = vunpack.c.l.s4 1983009808
    %v187 = vunpack.c.0.s8 %v186
    %v188 = vlaneseq
    %v189 = vshrl.u32 %v188, 7
    %v190 = vsub.s32 %v187, %v189
    %v191 = vrot.slane %v183, %v190
    %v192 = vcombine.high %v191, %v191
    %v195 = vpack.c.bf16 %v191, %v191
    %v196 = vpack.c.bf16 %v192, %v192
    %v197 = vld [vmem:[#allocation6] sm:$0xff]
    %v198 = vld [vmem:[#allocation6 + $0x8] sm:$0xff]
    %v199 = vld [vmem:[#allocation6 + $0x10] sm:$0xff]
    %v200 = vld [vmem:[#allocation6 + $0x18] sm:$0xff]
    %v201 = vld [vmem:[#allocation6 + $0x20] sm:$0xff]
    %v202 = vld [vmem:[#allocation6 + $0x28] sm:$0xff]
    %v203 = vld [vmem:[#allocation6 + $0x30] sm:$0xff]
    %v204 = vld [vmem:[#allocation6 + $0x38] sm:$0xff]
    %v205 = vld [vmem:[#allocation6 + $0x40] sm:$0xff]
    %v206 = vld [vmem:[#allocation6 + $0x48] sm:$0xff]
    %v207 = vld [vmem:[#allocation6 + $0x50] sm:$0xff]
    %v208 = vld [vmem:[#allocation6 + $0x58] sm:$0xff]
    %v209 = vld [vmem:[#allocation6 + $0x60] sm:$0xff]
    %v210 = vld [vmem:[#allocation6 + $0x68] sm:$0xff]
    %v211 = vld [vmem:[#allocation6 + $0x70] sm:$0xff]
    %v212 = vld [vmem:[#allocation6 + $0x78] sm:$0xff]
    %v213 = vld [vmem:[#allocation6 + $0x80] sm:$0xff]
    %v214 = vld [vmem:[#allocation6 + $0x88] sm:$0xff]
    %v215 = vld [vmem:[#allocation6 + $0x90] sm:$0xff]
    %v216 = vld [vmem:[#allocation6 + $0x98] sm:$0xff]
    %v217 = vld [vmem:[#allocation6 + $0xa0] sm:$0xff]
    %v218 = vld [vmem:[#allocation6 + $0xa8] sm:$0xff]
    %v219 = vld [vmem:[#allocation6 + $0xb0] sm:$0xff]
    %v220 = vld [vmem:[#allocation6 + $0xb8] sm:$0xff]
    %v221 = vld [vmem:[#allocation6 + $0xc0] sm:$0xff]
    %v222 = vld [vmem:[#allocation6 + $0xc8] sm:$0xff]
    %v223 = vld [vmem:[#allocation6 + $0xd0] sm:$0xff]
    %v224 = vld [vmem:[#allocation6 + $0xd8] sm:$0xff]
    %v225 = vld [vmem:[#allocation6 + $0xe0] sm:$0xff]
    %v226 = vld [vmem:[#allocation6 + $0xe8] sm:$0xff]
    %v227 = vld [vmem:[#allocation6 + $0xf0] sm:$0xff]
    %v228 = vld [vmem:[#allocation6 + $0xf8] sm:$0xff]
    %v229 = vld [vmem:[#allocation6 + $0x100] sm:$0xff]
    %v230 = vld [vmem:[#allocation6 + $0x108] sm:$0xff]
    %v231 = vld [vmem:[#allocation6 + $0x110] sm:$0xff]
    %v232 = vld [vmem:[#allocation6 + $0x118] sm:$0xff]
    %v233 = vld [vmem:[#allocation6 + $0x120] sm:$0xff]
    %v234 = vld [vmem:[#allocation6 + $0x128] sm:$0xff]
    %v235 = vld [vmem:[#allocation6 + $0x130] sm:$0xff]
    %v236 = vld [vmem:[#allocation6 + $0x138] sm:$0xff]
    %v237 = vld [vmem:[#allocation6 + $0x140] sm:$0xff]
    %v238 = vld [vmem:[#allocation6 + $0x148] sm:$0xff]
    %v239 = vld [vmem:[#allocation6 + $0x150] sm:$0xff]
    %v240 = vld [vmem:[#allocation6 + $0x158] sm:$0xff]
    %v241 = vld [vmem:[#allocation6 + $0x160] sm:$0xff]
    %v242 = vld [vmem:[#allocation6 + $0x168] sm:$0xff]
    %v243 = vld [vmem:[#allocation6 + $0x170] sm:$0xff]
    %v244 = vld [vmem:[#allocation6 + $0x178] sm:$0xff]
    %v245 = vld [vmem:[#allocation6 + $0x180] sm:$0xff]
    %v246 = vld [vmem:[#allocation6 + $0x188] sm:$0xff]
    %v247 = vld [vmem:[#allocation6 + $0x190] sm:$0xff]
    %v248 = vld [vmem:[#allocation6 + $0x198] sm:$0xff]
    %v249 = vld [vmem:[#allocation6 + $0x1a0] sm:$0xff]
    %v250 = vld [vmem:[#allocation6 + $0x1a8] sm:$0xff]
    %v251 = vld [vmem:[#allocation6 + $0x1b0] sm:$0xff]
    %v252 = vld [vmem:[#allocation6 + $0x1b8] sm:$0xff]
    %v253 = vld [vmem:[#allocation6 + $0x1c0] sm:$0xff]
    %v254 = vld [vmem:[#allocation6 + $0x1c8] sm:$0xff]
    %v255 = vld [vmem:[#allocation6 + $0x1d0] sm:$0xff]
    %v256 = vld [vmem:[#allocation6 + $0x1d8] sm:$0xff]
    %v257 = vld [vmem:[#allocation6 + $0x1e0] sm:$0xff]
    %v258 = vld [vmem:[#allocation6 + $0x1e8] sm:$0xff]
    %v259 = vld [vmem:[#allocation6 + $0x1f0] sm:$0xff]
    %v260 = vld [vmem:[#allocation6 + $0x1f8] sm:$0xff]
    %v261 = vld [vmem:[#allocation6 + $0x200] sm:$0xff]
    %v262 = vld [vmem:[#allocation6 + $0x208] sm:$0xff]
    %v263 = vld [vmem:[#allocation6 + $0x210] sm:$0xff]
    %v264 = vld [vmem:[#allocation6 + $0x218] sm:$0xff]
    %v265 = vld [vmem:[#allocation6 + $0x220] sm:$0xff]
    %v266 = vld [vmem:[#allocation6 + $0x228] sm:$0xff]
    %v267 = vld [vmem:[#allocation6 + $0x230] sm:$0xff]
    %v268 = vld [vmem:[#allocation6 + $0x238] sm:$0xff]
    %v269 = vld [vmem:[#allocation6 + $0x240] sm:$0xff]
    %v270 = vld [vmem:[#allocation6 + $0x248] sm:$0xff]
    %v271 = vld [vmem:[#allocation6 + $0x250] sm:$0xff]
    %v272 = vld [vmem:[#allocation6 + $0x258] sm:$0xff]
    %v273 = vld [vmem:[#allocation6 + $0x260] sm:$0xff]
    %v274 = vld [vmem:[#allocation6 + $0x268] sm:$0xff]
    %v275 = vld [vmem:[#allocation6 + $0x270] sm:$0xff]
    %v276 = vld [vmem:[#allocation6 + $0x278] sm:$0xff]
    %v277 = vld [vmem:[#allocation6 + $0x280] sm:$0xff]
    %v278 = vld [vmem:[#allocation6 + $0x288] sm:$0xff]
    %v279 = vld [vmem:[#allocation6 + $0x290] sm:$0xff]
    %v280 = vld [vmem:[#allocation6 + $0x298] sm:$0xff]
    %v281 = vld [vmem:[#allocation6 + $0x2a0] sm:$0xff]
    %v282 = vld [vmem:[#allocation6 + $0x2a8] sm:$0xff]
    %v283 = vld [vmem:[#allocation6 + $0x2b0] sm:$0xff]
    %v284 = vld [vmem:[#allocation6 + $0x2b8] sm:$0xff]
    %v285 = vld [vmem:[#allocation6 + $0x2c0] sm:$0xff]
    %v286 = vld [vmem:[#allocation6 + $0x2c8] sm:$0xff]
    %v287 = vld [vmem:[#allocation6 + $0x2d0] sm:$0xff]
    %v288 = vld [vmem:[#allocation6 + $0x2d8] sm:$0xff]
    %v289 = vld [vmem:[#allocation6 + $0x2e0] sm:$0xff]
    %v290 = vld [vmem:[#allocation6 + $0x2e8] sm:$0xff]
    %v291 = vld [vmem:[#allocation6 + $0x2f0] sm:$0xff]
    %v292 = vld [vmem:[#allocation6 + $0x2f8] sm:$0xff]
    %v293 = vld [vmem:[#allocation8] sm:$0x3f]
    %v295 = vlaneseq
    %v296 = vshrl.u32 %v295, 7
    %v297 = vsub.s32 0, %v296
    %v298 = vrot.slane %v293, %v297
    %v299 = vlaneseq
    %v300 = vshrl.u32 %v299, 7
    %v301 = vsub.s32 1, %v300
    %v302 = vrot.slane %v293, %v301
    %v303 = vlaneseq
    %v304 = vshrl.u32 %v303, 7
    %v305 = vsub.s32 2, %v304
    %v306 = vrot.slane %v293, %v305
    %v307 = vlaneseq
    %v308 = vshrl.u32 %v307, 7
    %v309 = vsub.s32 3, %v308
    %v310 = vrot.slane %v293, %v309
    %v311 = vlaneseq
    %v312 = vshrl.u32 %v311, 7
    %v313 = vsub.s32 4, %v312
    %v314 = vrot.slane %v293, %v313
    %v315 = vlaneseq
    %v316 = vshrl.u32 %v315, 7
    %v317 = vsub.s32 5, %v316
    %v318 = vrot.slane %v293, %v317
    %v421 = vunpack.c.l.b16 %v197
    %v422 = vunpack.c.h.b16 %v197
    %v423 = vunpack.c.l.b16 %v198
    %v424 = vunpack.c.h.b16 %v198
    %v425 = vunpack.c.l.b16 %v199
    %v426 = vunpack.c.h.b16 %v199
    %v427 = vunpack.c.l.b16 %v200
    %v428 = vunpack.c.h.b16 %v200
    %v429 = vunpack.c.l.b16 %v201
    %v430 = vunpack.c.h.b16 %v201
    %v431 = vunpack.c.l.b16 %v202
    %v432 = vunpack.c.h.b16 %v202
    %v433 = vunpack.c.l.b16 %v203
    %v434 = vunpack.c.h.b16 %v203
    %v435 = vunpack.c.l.b16 %v204
    %v436 = vunpack.c.h.b16 %v204
    %v437 = vunpack.c.l.b16 %v205
    %v438 = vunpack.c.h.b16 %v205
    %v439 = vunpack.c.l.b16 %v206
    %v440 = vunpack.c.h.b16 %v206
    %v441 = vunpack.c.l.b16 %v207
    %v442 = vunpack.c.h.b16 %v207
    %v443 = vunpack.c.l.b16 %v208
    %v444 = vunpack.c.h.b16 %v208
    %v445 = vunpack.c.l.b16 %v209
    %v446 = vunpack.c.h.b16 %v209
    %v447 = vunpack.c.l.b16 %v210
    %v448 = vunpack.c.h.b16 %v210
    %v449 = vunpack.c.l.b16 %v211
    %v450 = vunpack.c.h.b16 %v211
    %v451 = vunpack.c.l.b16 %v212
    %v452 = vunpack.c.h.b16 %v212
    %v453 = vunpack.c.l.b16 %v213
    %v454 = vunpack.c.h.b16 %v213
    %v455 = vunpack.c.l.b16 %v214
    %v456 = vunpack.c.h.b16 %v214
    %v457 = vunpack.c.l.b16 %v215
    %v458 = vunpack.c.h.b16 %v215
    %v459 = vunpack.c.l.b16 %v216
    %v460 = vunpack.c.h.b16 %v216
    %v461 = vunpack.c.l.b16 %v217
    %v462 = vunpack.c.h.b16 %v217
    %v463 = vunpack.c.l.b16 %v218
    %v464 = vunpack.c.h.b16 %v218
    %v465 = vunpack.c.l.b16 %v219
    %v466 = vunpack.c.h.b16 %v219
    %v467 = vunpack.c.l.b16 %v220
    %v468 = vunpack.c.h.b16 %v220
    %v469 = vunpack.c.l.b16 %v221
    %v470 = vunpack.c.h.b16 %v221
    %v471 = vunpack.c.l.b16 %v222
    %v472 = vunpack.c.h.b16 %v222
    %v473 = vunpack.c.l.b16 %v223
    %v474 = vunpack.c.h.b16 %v223
    %v475 = vunpack.c.l.b16 %v224
    %v476 = vunpack.c.h.b16 %v224
    %v477 = vunpack.c.l.b16 %v225
    %v478 = vunpack.c.h.b16 %v225
    %v479 = vunpack.c.l.b16 %v226
    %v480 = vunpack.c.h.b16 %v226
    %v481 = vunpack.c.l.b16 %v227
    %v482 = vunpack.c.h.b16 %v227
    %v483 = vunpack.c.l.b16 %v228
    %v484 = vunpack.c.h.b16 %v228
    %v485 = vunpack.c.l.b16 %v229
    %v486 = vunpack.c.h.b16 %v229
    %v487 = vunpack.c.l.b16 %v230
    %v488 = vunpack.c.h.b16 %v230
    %v489 = vunpack.c.l.b16 %v231
    %v490 = vunpack.c.h.b16 %v231
    %v491 = vunpack.c.l.b16 %v232
    %v492 = vunpack.c.h.b16 %v232
    %v493 = vunpack.c.l.b16 %v233
    %v494 = vunpack.c.h.b16 %v233
    %v495 = vunpack.c.l.b16 %v234
    %v496 = vunpack.c.h.b16 %v234
    %v497 = vunpack.c.l.b16 %v235
    %v498 = vunpack.c.h.b16 %v235
    %v499 = vunpack.c.l.b16 %v236
    %v500 = vunpack.c.h.b16 %v236
    %v501 = vunpack.c.l.b16 %v237
    %v502 = vunpack.c.h.b16 %v237
    %v503 = vunpack.c.l.b16 %v238
    %v504 = vunpack.c.h.b16 %v238
    %v505 = vunpack.c.l.b16 %v239
    %v506 = vunpack.c.h.b16 %v239
    %v507 = vunpack.c.l.b16 %v240
    %v508 = vunpack.c.h.b16 %v240
    %v509 = vunpack.c.l.b16 %v241
    %v510 = vunpack.c.h.b16 %v241
    %v511 = vunpack.c.l.b16 %v242
    %v512 = vunpack.c.h.b16 %v242
    %v513 = vunpack.c.l.b16 %v243
    %v514 = vunpack.c.h.b16 %v243
    %v515 = vunpack.c.l.b16 %v244
    %v516 = vunpack.c.h.b16 %v244
    %v517 = vunpack.c.l.b16 %v245
    %v518 = vunpack.c.h.b16 %v245
    %v519 = vunpack.c.l.b16 %v246
    %v520 = vunpack.c.h.b16 %v246
    %v521 = vunpack.c.l.b16 %v247
    %v522 = vunpack.c.h.b16 %v247
    %v523 = vunpack.c.l.b16 %v248
    %v524 = vunpack.c.h.b16 %v248
    %v525 = vunpack.c.l.b16 %v249
    %v526 = vunpack.c.h.b16 %v249
    %v527 = vunpack.c.l.b16 %v250
    %v528 = vunpack.c.h.b16 %v250
    %v529 = vunpack.c.l.b16 %v251
    %v530 = vunpack.c.h.b16 %v251
    %v531 = vunpack.c.l.b16 %v252
    %v532 = vunpack.c.h.b16 %v252
    %v533 = vunpack.c.l.b16 %v253
    %v534 = vunpack.c.h.b16 %v253
    %v535 = vunpack.c.l.b16 %v254
    %v536 = vunpack.c.h.b16 %v254
    %v537 = vunpack.c.l.b16 %v255
    %v538 = vunpack.c.h.b16 %v255
    %v539 = vunpack.c.l.b16 %v256
    %v540 = vunpack.c.h.b16 %v256
    %v541 = vunpack.c.l.b16 %v257
    %v542 = vunpack.c.h.b16 %v257
    %v543 = vunpack.c.l.b16 %v258
    %v544 = vunpack.c.h.b16 %v258
    %v545 = vunpack.c.l.b16 %v259
    %v546 = vunpack.c.h.b16 %v259
    %v547 = vunpack.c.l.b16 %v260
    %v548 = vunpack.c.h.b16 %v260
    %v549 = vunpack.c.l.b16 %v261
    %v550 = vunpack.c.h.b16 %v261
    %v551 = vunpack.c.l.b16 %v262
    %v552 = vunpack.c.h.b16 %v262
    %v553 = vunpack.c.l.b16 %v263
    %v554 = vunpack.c.h.b16 %v263
    %v555 = vunpack.c.l.b16 %v264
    %v556 = vunpack.c.h.b16 %v264
    %v557 = vunpack.c.l.b16 %v265
    %v558 = vunpack.c.h.b16 %v265
    %v559 = vunpack.c.l.b16 %v266
    %v560 = vunpack.c.h.b16 %v266
    %v561 = vunpack.c.l.b16 %v267
    %v562 = vunpack.c.h.b16 %v267
    %v563 = vunpack.c.l.b16 %v268
    %v564 = vunpack.c.h.b16 %v268
    %v565 = vunpack.c.l.b16 %v269
    %v566 = vunpack.c.h.b16 %v269
    %v567 = vunpack.c.l.b16 %v270
    %v568 = vunpack.c.h.b16 %v270
    %v569 = vunpack.c.l.b16 %v271
    %v570 = vunpack.c.h.b16 %v271
    %v571 = vunpack.c.l.b16 %v272
    %v572 = vunpack.c.h.b16 %v272
    %v573 = vunpack.c.l.b16 %v273
    %v574 = vunpack.c.h.b16 %v273
    %v575 = vunpack.c.l.b16 %v274
    %v576 = vunpack.c.h.b16 %v274
    %v577 = vunpack.c.l.b16 %v275
    %v578 = vunpack.c.h.b16 %v275
    %v579 = vunpack.c.l.b16 %v276
    %v580 = vunpack.c.h.b16 %v276
    %v581 = vunpack.c.l.b16 %v277
    %v582 = vunpack.c.h.b16 %v277
    %v583 = vunpack.c.l.b16 %v278
    %v584 = vunpack.c.h.b16 %v278
    %v585 = vunpack.c.l.b16 %v279
    %v586 = vunpack.c.h.b16 %v279
    %v587 = vunpack.c.l.b16 %v280
    %v588 = vunpack.c.h.b16 %v280
    %v589 = vunpack.c.l.b16 %v281
    %v590 = vunpack.c.h.b16 %v281
    %v591 = vunpack.c.l.b16 %v282
    %v592 = vunpack.c.h.b16 %v282
    %v593 = vunpack.c.l.b16 %v283
    %v594 = vunpack.c.h.b16 %v283
    %v595 = vunpack.c.l.b16 %v284
    %v596 = vunpack.c.h.b16 %v284
    %v597 = vunpack.c.l.b16 %v285
    %v598 = vunpack.c.h.b16 %v285
    %v599 = vunpack.c.l.b16 %v286
    %v600 = vunpack.c.h.b16 %v286
    %v601 = vunpack.c.l.b16 %v287
    %v602 = vunpack.c.h.b16 %v287
    %v603 = vunpack.c.l.b16 %v288
    %v604 = vunpack.c.h.b16 %v288
    %v605 = vunpack.c.l.b16 %v289
    %v606 = vunpack.c.h.b16 %v289
    %v607 = vunpack.c.l.b16 %v290
    %v608 = vunpack.c.h.b16 %v290
    %v609 = vunpack.c.l.b16 %v291
    %v610 = vunpack.c.h.b16 %v291
    %v611 = vunpack.c.l.b16 %v292
    %v612 = vunpack.c.h.b16 %v292
    %v613 = vpack.c.b16 %v427, %v421
    %v614 = vpack.c.b16 %v428, %v422
    %v615 = vpack.c.b16 %v429, %v423
    %v616 = vpack.c.b16 %v430, %v424
    %v617 = vpack.c.b16 %v431, %v425
    %v618 = vpack.c.b16 %v432, %v426
    %v619 = vpack.c.b16 %v439, %v433
    %v620 = vpack.c.b16 %v440, %v434
    %v621 = vpack.c.b16 %v441, %v435
    %v622 = vpack.c.b16 %v442, %v436
    %v623 = vpack.c.b16 %v443, %v437
    %v624 = vpack.c.b16 %v444, %v438
    %v625 = vpack.c.b16 %v451, %v445
    %v626 = vpack.c.b16 %v452, %v446
    %v627 = vpack.c.b16 %v453, %v447
    %v628 = vpack.c.b16 %v454, %v448
    %v629 = vpack.c.b16 %v455, %v449
    %v630 = vpack.c.b16 %v456, %v450
    %v631 = vpack.c.b16 %v463, %v457
    %v632 = vpack.c.b16 %v464, %v458
    %v633 = vpack.c.b16 %v465, %v459
    %v634 = vpack.c.b16 %v466, %v460
    %v635 = vpack.c.b16 %v467, %v461
    %v636 = vpack.c.b16 %v468, %v462
    %v637 = vpack.c.b16 %v475, %v469
    %v638 = vpack.c.b16 %v476, %v470
    %v639 = vpack.c.b16 %v477, %v471
    %v640 = vpack.c.b16 %v478, %v472
    %v641 = vpack.c.b16 %v479, %v473
    %v642 = vpack.c.b16 %v480, %v474
    %v643 = vpack.c.b16 %v487, %v481
    %v644 = vpack.c.b16 %v488, %v482
    %v645 = vpack.c.b16 %v489, %v483
    %v646 = vpack.c.b16 %v490, %v484
    %v647 = vpack.c.b16 %v491, %v485
    %v648 = vpack.c.b16 %v492, %v486
    %v649 = vpack.c.b16 %v499, %v493
    %v650 = vpack.c.b16 %v500, %v494
    %v651 = vpack.c.b16 %v501, %v495
    %v652 = vpack.c.b16 %v502, %v496
    %v653 = vpack.c.b16 %v503, %v497
    %v654 = vpack.c.b16 %v504, %v498
    %v655 = vpack.c.b16 %v511, %v505
    %v656 = vpack.c.b16 %v512, %v506
    %v657 = vpack.c.b16 %v513, %v507
    %v658 = vpack.c.b16 %v514, %v508
    %v659 = vpack.c.b16 %v515, %v509
    %v660 = vpack.c.b16 %v516, %v510
    %v661 = vpack.c.b16 %v523, %v517
    %v662 = vpack.c.b16 %v524, %v518
    %v663 = vpack.c.b16 %v525, %v519
    %v664 = vpack.c.b16 %v526, %v520
    %v665 = vpack.c.b16 %v527, %v521
    %v666 = vpack.c.b16 %v528, %v522
    %v667 = vpack.c.b16 %v535, %v529
    %v668 = vpack.c.b16 %v536, %v530
    %v669 = vpack.c.b16 %v537, %v531
    %v670 = vpack.c.b16 %v538, %v532
    %v671 = vpack.c.b16 %v539, %v533
    %v672 = vpack.c.b16 %v540, %v534
    %v673 = vpack.c.b16 %v547, %v541
    %v674 = vpack.c.b16 %v548, %v542
    %v675 = vpack.c.b16 %v549, %v543
    %v676 = vpack.c.b16 %v550, %v544
    %v677 = vpack.c.b16 %v551, %v545
    %v678 = vpack.c.b16 %v552, %v546
    %v679 = vpack.c.b16 %v559, %v553
    %v680 = vpack.c.b16 %v560, %v554
    %v681 = vpack.c.b16 %v561, %v555
    %v682 = vpack.c.b16 %v562, %v556
    %v683 = vpack.c.b16 %v563, %v557
    %v684 = vpack.c.b16 %v564, %v558
    %v685 = vpack.c.b16 %v571, %v565
    %v686 = vpack.c.b16 %v572, %v566
    %v687 = vpack.c.b16 %v573, %v567
    %v688 = vpack.c.b16 %v574, %v568
    %v689 = vpack.c.b16 %v575, %v569
    %v690 = vpack.c.b16 %v576, %v570
    %v691 = vpack.c.b16 %v583, %v577
    %v692 = vpack.c.b16 %v584, %v578
    %v693 = vpack.c.b16 %v585, %v579
    %v694 = vpack.c.b16 %v586, %v580
    %v695 = vpack.c.b16 %v587, %v581
    %v696 = vpack.c.b16 %v588, %v582
    %v697 = vpack.c.b16 %v595, %v589
    %v698 = vpack.c.b16 %v596, %v590
    %v699 = vpack.c.b16 %v597, %v591
    %v700 = vpack.c.b16 %v598, %v592
    %v701 = vpack.c.b16 %v599, %v593
    %v702 = vpack.c.b16 %v600, %v594
    %v703 = vpack.c.b16 %v607, %v601
    %v704 = vpack.c.b16 %v608, %v602
    %v705 = vpack.c.b16 %v609, %v603
    %v706 = vpack.c.b16 %v610, %v604
    %v707 = vpack.c.b16 %v611, %v605
    %v708 = vpack.c.b16 %v612, %v606
    %805 = vmatprep.subr.bf16.mxu0 %v656
    %806 = vmatpush1.bf16.msra.mxu0 %v655
    %807 = vmatprep.subr.bf16.mxu0 %v650
    %808 = vmatpush1.bf16.msra.mxu0 %v649
    %809 = vmatprep.subr.bf16.mxu0 %v644
    %810 = vmatpush1.bf16.msra.mxu0 %v643
    %811 = vmatprep.subr.bf16.mxu0 %v638
    %812 = vmatpush1.bf16.msra.mxu0 %v637
    %813 = vmatprep.subr.bf16.mxu0 %v632
    %814 = vmatpush1.bf16.msra.mxu0 %v631
    %815 = vmatprep.subr.bf16.mxu0 %v626
    %816 = vmatpush1.bf16.msra.mxu0 %v625
    %817 = vmatprep.subr.bf16.mxu0 %v620
    %818 = vmatpush1.bf16.msra.mxu0 %v619
    %819 = vmatprep.subr.bf16.mxu0 %v614
    %820 = vmatpush1.bf16.msra.mxu0 %v613
    %821 = vmatprep.subr.bf16.mxu0 %v704
    %822 = vmatpush2.bf16.msra.mxu0 %v703
    %823 = vmatprep.subr.bf16.mxu0 %v698
    %824 = vmatpush2.bf16.msra.mxu0 %v697
    %825 = vmatprep.subr.bf16.mxu0 %v692
    %826 = vmatpush2.bf16.msra.mxu0 %v691
    %827 = vmatprep.subr.bf16.mxu0 %v686
    %828 = vmatpush2.bf16.msra.mxu0 %v685
    %829 = vmatprep.subr.bf16.mxu0 %v680
    %830 = vmatpush2.bf16.msra.mxu0 %v679
    %831 = vmatprep.subr.bf16.mxu0 %v674
    %832 = vmatpush2.bf16.msra.mxu0 %v673
    %833 = vmatprep.subr.bf16.mxu0 %v668
    %834 = vmatpush2.bf16.msra.mxu0 %v667
    %835 = vmatprep.subr.bf16.mxu0 %v662
    %836 = vmatpush2.bf16.msra.mxu0 %v661
    %837 = vmatprep.mubr.bf16.mxu0 %v196
    %838 = vmatmul.mubr.bf16.gmra.mxu0 %v195
    %v839 = vpop.f32.mrf.mxu0
    %v840 = vadd.f32 %v298, %v839
    %v841 = vpop.f32.mrf.mxu0
    %v842 = vadd.f32 %v302, %v841
    %v843 = vpop.f32.mrf.mxu0
    %v844 = vpop.f32.mrf.mxu0
    %845 = vdwg.mxu0
    %846 = vmatprep.subr.bf16.mxu0 %v658
    %847 = vmatpush1.bf16.msra.mxu0 %v657
    %848 = vmatprep.subr.bf16.mxu0 %v652
    %849 = vmatpush1.bf16.msra.mxu0 %v651
    %850 = vmatprep.subr.bf16.mxu0 %v646
    %851 = vmatpush1.bf16.msra.mxu0 %v645
    %852 = vmatprep.subr.bf16.mxu0 %v640
    %853 = vmatpush1.bf16.msra.mxu0 %v639
    %854 = vmatprep.subr.bf16.mxu0 %v634
    %855 = vmatpush1.bf16.msra.mxu0 %v633
    %856 = vmatprep.subr.bf16.mxu0 %v628
    %857 = vmatpush1.bf16.msra.mxu0 %v627
    %858 = vmatprep.subr.bf16.mxu0 %v622
    %859 = vmatpush1.bf16.msra.mxu0 %v621
    %860 = vmatprep.subr.bf16.mxu0 %v616
    %861 = vmatpush1.bf16.msra.mxu0 %v615
    %862 = vmatprep.subr.bf16.mxu0 %v706
    %863 = vmatpush2.bf16.msra.mxu0 %v705
    %864 = vmatprep.subr.bf16.mxu0 %v700
    %865 = vmatpush2.bf16.msra.mxu0 %v699
    %866 = vmatprep.subr.bf16.mxu0 %v694
    %867 = vmatpush2.bf16.msra.mxu0 %v693
    %868 = vmatprep.subr.bf16.mxu0 %v688
    %869 = vmatpush2.bf16.msra.mxu0 %v687
    %870 = vmatprep.subr.bf16.mxu0 %v682
    %871 = vmatpush2.bf16.msra.mxu0 %v681
    %872 = vmatprep.subr.bf16.mxu0 %v676
    %873 = vmatpush2.bf16.msra.mxu0 %v675
    %874 = vmatprep.subr.bf16.mxu0 %v670
    %875 = vmatpush2.bf16.msra.mxu0 %v669
    %876 = vmatprep.subr.bf16.mxu0 %v664
    %877 = vmatpush2.bf16.msra.mxu0 %v663
    %878 = vmatprep.mubr.bf16.mxu0 %v196
    %879 = vmatmul.mubr.bf16.gmra.mxu0 %v195
    %v880 = vpop.f32.mrf.mxu0
    %v881 = vadd.f32 %v306, %v880
    %v882 = vpop.f32.mrf.mxu0
    %v883 = vadd.f32 %v310, %v882
    %v884 = vpop.f32.mrf.mxu0
    %v885 = vpop.f32.mrf.mxu0
    %886 = vdwg.mxu0
    %887 = vmatprep.subr.bf16.mxu0 %v660
    %888 = vmatpush1.bf16.msra.mxu0 %v659
    %889 = vmatprep.subr.bf16.mxu0 %v654
    %890 = vmatpush1.bf16.msra.mxu0 %v653
    %891 = vmatprep.subr.bf16.mxu0 %v648
    %892 = vmatpush1.bf16.msra.mxu0 %v647
    %893 = vmatprep.subr.bf16.mxu0 %v642
    %894 = vmatpush1.bf16.msra.mxu0 %v641
    %895 = vmatprep.subr.bf16.mxu0 %v636
    %896 = vmatpush1.bf16.msra.mxu0 %v635
    %897 = vmatprep.subr.bf16.mxu0 %v630
    %898 = vmatpush1.bf16.msra.mxu0 %v629
    %899 = vmatprep.subr.bf16.mxu0 %v624
    %900 = vmatpush1.bf16.msra.mxu0 %v623
    %901 = vmatprep.subr.bf16.mxu0 %v618
    %902 = vmatpush1.bf16.msra.mxu0 %v617
    %903 = vmatprep.subr.bf16.mxu0 %v708
    %904 = vmatpush2.bf16.msra.mxu0 %v707
    %905 = vmatprep.subr.bf16.mxu0 %v702
    %906 = vmatpush2.bf16.msra.mxu0 %v701
    %907 = vmatprep.subr.bf16.mxu0 %v696
    %908 = vmatpush2.bf16.msra.mxu0 %v695
    %909 = vmatprep.subr.bf16.mxu0 %v690
    %910 = vmatpush2.bf16.msra.mxu0 %v689
    %911 = vmatprep.subr.bf16.mxu0 %v684
    %912 = vmatpush2.bf16.msra.mxu0 %v683
    %913 = vmatprep.subr.bf16.mxu0 %v678
    %914 = vmatpush2.bf16.msra.mxu0 %v677
    %915 = vmatprep.subr.bf16.mxu0 %v672
    %916 = vmatpush2.bf16.msra.mxu0 %v671
    %917 = vmatprep.subr.bf16.mxu0 %v666
    %918 = vmatpush2.bf16.msra.mxu0 %v665
    %919 = vmatprep.mubr.bf16.mxu0 %v196
    %920 = vmatmul.mubr.bf16.gmra.mxu0 %v195
    %v921 = vpop.f32.mrf.mxu0
    %v922 = vadd.f32 %v314, %v921
    %v923 = vpop.f32.mrf.mxu0
    %v924 = vadd.f32 %v318, %v923
    %v925 = vpop.f32.mrf.mxu0
    %v926 = vpop.f32.mrf.mxu0
    %927 = vdwg.mxu0
    %v928 = vpack.c.bf16 %v840, %v840
    %v929 = vpack.c.bf16 %v842, %v842
    %v930 = vpack.c.bf16 %v881, %v881
    %v931 = vpack.c.bf16 %v883, %v883
    %v932 = vpack.c.bf16 %v922, %v922
    %v933 = vpack.c.bf16 %v924, %v924
    %v934 = vld [vmem:[#allocation9] sm:$0xff]
    %v935 = vld [vmem:[#allocation9 + $0x8] sm:$0xff]
    %v936 = vld [vmem:[#allocation9 + $0x10] sm:$0xff]
    %v937 = vld [vmem:[#allocation9 + $0x18] sm:$0xff]
    %v938 = vld [vmem:[#allocation9 + $0x20] sm:$0xff]
    %v939 = vld [vmem:[#allocation9 + $0x28] sm:$0xff]
    %v940 = vld [vmem:[#allocation9 + $0x30] sm:$0xff]
    %v941 = vld [vmem:[#allocation9 + $0x38] sm:$0xff]
    %v942 = vld [vmem:[#allocation9 + $0x40] sm:$0xff]
    %v943 = vld [vmem:[#allocation9 + $0x48] sm:$0xff]
    %v944 = vld [vmem:[#allocation9 + $0x50] sm:$0xff]
    %v945 = vld [vmem:[#allocation9 + $0x58] sm:$0xff]
    %v946 = vld [vmem:[#allocation9 + $0x60] sm:$0xff]
    %v947 = vld [vmem:[#allocation9 + $0x68] sm:$0xff]
    %v948 = vld [vmem:[#allocation9 + $0x70] sm:$0xff]
    %v949 = vld [vmem:[#allocation9 + $0x78] sm:$0xff]
    %v950 = vld [vmem:[#allocation9 + $0x80] sm:$0xff]
    %v951 = vld [vmem:[#allocation9 + $0x88] sm:$0xff]
    %v952 = vld [vmem:[#allocation9 + $0x90] sm:$0xff]
    %v953 = vld [vmem:[#allocation9 + $0x98] sm:$0xff]
    %v954 = vld [vmem:[#allocation9 + $0xa0] sm:$0xff]
    %v955 = vld [vmem:[#allocation9 + $0xa8] sm:$0xff]
    %v956 = vld [vmem:[#allocation9 + $0xb0] sm:$0xff]
    %v957 = vld [vmem:[#allocation9 + $0xb8] sm:$0xff]
    %v958 = vld [vmem:[#allocation9 + $0xc0] sm:$0xff]
    %v959 = vld [vmem:[#allocation9 + $0xc8] sm:$0xff]
    %v960 = vld [vmem:[#allocation9 + $0xd0] sm:$0xff]
    %v961 = vld [vmem:[#allocation9 + $0xd8] sm:$0xff]
    %v962 = vld [vmem:[#allocation9 + $0xe0] sm:$0xff]
    %v963 = vld [vmem:[#allocation9 + $0xe8] sm:$0xff]
    %v964 = vld [vmem:[#allocation9 + $0xf0] sm:$0xff]
    %v965 = vld [vmem:[#allocation9 + $0xf8] sm:$0xff]
    %v966 = vld [vmem:[#allocation9 + $0x100] sm:$0xff]
    %v967 = vld [vmem:[#allocation9 + $0x108] sm:$0xff]
    %v968 = vld [vmem:[#allocation9 + $0x110] sm:$0xff]
    %v969 = vld [vmem:[#allocation9 + $0x118] sm:$0xff]
    %v970 = vld [vmem:[#allocation9 + $0x120] sm:$0xff]
    %v971 = vld [vmem:[#allocation9 + $0x128] sm:$0xff]
    %v972 = vld [vmem:[#allocation9 + $0x130] sm:$0xff]
    %v973 = vld [vmem:[#allocation9 + $0x138] sm:$0xff]
    %v974 = vld [vmem:[#allocation9 + $0x140] sm:$0xff]
    %v975 = vld [vmem:[#allocation9 + $0x148] sm:$0xff]
    %v976 = vld [vmem:[#allocation9 + $0x150] sm:$0xff]
    %v977 = vld [vmem:[#allocation9 + $0x158] sm:$0xff]
    %v978 = vld [vmem:[#allocation9 + $0x160] sm:$0xff]
    %v979 = vld [vmem:[#allocation9 + $0x168] sm:$0xff]
    %v980 = vld [vmem:[#allocation9 + $0x170] sm:$0xff]
    %v981 = vld [vmem:[#allocation9 + $0x178] sm:$0xff]
    %v982 = vld [vmem:[#allocation9 + $0x180] sm:$0xff]
    %v983 = vld [vmem:[#allocation9 + $0x188] sm:$0xff]
    %v984 = vld [vmem:[#allocation9 + $0x190] sm:$0xff]
    %v985 = vld [vmem:[#allocation9 + $0x198] sm:$0xff]
    %v986 = vld [vmem:[#allocation9 + $0x1a0] sm:$0xff]
    %v987 = vld [vmem:[#allocation9 + $0x1a8] sm:$0xff]
    %v988 = vld [vmem:[#allocation9 + $0x1b0] sm:$0xff]
    %v989 = vld [vmem:[#allocation9 + $0x1b8] sm:$0xff]
    %v990 = vld [vmem:[#allocation9 + $0x1c0] sm:$0xff]
    %v991 = vld [vmem:[#allocation9 + $0x1c8] sm:$0xff]
    %v992 = vld [vmem:[#allocation9 + $0x1d0] sm:$0xff]
    %v993 = vld [vmem:[#allocation9 + $0x1d8] sm:$0xff]
    %v994 = vld [vmem:[#allocation9 + $0x1e0] sm:$0xff]
    %v995 = vld [vmem:[#allocation9 + $0x1e8] sm:$0xff]
    %v996 = vld [vmem:[#allocation9 + $0x1f0] sm:$0xff]
    %v997 = vld [vmem:[#allocation9 + $0x1f8] sm:$0xff]
    %v998 = vld [vmem:[#allocation9 + $0x200] sm:$0xff]
    %v999 = vld [vmem:[#allocation9 + $0x208] sm:$0xff]
    %v1000 = vld [vmem:[#allocation9 + $0x210] sm:$0xff]
    %v1001 = vld [vmem:[#allocation9 + $0x218] sm:$0xff]
    %v1002 = vld [vmem:[#allocation9 + $0x220] sm:$0xff]
    %v1003 = vld [vmem:[#allocation9 + $0x228] sm:$0xff]
    %v1004 = vld [vmem:[#allocation9 + $0x230] sm:$0xff]
    %v1005 = vld [vmem:[#allocation9 + $0x238] sm:$0xff]
    %v1006 = vld [vmem:[#allocation9 + $0x240] sm:$0xff]
    %v1007 = vld [vmem:[#allocation9 + $0x248] sm:$0xff]
    %v1008 = vld [vmem:[#allocation9 + $0x250] sm:$0xff]
    %v1009 = vld [vmem:[#allocation9 + $0x258] sm:$0xff]
    %v1010 = vld [vmem:[#allocation9 + $0x260] sm:$0xff]
    %v1011 = vld [vmem:[#allocation9 + $0x268] sm:$0xff]
    %v1012 = vld [vmem:[#allocation9 + $0x270] sm:$0xff]
    %v1013 = vld [vmem:[#allocation9 + $0x278] sm:$0xff]
    %v1014 = vld [vmem:[#allocation9 + $0x280] sm:$0xff]
    %v1015 = vld [vmem:[#allocation9 + $0x288] sm:$0xff]
    %v1016 = vld [vmem:[#allocation9 + $0x290] sm:$0xff]
    %v1017 = vld [vmem:[#allocation9 + $0x298] sm:$0xff]
    %v1018 = vld [vmem:[#allocation9 + $0x2a0] sm:$0xff]
    %v1019 = vld [vmem:[#allocation9 + $0x2a8] sm:$0xff]
    %v1020 = vld [vmem:[#allocation9 + $0x2b0] sm:$0xff]
    %v1021 = vld [vmem:[#allocation9 + $0x2b8] sm:$0xff]
    %v1022 = vld [vmem:[#allocation9 + $0x2c0] sm:$0xff]
    %v1023 = vld [vmem:[#allocation9 + $0x2c8] sm:$0xff]
    %v1024 = vld [vmem:[#allocation9 + $0x2d0] sm:$0xff]
    %v1025 = vld [vmem:[#allocation9 + $0x2d8] sm:$0xff]
    %v1026 = vld [vmem:[#allocation9 + $0x2e0] sm:$0xff]
    %v1027 = vld [vmem:[#allocation9 + $0x2e8] sm:$0xff]
    %v1028 = vld [vmem:[#allocation9 + $0x2f0] sm:$0xff]
    %v1029 = vld [vmem:[#allocation9 + $0x2f8] sm:$0xff]
    %v1030 = vld [vmem:[#allocation9 + $0x300] sm:$0xff]
    %v1031 = vld [vmem:[#allocation9 + $0x308] sm:$0xff]
    %v1032 = vld [vmem:[#allocation9 + $0x310] sm:$0xff]
    %v1033 = vld [vmem:[#allocation9 + $0x318] sm:$0xff]
    %v1034 = vld [vmem:[#allocation9 + $0x320] sm:$0xff]
    %v1035 = vld [vmem:[#allocation9 + $0x328] sm:$0xff]
    %v1036 = vld [vmem:[#allocation9 + $0x330] sm:$0xff]
    %v1037 = vld [vmem:[#allocation9 + $0x338] sm:$0xff]
    %v1038 = vld [vmem:[#allocation9 + $0x340] sm:$0xff]
    %v1039 = vld [vmem:[#allocation9 + $0x348] sm:$0xff]
    %v1040 = vld [vmem:[#allocation9 + $0x350] sm:$0xff]
    %v1041 = vld [vmem:[#allocation9 + $0x358] sm:$0xff]
    %v1042 = vld [vmem:[#allocation9 + $0x360] sm:$0xff]
    %v1043 = vld [vmem:[#allocation9 + $0x368] sm:$0xff]
    %v1044 = vld [vmem:[#allocation9 + $0x370] sm:$0xff]
    %v1045 = vld [vmem:[#allocation9 + $0x378] sm:$0xff]
    %v1046 = vld [vmem:[#allocation9 + $0x380] sm:$0xff]
    %v1047 = vld [vmem:[#allocation9 + $0x388] sm:$0xff]
    %v1048 = vld [vmem:[#allocation9 + $0x390] sm:$0xff]
    %v1049 = vld [vmem:[#allocation9 + $0x398] sm:$0xff]
    %v1050 = vld [vmem:[#allocation9 + $0x3a0] sm:$0xff]
    %v1051 = vld [vmem:[#allocation9 + $0x3a8] sm:$0xff]
    %v1052 = vld [vmem:[#allocation9 + $0x3b0] sm:$0xff]
    %v1053 = vld [vmem:[#allocation9 + $0x3b8] sm:$0xff]
    %v1054 = vld [vmem:[#allocation9 + $0x3c0] sm:$0xff]
    %v1055 = vld [vmem:[#allocation9 + $0x3c8] sm:$0xff]
    %v1056 = vld [vmem:[#allocation9 + $0x3d0] sm:$0xff]
    %v1057 = vld [vmem:[#allocation9 + $0x3d8] sm:$0xff]
    %v1058 = vld [vmem:[#allocation9 + $0x3e0] sm:$0xff]
    %v1059 = vld [vmem:[#allocation9 + $0x3e8] sm:$0xff]
    %v1060 = vld [vmem:[#allocation9 + $0x3f0] sm:$0xff]
    %v1061 = vld [vmem:[#allocation9 + $0x3f8] sm:$0xff]
    %v1062 = vld [vmem:[#allocation9 + $0x400] sm:$0xff]
    %v1063 = vld [vmem:[#allocation9 + $0x408] sm:$0xff]
    %v1064 = vld [vmem:[#allocation9 + $0x410] sm:$0xff]
    %v1065 = vld [vmem:[#allocation9 + $0x418] sm:$0xff]
    %v1066 = vld [vmem:[#allocation9 + $0x420] sm:$0xff]
    %v1067 = vld [vmem:[#allocation9 + $0x428] sm:$0xff]
    %v1068 = vld [vmem:[#allocation9 + $0x430] sm:$0xff]
    %v1069 = vld [vmem:[#allocation9 + $0x438] sm:$0xff]
    %v1070 = vld [vmem:[#allocation9 + $0x440] sm:$0xff]
    %v1071 = vld [vmem:[#allocation9 + $0x448] sm:$0xff]
    %v1072 = vld [vmem:[#allocation9 + $0x450] sm:$0xff]
    %v1073 = vld [vmem:[#allocation9 + $0x458] sm:$0xff]
    %v1074 = vld [vmem:[#allocation9 + $0x460] sm:$0xff]
    %v1075 = vld [vmem:[#allocation9 + $0x468] sm:$0xff]
    %v1076 = vld [vmem:[#allocation9 + $0x470] sm:$0xff]
    %v1077 = vld [vmem:[#allocation9 + $0x478] sm:$0xff]
    %v1078 = vld [vmem:[#allocation9 + $0x480] sm:$0xff]
    %v1079 = vld [vmem:[#allocation9 + $0x488] sm:$0xff]
    %v1080 = vld [vmem:[#allocation9 + $0x490] sm:$0xff]
    %v1081 = vld [vmem:[#allocation9 + $0x498] sm:$0xff]
    %v1082 = vld [vmem:[#allocation9 + $0x4a0] sm:$0xff]
    %v1083 = vld [vmem:[#allocation9 + $0x4a8] sm:$0xff]
    %v1084 = vld [vmem:[#allocation9 + $0x4b0] sm:$0xff]
    %v1085 = vld [vmem:[#allocation9 + $0x4b8] sm:$0xff]
    %v1086 = vld [vmem:[#allocation9 + $0x4c0] sm:$0xff]
    %v1087 = vld [vmem:[#allocation9 + $0x4c8] sm:$0xff]
    %v1088 = vld [vmem:[#allocation9 + $0x4d0] sm:$0xff]
    %v1089 = vld [vmem:[#allocation9 + $0x4d8] sm:$0xff]
    %v1090 = vld [vmem:[#allocation9 + $0x4e0] sm:$0xff]
    %v1091 = vld [vmem:[#allocation9 + $0x4e8] sm:$0xff]
    %v1092 = vld [vmem:[#allocation9 + $0x4f0] sm:$0xff]
    %v1093 = vld [vmem:[#allocation9 + $0x4f8] sm:$0xff]
    %v1094 = vld [vmem:[#allocation9 + $0x500] sm:$0xff]
    %v1095 = vld [vmem:[#allocation9 + $0x508] sm:$0xff]
    %v1096 = vld [vmem:[#allocation9 + $0x510] sm:$0xff]
    %v1097 = vld [vmem:[#allocation9 + $0x518] sm:$0xff]
    %v1098 = vld [vmem:[#allocation9 + $0x520] sm:$0xff]
    %v1099 = vld [vmem:[#allocation9 + $0x528] sm:$0xff]
    %v1100 = vld [vmem:[#allocation9 + $0x530] sm:$0xff]
    %v1101 = vld [vmem:[#allocation9 + $0x538] sm:$0xff]
    %v1102 = vld [vmem:[#allocation9 + $0x540] sm:$0xff]
    %v1103 = vld [vmem:[#allocation9 + $0x548] sm:$0xff]
    %v1104 = vld [vmem:[#allocation9 + $0x550] sm:$0xff]
    %v1105 = vld [vmem:[#allocation9 + $0x558] sm:$0xff]
    %v1106 = vld [vmem:[#allocation9 + $0x560] sm:$0xff]
    %v1107 = vld [vmem:[#allocation9 + $0x568] sm:$0xff]
    %v1108 = vld [vmem:[#allocation9 + $0x570] sm:$0xff]
    %v1109 = vld [vmem:[#allocation9 + $0x578] sm:$0xff]
    %v1110 = vld [vmem:[#allocation9 + $0x580] sm:$0xff]
    %v1111 = vld [vmem:[#allocation9 + $0x588] sm:$0xff]
    %v1112 = vld [vmem:[#allocation9 + $0x590] sm:$0xff]
    %v1113 = vld [vmem:[#allocation9 + $0x598] sm:$0xff]
    %v1114 = vld [vmem:[#allocation9 + $0x5a0] sm:$0xff]
    %v1115 = vld [vmem:[#allocation9 + $0x5a8] sm:$0xff]
    %v1116 = vld [vmem:[#allocation9 + $0x5b0] sm:$0xff]
    %v1117 = vld [vmem:[#allocation9 + $0x5b8] sm:$0xff]
    %v1118 = vld [vmem:[#allocation9 + $0x5c0] sm:$0xff]
    %v1119 = vld [vmem:[#allocation9 + $0x5c8] sm:$0xff]
    %v1120 = vld [vmem:[#allocation9 + $0x5d0] sm:$0xff]
    %v1121 = vld [vmem:[#allocation9 + $0x5d8] sm:$0xff]
    %v1122 = vld [vmem:[#allocation9 + $0x5e0] sm:$0xff]
    %v1123 = vld [vmem:[#allocation9 + $0x5e8] sm:$0xff]
    %v1124 = vld [vmem:[#allocation9 + $0x5f0] sm:$0xff]
    %v1125 = vld [vmem:[#allocation9 + $0x5f8] sm:$0xff]
    %v1126 = vld [vmem:[#allocation9 + $0x600] sm:$0xff]
    %v1127 = vld [vmem:[#allocation9 + $0x608] sm:$0xff]
    %v1128 = vld [vmem:[#allocation9 + $0x610] sm:$0xff]
    %v1129 = vld [vmem:[#allocation9 + $0x618] sm:$0xff]
    %v1130 = vld [vmem:[#allocation9 + $0x620] sm:$0xff]
    %v1131 = vld [vmem:[#allocation9 + $0x628] sm:$0xff]
    %v1132 = vld [vmem:[#allocation9 + $0x630] sm:$0xff]
    %v1133 = vld [vmem:[#allocation9 + $0x638] sm:$0xff]
    %v1134 = vld [vmem:[#allocation9 + $0x640] sm:$0xff]
    %v1135 = vld [vmem:[#allocation9 + $0x648] sm:$0xff]
    %v1136 = vld [vmem:[#allocation9 + $0x650] sm:$0xff]
    %v1137 = vld [vmem:[#allocation9 + $0x658] sm:$0xff]
    %v1138 = vld [vmem:[#allocation9 + $0x660] sm:$0xff]
    %v1139 = vld [vmem:[#allocation9 + $0x668] sm:$0xff]
    %v1140 = vld [vmem:[#allocation9 + $0x670] sm:$0xff]
    %v1141 = vld [vmem:[#allocation9 + $0x678] sm:$0xff]
    %v1142 = vld [vmem:[#allocation9 + $0x680] sm:$0xff]
    %v1143 = vld [vmem:[#allocation9 + $0x688] sm:$0xff]
    %v1144 = vld [vmem:[#allocation9 + $0x690] sm:$0xff]
    %v1145 = vld [vmem:[#allocation9 + $0x698] sm:$0xff]
    %v1146 = vld [vmem:[#allocation9 + $0x6a0] sm:$0xff]
    %v1147 = vld [vmem:[#allocation9 + $0x6a8] sm:$0xff]
    %v1148 = vld [vmem:[#allocation9 + $0x6b0] sm:$0xff]
    %v1149 = vld [vmem:[#allocation9 + $0x6b8] sm:$0xff]
    %v1150 = vld [vmem:[#allocation9 + $0x6c0] sm:$0xff]
    %v1151 = vld [vmem:[#allocation9 + $0x6c8] sm:$0xff]
    %v1152 = vld [vmem:[#allocation9 + $0x6d0] sm:$0xff]
    %v1153 = vld [vmem:[#allocation9 + $0x6d8] sm:$0xff]
    %v1154 = vld [vmem:[#allocation9 + $0x6e0] sm:$0xff]
    %v1155 = vld [vmem:[#allocation9 + $0x6e8] sm:$0xff]
    %v1156 = vld [vmem:[#allocation9 + $0x6f0] sm:$0xff]
    %v1157 = vld [vmem:[#allocation9 + $0x6f8] sm:$0xff]
    %v1158 = vld [vmem:[#allocation9 + $0x700] sm:$0xff]
    %v1159 = vld [vmem:[#allocation9 + $0x708] sm:$0xff]
    %v1160 = vld [vmem:[#allocation9 + $0x710] sm:$0xff]
    %v1161 = vld [vmem:[#allocation9 + $0x718] sm:$0xff]
    %v1162 = vld [vmem:[#allocation9 + $0x720] sm:$0xff]
    %v1163 = vld [vmem:[#allocation9 + $0x728] sm:$0xff]
    %v1164 = vld [vmem:[#allocation9 + $0x730] sm:$0xff]
    %v1165 = vld [vmem:[#allocation9 + $0x738] sm:$0xff]
    %v1166 = vld [vmem:[#allocation9 + $0x740] sm:$0xff]
    %v1167 = vld [vmem:[#allocation9 + $0x748] sm:$0xff]
    %v1168 = vld [vmem:[#allocation9 + $0x750] sm:$0xff]
    %v1169 = vld [vmem:[#allocation9 + $0x758] sm:$0xff]
    %v1170 = vld [vmem:[#allocation9 + $0x760] sm:$0xff]
    %v1171 = vld [vmem:[#allocation9 + $0x768] sm:$0xff]
    %v1172 = vld [vmem:[#allocation9 + $0x770] sm:$0xff]
    %v1173 = vld [vmem:[#allocation9 + $0x778] sm:$0xff]
    %v1174 = vld [vmem:[#allocation9 + $0x780] sm:$0xff]
    %v1175 = vld [vmem:[#allocation9 + $0x788] sm:$0xff]
    %v1176 = vld [vmem:[#allocation9 + $0x790] sm:$0xff]
    %v1177 = vld [vmem:[#allocation9 + $0x798] sm:$0xff]
    %v1178 = vld [vmem:[#allocation9 + $0x7a0] sm:$0xff]
    %v1179 = vld [vmem:[#allocation9 + $0x7a8] sm:$0xff]
    %v1180 = vld [vmem:[#allocation9 + $0x7b0] sm:$0xff]
    %v1181 = vld [vmem:[#allocation9 + $0x7b8] sm:$0xff]
    %v1182 = vld [vmem:[#allocation9 + $0x7c0] sm:$0xff]
    %v1183 = vld [vmem:[#allocation9 + $0x7c8] sm:$0xff]
    %v1184 = vld [vmem:[#allocation9 + $0x7d0] sm:$0xff]
    %v1185 = vld [vmem:[#allocation9 + $0x7d8] sm:$0xff]
    %v1186 = vld [vmem:[#allocation9 + $0x7e0] sm:$0xff]
    %v1187 = vld [vmem:[#allocation9 + $0x7e8] sm:$0xff]
    %v1188 = vld [vmem:[#allocation9 + $0x7f0] sm:$0xff]
    %v1189 = vld [vmem:[#allocation9 + $0x7f8] sm:$0xff]
    %v1190 = vld [vmem:[#allocation9 + $0x800] sm:$0xff]
    %v1191 = vld [vmem:[#allocation9 + $0x808] sm:$0xff]
    %v1192 = vld [vmem:[#allocation9 + $0x810] sm:$0xff]
    %v1193 = vld [vmem:[#allocation9 + $0x818] sm:$0xff]
    %v1194 = vld [vmem:[#allocation9 + $0x820] sm:$0xff]
    %v1195 = vld [vmem:[#allocation9 + $0x828] sm:$0xff]
    %v1196 = vld [vmem:[#allocation9 + $0x830] sm:$0xff]
    %v1197 = vld [vmem:[#allocation9 + $0x838] sm:$0xff]
    %v1198 = vld [vmem:[#allocation9 + $0x840] sm:$0xff]
    %v1199 = vld [vmem:[#allocation9 + $0x848] sm:$0xff]
    %v1200 = vld [vmem:[#allocation9 + $0x850] sm:$0xff]
    %v1201 = vld [vmem:[#allocation9 + $0x858] sm:$0xff]
    %v1202 = vld [vmem:[#allocation9 + $0x860] sm:$0xff]
    %v1203 = vld [vmem:[#allocation9 + $0x868] sm:$0xff]
    %v1204 = vld [vmem:[#allocation9 + $0x870] sm:$0xff]
    %v1205 = vld [vmem:[#allocation9 + $0x878] sm:$0xff]
    %v1206 = vld [vmem:[#allocation9 + $0x880] sm:$0xff]
    %v1207 = vld [vmem:[#allocation9 + $0x888] sm:$0xff]
    %v1208 = vld [vmem:[#allocation9 + $0x890] sm:$0xff]
    %v1209 = vld [vmem:[#allocation9 + $0x898] sm:$0xff]
    %v1210 = vld [vmem:[#allocation9 + $0x8a0] sm:$0xff]
    %v1211 = vld [vmem:[#allocation9 + $0x8a8] sm:$0xff]
    %v1212 = vld [vmem:[#allocation9 + $0x8b0] sm:$0xff]
    %v1213 = vld [vmem:[#allocation9 + $0x8b8] sm:$0xff]
    %v1214 = vld [vmem:[#allocation9 + $0x8c0] sm:$0xff]
    %v1215 = vld [vmem:[#allocation9 + $0x8c8] sm:$0xff]
    %v1216 = vld [vmem:[#allocation9 + $0x8d0] sm:$0xff]
    %v1217 = vld [vmem:[#allocation9 + $0x8d8] sm:$0xff]
    %v1218 = vld [vmem:[#allocation9 + $0x8e0] sm:$0xff]
    %v1219 = vld [vmem:[#allocation9 + $0x8e8] sm:$0xff]
    %v1220 = vld [vmem:[#allocation9 + $0x8f0] sm:$0xff]
    %v1221 = vld [vmem:[#allocation9 + $0x8f8] sm:$0xff]
    %v1222 = vld [vmem:[#allocation9 + $0x900] sm:$0xff]
    %v1223 = vld [vmem:[#allocation9 + $0x908] sm:$0xff]
    %v1224 = vld [vmem:[#allocation9 + $0x910] sm:$0xff]
    %v1225 = vld [vmem:[#allocation9 + $0x918] sm:$0xff]
    %v1226 = vld [vmem:[#allocation9 + $0x920] sm:$0xff]
    %v1227 = vld [vmem:[#allocation9 + $0x928] sm:$0xff]
    %v1228 = vld [vmem:[#allocation9 + $0x930] sm:$0xff]
    %v1229 = vld [vmem:[#allocation9 + $0x938] sm:$0xff]
    %v1230 = vld [vmem:[#allocation9 + $0x940] sm:$0xff]
    %v1231 = vld [vmem:[#allocation9 + $0x948] sm:$0xff]
    %v1232 = vld [vmem:[#allocation9 + $0x950] sm:$0xff]
    %v1233 = vld [vmem:[#allocation9 + $0x958] sm:$0xff]
    %v1234 = vld [vmem:[#allocation9 + $0x960] sm:$0xff]
    %v1235 = vld [vmem:[#allocation9 + $0x968] sm:$0xff]
    %v1236 = vld [vmem:[#allocation9 + $0x970] sm:$0xff]
    %v1237 = vld [vmem:[#allocation9 + $0x978] sm:$0xff]
    %v1238 = vld [vmem:[#allocation9 + $0x980] sm:$0xff]
    %v1239 = vld [vmem:[#allocation9 + $0x988] sm:$0xff]
    %v1240 = vld [vmem:[#allocation9 + $0x990] sm:$0xff]
    %v1241 = vld [vmem:[#allocation9 + $0x998] sm:$0xff]
    %v1242 = vld [vmem:[#allocation9 + $0x9a0] sm:$0xff]
    %v1243 = vld [vmem:[#allocation9 + $0x9a8] sm:$0xff]
    %v1244 = vld [vmem:[#allocation9 + $0x9b0] sm:$0xff]
    %v1245 = vld [vmem:[#allocation9 + $0x9b8] sm:$0xff]
    %v1246 = vld [vmem:[#allocation9 + $0x9c0] sm:$0xff]
    %v1247 = vld [vmem:[#allocation9 + $0x9c8] sm:$0xff]
    %v1248 = vld [vmem:[#allocation9 + $0x9d0] sm:$0xff]
    %v1249 = vld [vmem:[#allocation9 + $0x9d8] sm:$0xff]
    %v1250 = vld [vmem:[#allocation9 + $0x9e0] sm:$0xff]
    %v1251 = vld [vmem:[#allocation9 + $0x9e8] sm:$0xff]
    %v1252 = vld [vmem:[#allocation9 + $0x9f0] sm:$0xff]
    %v1253 = vld [vmem:[#allocation9 + $0x9f8] sm:$0xff]
    %v1254 = vld [vmem:[#allocation9 + $0xa00] sm:$0xff]
    %v1255 = vld [vmem:[#allocation9 + $0xa08] sm:$0xff]
    %v1256 = vld [vmem:[#allocation9 + $0xa10] sm:$0xff]
    %v1257 = vld [vmem:[#allocation9 + $0xa18] sm:$0xff]
    %v1258 = vld [vmem:[#allocation9 + $0xa20] sm:$0xff]
    %v1259 = vld [vmem:[#allocation9 + $0xa28] sm:$0xff]
    %v1260 = vld [vmem:[#allocation9 + $0xa30] sm:$0xff]
    %v1261 = vld [vmem:[#allocation9 + $0xa38] sm:$0xff]
    %v1262 = vld [vmem:[#allocation9 + $0xa40] sm:$0xff]
    %v1263 = vld [vmem:[#allocation9 + $0xa48] sm:$0xff]
    %v1264 = vld [vmem:[#allocation9 + $0xa50] sm:$0xff]
    %v1265 = vld [vmem:[#allocation9 + $0xa58] sm:$0xff]
    %v1266 = vld [vmem:[#allocation9 + $0xa60] sm:$0xff]
    %v1267 = vld [vmem:[#allocation9 + $0xa68] sm:$0xff]
    %v1268 = vld [vmem:[#allocation9 + $0xa70] sm:$0xff]
    %v1269 = vld [vmem:[#allocation9 + $0xa78] sm:$0xff]
    %v1270 = vld [vmem:[#allocation9 + $0xa80] sm:$0xff]
    %v1271 = vld [vmem:[#allocation9 + $0xa88] sm:$0xff]
    %v1272 = vld [vmem:[#allocation9 + $0xa90] sm:$0xff]
    %v1273 = vld [vmem:[#allocation9 + $0xa98] sm:$0xff]
    %v1274 = vld [vmem:[#allocation9 + $0xaa0] sm:$0xff]
    %v1275 = vld [vmem:[#allocation9 + $0xaa8] sm:$0xff]
    %v1276 = vld [vmem:[#allocation9 + $0xab0] sm:$0xff]
    %v1277 = vld [vmem:[#allocation9 + $0xab8] sm:$0xff]
    %v1278 = vld [vmem:[#allocation9 + $0xac0] sm:$0xff]
    %v1279 = vld [vmem:[#allocation9 + $0xac8] sm:$0xff]
    %v1280 = vld [vmem:[#allocation9 + $0xad0] sm:$0xff]
    %v1281 = vld [vmem:[#allocation9 + $0xad8] sm:$0xff]
    %v1282 = vld [vmem:[#allocation9 + $0xae0] sm:$0xff]
    %v1283 = vld [vmem:[#allocation9 + $0xae8] sm:$0xff]
    %v1284 = vld [vmem:[#allocation9 + $0xaf0] sm:$0xff]
    %v1285 = vld [vmem:[#allocation9 + $0xaf8] sm:$0xff]
    %v1286 = vld [vmem:[#allocation9 + $0xb00] sm:$0xff]
    %v1287 = vld [vmem:[#allocation9 + $0xb08] sm:$0xff]
    %v1288 = vld [vmem:[#allocation9 + $0xb10] sm:$0xff]
    %v1289 = vld [vmem:[#allocation9 + $0xb18] sm:$0xff]
    %v1290 = vld [vmem:[#allocation9 + $0xb20] sm:$0xff]
    %v1291 = vld [vmem:[#allocation9 + $0xb28] sm:$0xff]
    %v1292 = vld [vmem:[#allocation9 + $0xb30] sm:$0xff]
    %v1293 = vld [vmem:[#allocation9 + $0xb38] sm:$0xff]
    %v1294 = vld [vmem:[#allocation9 + $0xb40] sm:$0xff]
    %v1295 = vld [vmem:[#allocation9 + $0xb48] sm:$0xff]
    %v1296 = vld [vmem:[#allocation9 + $0xb50] sm:$0xff]
    %v1297 = vld [vmem:[#allocation9 + $0xb58] sm:$0xff]
    %v1298 = vld [vmem:[#allocation9 + $0xb60] sm:$0xff]
    %v1299 = vld [vmem:[#allocation9 + $0xb68] sm:$0xff]
    %v1300 = vld [vmem:[#allocation9 + $0xb70] sm:$0xff]
    %v1301 = vld [vmem:[#allocation9 + $0xb78] sm:$0xff]
    %v1302 = vld [vmem:[#allocation9 + $0xb80] sm:$0xff]
    %v1303 = vld [vmem:[#allocation9 + $0xb88] sm:$0xff]
    %v1304 = vld [vmem:[#allocation9 + $0xb90] sm:$0xff]
    %v1305 = vld [vmem:[#allocation9 + $0xb98] sm:$0xff]
    %v1306 = vld [vmem:[#allocation9 + $0xba0] sm:$0xff]
    %v1307 = vld [vmem:[#allocation9 + $0xba8] sm:$0xff]
    %v1308 = vld [vmem:[#allocation9 + $0xbb0] sm:$0xff]
    %v1309 = vld [vmem:[#allocation9 + $0xbb8] sm:$0xff]
    %v1310 = vld [vmem:[#allocation9 + $0xbc0] sm:$0xff]
    %v1311 = vld [vmem:[#allocation9 + $0xbc8] sm:$0xff]
    %v1312 = vld [vmem:[#allocation9 + $0xbd0] sm:$0xff]
    %v1313 = vld [vmem:[#allocation9 + $0xbd8] sm:$0xff]
    %v1314 = vld [vmem:[#allocation9 + $0xbe0] sm:$0xff]
    %v1315 = vld [vmem:[#allocation9 + $0xbe8] sm:$0xff]
    %v1316 = vld [vmem:[#allocation9 + $0xbf0] sm:$0xff]
    %v1317 = vld [vmem:[#allocation9 + $0xbf8] sm:$0xff]
    %v1318 = vld [vmem:[#allocation11] sm:$0xff]
    %v1320 = vlaneseq
    %v1321 = vshrl.u32 %v1320, 7
    %v1322 = vsub.s32 0, %v1321
    %v1323 = vrot.slane %v1318, %v1322
    %v1324 = vlaneseq
    %v1325 = vshrl.u32 %v1324, 7
    %v1326 = vsub.s32 1, %v1325
    %v1327 = vrot.slane %v1318, %v1326
    %v1328 = vlaneseq
    %v1329 = vshrl.u32 %v1328, 7
    %v1330 = vsub.s32 2, %v1329
    %v1331 = vrot.slane %v1318, %v1330
    %v1332 = vlaneseq
    %v1333 = vshrl.u32 %v1332, 7
    %v1334 = vsub.s32 3, %v1333
    %v1335 = vrot.slane %v1318, %v1334
    %v1336 = vlaneseq
    %v1337 = vshrl.u32 %v1336, 7
    %v1338 = vsub.s32 4, %v1337
    %v1339 = vrot.slane %v1318, %v1338
    %v1340 = vlaneseq
    %v1341 = vshrl.u32 %v1340, 7
    %v1342 = vsub.s32 5, %v1341
    %v1343 = vrot.slane %v1318, %v1342
    %v1344 = vlaneseq
    %v1345 = vshrl.u32 %v1344, 7
    %v1346 = vsub.s32 6, %v1345
    %v1347 = vrot.slane %v1318, %v1346
    %v1348 = vlaneseq
    %v1349 = vshrl.u32 %v1348, 7
    %v1350 = vsub.s32 7, %v1349
    %v1351 = vrot.slane %v1318, %v1350
    %v1744 = vunpack.c.l.b16 %v934
    %v1745 = vunpack.c.h.b16 %v934
    %v1746 = vunpack.c.l.b16 %v935
    %v1747 = vunpack.c.h.b16 %v935
    %v1748 = vunpack.c.l.b16 %v936
    %v1749 = vunpack.c.h.b16 %v936
    %v1750 = vunpack.c.l.b16 %v937
    %v1751 = vunpack.c.h.b16 %v937
    %v1752 = vunpack.c.l.b16 %v938
    %v1753 = vunpack.c.h.b16 %v938
    %v1754 = vunpack.c.l.b16 %v939
    %v1755 = vunpack.c.h.b16 %v939
    %v1756 = vunpack.c.l.b16 %v940
    %v1757 = vunpack.c.h.b16 %v940
    %v1758 = vunpack.c.l.b16 %v941
    %v1759 = vunpack.c.h.b16 %v941
    %v1760 = vunpack.c.l.b16 %v942
    %v1761 = vunpack.c.h.b16 %v942
    %v1762 = vunpack.c.l.b16 %v943
    %v1763 = vunpack.c.h.b16 %v943
    %v1764 = vunpack.c.l.b16 %v944
    %v1765 = vunpack.c.h.b16 %v944
    %v1766 = vunpack.c.l.b16 %v945
    %v1767 = vunpack.c.h.b16 %v945
    %v1768 = vunpack.c.l.b16 %v946
    %v1769 = vunpack.c.h.b16 %v946
    %v1770 = vunpack.c.l.b16 %v947
    %v1771 = vunpack.c.h.b16 %v947
    %v1772 = vunpack.c.l.b16 %v948
    %v1773 = vunpack.c.h.b16 %v948
    %v1774 = vunpack.c.l.b16 %v949
    %v1775 = vunpack.c.h.b16 %v949
    %v1776 = vunpack.c.l.b16 %v950
    %v1777 = vunpack.c.h.b16 %v950
    %v1778 = vunpack.c.l.b16 %v951
    %v1779 = vunpack.c.h.b16 %v951
    %v1780 = vunpack.c.l.b16 %v952
    %v1781 = vunpack.c.h.b16 %v952
    %v1782 = vunpack.c.l.b16 %v953
    %v1783 = vunpack.c.h.b16 %v953
    %v1784 = vunpack.c.l.b16 %v954
    %v1785 = vunpack.c.h.b16 %v954
    %v1786 = vunpack.c.l.b16 %v955
    %v1787 = vunpack.c.h.b16 %v955
    %v1788 = vunpack.c.l.b16 %v956
    %v1789 = vunpack.c.h.b16 %v956
    %v1790 = vunpack.c.l.b16 %v957
    %v1791 = vunpack.c.h.b16 %v957
    %v1792 = vunpack.c.l.b16 %v958
    %v1793 = vunpack.c.h.b16 %v958
    %v1794 = vunpack.c.l.b16 %v959
    %v1795 = vunpack.c.h.b16 %v959
    %v1796 = vunpack.c.l.b16 %v960
    %v1797 = vunpack.c.h.b16 %v960
    %v1798 = vunpack.c.l.b16 %v961
    %v1799 = vunpack.c.h.b16 %v961
    %v1800 = vunpack.c.l.b16 %v962
    %v1801 = vunpack.c.h.b16 %v962
    %v1802 = vunpack.c.l.b16 %v963
    %v1803 = vunpack.c.h.b16 %v963
    %v1804 = vunpack.c.l.b16 %v964
    %v1805 = vunpack.c.h.b16 %v964
    %v1806 = vunpack.c.l.b16 %v965
    %v1807 = vunpack.c.h.b16 %v965
    %v1808 = vunpack.c.l.b16 %v966
    %v1809 = vunpack.c.h.b16 %v966
    %v1810 = vunpack.c.l.b16 %v967
    %v1811 = vunpack.c.h.b16 %v967
    %v1812 = vunpack.c.l.b16 %v968
    %v1813 = vunpack.c.h.b16 %v968
    %v1814 = vunpack.c.l.b16 %v969
    %v1815 = vunpack.c.h.b16 %v969
    %v1816 = vunpack.c.l.b16 %v970
    %v1817 = vunpack.c.h.b16 %v970
    %v1818 = vunpack.c.l.b16 %v971
    %v1819 = vunpack.c.h.b16 %v971
    %v1820 = vunpack.c.l.b16 %v972
    %v1821 = vunpack.c.h.b16 %v972
    %v1822 = vunpack.c.l.b16 %v973
    %v1823 = vunpack.c.h.b16 %v973
    %v1824 = vunpack.c.l.b16 %v974
    %v1825 = vunpack.c.h.b16 %v974
    %v1826 = vunpack.c.l.b16 %v975
    %v1827 = vunpack.c.h.b16 %v975
    %v1828 = vunpack.c.l.b16 %v976
    %v1829 = vunpack.c.h.b16 %v976
    %v1830 = vunpack.c.l.b16 %v977
    %v1831 = vunpack.c.h.b16 %v977
    %v1832 = vunpack.c.l.b16 %v978
    %v1833 = vunpack.c.h.b16 %v978
    %v1834 = vunpack.c.l.b16 %v979
    %v1835 = vunpack.c.h.b16 %v979
    %v1836 = vunpack.c.l.b16 %v980
    %v1837 = vunpack.c.h.b16 %v980
    %v1838 = vunpack.c.l.b16 %v981
    %v1839 = vunpack.c.h.b16 %v981
    %v1840 = vunpack.c.l.b16 %v982
    %v1841 = vunpack.c.h.b16 %v982
    %v1842 = vunpack.c.l.b16 %v983
    %v1843 = vunpack.c.h.b16 %v983
    %v1844 = vunpack.c.l.b16 %v984
    %v1845 = vunpack.c.h.b16 %v984
    %v1846 = vunpack.c.l.b16 %v985
    %v1847 = vunpack.c.h.b16 %v985
    %v1848 = vunpack.c.l.b16 %v986
    %v1849 = vunpack.c.h.b16 %v986
    %v1850 = vunpack.c.l.b16 %v987
    %v1851 = vunpack.c.h.b16 %v987
    %v1852 = vunpack.c.l.b16 %v988
    %v1853 = vunpack.c.h.b16 %v988
    %v1854 = vunpack.c.l.b16 %v989
    %v1855 = vunpack.c.h.b16 %v989
    %v1856 = vunpack.c.l.b16 %v990
    %v1857 = vunpack.c.h.b16 %v990
    %v1858 = vunpack.c.l.b16 %v991
    %v1859 = vunpack.c.h.b16 %v991
    %v1860 = vunpack.c.l.b16 %v992
    %v1861 = vunpack.c.h.b16 %v992
    %v1862 = vunpack.c.l.b16 %v993
    %v1863 = vunpack.c.h.b16 %v993
    %v1864 = vunpack.c.l.b16 %v994
    %v1865 = vunpack.c.h.b16 %v994
    %v1866 = vunpack.c.l.b16 %v995
    %v1867 = vunpack.c.h.b16 %v995
    %v1868 = vunpack.c.l.b16 %v996
    %v1869 = vunpack.c.h.b16 %v996
    %v1870 = vunpack.c.l.b16 %v997
    %v1871 = vunpack.c.h.b16 %v997
    %v1872 = vunpack.c.l.b16 %v998
    %v1873 = vunpack.c.h.b16 %v998
    %v1874 = vunpack.c.l.b16 %v999
    %v1875 = vunpack.c.h.b16 %v999
    %v1876 = vunpack.c.l.b16 %v1000
    %v1877 = vunpack.c.h.b16 %v1000
    %v1878 = vunpack.c.l.b16 %v1001
    %v1879 = vunpack.c.h.b16 %v1001
    %v1880 = vunpack.c.l.b16 %v1002
    %v1881 = vunpack.c.h.b16 %v1002
    %v1882 = vunpack.c.l.b16 %v1003
    %v1883 = vunpack.c.h.b16 %v1003
    %v1884 = vunpack.c.l.b16 %v1004
    %v1885 = vunpack.c.h.b16 %v1004
    %v1886 = vunpack.c.l.b16 %v1005
    %v1887 = vunpack.c.h.b16 %v1005
    %v1888 = vunpack.c.l.b16 %v1006
    %v1889 = vunpack.c.h.b16 %v1006
    %v1890 = vunpack.c.l.b16 %v1007
    %v1891 = vunpack.c.h.b16 %v1007
    %v1892 = vunpack.c.l.b16 %v1008
    %v1893 = vunpack.c.h.b16 %v1008
    %v1894 = vunpack.c.l.b16 %v1009
    %v1895 = vunpack.c.h.b16 %v1009
    %v1896 = vunpack.c.l.b16 %v1010
    %v1897 = vunpack.c.h.b16 %v1010
    %v1898 = vunpack.c.l.b16 %v1011
    %v1899 = vunpack.c.h.b16 %v1011
    %v1900 = vunpack.c.l.b16 %v1012
    %v1901 = vunpack.c.h.b16 %v1012
    %v1902 = vunpack.c.l.b16 %v1013
    %v1903 = vunpack.c.h.b16 %v1013
    %v1904 = vunpack.c.l.b16 %v1014
    %v1905 = vunpack.c.h.b16 %v1014
    %v1906 = vunpack.c.l.b16 %v1015
    %v1907 = vunpack.c.h.b16 %v1015
    %v1908 = vunpack.c.l.b16 %v1016
    %v1909 = vunpack.c.h.b16 %v1016
    %v1910 = vunpack.c.l.b16 %v1017
    %v1911 = vunpack.c.h.b16 %v1017
    %v1912 = vunpack.c.l.b16 %v1018
    %v1913 = vunpack.c.h.b16 %v1018
    %v1914 = vunpack.c.l.b16 %v1019
    %v1915 = vunpack.c.h.b16 %v1019
    %v1916 = vunpack.c.l.b16 %v1020
    %v1917 = vunpack.c.h.b16 %v1020
    %v1918 = vunpack.c.l.b16 %v1021
    %v1919 = vunpack.c.h.b16 %v1021
    %v1920 = vunpack.c.l.b16 %v1022
    %v1921 = vunpack.c.h.b16 %v1022
    %v1922 = vunpack.c.l.b16 %v1023
    %v1923 = vunpack.c.h.b16 %v1023
    %v1924 = vunpack.c.l.b16 %v1024
    %v1925 = vunpack.c.h.b16 %v1024
    %v1926 = vunpack.c.l.b16 %v1025
    %v1927 = vunpack.c.h.b16 %v1025
    %v1928 = vunpack.c.l.b16 %v1026
    %v1929 = vunpack.c.h.b16 %v1026
    %v1930 = vunpack.c.l.b16 %v1027
    %v1931 = vunpack.c.h.b16 %v1027
    %v1932 = vunpack.c.l.b16 %v1028
    %v1933 = vunpack.c.h.b16 %v1028
    %v1934 = vunpack.c.l.b16 %v1029
    %v1935 = vunpack.c.h.b16 %v1029
    %v1936 = vunpack.c.l.b16 %v1030
    %v1937 = vunpack.c.h.b16 %v1030
    %v1938 = vunpack.c.l.b16 %v1031
    %v1939 = vunpack.c.h.b16 %v1031
    %v1940 = vunpack.c.l.b16 %v1032
    %v1941 = vunpack.c.h.b16 %v1032
    %v1942 = vunpack.c.l.b16 %v1033
    %v1943 = vunpack.c.h.b16 %v1033
    %v1944 = vunpack.c.l.b16 %v1034
    %v1945 = vunpack.c.h.b16 %v1034
    %v1946 = vunpack.c.l.b16 %v1035
    %v1947 = vunpack.c.h.b16 %v1035
    %v1948 = vunpack.c.l.b16 %v1036
    %v1949 = vunpack.c.h.b16 %v1036
    %v1950 = vunpack.c.l.b16 %v1037
    %v1951 = vunpack.c.h.b16 %v1037
    %v1952 = vunpack.c.l.b16 %v1038
    %v1953 = vunpack.c.h.b16 %v1038
    %v1954 = vunpack.c.l.b16 %v1039
    %v1955 = vunpack.c.h.b16 %v1039
    %v1956 = vunpack.c.l.b16 %v1040
    %v1957 = vunpack.c.h.b16 %v1040
    %v1958 = vunpack.c.l.b16 %v1041
    %v1959 = vunpack.c.h.b16 %v1041
    %v1960 = vunpack.c.l.b16 %v1042
    %v1961 = vunpack.c.h.b16 %v1042
    %v1962 = vunpack.c.l.b16 %v1043
    %v1963 = vunpack.c.h.b16 %v1043
    %v1964 = vunpack.c.l.b16 %v1044
    %v1965 = vunpack.c.h.b16 %v1044
    %v1966 = vunpack.c.l.b16 %v1045
    %v1967 = vunpack.c.h.b16 %v1045
    %v1968 = vunpack.c.l.b16 %v1046
    %v1969 = vunpack.c.h.b16 %v1046
    %v1970 = vunpack.c.l.b16 %v1047
    %v1971 = vunpack.c.h.b16 %v1047
    %v1972 = vunpack.c.l.b16 %v1048
    %v1973 = vunpack.c.h.b16 %v1048
    %v1974 = vunpack.c.l.b16 %v1049
    %v1975 = vunpack.c.h.b16 %v1049
    %v1976 = vunpack.c.l.b16 %v1050
    %v1977 = vunpack.c.h.b16 %v1050
    %v1978 = vunpack.c.l.b16 %v1051
    %v1979 = vunpack.c.h.b16 %v1051
    %v1980 = vunpack.c.l.b16 %v1052
    %v1981 = vunpack.c.h.b16 %v1052
    %v1982 = vunpack.c.l.b16 %v1053
    %v1983 = vunpack.c.h.b16 %v1053
    %v1984 = vunpack.c.l.b16 %v1054
    %v1985 = vunpack.c.h.b16 %v1054
    %v1986 = vunpack.c.l.b16 %v1055
    %v1987 = vunpack.c.h.b16 %v1055
    %v1988 = vunpack.c.l.b16 %v1056
    %v1989 = vunpack.c.h.b16 %v1056
    %v1990 = vunpack.c.l.b16 %v1057
    %v1991 = vunpack.c.h.b16 %v1057
    %v1992 = vunpack.c.l.b16 %v1058
    %v1993 = vunpack.c.h.b16 %v1058
    %v1994 = vunpack.c.l.b16 %v1059
    %v1995 = vunpack.c.h.b16 %v1059
    %v1996 = vunpack.c.l.b16 %v1060
    %v1997 = vunpack.c.h.b16 %v1060
    %v1998 = vunpack.c.l.b16 %v1061
    %v1999 = vunpack.c.h.b16 %v1061
    %v2000 = vunpack.c.l.b16 %v1062
    %v2001 = vunpack.c.h.b16 %v1062
    %v2002 = vunpack.c.l.b16 %v1063
    %v2003 = vunpack.c.h.b16 %v1063
    %v2004 = vunpack.c.l.b16 %v1064
    %v2005 = vunpack.c.h.b16 %v1064
    %v2006 = vunpack.c.l.b16 %v1065
    %v2007 = vunpack.c.h.b16 %v1065
    %v2008 = vunpack.c.l.b16 %v1066
    %v2009 = vunpack.c.h.b16 %v1066
    %v2010 = vunpack.c.l.b16 %v1067
    %v2011 = vunpack.c.h.b16 %v1067
    %v2012 = vunpack.c.l.b16 %v1068
    %v2013 = vunpack.c.h.b16 %v1068
    %v2014 = vunpack.c.l.b16 %v1069
    %v2015 = vunpack.c.h.b16 %v1069
    %v2016 = vunpack.c.l.b16 %v1070
    %v2017 = vunpack.c.h.b16 %v1070
    %v2018 = vunpack.c.l.b16 %v1071
    %v2019 = vunpack.c.h.b16 %v1071
    %v2020 = vunpack.c.l.b16 %v1072
    %v2021 = vunpack.c.h.b16 %v1072
    %v2022 = vunpack.c.l.b16 %v1073
    %v2023 = vunpack.c.h.b16 %v1073
    %v2024 = vunpack.c.l.b16 %v1074
    %v2025 = vunpack.c.h.b16 %v1074
    %v2026 = vunpack.c.l.b16 %v1075
    %v2027 = vunpack.c.h.b16 %v1075
    %v2028 = vunpack.c.l.b16 %v1076
    %v2029 = vunpack.c.h.b16 %v1076
    %v2030 = vunpack.c.l.b16 %v1077
    %v2031 = vunpack.c.h.b16 %v1077
    %v2032 = vunpack.c.l.b16 %v1078
    %v2033 = vunpack.c.h.b16 %v1078
    %v2034 = vunpack.c.l.b16 %v1079
    %v2035 = vunpack.c.h.b16 %v1079
    %v2036 = vunpack.c.l.b16 %v1080
    %v2037 = vunpack.c.h.b16 %v1080
    %v2038 = vunpack.c.l.b16 %v1081
    %v2039 = vunpack.c.h.b16 %v1081
    %v2040 = vunpack.c.l.b16 %v1082
    %v2041 = vunpack.c.h.b16 %v1082
    %v2042 = vunpack.c.l.b16 %v1083
    %v2043 = vunpack.c.h.b16 %v1083
    %v2044 = vunpack.c.l.b16 %v1084
    %v2045 = vunpack.c.h.b16 %v1084
    %v2046 = vunpack.c.l.b16 %v1085
    %v2047 = vunpack.c.h.b16 %v1085
    %v2048 = vunpack.c.l.b16 %v1086
    %v2049 = vunpack.c.h.b16 %v1086
    %v2050 = vunpack.c.l.b16 %v1087
    %v2051 = vunpack.c.h.b16 %v1087
    %v2052 = vunpack.c.l.b16 %v1088
    %v2053 = vunpack.c.h.b16 %v1088
    %v2054 = vunpack.c.l.b16 %v1089
    %v2055 = vunpack.c.h.b16 %v1089
    %v2056 = vunpack.c.l.b16 %v1090
    %v2057 = vunpack.c.h.b16 %v1090
    %v2058 = vunpack.c.l.b16 %v1091
    %v2059 = vunpack.c.h.b16 %v1091
    %v2060 = vunpack.c.l.b16 %v1092
    %v2061 = vunpack.c.h.b16 %v1092
    %v2062 = vunpack.c.l.b16 %v1093
    %v2063 = vunpack.c.h.b16 %v1093
    %v2064 = vunpack.c.l.b16 %v1094
    %v2065 = vunpack.c.h.b16 %v1094
    %v2066 = vunpack.c.l.b16 %v1095
    %v2067 = vunpack.c.h.b16 %v1095
    %v2068 = vunpack.c.l.b16 %v1096
    %v2069 = vunpack.c.h.b16 %v1096
    %v2070 = vunpack.c.l.b16 %v1097
    %v2071 = vunpack.c.h.b16 %v1097
    %v2072 = vunpack.c.l.b16 %v1098
    %v2073 = vunpack.c.h.b16 %v1098
    %v2074 = vunpack.c.l.b16 %v1099
    %v2075 = vunpack.c.h.b16 %v1099
    %v2076 = vunpack.c.l.b16 %v1100
    %v2077 = vunpack.c.h.b16 %v1100
    %v2078 = vunpack.c.l.b16 %v1101
    %v2079 = vunpack.c.h.b16 %v1101
    %v2080 = vunpack.c.l.b16 %v1102
    %v2081 = vunpack.c.h.b16 %v1102
    %v2082 = vunpack.c.l.b16 %v1103
    %v2083 = vunpack.c.h.b16 %v1103
    %v2084 = vunpack.c.l.b16 %v1104
    %v2085 = vunpack.c.h.b16 %v1104
    %v2086 = vunpack.c.l.b16 %v1105
    %v2087 = vunpack.c.h.b16 %v1105
    %v2088 = vunpack.c.l.b16 %v1106
    %v2089 = vunpack.c.h.b16 %v1106
    %v2090 = vunpack.c.l.b16 %v1107
    %v2091 = vunpack.c.h.b16 %v1107
    %v2092 = vunpack.c.l.b16 %v1108
    %v2093 = vunpack.c.h.b16 %v1108
    %v2094 = vunpack.c.l.b16 %v1109
    %v2095 = vunpack.c.h.b16 %v1109
    %v2096 = vunpack.c.l.b16 %v1110
    %v2097 = vunpack.c.h.b16 %v1110
    %v2098 = vunpack.c.l.b16 %v1111
    %v2099 = vunpack.c.h.b16 %v1111
    %v2100 = vunpack.c.l.b16 %v1112
    %v2101 = vunpack.c.h.b16 %v1112
    %v2102 = vunpack.c.l.b16 %v1113
    %v2103 = vunpack.c.h.b16 %v1113
    %v2104 = vunpack.c.l.b16 %v1114
    %v2105 = vunpack.c.h.b16 %v1114
    %v2106 = vunpack.c.l.b16 %v1115
    %v2107 = vunpack.c.h.b16 %v1115
    %v2108 = vunpack.c.l.b16 %v1116
    %v2109 = vunpack.c.h.b16 %v1116
    %v2110 = vunpack.c.l.b16 %v1117
    %v2111 = vunpack.c.h.b16 %v1117
    %v2112 = vunpack.c.l.b16 %v1118
    %v2113 = vunpack.c.h.b16 %v1118
    %v2114 = vunpack.c.l.b16 %v1119
    %v2115 = vunpack.c.h.b16 %v1119
    %v2116 = vunpack.c.l.b16 %v1120
    %v2117 = vunpack.c.h.b16 %v1120
    %v2118 = vunpack.c.l.b16 %v1121
    %v2119 = vunpack.c.h.b16 %v1121
    %v2120 = vunpack.c.l.b16 %v1122
    %v2121 = vunpack.c.h.b16 %v1122
    %v2122 = vunpack.c.l.b16 %v1123
    %v2123 = vunpack.c.h.b16 %v1123
    %v2124 = vunpack.c.l.b16 %v1124
    %v2125 = vunpack.c.h.b16 %v1124
    %v2126 = vunpack.c.l.b16 %v1125
    %v2127 = vunpack.c.h.b16 %v1125
    %v2128 = vunpack.c.l.b16 %v1126
    %v2129 = vunpack.c.h.b16 %v1126
    %v2130 = vunpack.c.l.b16 %v1127
    %v2131 = vunpack.c.h.b16 %v1127
    %v2132 = vunpack.c.l.b16 %v1128
    %v2133 = vunpack.c.h.b16 %v1128
    %v2134 = vunpack.c.l.b16 %v1129
    %v2135 = vunpack.c.h.b16 %v1129
    %v2136 = vunpack.c.l.b16 %v1130
    %v2137 = vunpack.c.h.b16 %v1130
    %v2138 = vunpack.c.l.b16 %v1131
    %v2139 = vunpack.c.h.b16 %v1131
    %v2140 = vunpack.c.l.b16 %v1132
    %v2141 = vunpack.c.h.b16 %v1132
    %v2142 = vunpack.c.l.b16 %v1133
    %v2143 = vunpack.c.h.b16 %v1133
    %v2144 = vunpack.c.l.b16 %v1134
    %v2145 = vunpack.c.h.b16 %v1134
    %v2146 = vunpack.c.l.b16 %v1135
    %v2147 = vunpack.c.h.b16 %v1135
    %v2148 = vunpack.c.l.b16 %v1136
    %v2149 = vunpack.c.h.b16 %v1136
    %v2150 = vunpack.c.l.b16 %v1137
    %v2151 = vunpack.c.h.b16 %v1137
    %v2152 = vunpack.c.l.b16 %v1138
    %v2153 = vunpack.c.h.b16 %v1138
    %v2154 = vunpack.c.l.b16 %v1139
    %v2155 = vunpack.c.h.b16 %v1139
    %v2156 = vunpack.c.l.b16 %v1140
    %v2157 = vunpack.c.h.b16 %v1140
    %v2158 = vunpack.c.l.b16 %v1141
    %v2159 = vunpack.c.h.b16 %v1141
    %v2160 = vunpack.c.l.b16 %v1142
    %v2161 = vunpack.c.h.b16 %v1142
    %v2162 = vunpack.c.l.b16 %v1143
    %v2163 = vunpack.c.h.b16 %v1143
    %v2164 = vunpack.c.l.b16 %v1144
    %v2165 = vunpack.c.h.b16 %v1144
    %v2166 = vunpack.c.l.b16 %v1145
    %v2167 = vunpack.c.h.b16 %v1145
    %v2168 = vunpack.c.l.b16 %v1146
    %v2169 = vunpack.c.h.b16 %v1146
    %v2170 = vunpack.c.l.b16 %v1147
    %v2171 = vunpack.c.h.b16 %v1147
    %v2172 = vunpack.c.l.b16 %v1148
    %v2173 = vunpack.c.h.b16 %v1148
    %v2174 = vunpack.c.l.b16 %v1149
    %v2175 = vunpack.c.h.b16 %v1149
    %v2176 = vunpack.c.l.b16 %v1150
    %v2177 = vunpack.c.h.b16 %v1150
    %v2178 = vunpack.c.l.b16 %v1151
    %v2179 = vunpack.c.h.b16 %v1151
    %v2180 = vunpack.c.l.b16 %v1152
    %v2181 = vunpack.c.h.b16 %v1152
    %v2182 = vunpack.c.l.b16 %v1153
    %v2183 = vunpack.c.h.b16 %v1153
    %v2184 = vunpack.c.l.b16 %v1154
    %v2185 = vunpack.c.h.b16 %v1154
    %v2186 = vunpack.c.l.b16 %v1155
    %v2187 = vunpack.c.h.b16 %v1155
    %v2188 = vunpack.c.l.b16 %v1156
    %v2189 = vunpack.c.h.b16 %v1156
    %v2190 = vunpack.c.l.b16 %v1157
    %v2191 = vunpack.c.h.b16 %v1157
    %v2192 = vunpack.c.l.b16 %v1158
    %v2193 = vunpack.c.h.b16 %v1158
    %v2194 = vunpack.c.l.b16 %v1159
    %v2195 = vunpack.c.h.b16 %v1159
    %v2196 = vunpack.c.l.b16 %v1160
    %v2197 = vunpack.c.h.b16 %v1160
    %v2198 = vunpack.c.l.b16 %v1161
    %v2199 = vunpack.c.h.b16 %v1161
    %v2200 = vunpack.c.l.b16 %v1162
    %v2201 = vunpack.c.h.b16 %v1162
    %v2202 = vunpack.c.l.b16 %v1163
    %v2203 = vunpack.c.h.b16 %v1163
    %v2204 = vunpack.c.l.b16 %v1164
    %v2205 = vunpack.c.h.b16 %v1164
    %v2206 = vunpack.c.l.b16 %v1165
    %v2207 = vunpack.c.h.b16 %v1165
    %v2208 = vunpack.c.l.b16 %v1166
    %v2209 = vunpack.c.h.b16 %v1166
    %v2210 = vunpack.c.l.b16 %v1167
    %v2211 = vunpack.c.h.b16 %v1167
    %v2212 = vunpack.c.l.b16 %v1168
    %v2213 = vunpack.c.h.b16 %v1168
    %v2214 = vunpack.c.l.b16 %v1169
    %v2215 = vunpack.c.h.b16 %v1169
    %v2216 = vunpack.c.l.b16 %v1170
    %v2217 = vunpack.c.h.b16 %v1170
    %v2218 = vunpack.c.l.b16 %v1171
    %v2219 = vunpack.c.h.b16 %v1171
    %v2220 = vunpack.c.l.b16 %v1172
    %v2221 = vunpack.c.h.b16 %v1172
    %v2222 = vunpack.c.l.b16 %v1173
    %v2223 = vunpack.c.h.b16 %v1173
    %v2224 = vunpack.c.l.b16 %v1174
    %v2225 = vunpack.c.h.b16 %v1174
    %v2226 = vunpack.c.l.b16 %v1175
    %v2227 = vunpack.c.h.b16 %v1175
    %v2228 = vunpack.c.l.b16 %v1176
    %v2229 = vunpack.c.h.b16 %v1176
    %v2230 = vunpack.c.l.b16 %v1177
    %v2231 = vunpack.c.h.b16 %v1177
    %v2232 = vunpack.c.l.b16 %v1178
    %v2233 = vunpack.c.h.b16 %v1178
    %v2234 = vunpack.c.l.b16 %v1179
    %v2235 = vunpack.c.h.b16 %v1179
    %v2236 = vunpack.c.l.b16 %v1180
    %v2237 = vunpack.c.h.b16 %v1180
    %v2238 = vunpack.c.l.b16 %v1181
    %v2239 = vunpack.c.h.b16 %v1181
    %v2240 = vunpack.c.l.b16 %v1182
    %v2241 = vunpack.c.h.b16 %v1182
    %v2242 = vunpack.c.l.b16 %v1183
    %v2243 = vunpack.c.h.b16 %v1183
    %v2244 = vunpack.c.l.b16 %v1184
    %v2245 = vunpack.c.h.b16 %v1184
    %v2246 = vunpack.c.l.b16 %v1185
    %v2247 = vunpack.c.h.b16 %v1185
    %v2248 = vunpack.c.l.b16 %v1186
    %v2249 = vunpack.c.h.b16 %v1186
    %v2250 = vunpack.c.l.b16 %v1187
    %v2251 = vunpack.c.h.b16 %v1187
    %v2252 = vunpack.c.l.b16 %v1188
    %v2253 = vunpack.c.h.b16 %v1188
    %v2254 = vunpack.c.l.b16 %v1189
    %v2255 = vunpack.c.h.b16 %v1189
    %v2256 = vunpack.c.l.b16 %v1190
    %v2257 = vunpack.c.h.b16 %v1190
    %v2258 = vunpack.c.l.b16 %v1191
    %v2259 = vunpack.c.h.b16 %v1191
    %v2260 = vunpack.c.l.b16 %v1192
    %v2261 = vunpack.c.h.b16 %v1192
    %v2262 = vunpack.c.l.b16 %v1193
    %v2263 = vunpack.c.h.b16 %v1193
    %v2264 = vunpack.c.l.b16 %v1194
    %v2265 = vunpack.c.h.b16 %v1194
    %v2266 = vunpack.c.l.b16 %v1195
    %v2267 = vunpack.c.h.b16 %v1195
    %v2268 = vunpack.c.l.b16 %v1196
    %v2269 = vunpack.c.h.b16 %v1196
    %v2270 = vunpack.c.l.b16 %v1197
    %v2271 = vunpack.c.h.b16 %v1197
    %v2272 = vunpack.c.l.b16 %v1198
    %v2273 = vunpack.c.h.b16 %v1198
    %v2274 = vunpack.c.l.b16 %v1199
    %v2275 = vunpack.c.h.b16 %v1199
    %v2276 = vunpack.c.l.b16 %v1200
    %v2277 = vunpack.c.h.b16 %v1200
    %v2278 = vunpack.c.l.b16 %v1201
    %v2279 = vunpack.c.h.b16 %v1201
    %v2280 = vunpack.c.l.b16 %v1202
    %v2281 = vunpack.c.h.b16 %v1202
    %v2282 = vunpack.c.l.b16 %v1203
    %v2283 = vunpack.c.h.b16 %v1203
    %v2284 = vunpack.c.l.b16 %v1204
    %v2285 = vunpack.c.h.b16 %v1204
    %v2286 = vunpack.c.l.b16 %v1205
    %v2287 = vunpack.c.h.b16 %v1205
    %v2288 = vunpack.c.l.b16 %v1206
    %v2289 = vunpack.c.h.b16 %v1206
    %v2290 = vunpack.c.l.b16 %v1207
    %v2291 = vunpack.c.h.b16 %v1207
    %v2292 = vunpack.c.l.b16 %v1208
    %v2293 = vunpack.c.h.b16 %v1208
    %v2294 = vunpack.c.l.b16 %v1209
    %v2295 = vunpack.c.h.b16 %v1209
    %v2296 = vunpack.c.l.b16 %v1210
    %v2297 = vunpack.c.h.b16 %v1210
    %v2298 = vunpack.c.l.b16 %v1211
    %v2299 = vunpack.c.h.b16 %v1211
    %v2300 = vunpack.c.l.b16 %v1212
    %v2301 = vunpack.c.h.b16 %v1212
    %v2302 = vunpack.c.l.b16 %v1213
    %v2303 = vunpack.c.h.b16 %v1213
    %v2304 = vunpack.c.l.b16 %v1214
    %v2305 = vunpack.c.h.b16 %v1214
    %v2306 = vunpack.c.l.b16 %v1215
    %v2307 = vunpack.c.h.b16 %v1215
    %v2308 = vunpack.c.l.b16 %v1216
    %v2309 = vunpack.c.h.b16 %v1216
    %v2310 = vunpack.c.l.b16 %v1217
    %v2311 = vunpack.c.h.b16 %v1217
    %v2312 = vunpack.c.l.b16 %v1218
    %v2313 = vunpack.c.h.b16 %v1218
    %v2314 = vunpack.c.l.b16 %v1219
    %v2315 = vunpack.c.h.b16 %v1219
    %v2316 = vunpack.c.l.b16 %v1220
    %v2317 = vunpack.c.h.b16 %v1220
    %v2318 = vunpack.c.l.b16 %v1221
    %v2319 = vunpack.c.h.b16 %v1221
    %v2320 = vunpack.c.l.b16 %v1222
    %v2321 = vunpack.c.h.b16 %v1222
    %v2322 = vunpack.c.l.b16 %v1223
    %v2323 = vunpack.c.h.b16 %v1223
    %v2324 = vunpack.c.l.b16 %v1224
    %v2325 = vunpack.c.h.b16 %v1224
    %v2326 = vunpack.c.l.b16 %v1225
    %v2327 = vunpack.c.h.b16 %v1225
    %v2328 = vunpack.c.l.b16 %v1226
    %v2329 = vunpack.c.h.b16 %v1226
    %v2330 = vunpack.c.l.b16 %v1227
    %v2331 = vunpack.c.h.b16 %v1227
    %v2332 = vunpack.c.l.b16 %v1228
    %v2333 = vunpack.c.h.b16 %v1228
    %v2334 = vunpack.c.l.b16 %v1229
    %v2335 = vunpack.c.h.b16 %v1229
    %v2336 = vunpack.c.l.b16 %v1230
    %v2337 = vunpack.c.h.b16 %v1230
    %v2338 = vunpack.c.l.b16 %v1231
    %v2339 = vunpack.c.h.b16 %v1231
    %v2340 = vunpack.c.l.b16 %v1232
    %v2341 = vunpack.c.h.b16 %v1232
    %v2342 = vunpack.c.l.b16 %v1233
    %v2343 = vunpack.c.h.b16 %v1233
    %v2344 = vunpack.c.l.b16 %v1234
    %v2345 = vunpack.c.h.b16 %v1234
    %v2346 = vunpack.c.l.b16 %v1235
    %v2347 = vunpack.c.h.b16 %v1235
    %v2348 = vunpack.c.l.b16 %v1236
    %v2349 = vunpack.c.h.b16 %v1236
    %v2350 = vunpack.c.l.b16 %v1237
    %v2351 = vunpack.c.h.b16 %v1237
    %v2352 = vunpack.c.l.b16 %v1238
    %v2353 = vunpack.c.h.b16 %v1238
    %v2354 = vunpack.c.l.b16 %v1239
    %v2355 = vunpack.c.h.b16 %v1239
    %v2356 = vunpack.c.l.b16 %v1240
    %v2357 = vunpack.c.h.b16 %v1240
    %v2358 = vunpack.c.l.b16 %v1241
    %v2359 = vunpack.c.h.b16 %v1241
    %v2360 = vunpack.c.l.b16 %v1242
    %v2361 = vunpack.c.h.b16 %v1242
    %v2362 = vunpack.c.l.b16 %v1243
    %v2363 = vunpack.c.h.b16 %v1243
    %v2364 = vunpack.c.l.b16 %v1244
    %v2365 = vunpack.c.h.b16 %v1244
    %v2366 = vunpack.c.l.b16 %v1245
    %v2367 = vunpack.c.h.b16 %v1245
    %v2368 = vunpack.c.l.b16 %v1246
    %v2369 = vunpack.c.h.b16 %v1246
    %v2370 = vunpack.c.l.b16 %v1247
    %v2371 = vunpack.c.h.b16 %v1247
    %v2372 = vunpack.c.l.b16 %v1248
    %v2373 = vunpack.c.h.b16 %v1248
    %v2374 = vunpack.c.l.b16 %v1249
    %v2375 = vunpack.c.h.b16 %v1249
    %v2376 = vunpack.c.l.b16 %v1250
    %v2377 = vunpack.c.h.b16 %v1250
    %v2378 = vunpack.c.l.b16 %v1251
    %v2379 = vunpack.c.h.b16 %v1251
    %v2380 = vunpack.c.l.b16 %v1252
    %v2381 = vunpack.c.h.b16 %v1252
    %v2382 = vunpack.c.l.b16 %v1253
    %v2383 = vunpack.c.h.b16 %v1253
    %v2384 = vunpack.c.l.b16 %v1254
    %v2385 = vunpack.c.h.b16 %v1254
    %v2386 = vunpack.c.l.b16 %v1255
    %v2387 = vunpack.c.h.b16 %v1255
    %v2388 = vunpack.c.l.b16 %v1256
    %v2389 = vunpack.c.h.b16 %v1256
    %v2390 = vunpack.c.l.b16 %v1257
    %v2391 = vunpack.c.h.b16 %v1257
    %v2392 = vunpack.c.l.b16 %v1258
    %v2393 = vunpack.c.h.b16 %v1258
    %v2394 = vunpack.c.l.b16 %v1259
    %v2395 = vunpack.c.h.b16 %v1259
    %v2396 = vunpack.c.l.b16 %v1260
    %v2397 = vunpack.c.h.b16 %v1260
    %v2398 = vunpack.c.l.b16 %v1261
    %v2399 = vunpack.c.h.b16 %v1261
    %v2400 = vunpack.c.l.b16 %v1262
    %v2401 = vunpack.c.h.b16 %v1262
    %v2402 = vunpack.c.l.b16 %v1263
    %v2403 = vunpack.c.h.b16 %v1263
    %v2404 = vunpack.c.l.b16 %v1264
    %v2405 = vunpack.c.h.b16 %v1264
    %v2406 = vunpack.c.l.b16 %v1265
    %v2407 = vunpack.c.h.b16 %v1265
    %v2408 = vunpack.c.l.b16 %v1266
    %v2409 = vunpack.c.h.b16 %v1266
    %v2410 = vunpack.c.l.b16 %v1267
    %v2411 = vunpack.c.h.b16 %v1267
    %v2412 = vunpack.c.l.b16 %v1268
    %v2413 = vunpack.c.h.b16 %v1268
    %v2414 = vunpack.c.l.b16 %v1269
    %v2415 = vunpack.c.h.b16 %v1269
    %v2416 = vunpack.c.l.b16 %v1270
    %v2417 = vunpack.c.h.b16 %v1270
    %v2418 = vunpack.c.l.b16 %v1271
    %v2419 = vunpack.c.h.b16 %v1271
    %v2420 = vunpack.c.l.b16 %v1272
    %v2421 = vunpack.c.h.b16 %v1272
    %v2422 = vunpack.c.l.b16 %v1273
    %v2423 = vunpack.c.h.b16 %v1273
    %v2424 = vunpack.c.l.b16 %v1274
    %v2425 = vunpack.c.h.b16 %v1274
    %v2426 = vunpack.c.l.b16 %v1275
    %v2427 = vunpack.c.h.b16 %v1275
    %v2428 = vunpack.c.l.b16 %v1276
    %v2429 = vunpack.c.h.b16 %v1276
    %v2430 = vunpack.c.l.b16 %v1277
    %v2431 = vunpack.c.h.b16 %v1277
    %v2432 = vunpack.c.l.b16 %v1278
    %v2433 = vunpack.c.h.b16 %v1278
    %v2434 = vunpack.c.l.b16 %v1279
    %v2435 = vunpack.c.h.b16 %v1279
    %v2436 = vunpack.c.l.b16 %v1280
    %v2437 = vunpack.c.h.b16 %v1280
    %v2438 = vunpack.c.l.b16 %v1281
    %v2439 = vunpack.c.h.b16 %v1281
    %v2440 = vunpack.c.l.b16 %v1282
    %v2441 = vunpack.c.h.b16 %v1282
    %v2442 = vunpack.c.l.b16 %v1283
    %v2443 = vunpack.c.h.b16 %v1283
    %v2444 = vunpack.c.l.b16 %v1284
    %v2445 = vunpack.c.h.b16 %v1284
    %v2446 = vunpack.c.l.b16 %v1285
    %v2447 = vunpack.c.h.b16 %v1285
    %v2448 = vunpack.c.l.b16 %v1286
    %v2449 = vunpack.c.h.b16 %v1286
    %v2450 = vunpack.c.l.b16 %v1287
    %v2451 = vunpack.c.h.b16 %v1287
    %v2452 = vunpack.c.l.b16 %v1288
    %v2453 = vunpack.c.h.b16 %v1288
    %v2454 = vunpack.c.l.b16 %v1289
    %v2455 = vunpack.c.h.b16 %v1289
    %v2456 = vunpack.c.l.b16 %v1290
    %v2457 = vunpack.c.h.b16 %v1290
    %v2458 = vunpack.c.l.b16 %v1291
    %v2459 = vunpack.c.h.b16 %v1291
    %v2460 = vunpack.c.l.b16 %v1292
    %v2461 = vunpack.c.h.b16 %v1292
    %v2462 = vunpack.c.l.b16 %v1293
    %v2463 = vunpack.c.h.b16 %v1293
    %v2464 = vunpack.c.l.b16 %v1294
    %v2465 = vunpack.c.h.b16 %v1294
    %v2466 = vunpack.c.l.b16 %v1295
    %v2467 = vunpack.c.h.b16 %v1295
    %v2468 = vunpack.c.l.b16 %v1296
    %v2469 = vunpack.c.h.b16 %v1296
    %v2470 = vunpack.c.l.b16 %v1297
    %v2471 = vunpack.c.h.b16 %v1297
    %v2472 = vunpack.c.l.b16 %v1298
    %v2473 = vunpack.c.h.b16 %v1298
    %v2474 = vunpack.c.l.b16 %v1299
    %v2475 = vunpack.c.h.b16 %v1299
    %v2476 = vunpack.c.l.b16 %v1300
    %v2477 = vunpack.c.h.b16 %v1300
    %v2478 = vunpack.c.l.b16 %v1301
    %v2479 = vunpack.c.h.b16 %v1301
    %v2480 = vunpack.c.l.b16 %v1302
    %v2481 = vunpack.c.h.b16 %v1302
    %v2482 = vunpack.c.l.b16 %v1303
    %v2483 = vunpack.c.h.b16 %v1303
    %v2484 = vunpack.c.l.b16 %v1304
    %v2485 = vunpack.c.h.b16 %v1304
    %v2486 = vunpack.c.l.b16 %v1305
    %v2487 = vunpack.c.h.b16 %v1305
    %v2488 = vunpack.c.l.b16 %v1306
    %v2489 = vunpack.c.h.b16 %v1306
    %v2490 = vunpack.c.l.b16 %v1307
    %v2491 = vunpack.c.h.b16 %v1307
    %v2492 = vunpack.c.l.b16 %v1308
    %v2493 = vunpack.c.h.b16 %v1308
    %v2494 = vunpack.c.l.b16 %v1309
    %v2495 = vunpack.c.h.b16 %v1309
    %v2496 = vunpack.c.l.b16 %v1310
    %v2497 = vunpack.c.h.b16 %v1310
    %v2498 = vunpack.c.l.b16 %v1311
    %v2499 = vunpack.c.h.b16 %v1311
    %v2500 = vunpack.c.l.b16 %v1312
    %v2501 = vunpack.c.h.b16 %v1312
    %v2502 = vunpack.c.l.b16 %v1313
    %v2503 = vunpack.c.h.b16 %v1313
    %v2504 = vunpack.c.l.b16 %v1314
    %v2505 = vunpack.c.h.b16 %v1314
    %v2506 = vunpack.c.l.b16 %v1315
    %v2507 = vunpack.c.h.b16 %v1315
    %v2508 = vunpack.c.l.b16 %v1316
    %v2509 = vunpack.c.h.b16 %v1316
    %v2510 = vunpack.c.l.b16 %v1317
    %v2511 = vunpack.c.h.b16 %v1317
    %v2512 = vpack.c.b16 %v1752, %v1744
    %v2513 = vpack.c.b16 %v1753, %v1745
    %v2514 = vpack.c.b16 %v1754, %v1746
    %v2515 = vpack.c.b16 %v1755, %v1747
    %v2516 = vpack.c.b16 %v1756, %v1748
    %v2517 = vpack.c.b16 %v1757, %v1749
    %v2518 = vpack.c.b16 %v1758, %v1750
    %v2519 = vpack.c.b16 %v1759, %v1751
    %v2520 = vpack.c.b16 %v1768, %v1760
    %v2521 = vpack.c.b16 %v1769, %v1761
    %v2522 = vpack.c.b16 %v1770, %v1762
    %v2523 = vpack.c.b16 %v1771, %v1763
    %v2524 = vpack.c.b16 %v1772, %v1764
    %v2525 = vpack.c.b16 %v1773, %v1765
    %v2526 = vpack.c.b16 %v1774, %v1766
    %v2527 = vpack.c.b16 %v1775, %v1767
    %v2528 = vpack.c.b16 %v1784, %v1776
    %v2529 = vpack.c.b16 %v1785, %v1777
    %v2530 = vpack.c.b16 %v1786, %v1778
    %v2531 = vpack.c.b16 %v1787, %v1779
    %v2532 = vpack.c.b16 %v1788, %v1780
    %v2533 = vpack.c.b16 %v1789, %v1781
    %v2534 = vpack.c.b16 %v1790, %v1782
    %v2535 = vpack.c.b16 %v1791, %v1783
    %v2536 = vpack.c.b16 %v1800, %v1792
    %v2537 = vpack.c.b16 %v1801, %v1793
    %v2538 = vpack.c.b16 %v1802, %v1794
    %v2539 = vpack.c.b16 %v1803, %v1795
    %v2540 = vpack.c.b16 %v1804, %v1796
    %v2541 = vpack.c.b16 %v1805, %v1797
    %v2542 = vpack.c.b16 %v1806, %v1798
    %v2543 = vpack.c.b16 %v1807, %v1799
    %v2544 = vpack.c.b16 %v1816, %v1808
    %v2545 = vpack.c.b16 %v1817, %v1809
    %v2546 = vpack.c.b16 %v1818, %v1810
    %v2547 = vpack.c.b16 %v1819, %v1811
    %v2548 = vpack.c.b16 %v1820, %v1812
    %v2549 = vpack.c.b16 %v1821, %v1813
    %v2550 = vpack.c.b16 %v1822, %v1814
    %v2551 = vpack.c.b16 %v1823, %v1815
    %v2552 = vpack.c.b16 %v1832, %v1824
    %v2553 = vpack.c.b16 %v1833, %v1825
    %v2554 = vpack.c.b16 %v1834, %v1826
    %v2555 = vpack.c.b16 %v1835, %v1827
    %v2556 = vpack.c.b16 %v1836, %v1828
    %v2557 = vpack.c.b16 %v1837, %v1829
    %v2558 = vpack.c.b16 %v1838, %v1830
    %v2559 = vpack.c.b16 %v1839, %v1831
    %v2560 = vpack.c.b16 %v1848, %v1840
    %v2561 = vpack.c.b16 %v1849, %v1841
    %v2562 = vpack.c.b16 %v1850, %v1842
    %v2563 = vpack.c.b16 %v1851, %v1843
    %v2564 = vpack.c.b16 %v1852, %v1844
    %v2565 = vpack.c.b16 %v1853, %v1845
    %v2566 = vpack.c.b16 %v1854, %v1846
    %v2567 = vpack.c.b16 %v1855, %v1847
    %v2568 = vpack.c.b16 %v1864, %v1856
    %v2569 = vpack.c.b16 %v1865, %v1857
    %v2570 = vpack.c.b16 %v1866, %v1858
    %v2571 = vpack.c.b16 %v1867, %v1859
    %v2572 = vpack.c.b16 %v1868, %v1860
    %v2573 = vpack.c.b16 %v1869, %v1861
    %v2574 = vpack.c.b16 %v1870, %v1862
    %v2575 = vpack.c.b16 %v1871, %v1863
    %v2576 = vpack.c.b16 %v1880, %v1872
    %v2577 = vpack.c.b16 %v1881, %v1873
    %v2578 = vpack.c.b16 %v1882, %v1874
    %v2579 = vpack.c.b16 %v1883, %v1875
    %v2580 = vpack.c.b16 %v1884, %v1876
    %v2581 = vpack.c.b16 %v1885, %v1877
    %v2582 = vpack.c.b16 %v1886, %v1878
    %v2583 = vpack.c.b16 %v1887, %v1879
    %v2584 = vpack.c.b16 %v1896, %v1888
    %v2585 = vpack.c.b16 %v1897, %v1889
    %v2586 = vpack.c.b16 %v1898, %v1890
    %v2587 = vpack.c.b16 %v1899, %v1891
    %v2588 = vpack.c.b16 %v1900, %v1892
    %v2589 = vpack.c.b16 %v1901, %v1893
    %v2590 = vpack.c.b16 %v1902, %v1894
    %v2591 = vpack.c.b16 %v1903, %v1895
    %v2592 = vpack.c.b16 %v1912, %v1904
    %v2593 = vpack.c.b16 %v1913, %v1905
    %v2594 = vpack.c.b16 %v1914, %v1906
    %v2595 = vpack.c.b16 %v1915, %v1907
    %v2596 = vpack.c.b16 %v1916, %v1908
    %v2597 = vpack.c.b16 %v1917, %v1909
    %v2598 = vpack.c.b16 %v1918, %v1910
    %v2599 = vpack.c.b16 %v1919, %v1911
    %v2600 = vpack.c.b16 %v1928, %v1920
    %v2601 = vpack.c.b16 %v1929, %v1921
    %v2602 = vpack.c.b16 %v1930, %v1922
    %v2603 = vpack.c.b16 %v1931, %v1923
    %v2604 = vpack.c.b16 %v1932, %v1924
    %v2605 = vpack.c.b16 %v1933, %v1925
    %v2606 = vpack.c.b16 %v1934, %v1926
    %v2607 = vpack.c.b16 %v1935, %v1927
    %v2608 = vpack.c.b16 %v1944, %v1936
    %v2609 = vpack.c.b16 %v1945, %v1937
    %v2610 = vpack.c.b16 %v1946, %v1938
    %v2611 = vpack.c.b16 %v1947, %v1939
    %v2612 = vpack.c.b16 %v1948, %v1940
    %v2613 = vpack.c.b16 %v1949, %v1941
    %v2614 = vpack.c.b16 %v1950, %v1942
    %v2615 = vpack.c.b16 %v1951, %v1943
    %v2616 = vpack.c.b16 %v1960, %v1952
    %v2617 = vpack.c.b16 %v1961, %v1953
    %v2618 = vpack.c.b16 %v1962, %v1954
    %v2619 = vpack.c.b16 %v1963, %v1955
    %v2620 = vpack.c.b16 %v1964, %v1956
    %v2621 = vpack.c.b16 %v1965, %v1957
    %v2622 = vpack.c.b16 %v1966, %v1958
    %v2623 = vpack.c.b16 %v1967, %v1959
    %v2624 = vpack.c.b16 %v1976, %v1968
    %v2625 = vpack.c.b16 %v1977, %v1969
    %v2626 = vpack.c.b16 %v1978, %v1970
    %v2627 = vpack.c.b16 %v1979, %v1971
    %v2628 = vpack.c.b16 %v1980, %v1972
    %v2629 = vpack.c.b16 %v1981, %v1973
    %v2630 = vpack.c.b16 %v1982, %v1974
    %v2631 = vpack.c.b16 %v1983, %v1975
    %v2632 = vpack.c.b16 %v1992, %v1984
    %v2633 = vpack.c.b16 %v1993, %v1985
    %v2634 = vpack.c.b16 %v1994, %v1986
    %v2635 = vpack.c.b16 %v1995, %v1987
    %v2636 = vpack.c.b16 %v1996, %v1988
    %v2637 = vpack.c.b16 %v1997, %v1989
    %v2638 = vpack.c.b16 %v1998, %v1990
    %v2639 = vpack.c.b16 %v1999, %v1991
    %v2640 = vpack.c.b16 %v2008, %v2000
    %v2641 = vpack.c.b16 %v2009, %v2001
    %v2642 = vpack.c.b16 %v2010, %v2002
    %v2643 = vpack.c.b16 %v2011, %v2003
    %v2644 = vpack.c.b16 %v2012, %v2004
    %v2645 = vpack.c.b16 %v2013, %v2005
    %v2646 = vpack.c.b16 %v2014, %v2006
    %v2647 = vpack.c.b16 %v2015, %v2007
    %v2648 = vpack.c.b16 %v2024, %v2016
    %v2649 = vpack.c.b16 %v2025, %v2017
    %v2650 = vpack.c.b16 %v2026, %v2018
    %v2651 = vpack.c.b16 %v2027, %v2019
    %v2652 = vpack.c.b16 %v2028, %v2020
    %v2653 = vpack.c.b16 %v2029, %v2021
    %v2654 = vpack.c.b16 %v2030, %v2022
    %v2655 = vpack.c.b16 %v2031, %v2023
    %v2656 = vpack.c.b16 %v2040, %v2032
    %v2657 = vpack.c.b16 %v2041, %v2033
    %v2658 = vpack.c.b16 %v2042, %v2034
    %v2659 = vpack.c.b16 %v2043, %v2035
    %v2660 = vpack.c.b16 %v2044, %v2036
    %v2661 = vpack.c.b16 %v2045, %v2037
    %v2662 = vpack.c.b16 %v2046, %v2038
    %v2663 = vpack.c.b16 %v2047, %v2039
    %v2664 = vpack.c.b16 %v2056, %v2048
    %v2665 = vpack.c.b16 %v2057, %v2049
    %v2666 = vpack.c.b16 %v2058, %v2050
    %v2667 = vpack.c.b16 %v2059, %v2051
    %v2668 = vpack.c.b16 %v2060, %v2052
    %v2669 = vpack.c.b16 %v2061, %v2053
    %v2670 = vpack.c.b16 %v2062, %v2054
    %v2671 = vpack.c.b16 %v2063, %v2055
    %v2672 = vpack.c.b16 %v2072, %v2064
    %v2673 = vpack.c.b16 %v2073, %v2065
    %v2674 = vpack.c.b16 %v2074, %v2066
    %v2675 = vpack.c.b16 %v2075, %v2067
    %v2676 = vpack.c.b16 %v2076, %v2068
    %v2677 = vpack.c.b16 %v2077, %v2069
    %v2678 = vpack.c.b16 %v2078, %v2070
    %v2679 = vpack.c.b16 %v2079, %v2071
    %v2680 = vpack.c.b16 %v2088, %v2080
    %v2681 = vpack.c.b16 %v2089, %v2081
    %v2682 = vpack.c.b16 %v2090, %v2082
    %v2683 = vpack.c.b16 %v2091, %v2083
    %v2684 = vpack.c.b16 %v2092, %v2084
    %v2685 = vpack.c.b16 %v2093, %v2085
    %v2686 = vpack.c.b16 %v2094, %v2086
    %v2687 = vpack.c.b16 %v2095, %v2087
    %v2688 = vpack.c.b16 %v2104, %v2096
    %v2689 = vpack.c.b16 %v2105, %v2097
    %v2690 = vpack.c.b16 %v2106, %v2098
    %v2691 = vpack.c.b16 %v2107, %v2099
    %v2692 = vpack.c.b16 %v2108, %v2100
    %v2693 = vpack.c.b16 %v2109, %v2101
    %v2694 = vpack.c.b16 %v2110, %v2102
    %v2695 = vpack.c.b16 %v2111, %v2103
    %v2696 = vpack.c.b16 %v2120, %v2112
    %v2697 = vpack.c.b16 %v2121, %v2113
    %v2698 = vpack.c.b16 %v2122, %v2114
    %v2699 = vpack.c.b16 %v2123, %v2115
    %v2700 = vpack.c.b16 %v2124, %v2116
    %v2701 = vpack.c.b16 %v2125, %v2117
    %v2702 = vpack.c.b16 %v2126, %v2118
    %v2703 = vpack.c.b16 %v2127, %v2119
    %v2704 = vpack.c.b16 %v2136, %v2128
    %v2705 = vpack.c.b16 %v2137, %v2129
    %v2706 = vpack.c.b16 %v2138, %v2130
    %v2707 = vpack.c.b16 %v2139, %v2131
    %v2708 = vpack.c.b16 %v2140, %v2132
    %v2709 = vpack.c.b16 %v2141, %v2133
    %v2710 = vpack.c.b16 %v2142, %v2134
    %v2711 = vpack.c.b16 %v2143, %v2135
    %v2712 = vpack.c.b16 %v2152, %v2144
    %v2713 = vpack.c.b16 %v2153, %v2145
    %v2714 = vpack.c.b16 %v2154, %v2146
    %v2715 = vpack.c.b16 %v2155, %v2147
    %v2716 = vpack.c.b16 %v2156, %v2148
    %v2717 = vpack.c.b16 %v2157, %v2149
    %v2718 = vpack.c.b16 %v2158, %v2150
    %v2719 = vpack.c.b16 %v2159, %v2151
    %v2720 = vpack.c.b16 %v2168, %v2160
    %v2721 = vpack.c.b16 %v2169, %v2161
    %v2722 = vpack.c.b16 %v2170, %v2162
    %v2723 = vpack.c.b16 %v2171, %v2163
    %v2724 = vpack.c.b16 %v2172, %v2164
    %v2725 = vpack.c.b16 %v2173, %v2165
    %v2726 = vpack.c.b16 %v2174, %v2166
    %v2727 = vpack.c.b16 %v2175, %v2167
    %v2728 = vpack.c.b16 %v2184, %v2176
    %v2729 = vpack.c.b16 %v2185, %v2177
    %v2730 = vpack.c.b16 %v2186, %v2178
    %v2731 = vpack.c.b16 %v2187, %v2179
    %v2732 = vpack.c.b16 %v2188, %v2180
    %v2733 = vpack.c.b16 %v2189, %v2181
    %v2734 = vpack.c.b16 %v2190, %v2182
    %v2735 = vpack.c.b16 %v2191, %v2183
    %v2736 = vpack.c.b16 %v2200, %v2192
    %v2737 = vpack.c.b16 %v2201, %v2193
    %v2738 = vpack.c.b16 %v2202, %v2194
    %v2739 = vpack.c.b16 %v2203, %v2195
    %v2740 = vpack.c.b16 %v2204, %v2196
    %v2741 = vpack.c.b16 %v2205, %v2197
    %v2742 = vpack.c.b16 %v2206, %v2198
    %v2743 = vpack.c.b16 %v2207, %v2199
    %v2744 = vpack.c.b16 %v2216, %v2208
    %v2745 = vpack.c.b16 %v2217, %v2209
    %v2746 = vpack.c.b16 %v2218, %v2210
    %v2747 = vpack.c.b16 %v2219, %v2211
    %v2748 = vpack.c.b16 %v2220, %v2212
    %v2749 = vpack.c.b16 %v2221, %v2213
    %v2750 = vpack.c.b16 %v2222, %v2214
    %v2751 = vpack.c.b16 %v2223, %v2215
    %v2752 = vpack.c.b16 %v2232, %v2224
    %v2753 = vpack.c.b16 %v2233, %v2225
    %v2754 = vpack.c.b16 %v2234, %v2226
    %v2755 = vpack.c.b16 %v2235, %v2227
    %v2756 = vpack.c.b16 %v2236, %v2228
    %v2757 = vpack.c.b16 %v2237, %v2229
    %v2758 = vpack.c.b16 %v2238, %v2230
    %v2759 = vpack.c.b16 %v2239, %v2231
    %v2760 = vpack.c.b16 %v2248, %v2240
    %v2761 = vpack.c.b16 %v2249, %v2241
    %v2762 = vpack.c.b16 %v2250, %v2242
    %v2763 = vpack.c.b16 %v2251, %v2243
    %v2764 = vpack.c.b16 %v2252, %v2244
    %v2765 = vpack.c.b16 %v2253, %v2245
    %v2766 = vpack.c.b16 %v2254, %v2246
    %v2767 = vpack.c.b16 %v2255, %v2247
    %v2768 = vpack.c.b16 %v2264, %v2256
    %v2769 = vpack.c.b16 %v2265, %v2257
    %v2770 = vpack.c.b16 %v2266, %v2258
    %v2771 = vpack.c.b16 %v2267, %v2259
    %v2772 = vpack.c.b16 %v2268, %v2260
    %v2773 = vpack.c.b16 %v2269, %v2261
    %v2774 = vpack.c.b16 %v2270, %v2262
    %v2775 = vpack.c.b16 %v2271, %v2263
    %v2776 = vpack.c.b16 %v2280, %v2272
    %v2777 = vpack.c.b16 %v2281, %v2273
    %v2778 = vpack.c.b16 %v2282, %v2274
    %v2779 = vpack.c.b16 %v2283, %v2275
    %v2780 = vpack.c.b16 %v2284, %v2276
    %v2781 = vpack.c.b16 %v2285, %v2277
    %v2782 = vpack.c.b16 %v2286, %v2278
    %v2783 = vpack.c.b16 %v2287, %v2279
    %v2784 = vpack.c.b16 %v2296, %v2288
    %v2785 = vpack.c.b16 %v2297, %v2289
    %v2786 = vpack.c.b16 %v2298, %v2290
    %v2787 = vpack.c.b16 %v2299, %v2291
    %v2788 = vpack.c.b16 %v2300, %v2292
    %v2789 = vpack.c.b16 %v2301, %v2293
    %v2790 = vpack.c.b16 %v2302, %v2294
    %v2791 = vpack.c.b16 %v2303, %v2295
    %v2792 = vpack.c.b16 %v2312, %v2304
    %v2793 = vpack.c.b16 %v2313, %v2305
    %v2794 = vpack.c.b16 %v2314, %v2306
    %v2795 = vpack.c.b16 %v2315, %v2307
    %v2796 = vpack.c.b16 %v2316, %v2308
    %v2797 = vpack.c.b16 %v2317, %v2309
    %v2798 = vpack.c.b16 %v2318, %v2310
    %v2799 = vpack.c.b16 %v2319, %v2311
    %v2800 = vpack.c.b16 %v2328, %v2320
    %v2801 = vpack.c.b16 %v2329, %v2321
    %v2802 = vpack.c.b16 %v2330, %v2322
    %v2803 = vpack.c.b16 %v2331, %v2323
    %v2804 = vpack.c.b16 %v2332, %v2324
    %v2805 = vpack.c.b16 %v2333, %v2325
    %v2806 = vpack.c.b16 %v2334, %v2326
    %v2807 = vpack.c.b16 %v2335, %v2327
    %v2808 = vpack.c.b16 %v2344, %v2336
    %v2809 = vpack.c.b16 %v2345, %v2337
    %v2810 = vpack.c.b16 %v2346, %v2338
    %v2811 = vpack.c.b16 %v2347, %v2339
    %v2812 = vpack.c.b16 %v2348, %v2340
    %v2813 = vpack.c.b16 %v2349, %v2341
    %v2814 = vpack.c.b16 %v2350, %v2342
    %v2815 = vpack.c.b16 %v2351, %v2343
    %v2816 = vpack.c.b16 %v2360, %v2352
    %v2817 = vpack.c.b16 %v2361, %v2353
    %v2818 = vpack.c.b16 %v2362, %v2354
    %v2819 = vpack.c.b16 %v2363, %v2355
    %v2820 = vpack.c.b16 %v2364, %v2356
    %v2821 = vpack.c.b16 %v2365, %v2357
    %v2822 = vpack.c.b16 %v2366, %v2358
    %v2823 = vpack.c.b16 %v2367, %v2359
    %v2824 = vpack.c.b16 %v2376, %v2368
    %v2825 = vpack.c.b16 %v2377, %v2369
    %v2826 = vpack.c.b16 %v2378, %v2370
    %v2827 = vpack.c.b16 %v2379, %v2371
    %v2828 = vpack.c.b16 %v2380, %v2372
    %v2829 = vpack.c.b16 %v2381, %v2373
    %v2830 = vpack.c.b16 %v2382, %v2374
    %v2831 = vpack.c.b16 %v2383, %v2375
    %v2832 = vpack.c.b16 %v2392, %v2384
    %v2833 = vpack.c.b16 %v2393, %v2385
    %v2834 = vpack.c.b16 %v2394, %v2386
    %v2835 = vpack.c.b16 %v2395, %v2387
    %v2836 = vpack.c.b16 %v2396, %v2388
    %v2837 = vpack.c.b16 %v2397, %v2389
    %v2838 = vpack.c.b16 %v2398, %v2390
    %v2839 = vpack.c.b16 %v2399, %v2391
    %v2840 = vpack.c.b16 %v2408, %v2400
    %v2841 = vpack.c.b16 %v2409, %v2401
    %v2842 = vpack.c.b16 %v2410, %v2402
    %v2843 = vpack.c.b16 %v2411, %v2403
    %v2844 = vpack.c.b16 %v2412, %v2404
    %v2845 = vpack.c.b16 %v2413, %v2405
    %v2846 = vpack.c.b16 %v2414, %v2406
    %v2847 = vpack.c.b16 %v2415, %v2407
    %v2848 = vpack.c.b16 %v2424, %v2416
    %v2849 = vpack.c.b16 %v2425, %v2417
    %v2850 = vpack.c.b16 %v2426, %v2418
    %v2851 = vpack.c.b16 %v2427, %v2419
    %v2852 = vpack.c.b16 %v2428, %v2420
    %v2853 = vpack.c.b16 %v2429, %v2421
    %v2854 = vpack.c.b16 %v2430, %v2422
    %v2855 = vpack.c.b16 %v2431, %v2423
    %v2856 = vpack.c.b16 %v2440, %v2432
    %v2857 = vpack.c.b16 %v2441, %v2433
    %v2858 = vpack.c.b16 %v2442, %v2434
    %v2859 = vpack.c.b16 %v2443, %v2435
    %v2860 = vpack.c.b16 %v2444, %v2436
    %v2861 = vpack.c.b16 %v2445, %v2437
    %v2862 = vpack.c.b16 %v2446, %v2438
    %v2863 = vpack.c.b16 %v2447, %v2439
    %v2864 = vpack.c.b16 %v2456, %v2448
    %v2865 = vpack.c.b16 %v2457, %v2449
    %v2866 = vpack.c.b16 %v2458, %v2450
    %v2867 = vpack.c.b16 %v2459, %v2451
    %v2868 = vpack.c.b16 %v2460, %v2452
    %v2869 = vpack.c.b16 %v2461, %v2453
    %v2870 = vpack.c.b16 %v2462, %v2454
    %v2871 = vpack.c.b16 %v2463, %v2455
    %v2872 = vpack.c.b16 %v2472, %v2464
    %v2873 = vpack.c.b16 %v2473, %v2465
    %v2874 = vpack.c.b16 %v2474, %v2466
    %v2875 = vpack.c.b16 %v2475, %v2467
    %v2876 = vpack.c.b16 %v2476, %v2468
    %v2877 = vpack.c.b16 %v2477, %v2469
    %v2878 = vpack.c.b16 %v2478, %v2470
    %v2879 = vpack.c.b16 %v2479, %v2471
    %v2880 = vpack.c.b16 %v2488, %v2480
    %v2881 = vpack.c.b16 %v2489, %v2481
    %v2882 = vpack.c.b16 %v2490, %v2482
    %v2883 = vpack.c.b16 %v2491, %v2483
    %v2884 = vpack.c.b16 %v2492, %v2484
    %v2885 = vpack.c.b16 %v2493, %v2485
    %v2886 = vpack.c.b16 %v2494, %v2486
    %v2887 = vpack.c.b16 %v2495, %v2487
    %v2888 = vpack.c.b16 %v2504, %v2496
    %v2889 = vpack.c.b16 %v2505, %v2497
    %v2890 = vpack.c.b16 %v2506, %v2498
    %v2891 = vpack.c.b16 %v2507, %v2499
    %v2892 = vpack.c.b16 %v2508, %v2500
    %v2893 = vpack.c.b16 %v2509, %v2501
    %v2894 = vpack.c.b16 %v2510, %v2502
    %v2895 = vpack.c.b16 %v2511, %v2503
    %3280 = vmatprep.subr.bf16.mxu0 %v2569
    %3281 = vmatpush1.bf16.msra.mxu0 %v2568
    %3282 = vmatprep.subr.bf16.mxu0 %v2561
    %3283 = vmatpush1.bf16.msra.mxu0 %v2560
    %3284 = vmatprep.subr.bf16.mxu0 %v2553
    %3285 = vmatpush1.bf16.msra.mxu0 %v2552
    %3286 = vmatprep.subr.bf16.mxu0 %v2545
    %3287 = vmatpush1.bf16.msra.mxu0 %v2544
    %3288 = vmatprep.subr.bf16.mxu0 %v2537
    %3289 = vmatpush1.bf16.msra.mxu0 %v2536
    %3290 = vmatprep.subr.bf16.mxu0 %v2529
    %3291 = vmatpush1.bf16.msra.mxu0 %v2528
    %3292 = vmatprep.subr.bf16.mxu0 %v2521
    %3293 = vmatpush1.bf16.msra.mxu0 %v2520
    %3294 = vmatprep.subr.bf16.mxu0 %v2513
    %3295 = vmatpush1.bf16.msra.mxu0 %v2512
    %3296 = vmatprep.subr.bf16.mxu0 %v2633
    %3297 = vmatpush2.bf16.msra.mxu0 %v2632
    %3298 = vmatprep.subr.bf16.mxu0 %v2625
    %3299 = vmatpush2.bf16.msra.mxu0 %v2624
    %3300 = vmatprep.subr.bf16.mxu0 %v2617
    %3301 = vmatpush2.bf16.msra.mxu0 %v2616
    %3302 = vmatprep.subr.bf16.mxu0 %v2609
    %3303 = vmatpush2.bf16.msra.mxu0 %v2608
    %3304 = vmatprep.subr.bf16.mxu0 %v2601
    %3305 = vmatpush2.bf16.msra.mxu0 %v2600
    %3306 = vmatprep.subr.bf16.mxu0 %v2593
    %3307 = vmatpush2.bf16.msra.mxu0 %v2592
    %3308 = vmatprep.subr.bf16.mxu0 %v2585
    %3309 = vmatpush2.bf16.msra.mxu0 %v2584
    %3310 = vmatprep.subr.bf16.mxu0 %v2577
    %3311 = vmatpush2.bf16.msra.mxu0 %v2576
    %3312 = vmatprep.mubr.bf16.mxu0 %v929
    %3313 = vmatmul.mubr.bf16.gmra.mxu0 %v928
    %v3314 = vpop.f32.mrf.mxu0
    %v3315 = vadd.f32 %v1323, %v3314
    %v3316 = vpop.f32.mrf.mxu0
    %v3317 = vadd.f32 %v1327, %v3316
    %v3318 = vpop.f32.mrf.mxu0
    %v3319 = vpop.f32.mrf.mxu0
    %3320 = vdwg.mxu0
    %3321 = vmatprep.subr.bf16.mxu0 %v2697
    %3322 = vmatpush1.bf16.msra.mxu0 %v2696
    %3323 = vmatprep.subr.bf16.mxu0 %v2689
    %3324 = vmatpush1.bf16.msra.mxu0 %v2688
    %3325 = vmatprep.subr.bf16.mxu0 %v2681
    %3326 = vmatpush1.bf16.msra.mxu0 %v2680
    %3327 = vmatprep.subr.bf16.mxu0 %v2673
    %3328 = vmatpush1.bf16.msra.mxu0 %v2672
    %3329 = vmatprep.subr.bf16.mxu0 %v2665
    %3330 = vmatpush1.bf16.msra.mxu0 %v2664
    %3331 = vmatprep.subr.bf16.mxu0 %v2657
    %3332 = vmatpush1.bf16.msra.mxu0 %v2656
    %3333 = vmatprep.subr.bf16.mxu0 %v2649
    %3334 = vmatpush1.bf16.msra.mxu0 %v2648
    %3335 = vmatprep.subr.bf16.mxu0 %v2641
    %3336 = vmatpush1.bf16.msra.mxu0 %v2640
    %3337 = vmatprep.subr.bf16.mxu0 %v2761
    %3338 = vmatpush2.bf16.msra.mxu0 %v2760
    %3339 = vmatprep.subr.bf16.mxu0 %v2753
    %3340 = vmatpush2.bf16.msra.mxu0 %v2752
    %3341 = vmatprep.subr.bf16.mxu0 %v2745
    %3342 = vmatpush2.bf16.msra.mxu0 %v2744
    %3343 = vmatprep.subr.bf16.mxu0 %v2737
    %3344 = vmatpush2.bf16.msra.mxu0 %v2736
    %3345 = vmatprep.subr.bf16.mxu0 %v2729
    %3346 = vmatpush2.bf16.msra.mxu0 %v2728
    %3347 = vmatprep.subr.bf16.mxu0 %v2721
    %3348 = vmatpush2.bf16.msra.mxu0 %v2720
    %3349 = vmatprep.subr.bf16.mxu0 %v2713
    %3350 = vmatpush2.bf16.msra.mxu0 %v2712
    %3351 = vmatprep.subr.bf16.mxu0 %v2705
    %3352 = vmatpush2.bf16.msra.mxu0 %v2704
    %3353 = vmatprep.mubr.bf16.mxu0 %v931
    %3354 = vmatmul.mubr.bf16.gmra.mxu0 %v930
    %v3355 = vpop.f32.mrf.mxu0
    %v3356 = vadd.f32 %v3315, %v3355
    %v3357 = vpop.f32.mrf.mxu0
    %v3358 = vadd.f32 %v3317, %v3357
    %v3359 = vpop.f32.mrf.mxu0
    %v3360 = vpop.f32.mrf.mxu0
    %3361 = vdwg.mxu0
    %3362 = vmatprep.subr.bf16.mxu0 %v2825
    %3363 = vmatpush1.bf16.msra.mxu0 %v2824
    %3364 = vmatprep.subr.bf16.mxu0 %v2817
    %3365 = vmatpush1.bf16.msra.mxu0 %v2816
    %3366 = vmatprep.subr.bf16.mxu0 %v2809
    %3367 = vmatpush1.bf16.msra.mxu0 %v2808
    %3368 = vmatprep.subr.bf16.mxu0 %v2801
    %3369 = vmatpush1.bf16.msra.mxu0 %v2800
    %3370 = vmatprep.subr.bf16.mxu0 %v2793
    %3371 = vmatpush1.bf16.msra.mxu0 %v2792
    %3372 = vmatprep.subr.bf16.mxu0 %v2785
    %3373 = vmatpush1.bf16.msra.mxu0 %v2784
    %3374 = vmatprep.subr.bf16.mxu0 %v2777
    %3375 = vmatpush1.bf16.msra.mxu0 %v2776
    %3376 = vmatprep.subr.bf16.mxu0 %v2769
    %3377 = vmatpush1.bf16.msra.mxu0 %v2768
    %3378 = vmatprep.subr.bf16.mxu0 %v2889
    %3379 = vmatpush2.bf16.msra.mxu0 %v2888
    %3380 = vmatprep.subr.bf16.mxu0 %v2881
    %3381 = vmatpush2.bf16.msra.mxu0 %v2880
    %3382 = vmatprep.subr.bf16.mxu0 %v2873
    %3383 = vmatpush2.bf16.msra.mxu0 %v2872
    %3384 = vmatprep.subr.bf16.mxu0 %v2865
    %3385 = vmatpush2.bf16.msra.mxu0 %v2864
    %3386 = vmatprep.subr.bf16.mxu0 %v2857
    %3387 = vmatpush2.bf16.msra.mxu0 %v2856
    %3388 = vmatprep.subr.bf16.mxu0 %v2849
    %3389 = vmatpush2.bf16.msra.mxu0 %v2848
    %3390 = vmatprep.subr.bf16.mxu0 %v2841
    %3391 = vmatpush2.bf16.msra.mxu0 %v2840
    %3392 = vmatprep.subr.bf16.mxu0 %v2833
    %3393 = vmatpush2.bf16.msra.mxu0 %v2832
    %3394 = vmatprep.mubr.bf16.mxu0 %v933
    %3395 = vmatmul.mubr.bf16.gmra.mxu0 %v932
    %v3396 = vpop.f32.mrf.mxu0
    %v3397 = vadd.f32 %v3356, %v3396
    %v3398 = vpop.f32.mrf.mxu0
    %v3399 = vadd.f32 %v3358, %v3398
    %v3400 = vpop.f32.mrf.mxu0
    %v3401 = vpop.f32.mrf.mxu0
    %3402 = vdwg.mxu0
    %3403 = vmatprep.subr.bf16.mxu0 %v2571
    %3404 = vmatpush1.bf16.msra.mxu0 %v2570
    %3405 = vmatprep.subr.bf16.mxu0 %v2563
    %3406 = vmatpush1.bf16.msra.mxu0 %v2562
    %3407 = vmatprep.subr.bf16.mxu0 %v2555
    %3408 = vmatpush1.bf16.msra.mxu0 %v2554
    %3409 = vmatprep.subr.bf16.mxu0 %v2547
    %3410 = vmatpush1.bf16.msra.mxu0 %v2546
    %3411 = vmatprep.subr.bf16.mxu0 %v2539
    %3412 = vmatpush1.bf16.msra.mxu0 %v2538
    %3413 = vmatprep.subr.bf16.mxu0 %v2531
    %3414 = vmatpush1.bf16.msra.mxu0 %v2530
    %3415 = vmatprep.subr.bf16.mxu0 %v2523
    %3416 = vmatpush1.bf16.msra.mxu0 %v2522
    %3417 = vmatprep.subr.bf16.mxu0 %v2515
    %3418 = vmatpush1.bf16.msra.mxu0 %v2514
    %3419 = vmatprep.subr.bf16.mxu0 %v2635
    %3420 = vmatpush2.bf16.msra.mxu0 %v2634
    %3421 = vmatprep.subr.bf16.mxu0 %v2627
    %3422 = vmatpush2.bf16.msra.mxu0 %v2626
    %3423 = vmatprep.subr.bf16.mxu0 %v2619
    %3424 = vmatpush2.bf16.msra.mxu0 %v2618
    %3425 = vmatprep.subr.bf16.mxu0 %v2611
    %3426 = vmatpush2.bf16.msra.mxu0 %v2610
    %3427 = vmatprep.subr.bf16.mxu0 %v2603
    %3428 = vmatpush2.bf16.msra.mxu0 %v2602
    %3429 = vmatprep.subr.bf16.mxu0 %v2595
    %3430 = vmatpush2.bf16.msra.mxu0 %v2594
    %3431 = vmatprep.subr.bf16.mxu0 %v2587
    %3432 = vmatpush2.bf16.msra.mxu0 %v2586
    %3433 = vmatprep.subr.bf16.mxu0 %v2579
    %3434 = vmatpush2.bf16.msra.mxu0 %v2578
    %3435 = vmatprep.mubr.bf16.mxu0 %v929
    %3436 = vmatmul.mubr.bf16.gmra.mxu0 %v928
    %v3437 = vpop.f32.mrf.mxu0
    %v3438 = vadd.f32 %v1331, %v3437
    %v3439 = vpop.f32.mrf.mxu0
    %v3440 = vadd.f32 %v1335, %v3439
    %v3441 = vpop.f32.mrf.mxu0
    %v3442 = vpop.f32.mrf.mxu0
    %3443 = vdwg.mxu0
    %3444 = vmatprep.subr.bf16.mxu0 %v2699
    %3445 = vmatpush1.bf16.msra.mxu0 %v2698
    %3446 = vmatprep.subr.bf16.mxu0 %v2691
    %3447 = vmatpush1.bf16.msra.mxu0 %v2690
    %3448 = vmatprep.subr.bf16.mxu0 %v2683
    %3449 = vmatpush1.bf16.msra.mxu0 %v2682
    %3450 = vmatprep.subr.bf16.mxu0 %v2675
    %3451 = vmatpush1.bf16.msra.mxu0 %v2674
    %3452 = vmatprep.subr.bf16.mxu0 %v2667
    %3453 = vmatpush1.bf16.msra.mxu0 %v2666
    %3454 = vmatprep.subr.bf16.mxu0 %v2659
    %3455 = vmatpush1.bf16.msra.mxu0 %v2658
    %3456 = vmatprep.subr.bf16.mxu0 %v2651
    %3457 = vmatpush1.bf16.msra.mxu0 %v2650
    %3458 = vmatprep.subr.bf16.mxu0 %v2643
    %3459 = vmatpush1.bf16.msra.mxu0 %v2642
    %3460 = vmatprep.subr.bf16.mxu0 %v2763
    %3461 = vmatpush2.bf16.msra.mxu0 %v2762
    %3462 = vmatprep.subr.bf16.mxu0 %v2755
    %3463 = vmatpush2.bf16.msra.mxu0 %v2754
    %3464 = vmatprep.subr.bf16.mxu0 %v2747
    %3465 = vmatpush2.bf16.msra.mxu0 %v2746
    %3466 = vmatprep.subr.bf16.mxu0 %v2739
    %3467 = vmatpush2.bf16.msra.mxu0 %v2738
    %3468 = vmatprep.subr.bf16.mxu0 %v2731
    %3469 = vmatpush2.bf16.msra.mxu0 %v2730
    %3470 = vmatprep.subr.bf16.mxu0 %v2723
    %3471 = vmatpush2.bf16.msra.mxu0 %v2722
    %3472 = vmatprep.subr.bf16.mxu0 %v2715
    %3473 = vmatpush2.bf16.msra.mxu0 %v2714
    %3474 = vmatprep.subr.bf16.mxu0 %v2707
    %3475 = vmatpush2.bf16.msra.mxu0 %v2706
    %3476 = vmatprep.mubr.bf16.mxu0 %v931
    %3477 = vmatmul.mubr.bf16.gmra.mxu0 %v930
    %v3478 = vpop.f32.mrf.mxu0
    %v3479 = vadd.f32 %v3438, %v3478
    %v3480 = vpop.f32.mrf.mxu0
    %v3481 = vadd.f32 %v3440, %v3480
    %v3482 = vpop.f32.mrf.mxu0
    %v3483 = vpop.f32.mrf.mxu0
    %3484 = vdwg.mxu0
    %3485 = vmatprep.subr.bf16.mxu0 %v2827
    %3486 = vmatpush1.bf16.msra.mxu0 %v2826
    %3487 = vmatprep.subr.bf16.mxu0 %v2819
    %3488 = vmatpush1.bf16.msra.mxu0 %v2818
    %3489 = vmatprep.subr.bf16.mxu0 %v2811
    %3490 = vmatpush1.bf16.msra.mxu0 %v2810
    %3491 = vmatprep.subr.bf16.mxu0 %v2803
    %3492 = vmatpush1.bf16.msra.mxu0 %v2802
    %3493 = vmatprep.subr.bf16.mxu0 %v2795
    %3494 = vmatpush1.bf16.msra.mxu0 %v2794
    %3495 = vmatprep.subr.bf16.mxu0 %v2787
    %3496 = vmatpush1.bf16.msra.mxu0 %v2786
    %3497 = vmatprep.subr.bf16.mxu0 %v2779
    %3498 = vmatpush1.bf16.msra.mxu0 %v2778
    %3499 = vmatprep.subr.bf16.mxu0 %v2771
    %3500 = vmatpush1.bf16.msra.mxu0 %v2770
    %3501 = vmatprep.subr.bf16.mxu0 %v2891
    %3502 = vmatpush2.bf16.msra.mxu0 %v2890
    %3503 = vmatprep.subr.bf16.mxu0 %v2883
    %3504 = vmatpush2.bf16.msra.mxu0 %v2882
    %3505 = vmatprep.subr.bf16.mxu0 %v2875
    %3506 = vmatpush2.bf16.msra.mxu0 %v2874
    %3507 = vmatprep.subr.bf16.mxu0 %v2867
    %3508 = vmatpush2.bf16.msra.mxu0 %v2866
    %3509 = vmatprep.subr.bf16.mxu0 %v2859
    %3510 = vmatpush2.bf16.msra.mxu0 %v2858
    %3511 = vmatprep.subr.bf16.mxu0 %v2851
    %3512 = vmatpush2.bf16.msra.mxu0 %v2850
    %3513 = vmatprep.subr.bf16.mxu0 %v2843
    %3514 = vmatpush2.bf16.msra.mxu0 %v2842
    %3515 = vmatprep.subr.bf16.mxu0 %v2835
    %3516 = vmatpush2.bf16.msra.mxu0 %v2834
    %3517 = vmatprep.mubr.bf16.mxu0 %v933
    %3518 = vmatmul.mubr.bf16.gmra.mxu0 %v932
    %v3519 = vpop.f32.mrf.mxu0
    %v3520 = vadd.f32 %v3479, %v3519
    %v3521 = vpop.f32.mrf.mxu0
    %v3522 = vadd.f32 %v3481, %v3521
    %v3523 = vpop.f32.mrf.mxu0
    %v3524 = vpop.f32.mrf.mxu0
    %3525 = vdwg.mxu0
    %3526 = vmatprep.subr.bf16.mxu0 %v2573
    %3527 = vmatpush1.bf16.msra.mxu0 %v2572
    %3528 = vmatprep.subr.bf16.mxu0 %v2565
    %3529 = vmatpush1.bf16.msra.mxu0 %v2564
    %3530 = vmatprep.subr.bf16.mxu0 %v2557
    %3531 = vmatpush1.bf16.msra.mxu0 %v2556
    %3532 = vmatprep.subr.bf16.mxu0 %v2549
    %3533 = vmatpush1.bf16.msra.mxu0 %v2548
    %3534 = vmatprep.subr.bf16.mxu0 %v2541
    %3535 = vmatpush1.bf16.msra.mxu0 %v2540
    %3536 = vmatprep.subr.bf16.mxu0 %v2533
    %3537 = vmatpush1.bf16.msra.mxu0 %v2532
    %3538 = vmatprep.subr.bf16.mxu0 %v2525
    %3539 = vmatpush1.bf16.msra.mxu0 %v2524
    %3540 = vmatprep.subr.bf16.mxu0 %v2517
    %3541 = vmatpush1.bf16.msra.mxu0 %v2516
    %3542 = vmatprep.subr.bf16.mxu0 %v2637
    %3543 = vmatpush2.bf16.msra.mxu0 %v2636
    %3544 = vmatprep.subr.bf16.mxu0 %v2629
    %3545 = vmatpush2.bf16.msra.mxu0 %v2628
    %3546 = vmatprep.subr.bf16.mxu0 %v2621
    %3547 = vmatpush2.bf16.msra.mxu0 %v2620
    %3548 = vmatprep.subr.bf16.mxu0 %v2613
    %3549 = vmatpush2.bf16.msra.mxu0 %v2612
    %3550 = vmatprep.subr.bf16.mxu0 %v2605
    %3551 = vmatpush2.bf16.msra.mxu0 %v2604
    %3552 = vmatprep.subr.bf16.mxu0 %v2597
    %3553 = vmatpush2.bf16.msra.mxu0 %v2596
    %3554 = vmatprep.subr.bf16.mxu0 %v2589
    %3555 = vmatpush2.bf16.msra.mxu0 %v2588
    %3556 = vmatprep.subr.bf16.mxu0 %v2581
    %3557 = vmatpush2.bf16.msra.mxu0 %v2580
    %3558 = vmatprep.mubr.bf16.mxu0 %v929
    %3559 = vmatmul.mubr.bf16.gmra.mxu0 %v928
    %v3560 = vpop.f32.mrf.mxu0
    %v3561 = vadd.f32 %v1339, %v3560
    %v3562 = vpop.f32.mrf.mxu0
    %v3563 = vadd.f32 %v1343, %v3562
    %v3564 = vpop.f32.mrf.mxu0
    %v3565 = vpop.f32.mrf.mxu0
    %3566 = vdwg.mxu0
    %3567 = vmatprep.subr.bf16.mxu0 %v2701
    %3568 = vmatpush1.bf16.msra.mxu0 %v2700
    %3569 = vmatprep.subr.bf16.mxu0 %v2693
    %3570 = vmatpush1.bf16.msra.mxu0 %v2692
    %3571 = vmatprep.subr.bf16.mxu0 %v2685
    %3572 = vmatpush1.bf16.msra.mxu0 %v2684
    %3573 = vmatprep.subr.bf16.mxu0 %v2677
    %3574 = vmatpush1.bf16.msra.mxu0 %v2676
    %3575 = vmatprep.subr.bf16.mxu0 %v2669
    %3576 = vmatpush1.bf16.msra.mxu0 %v2668
    %3577 = vmatprep.subr.bf16.mxu0 %v2661
    %3578 = vmatpush1.bf16.msra.mxu0 %v2660
    %3579 = vmatprep.subr.bf16.mxu0 %v2653
    %3580 = vmatpush1.bf16.msra.mxu0 %v2652
    %3581 = vmatprep.subr.bf16.mxu0 %v2645
    %3582 = vmatpush1.bf16.msra.mxu0 %v2644
    %3583 = vmatprep.subr.bf16.mxu0 %v2765
    %3584 = vmatpush2.bf16.msra.mxu0 %v2764
    %3585 = vmatprep.subr.bf16.mxu0 %v2757
    %3586 = vmatpush2.bf16.msra.mxu0 %v2756
    %3587 = vmatprep.subr.bf16.mxu0 %v2749
    %3588 = vmatpush2.bf16.msra.mxu0 %v2748
    %3589 = vmatprep.subr.bf16.mxu0 %v2741
    %3590 = vmatpush2.bf16.msra.mxu0 %v2740
    %3591 = vmatprep.subr.bf16.mxu0 %v2733
    %3592 = vmatpush2.bf16.msra.mxu0 %v2732
    %3593 = vmatprep.subr.bf16.mxu0 %v2725
    %3594 = vmatpush2.bf16.msra.mxu0 %v2724
    %3595 = vmatprep.subr.bf16.mxu0 %v2717
    %3596 = vmatpush2.bf16.msra.mxu0 %v2716
    %3597 = vmatprep.subr.bf16.mxu0 %v2709
    %3598 = vmatpush2.bf16.msra.mxu0 %v2708
    %3599 = vmatprep.mubr.bf16.mxu0 %v931
    %3600 = vmatmul.mubr.bf16.gmra.mxu0 %v930
    %v3601 = vpop.f32.mrf.mxu0
    %v3602 = vadd.f32 %v3561, %v3601
    %v3603 = vpop.f32.mrf.mxu0
    %v3604 = vadd.f32 %v3563, %v3603
    %v3605 = vpop.f32.mrf.mxu0
    %v3606 = vpop.f32.mrf.mxu0
    %3607 = vdwg.mxu0
    %3608 = vmatprep.subr.bf16.mxu0 %v2829
    %3609 = vmatpush1.bf16.msra.mxu0 %v2828
    %3610 = vmatprep.subr.bf16.mxu0 %v2821
    %3611 = vmatpush1.bf16.msra.mxu0 %v2820
    %3612 = vmatprep.subr.bf16.mxu0 %v2813
    %3613 = vmatpush1.bf16.msra.mxu0 %v2812
    %3614 = vmatprep.subr.bf16.mxu0 %v2805
    %3615 = vmatpush1.bf16.msra.mxu0 %v2804
    %3616 = vmatprep.subr.bf16.mxu0 %v2797
    %3617 = vmatpush1.bf16.msra.mxu0 %v2796
    %3618 = vmatprep.subr.bf16.mxu0 %v2789
    %3619 = vmatpush1.bf16.msra.mxu0 %v2788
    %3620 = vmatprep.subr.bf16.mxu0 %v2781
    %3621 = vmatpush1.bf16.msra.mxu0 %v2780
    %3622 = vmatprep.subr.bf16.mxu0 %v2773
    %3623 = vmatpush1.bf16.msra.mxu0 %v2772
    %3624 = vmatprep.subr.bf16.mxu0 %v2893
    %3625 = vmatpush2.bf16.msra.mxu0 %v2892
    %3626 = vmatprep.subr.bf16.mxu0 %v2885
    %3627 = vmatpush2.bf16.msra.mxu0 %v2884
    %3628 = vmatprep.subr.bf16.mxu0 %v2877
    %3629 = vmatpush2.bf16.msra.mxu0 %v2876
    %3630 = vmatprep.subr.bf16.mxu0 %v2869
    %3631 = vmatpush2.bf16.msra.mxu0 %v2868
    %3632 = vmatprep.subr.bf16.mxu0 %v2861
    %3633 = vmatpush2.bf16.msra.mxu0 %v2860
    %3634 = vmatprep.subr.bf16.mxu0 %v2853
    %3635 = vmatpush2.bf16.msra.mxu0 %v2852
    %3636 = vmatprep.subr.bf16.mxu0 %v2845
    %3637 = vmatpush2.bf16.msra.mxu0 %v2844
    %3638 = vmatprep.subr.bf16.mxu0 %v2837
    %3639 = vmatpush2.bf16.msra.mxu0 %v2836
    %3640 = vmatprep.mubr.bf16.mxu0 %v933
    %3641 = vmatmul.mubr.bf16.gmra.mxu0 %v932
    %v3642 = vpop.f32.mrf.mxu0
    %v3643 = vadd.f32 %v3602, %v3642
    %v3644 = vpop.f32.mrf.mxu0
    %v3645 = vadd.f32 %v3604, %v3644
    %v3646 = vpop.f32.mrf.mxu0
    %v3647 = vpop.f32.mrf.mxu0
    %3648 = vdwg.mxu0
    %3649 = vmatprep.subr.bf16.mxu0 %v2575
    %3650 = vmatpush1.bf16.msra.mxu0 %v2574
    %3651 = vmatprep.subr.bf16.mxu0 %v2567
    %3652 = vmatpush1.bf16.msra.mxu0 %v2566
    %3653 = vmatprep.subr.bf16.mxu0 %v2559
    %3654 = vmatpush1.bf16.msra.mxu0 %v2558
    %3655 = vmatprep.subr.bf16.mxu0 %v2551
    %3656 = vmatpush1.bf16.msra.mxu0 %v2550
    %3657 = vmatprep.subr.bf16.mxu0 %v2543
    %3658 = vmatpush1.bf16.msra.mxu0 %v2542
    %3659 = vmatprep.subr.bf16.mxu0 %v2535
    %3660 = vmatpush1.bf16.msra.mxu0 %v2534
    %3661 = vmatprep.subr.bf16.mxu0 %v2527
    %3662 = vmatpush1.bf16.msra.mxu0 %v2526
    %3663 = vmatprep.subr.bf16.mxu0 %v2519
    %3664 = vmatpush1.bf16.msra.mxu0 %v2518
    %3665 = vmatprep.subr.bf16.mxu0 %v2639
    %3666 = vmatpush2.bf16.msra.mxu0 %v2638
    %3667 = vmatprep.subr.bf16.mxu0 %v2631
    %3668 = vmatpush2.bf16.msra.mxu0 %v2630
    %3669 = vmatprep.subr.bf16.mxu0 %v2623
    %3670 = vmatpush2.bf16.msra.mxu0 %v2622
    %3671 = vmatprep.subr.bf16.mxu0 %v2615
    %3672 = vmatpush2.bf16.msra.mxu0 %v2614
    %3673 = vmatprep.subr.bf16.mxu0 %v2607
    %3674 = vmatpush2.bf16.msra.mxu0 %v2606
    %3675 = vmatprep.subr.bf16.mxu0 %v2599
    %3676 = vmatpush2.bf16.msra.mxu0 %v2598
    %3677 = vmatprep.subr.bf16.mxu0 %v2591
    %3678 = vmatpush2.bf16.msra.mxu0 %v2590
    %3679 = vmatprep.subr.bf16.mxu0 %v2583
    %3680 = vmatpush2.bf16.msra.mxu0 %v2582
    %3681 = vmatprep.mubr.bf16.mxu0 %v929
    %3682 = vmatmul.mubr.bf16.gmra.mxu0 %v928
    %v3683 = vpop.f32.mrf.mxu0
    %v3684 = vadd.f32 %v1347, %v3683
    %v3685 = vpop.f32.mrf.mxu0
    %v3686 = vadd.f32 %v1351, %v3685
    %v3687 = vpop.f32.mrf.mxu0
    %v3688 = vpop.f32.mrf.mxu0
    %3689 = vdwg.mxu0
    %3690 = vmatprep.subr.bf16.mxu0 %v2703
    %3691 = vmatpush1.bf16.msra.mxu0 %v2702
    %3692 = vmatprep.subr.bf16.mxu0 %v2695
    %3693 = vmatpush1.bf16.msra.mxu0 %v2694
    %3694 = vmatprep.subr.bf16.mxu0 %v2687
    %3695 = vmatpush1.bf16.msra.mxu0 %v2686
    %3696 = vmatprep.subr.bf16.mxu0 %v2679
    %3697 = vmatpush1.bf16.msra.mxu0 %v2678
    %3698 = vmatprep.subr.bf16.mxu0 %v2671
    %3699 = vmatpush1.bf16.msra.mxu0 %v2670
    %3700 = vmatprep.subr.bf16.mxu0 %v2663
    %3701 = vmatpush1.bf16.msra.mxu0 %v2662
    %3702 = vmatprep.subr.bf16.mxu0 %v2655
    %3703 = vmatpush1.bf16.msra.mxu0 %v2654
    %3704 = vmatprep.subr.bf16.mxu0 %v2647
    %3705 = vmatpush1.bf16.msra.mxu0 %v2646
    %3706 = vmatprep.subr.bf16.mxu0 %v2767
    %3707 = vmatpush2.bf16.msra.mxu0 %v2766
    %3708 = vmatprep.subr.bf16.mxu0 %v2759
    %3709 = vmatpush2.bf16.msra.mxu0 %v2758
    %3710 = vmatprep.subr.bf16.mxu0 %v2751
    %3711 = vmatpush2.bf16.msra.mxu0 %v2750
    %3712 = vmatprep.subr.bf16.mxu0 %v2743
    %3713 = vmatpush2.bf16.msra.mxu0 %v2742
    %3714 = vmatprep.subr.bf16.mxu0 %v2735
    %3715 = vmatpush2.bf16.msra.mxu0 %v2734
    %3716 = vmatprep.subr.bf16.mxu0 %v2727
    %3717 = vmatpush2.bf16.msra.mxu0 %v2726
    %3718 = vmatprep.subr.bf16.mxu0 %v2719
    %3719 = vmatpush2.bf16.msra.mxu0 %v2718
    %3720 = vmatprep.subr.bf16.mxu0 %v2711
    %3721 = vmatpush2.bf16.msra.mxu0 %v2710
    %3722 = vmatprep.mubr.bf16.mxu0 %v931
    %3723 = vmatmul.mubr.bf16.gmra.mxu0 %v930
    %v3724 = vpop.f32.mrf.mxu0
    %v3725 = vadd.f32 %v3684, %v3724
    %v3726 = vpop.f32.mrf.mxu0
    %v3727 = vadd.f32 %v3686, %v3726
    %v3728 = vpop.f32.mrf.mxu0
    %v3729 = vpop.f32.mrf.mxu0
    %3730 = vdwg.mxu0
    %3731 = vmatprep.subr.bf16.mxu0 %v2831
    %3732 = vmatpush1.bf16.msra.mxu0 %v2830
    %3733 = vmatprep.subr.bf16.mxu0 %v2823
    %3734 = vmatpush1.bf16.msra.mxu0 %v2822
    %3735 = vmatprep.subr.bf16.mxu0 %v2815
    %3736 = vmatpush1.bf16.msra.mxu0 %v2814
    %3737 = vmatprep.subr.bf16.mxu0 %v2807
    %3738 = vmatpush1.bf16.msra.mxu0 %v2806
    %3739 = vmatprep.subr.bf16.mxu0 %v2799
    %3740 = vmatpush1.bf16.msra.mxu0 %v2798
    %3741 = vmatprep.subr.bf16.mxu0 %v2791
    %3742 = vmatpush1.bf16.msra.mxu0 %v2790
    %3743 = vmatprep.subr.bf16.mxu0 %v2783
    %3744 = vmatpush1.bf16.msra.mxu0 %v2782
    %3745 = vmatprep.subr.bf16.mxu0 %v2775
    %3746 = vmatpush1.bf16.msra.mxu0 %v2774
    %3747 = vmatprep.subr.bf16.mxu0 %v2895
    %3748 = vmatpush2.bf16.msra.mxu0 %v2894
    %3749 = vmatprep.subr.bf16.mxu0 %v2887
    %3750 = vmatpush2.bf16.msra.mxu0 %v2886
    %3751 = vmatprep.subr.bf16.mxu0 %v2879
    %3752 = vmatpush2.bf16.msra.mxu0 %v2878
    %3753 = vmatprep.subr.bf16.mxu0 %v2871
    %3754 = vmatpush2.bf16.msra.mxu0 %v2870
    %3755 = vmatprep.subr.bf16.mxu0 %v2863
    %3756 = vmatpush2.bf16.msra.mxu0 %v2862
    %3757 = vmatprep.subr.bf16.mxu0 %v2855
    %3758 = vmatpush2.bf16.msra.mxu0 %v2854
    %3759 = vmatprep.subr.bf16.mxu0 %v2847
    %3760 = vmatpush2.bf16.msra.mxu0 %v2846
    %3761 = vmatprep.subr.bf16.mxu0 %v2839
    %3762 = vmatpush2.bf16.msra.mxu0 %v2838
    %3763 = vmatprep.mubr.bf16.mxu0 %v933
    %3764 = vmatmul.mubr.bf16.gmra.mxu0 %v932
    %v3765 = vpop.f32.mrf.mxu0
    %v3766 = vadd.f32 %v3725, %v3765
    %v3767 = vpop.f32.mrf.mxu0
    %v3768 = vadd.f32 %v3727, %v3767
    %v3769 = vpop.f32.mrf.mxu0
    %v3770 = vpop.f32.mrf.mxu0
    %3771 = vdwg.mxu0
    %v3772 = vmax.f32 %v3397, 0.0
    %v3773 = vmax.f32 %v3399, 0.0
    %v3774 = vmax.f32 %v3520, 0.0
    %v3775 = vmax.f32 %v3522, 0.0
    %v3776 = vmax.f32 %v3643, 0.0
    %v3777 = vmax.f32 %v3645, 0.0
    %v3778 = vmax.f32 %v3766, 0.0
    %v3779 = vmax.f32 %v3768, 0.0
    %v3780 = vpack.c.bf16 %v3772, %v3772
    %v3781 = vpack.c.bf16 %v3773, %v3773
    %v3782 = vpack.c.bf16 %v3774, %v3774
    %v3783 = vpack.c.bf16 %v3775, %v3775
    %v3784 = vpack.c.bf16 %v3776, %v3776
    %v3785 = vpack.c.bf16 %v3777, %v3777
    %v3786 = vpack.c.bf16 %v3778, %v3778
    %v3787 = vpack.c.bf16 %v3779, %v3779
    %v3788 = vld [vmem:[#allocation12] sm:$0xff]
    %v3789 = vld [vmem:[#allocation12 + $0x8] sm:$0xff]
    %v3790 = vld [vmem:[#allocation12 + $0x10] sm:$0xff]
    %v3791 = vld [vmem:[#allocation12 + $0x18] sm:$0xff]
    %v3792 = vld [vmem:[#allocation12 + $0x20] sm:$0xff]
    %v3793 = vld [vmem:[#allocation12 + $0x28] sm:$0xff]
    %v3794 = vld [vmem:[#allocation12 + $0x30] sm:$0xff]
    %v3795 = vld [vmem:[#allocation12 + $0x38] sm:$0xff]
    %v3796 = vld [vmem:[#allocation12 + $0x40] sm:$0xff]
    %v3797 = vld [vmem:[#allocation12 + $0x48] sm:$0xff]
    %v3798 = vld [vmem:[#allocation12 + $0x50] sm:$0xff]
    %v3799 = vld [vmem:[#allocation12 + $0x58] sm:$0xff]
    %v3800 = vld [vmem:[#allocation12 + $0x60] sm:$0xff]
    %v3801 = vld [vmem:[#allocation12 + $0x68] sm:$0xff]
    %v3802 = vld [vmem:[#allocation12 + $0x70] sm:$0xff]
    %v3803 = vld [vmem:[#allocation12 + $0x78] sm:$0xff]
    %v3804 = vld [vmem:[#allocation12 + $0x80] sm:$0xff]
    %v3805 = vld [vmem:[#allocation12 + $0x88] sm:$0xff]
    %v3806 = vld [vmem:[#allocation12 + $0x90] sm:$0xff]
    %v3807 = vld [vmem:[#allocation12 + $0x98] sm:$0xff]
    %v3808 = vld [vmem:[#allocation12 + $0xa0] sm:$0xff]
    %v3809 = vld [vmem:[#allocation12 + $0xa8] sm:$0xff]
    %v3810 = vld [vmem:[#allocation12 + $0xb0] sm:$0xff]
    %v3811 = vld [vmem:[#allocation12 + $0xb8] sm:$0xff]
    %v3812 = vld [vmem:[#allocation12 + $0xc0] sm:$0xff]
    %v3813 = vld [vmem:[#allocation12 + $0xc8] sm:$0xff]
    %v3814 = vld [vmem:[#allocation12 + $0xd0] sm:$0xff]
    %v3815 = vld [vmem:[#allocation12 + $0xd8] sm:$0xff]
    %v3816 = vld [vmem:[#allocation12 + $0xe0] sm:$0xff]
    %v3817 = vld [vmem:[#allocation12 + $0xe8] sm:$0xff]
    %v3818 = vld [vmem:[#allocation12 + $0xf0] sm:$0xff]
    %v3819 = vld [vmem:[#allocation12 + $0xf8] sm:$0xff]
    %v3820 = vld [vmem:[#allocation12 + $0x100] sm:$0xff]
    %v3821 = vld [vmem:[#allocation12 + $0x108] sm:$0xff]
    %v3822 = vld [vmem:[#allocation12 + $0x110] sm:$0xff]
    %v3823 = vld [vmem:[#allocation12 + $0x118] sm:$0xff]
    %v3824 = vld [vmem:[#allocation12 + $0x120] sm:$0xff]
    %v3825 = vld [vmem:[#allocation12 + $0x128] sm:$0xff]
    %v3826 = vld [vmem:[#allocation12 + $0x130] sm:$0xff]
    %v3827 = vld [vmem:[#allocation12 + $0x138] sm:$0xff]
    %v3828 = vld [vmem:[#allocation12 + $0x140] sm:$0xff]
    %v3829 = vld [vmem:[#allocation12 + $0x148] sm:$0xff]
    %v3830 = vld [vmem:[#allocation12 + $0x150] sm:$0xff]
    %v3831 = vld [vmem:[#allocation12 + $0x158] sm:$0xff]
    %v3832 = vld [vmem:[#allocation12 + $0x160] sm:$0xff]
    %v3833 = vld [vmem:[#allocation12 + $0x168] sm:$0xff]
    %v3834 = vld [vmem:[#allocation12 + $0x170] sm:$0xff]
    %v3835 = vld [vmem:[#allocation12 + $0x178] sm:$0xff]
    %v3836 = vld [vmem:[#allocation12 + $0x180] sm:$0xff]
    %v3837 = vld [vmem:[#allocation12 + $0x188] sm:$0xff]
    %v3838 = vld [vmem:[#allocation12 + $0x190] sm:$0xff]
    %v3839 = vld [vmem:[#allocation12 + $0x198] sm:$0xff]
    %v3840 = vld [vmem:[#allocation12 + $0x1a0] sm:$0xff]
    %v3841 = vld [vmem:[#allocation12 + $0x1a8] sm:$0xff]
    %v3842 = vld [vmem:[#allocation12 + $0x1b0] sm:$0xff]
    %v3843 = vld [vmem:[#allocation12 + $0x1b8] sm:$0xff]
    %v3844 = vld [vmem:[#allocation12 + $0x1c0] sm:$0xff]
    %v3845 = vld [vmem:[#allocation12 + $0x1c8] sm:$0xff]
    %v3846 = vld [vmem:[#allocation12 + $0x1d0] sm:$0xff]
    %v3847 = vld [vmem:[#allocation12 + $0x1d8] sm:$0xff]
    %v3848 = vld [vmem:[#allocation12 + $0x1e0] sm:$0xff]
    %v3849 = vld [vmem:[#allocation12 + $0x1e8] sm:$0xff]
    %v3850 = vld [vmem:[#allocation12 + $0x1f0] sm:$0xff]
    %v3851 = vld [vmem:[#allocation12 + $0x1f8] sm:$0xff]
    %v3852 = vld [vmem:[#allocation12 + $0x200] sm:$0xff]
    %v3853 = vld [vmem:[#allocation12 + $0x208] sm:$0xff]
    %v3854 = vld [vmem:[#allocation12 + $0x210] sm:$0xff]
    %v3855 = vld [vmem:[#allocation12 + $0x218] sm:$0xff]
    %v3856 = vld [vmem:[#allocation12 + $0x220] sm:$0xff]
    %v3857 = vld [vmem:[#allocation12 + $0x228] sm:$0xff]
    %v3858 = vld [vmem:[#allocation12 + $0x230] sm:$0xff]
    %v3859 = vld [vmem:[#allocation12 + $0x238] sm:$0xff]
    %v3860 = vld [vmem:[#allocation12 + $0x240] sm:$0xff]
    %v3861 = vld [vmem:[#allocation12 + $0x248] sm:$0xff]
    %v3862 = vld [vmem:[#allocation12 + $0x250] sm:$0xff]
    %v3863 = vld [vmem:[#allocation12 + $0x258] sm:$0xff]
    %v3864 = vld [vmem:[#allocation12 + $0x260] sm:$0xff]
    %v3865 = vld [vmem:[#allocation12 + $0x268] sm:$0xff]
    %v3866 = vld [vmem:[#allocation12 + $0x270] sm:$0xff]
    %v3867 = vld [vmem:[#allocation12 + $0x278] sm:$0xff]
    %v3868 = vld [vmem:[#allocation12 + $0x280] sm:$0xff]
    %v3869 = vld [vmem:[#allocation12 + $0x288] sm:$0xff]
    %v3870 = vld [vmem:[#allocation12 + $0x290] sm:$0xff]
    %v3871 = vld [vmem:[#allocation12 + $0x298] sm:$0xff]
    %v3872 = vld [vmem:[#allocation12 + $0x2a0] sm:$0xff]
    %v3873 = vld [vmem:[#allocation12 + $0x2a8] sm:$0xff]
    %v3874 = vld [vmem:[#allocation12 + $0x2b0] sm:$0xff]
    %v3875 = vld [vmem:[#allocation12 + $0x2b8] sm:$0xff]
    %v3876 = vld [vmem:[#allocation12 + $0x2c0] sm:$0xff]
    %v3877 = vld [vmem:[#allocation12 + $0x2c8] sm:$0xff]
    %v3878 = vld [vmem:[#allocation12 + $0x2d0] sm:$0xff]
    %v3879 = vld [vmem:[#allocation12 + $0x2d8] sm:$0xff]
    %v3880 = vld [vmem:[#allocation12 + $0x2e0] sm:$0xff]
    %v3881 = vld [vmem:[#allocation12 + $0x2e8] sm:$0xff]
    %v3882 = vld [vmem:[#allocation12 + $0x2f0] sm:$0xff]
    %v3883 = vld [vmem:[#allocation12 + $0x2f8] sm:$0xff]
    %v3884 = vld [vmem:[#allocation12 + $0x300] sm:$0xff]
    %v3885 = vld [vmem:[#allocation12 + $0x308] sm:$0xff]
    %v3886 = vld [vmem:[#allocation12 + $0x310] sm:$0xff]
    %v3887 = vld [vmem:[#allocation12 + $0x318] sm:$0xff]
    %v3888 = vld [vmem:[#allocation12 + $0x320] sm:$0xff]
    %v3889 = vld [vmem:[#allocation12 + $0x328] sm:$0xff]
    %v3890 = vld [vmem:[#allocation12 + $0x330] sm:$0xff]
    %v3891 = vld [vmem:[#allocation12 + $0x338] sm:$0xff]
    %v3892 = vld [vmem:[#allocation12 + $0x340] sm:$0xff]
    %v3893 = vld [vmem:[#allocation12 + $0x348] sm:$0xff]
    %v3894 = vld [vmem:[#allocation12 + $0x350] sm:$0xff]
    %v3895 = vld [vmem:[#allocation12 + $0x358] sm:$0xff]
    %v3896 = vld [vmem:[#allocation12 + $0x360] sm:$0xff]
    %v3897 = vld [vmem:[#allocation12 + $0x368] sm:$0xff]
    %v3898 = vld [vmem:[#allocation12 + $0x370] sm:$0xff]
    %v3899 = vld [vmem:[#allocation12 + $0x378] sm:$0xff]
    %v3900 = vld [vmem:[#allocation12 + $0x380] sm:$0xff]
    %v3901 = vld [vmem:[#allocation12 + $0x388] sm:$0xff]
    %v3902 = vld [vmem:[#allocation12 + $0x390] sm:$0xff]
    %v3903 = vld [vmem:[#allocation12 + $0x398] sm:$0xff]
    %v3904 = vld [vmem:[#allocation12 + $0x3a0] sm:$0xff]
    %v3905 = vld [vmem:[#allocation12 + $0x3a8] sm:$0xff]
    %v3906 = vld [vmem:[#allocation12 + $0x3b0] sm:$0xff]
    %v3907 = vld [vmem:[#allocation12 + $0x3b8] sm:$0xff]
    %v3908 = vld [vmem:[#allocation12 + $0x3c0] sm:$0xff]
    %v3909 = vld [vmem:[#allocation12 + $0x3c8] sm:$0xff]
    %v3910 = vld [vmem:[#allocation12 + $0x3d0] sm:$0xff]
    %v3911 = vld [vmem:[#allocation12 + $0x3d8] sm:$0xff]
    %v3912 = vld [vmem:[#allocation12 + $0x3e0] sm:$0xff]
    %v3913 = vld [vmem:[#allocation12 + $0x3e8] sm:$0xff]
    %v3914 = vld [vmem:[#allocation12 + $0x3f0] sm:$0xff]
    %v3915 = vld [vmem:[#allocation12 + $0x3f8] sm:$0xff]
    %v3916 = vld [vmem:[#allocation12 + $0x400] sm:$0xff]
    %v3917 = vld [vmem:[#allocation12 + $0x408] sm:$0xff]
    %v3918 = vld [vmem:[#allocation12 + $0x410] sm:$0xff]
    %v3919 = vld [vmem:[#allocation12 + $0x418] sm:$0xff]
    %v3920 = vld [vmem:[#allocation12 + $0x420] sm:$0xff]
    %v3921 = vld [vmem:[#allocation12 + $0x428] sm:$0xff]
    %v3922 = vld [vmem:[#allocation12 + $0x430] sm:$0xff]
    %v3923 = vld [vmem:[#allocation12 + $0x438] sm:$0xff]
    %v3924 = vld [vmem:[#allocation12 + $0x440] sm:$0xff]
    %v3925 = vld [vmem:[#allocation12 + $0x448] sm:$0xff]
    %v3926 = vld [vmem:[#allocation12 + $0x450] sm:$0xff]
    %v3927 = vld [vmem:[#allocation12 + $0x458] sm:$0xff]
    %v3928 = vld [vmem:[#allocation12 + $0x460] sm:$0xff]
    %v3929 = vld [vmem:[#allocation12 + $0x468] sm:$0xff]
    %v3930 = vld [vmem:[#allocation12 + $0x470] sm:$0xff]
    %v3931 = vld [vmem:[#allocation12 + $0x478] sm:$0xff]
    %v3932 = vld [vmem:[#allocation12 + $0x480] sm:$0xff]
    %v3933 = vld [vmem:[#allocation12 + $0x488] sm:$0xff]
    %v3934 = vld [vmem:[#allocation12 + $0x490] sm:$0xff]
    %v3935 = vld [vmem:[#allocation12 + $0x498] sm:$0xff]
    %v3936 = vld [vmem:[#allocation12 + $0x4a0] sm:$0xff]
    %v3937 = vld [vmem:[#allocation12 + $0x4a8] sm:$0xff]
    %v3938 = vld [vmem:[#allocation12 + $0x4b0] sm:$0xff]
    %v3939 = vld [vmem:[#allocation12 + $0x4b8] sm:$0xff]
    %v3940 = vld [vmem:[#allocation12 + $0x4c0] sm:$0xff]
    %v3941 = vld [vmem:[#allocation12 + $0x4c8] sm:$0xff]
    %v3942 = vld [vmem:[#allocation12 + $0x4d0] sm:$0xff]
    %v3943 = vld [vmem:[#allocation12 + $0x4d8] sm:$0xff]
    %v3944 = vld [vmem:[#allocation12 + $0x4e0] sm:$0xff]
    %v3945 = vld [vmem:[#allocation12 + $0x4e8] sm:$0xff]
    %v3946 = vld [vmem:[#allocation12 + $0x4f0] sm:$0xff]
    %v3947 = vld [vmem:[#allocation12 + $0x4f8] sm:$0xff]
    %v3948 = vld [vmem:[#allocation12 + $0x500] sm:$0xff]
    %v3949 = vld [vmem:[#allocation12 + $0x508] sm:$0xff]
    %v3950 = vld [vmem:[#allocation12 + $0x510] sm:$0xff]
    %v3951 = vld [vmem:[#allocation12 + $0x518] sm:$0xff]
    %v3952 = vld [vmem:[#allocation12 + $0x520] sm:$0xff]
    %v3953 = vld [vmem:[#allocation12 + $0x528] sm:$0xff]
    %v3954 = vld [vmem:[#allocation12 + $0x530] sm:$0xff]
    %v3955 = vld [vmem:[#allocation12 + $0x538] sm:$0xff]
    %v3956 = vld [vmem:[#allocation12 + $0x540] sm:$0xff]
    %v3957 = vld [vmem:[#allocation12 + $0x548] sm:$0xff]
    %v3958 = vld [vmem:[#allocation12 + $0x550] sm:$0xff]
    %v3959 = vld [vmem:[#allocation12 + $0x558] sm:$0xff]
    %v3960 = vld [vmem:[#allocation12 + $0x560] sm:$0xff]
    %v3961 = vld [vmem:[#allocation12 + $0x568] sm:$0xff]
    %v3962 = vld [vmem:[#allocation12 + $0x570] sm:$0xff]
    %v3963 = vld [vmem:[#allocation12 + $0x578] sm:$0xff]
    %v3964 = vld [vmem:[#allocation12 + $0x580] sm:$0xff]
    %v3965 = vld [vmem:[#allocation12 + $0x588] sm:$0xff]
    %v3966 = vld [vmem:[#allocation12 + $0x590] sm:$0xff]
    %v3967 = vld [vmem:[#allocation12 + $0x598] sm:$0xff]
    %v3968 = vld [vmem:[#allocation12 + $0x5a0] sm:$0xff]
    %v3969 = vld [vmem:[#allocation12 + $0x5a8] sm:$0xff]
    %v3970 = vld [vmem:[#allocation12 + $0x5b0] sm:$0xff]
    %v3971 = vld [vmem:[#allocation12 + $0x5b8] sm:$0xff]
    %v3972 = vld [vmem:[#allocation12 + $0x5c0] sm:$0xff]
    %v3973 = vld [vmem:[#allocation12 + $0x5c8] sm:$0xff]
    %v3974 = vld [vmem:[#allocation12 + $0x5d0] sm:$0xff]
    %v3975 = vld [vmem:[#allocation12 + $0x5d8] sm:$0xff]
    %v3976 = vld [vmem:[#allocation12 + $0x5e0] sm:$0xff]
    %v3977 = vld [vmem:[#allocation12 + $0x5e8] sm:$0xff]
    %v3978 = vld [vmem:[#allocation12 + $0x5f0] sm:$0xff]
    %v3979 = vld [vmem:[#allocation12 + $0x5f8] sm:$0xff]
    %v3980 = vld [vmem:[#allocation12 + $0x600] sm:$0xff]
    %v3981 = vld [vmem:[#allocation12 + $0x608] sm:$0xff]
    %v3982 = vld [vmem:[#allocation12 + $0x610] sm:$0xff]
    %v3983 = vld [vmem:[#allocation12 + $0x618] sm:$0xff]
    %v3984 = vld [vmem:[#allocation12 + $0x620] sm:$0xff]
    %v3985 = vld [vmem:[#allocation12 + $0x628] sm:$0xff]
    %v3986 = vld [vmem:[#allocation12 + $0x630] sm:$0xff]
    %v3987 = vld [vmem:[#allocation12 + $0x638] sm:$0xff]
    %v3988 = vld [vmem:[#allocation12 + $0x640] sm:$0xff]
    %v3989 = vld [vmem:[#allocation12 + $0x648] sm:$0xff]
    %v3990 = vld [vmem:[#allocation12 + $0x650] sm:$0xff]
    %v3991 = vld [vmem:[#allocation12 + $0x658] sm:$0xff]
    %v3992 = vld [vmem:[#allocation12 + $0x660] sm:$0xff]
    %v3993 = vld [vmem:[#allocation12 + $0x668] sm:$0xff]
    %v3994 = vld [vmem:[#allocation12 + $0x670] sm:$0xff]
    %v3995 = vld [vmem:[#allocation12 + $0x678] sm:$0xff]
    %v3996 = vld [vmem:[#allocation12 + $0x680] sm:$0xff]
    %v3997 = vld [vmem:[#allocation12 + $0x688] sm:$0xff]
    %v3998 = vld [vmem:[#allocation12 + $0x690] sm:$0xff]
    %v3999 = vld [vmem:[#allocation12 + $0x698] sm:$0xff]
    %v4000 = vld [vmem:[#allocation12 + $0x6a0] sm:$0xff]
    %v4001 = vld [vmem:[#allocation12 + $0x6a8] sm:$0xff]
    %v4002 = vld [vmem:[#allocation12 + $0x6b0] sm:$0xff]
    %v4003 = vld [vmem:[#allocation12 + $0x6b8] sm:$0xff]
    %v4004 = vld [vmem:[#allocation12 + $0x6c0] sm:$0xff]
    %v4005 = vld [vmem:[#allocation12 + $0x6c8] sm:$0xff]
    %v4006 = vld [vmem:[#allocation12 + $0x6d0] sm:$0xff]
    %v4007 = vld [vmem:[#allocation12 + $0x6d8] sm:$0xff]
    %v4008 = vld [vmem:[#allocation12 + $0x6e0] sm:$0xff]
    %v4009 = vld [vmem:[#allocation12 + $0x6e8] sm:$0xff]
    %v4010 = vld [vmem:[#allocation12 + $0x6f0] sm:$0xff]
    %v4011 = vld [vmem:[#allocation12 + $0x6f8] sm:$0xff]
    %v4012 = vld [vmem:[#allocation12 + $0x700] sm:$0xff]
    %v4013 = vld [vmem:[#allocation12 + $0x708] sm:$0xff]
    %v4014 = vld [vmem:[#allocation12 + $0x710] sm:$0xff]
    %v4015 = vld [vmem:[#allocation12 + $0x718] sm:$0xff]
    %v4016 = vld [vmem:[#allocation12 + $0x720] sm:$0xff]
    %v4017 = vld [vmem:[#allocation12 + $0x728] sm:$0xff]
    %v4018 = vld [vmem:[#allocation12 + $0x730] sm:$0xff]
    %v4019 = vld [vmem:[#allocation12 + $0x738] sm:$0xff]
    %v4020 = vld [vmem:[#allocation12 + $0x740] sm:$0xff]
    %v4021 = vld [vmem:[#allocation12 + $0x748] sm:$0xff]
    %v4022 = vld [vmem:[#allocation12 + $0x750] sm:$0xff]
    %v4023 = vld [vmem:[#allocation12 + $0x758] sm:$0xff]
    %v4024 = vld [vmem:[#allocation12 + $0x760] sm:$0xff]
    %v4025 = vld [vmem:[#allocation12 + $0x768] sm:$0xff]
    %v4026 = vld [vmem:[#allocation12 + $0x770] sm:$0xff]
    %v4027 = vld [vmem:[#allocation12 + $0x778] sm:$0xff]
    %v4028 = vld [vmem:[#allocation12 + $0x780] sm:$0xff]
    %v4029 = vld [vmem:[#allocation12 + $0x788] sm:$0xff]
    %v4030 = vld [vmem:[#allocation12 + $0x790] sm:$0xff]
    %v4031 = vld [vmem:[#allocation12 + $0x798] sm:$0xff]
    %v4032 = vld [vmem:[#allocation12 + $0x7a0] sm:$0xff]
    %v4033 = vld [vmem:[#allocation12 + $0x7a8] sm:$0xff]
    %v4034 = vld [vmem:[#allocation12 + $0x7b0] sm:$0xff]
    %v4035 = vld [vmem:[#allocation12 + $0x7b8] sm:$0xff]
    %v4036 = vld [vmem:[#allocation12 + $0x7c0] sm:$0xff]
    %v4037 = vld [vmem:[#allocation12 + $0x7c8] sm:$0xff]
    %v4038 = vld [vmem:[#allocation12 + $0x7d0] sm:$0xff]
    %v4039 = vld [vmem:[#allocation12 + $0x7d8] sm:$0xff]
    %v4040 = vld [vmem:[#allocation12 + $0x7e0] sm:$0xff]
    %v4041 = vld [vmem:[#allocation12 + $0x7e8] sm:$0xff]
    %v4042 = vld [vmem:[#allocation12 + $0x7f0] sm:$0xff]
    %v4043 = vld [vmem:[#allocation12 + $0x7f8] sm:$0xff]
    %v4044 = vld [vmem:[#allocation12 + $0x800] sm:$0xff]
    %v4045 = vld [vmem:[#allocation12 + $0x808] sm:$0xff]
    %v4046 = vld [vmem:[#allocation12 + $0x810] sm:$0xff]
    %v4047 = vld [vmem:[#allocation12 + $0x818] sm:$0xff]
    %v4048 = vld [vmem:[#allocation12 + $0x820] sm:$0xff]
    %v4049 = vld [vmem:[#allocation12 + $0x828] sm:$0xff]
    %v4050 = vld [vmem:[#allocation12 + $0x830] sm:$0xff]
    %v4051 = vld [vmem:[#allocation12 + $0x838] sm:$0xff]
    %v4052 = vld [vmem:[#allocation12 + $0x840] sm:$0xff]
    %v4053 = vld [vmem:[#allocation12 + $0x848] sm:$0xff]
    %v4054 = vld [vmem:[#allocation12 + $0x850] sm:$0xff]
    %v4055 = vld [vmem:[#allocation12 + $0x858] sm:$0xff]
    %v4056 = vld [vmem:[#allocation12 + $0x860] sm:$0xff]
    %v4057 = vld [vmem:[#allocation12 + $0x868] sm:$0xff]
    %v4058 = vld [vmem:[#allocation12 + $0x870] sm:$0xff]
    %v4059 = vld [vmem:[#allocation12 + $0x878] sm:$0xff]
    %v4060 = vld [vmem:[#allocation12 + $0x880] sm:$0xff]
    %v4061 = vld [vmem:[#allocation12 + $0x888] sm:$0xff]
    %v4062 = vld [vmem:[#allocation12 + $0x890] sm:$0xff]
    %v4063 = vld [vmem:[#allocation12 + $0x898] sm:$0xff]
    %v4064 = vld [vmem:[#allocation12 + $0x8a0] sm:$0xff]
    %v4065 = vld [vmem:[#allocation12 + $0x8a8] sm:$0xff]
    %v4066 = vld [vmem:[#allocation12 + $0x8b0] sm:$0xff]
    %v4067 = vld [vmem:[#allocation12 + $0x8b8] sm:$0xff]
    %v4068 = vld [vmem:[#allocation12 + $0x8c0] sm:$0xff]
    %v4069 = vld [vmem:[#allocation12 + $0x8c8] sm:$0xff]
    %v4070 = vld [vmem:[#allocation12 + $0x8d0] sm:$0xff]
    %v4071 = vld [vmem:[#allocation12 + $0x8d8] sm:$0xff]
    %v4072 = vld [vmem:[#allocation12 + $0x8e0] sm:$0xff]
    %v4073 = vld [vmem:[#allocation12 + $0x8e8] sm:$0xff]
    %v4074 = vld [vmem:[#allocation12 + $0x8f0] sm:$0xff]
    %v4075 = vld [vmem:[#allocation12 + $0x8f8] sm:$0xff]
    %v4076 = vld [vmem:[#allocation12 + $0x900] sm:$0xff]
    %v4077 = vld [vmem:[#allocation12 + $0x908] sm:$0xff]
    %v4078 = vld [vmem:[#allocation12 + $0x910] sm:$0xff]
    %v4079 = vld [vmem:[#allocation12 + $0x918] sm:$0xff]
    %v4080 = vld [vmem:[#allocation12 + $0x920] sm:$0xff]
    %v4081 = vld [vmem:[#allocation12 + $0x928] sm:$0xff]
    %v4082 = vld [vmem:[#allocation12 + $0x930] sm:$0xff]
    %v4083 = vld [vmem:[#allocation12 + $0x938] sm:$0xff]
    %v4084 = vld [vmem:[#allocation12 + $0x940] sm:$0xff]
    %v4085 = vld [vmem:[#allocation12 + $0x948] sm:$0xff]
    %v4086 = vld [vmem:[#allocation12 + $0x950] sm:$0xff]
    %v4087 = vld [vmem:[#allocation12 + $0x958] sm:$0xff]
    %v4088 = vld [vmem:[#allocation12 + $0x960] sm:$0xff]
    %v4089 = vld [vmem:[#allocation12 + $0x968] sm:$0xff]
    %v4090 = vld [vmem:[#allocation12 + $0x970] sm:$0xff]
    %v4091 = vld [vmem:[#allocation12 + $0x978] sm:$0xff]
    %v4092 = vld [vmem:[#allocation12 + $0x980] sm:$0xff]
    %v4093 = vld [vmem:[#allocation12 + $0x988] sm:$0xff]
    %v4094 = vld [vmem:[#allocation12 + $0x990] sm:$0xff]
    %v4095 = vld [vmem:[#allocation12 + $0x998] sm:$0xff]
    %v4096 = vld [vmem:[#allocation12 + $0x9a0] sm:$0xff]
    %v4097 = vld [vmem:[#allocation12 + $0x9a8] sm:$0xff]
    %v4098 = vld [vmem:[#allocation12 + $0x9b0] sm:$0xff]
    %v4099 = vld [vmem:[#allocation12 + $0x9b8] sm:$0xff]
    %v4100 = vld [vmem:[#allocation12 + $0x9c0] sm:$0xff]
    %v4101 = vld [vmem:[#allocation12 + $0x9c8] sm:$0xff]
    %v4102 = vld [vmem:[#allocation12 + $0x9d0] sm:$0xff]
    %v4103 = vld [vmem:[#allocation12 + $0x9d8] sm:$0xff]
    %v4104 = vld [vmem:[#allocation12 + $0x9e0] sm:$0xff]
    %v4105 = vld [vmem:[#allocation12 + $0x9e8] sm:$0xff]
    %v4106 = vld [vmem:[#allocation12 + $0x9f0] sm:$0xff]
    %v4107 = vld [vmem:[#allocation12 + $0x9f8] sm:$0xff]
    %v4108 = vld [vmem:[#allocation12 + $0xa00] sm:$0xff]
    %v4109 = vld [vmem:[#allocation12 + $0xa08] sm:$0xff]
    %v4110 = vld [vmem:[#allocation12 + $0xa10] sm:$0xff]
    %v4111 = vld [vmem:[#allocation12 + $0xa18] sm:$0xff]
    %v4112 = vld [vmem:[#allocation12 + $0xa20] sm:$0xff]
    %v4113 = vld [vmem:[#allocation12 + $0xa28] sm:$0xff]
    %v4114 = vld [vmem:[#allocation12 + $0xa30] sm:$0xff]
    %v4115 = vld [vmem:[#allocation12 + $0xa38] sm:$0xff]
    %v4116 = vld [vmem:[#allocation12 + $0xa40] sm:$0xff]
    %v4117 = vld [vmem:[#allocation12 + $0xa48] sm:$0xff]
    %v4118 = vld [vmem:[#allocation12 + $0xa50] sm:$0xff]
    %v4119 = vld [vmem:[#allocation12 + $0xa58] sm:$0xff]
    %v4120 = vld [vmem:[#allocation12 + $0xa60] sm:$0xff]
    %v4121 = vld [vmem:[#allocation12 + $0xa68] sm:$0xff]
    %v4122 = vld [vmem:[#allocation12 + $0xa70] sm:$0xff]
    %v4123 = vld [vmem:[#allocation12 + $0xa78] sm:$0xff]
    %v4124 = vld [vmem:[#allocation12 + $0xa80] sm:$0xff]
    %v4125 = vld [vmem:[#allocation12 + $0xa88] sm:$0xff]
    %v4126 = vld [vmem:[#allocation12 + $0xa90] sm:$0xff]
    %v4127 = vld [vmem:[#allocation12 + $0xa98] sm:$0xff]
    %v4128 = vld [vmem:[#allocation12 + $0xaa0] sm:$0xff]
    %v4129 = vld [vmem:[#allocation12 + $0xaa8] sm:$0xff]
    %v4130 = vld [vmem:[#allocation12 + $0xab0] sm:$0xff]
    %v4131 = vld [vmem:[#allocation12 + $0xab8] sm:$0xff]
    %v4132 = vld [vmem:[#allocation12 + $0xac0] sm:$0xff]
    %v4133 = vld [vmem:[#allocation12 + $0xac8] sm:$0xff]
    %v4134 = vld [vmem:[#allocation12 + $0xad0] sm:$0xff]
    %v4135 = vld [vmem:[#allocation12 + $0xad8] sm:$0xff]
    %v4136 = vld [vmem:[#allocation12 + $0xae0] sm:$0xff]
    %v4137 = vld [vmem:[#allocation12 + $0xae8] sm:$0xff]
    %v4138 = vld [vmem:[#allocation12 + $0xaf0] sm:$0xff]
    %v4139 = vld [vmem:[#allocation12 + $0xaf8] sm:$0xff]
    %v4140 = vld [vmem:[#allocation12 + $0xb00] sm:$0xff]
    %v4141 = vld [vmem:[#allocation12 + $0xb08] sm:$0xff]
    %v4142 = vld [vmem:[#allocation12 + $0xb10] sm:$0xff]
    %v4143 = vld [vmem:[#allocation12 + $0xb18] sm:$0xff]
    %v4144 = vld [vmem:[#allocation12 + $0xb20] sm:$0xff]
    %v4145 = vld [vmem:[#allocation12 + $0xb28] sm:$0xff]
    %v4146 = vld [vmem:[#allocation12 + $0xb30] sm:$0xff]
    %v4147 = vld [vmem:[#allocation12 + $0xb38] sm:$0xff]
    %v4148 = vld [vmem:[#allocation12 + $0xb40] sm:$0xff]
    %v4149 = vld [vmem:[#allocation12 + $0xb48] sm:$0xff]
    %v4150 = vld [vmem:[#allocation12 + $0xb50] sm:$0xff]
    %v4151 = vld [vmem:[#allocation12 + $0xb58] sm:$0xff]
    %v4152 = vld [vmem:[#allocation12 + $0xb60] sm:$0xff]
    %v4153 = vld [vmem:[#allocation12 + $0xb68] sm:$0xff]
    %v4154 = vld [vmem:[#allocation12 + $0xb70] sm:$0xff]
    %v4155 = vld [vmem:[#allocation12 + $0xb78] sm:$0xff]
    %v4156 = vld [vmem:[#allocation12 + $0xb80] sm:$0xff]
    %v4157 = vld [vmem:[#allocation12 + $0xb88] sm:$0xff]
    %v4158 = vld [vmem:[#allocation12 + $0xb90] sm:$0xff]
    %v4159 = vld [vmem:[#allocation12 + $0xb98] sm:$0xff]
    %v4160 = vld [vmem:[#allocation12 + $0xba0] sm:$0xff]
    %v4161 = vld [vmem:[#allocation12 + $0xba8] sm:$0xff]
    %v4162 = vld [vmem:[#allocation12 + $0xbb0] sm:$0xff]
    %v4163 = vld [vmem:[#allocation12 + $0xbb8] sm:$0xff]
    %v4164 = vld [vmem:[#allocation12 + $0xbc0] sm:$0xff]
    %v4165 = vld [vmem:[#allocation12 + $0xbc8] sm:$0xff]
    %v4166 = vld [vmem:[#allocation12 + $0xbd0] sm:$0xff]
    %v4167 = vld [vmem:[#allocation12 + $0xbd8] sm:$0xff]
    %v4168 = vld [vmem:[#allocation12 + $0xbe0] sm:$0xff]
    %v4169 = vld [vmem:[#allocation12 + $0xbe8] sm:$0xff]
    %v4170 = vld [vmem:[#allocation12 + $0xbf0] sm:$0xff]
    %v4171 = vld [vmem:[#allocation12 + $0xbf8] sm:$0xff]
    %v4172 = vld [vmem:[#allocation12 + $0xc00] sm:$0xff]
    %v4173 = vld [vmem:[#allocation12 + $0xc08] sm:$0xff]
    %v4174 = vld [vmem:[#allocation12 + $0xc10] sm:$0xff]
    %v4175 = vld [vmem:[#allocation12 + $0xc18] sm:$0xff]
    %v4176 = vld [vmem:[#allocation12 + $0xc20] sm:$0xff]
    %v4177 = vld [vmem:[#allocation12 + $0xc28] sm:$0xff]
    %v4178 = vld [vmem:[#allocation12 + $0xc30] sm:$0xff]
    %v4179 = vld [vmem:[#allocation12 + $0xc38] sm:$0xff]
    %v4180 = vld [vmem:[#allocation12 + $0xc40] sm:$0xff]
    %v4181 = vld [vmem:[#allocation12 + $0xc48] sm:$0xff]
    %v4182 = vld [vmem:[#allocation12 + $0xc50] sm:$0xff]
    %v4183 = vld [vmem:[#allocation12 + $0xc58] sm:$0xff]
    %v4184 = vld [vmem:[#allocation12 + $0xc60] sm:$0xff]
    %v4185 = vld [vmem:[#allocation12 + $0xc68] sm:$0xff]
    %v4186 = vld [vmem:[#allocation12 + $0xc70] sm:$0xff]
    %v4187 = vld [vmem:[#allocation12 + $0xc78] sm:$0xff]
    %v4188 = vld [vmem:[#allocation12 + $0xc80] sm:$0xff]
    %v4189 = vld [vmem:[#allocation12 + $0xc88] sm:$0xff]
    %v4190 = vld [vmem:[#allocation12 + $0xc90] sm:$0xff]
    %v4191 = vld [vmem:[#allocation12 + $0xc98] sm:$0xff]
    %v4192 = vld [vmem:[#allocation12 + $0xca0] sm:$0xff]
    %v4193 = vld [vmem:[#allocation12 + $0xca8] sm:$0xff]
    %v4194 = vld [vmem:[#allocation12 + $0xcb0] sm:$0xff]
    %v4195 = vld [vmem:[#allocation12 + $0xcb8] sm:$0xff]
    %v4196 = vld [vmem:[#allocation12 + $0xcc0] sm:$0xff]
    %v4197 = vld [vmem:[#allocation12 + $0xcc8] sm:$0xff]
    %v4198 = vld [vmem:[#allocation12 + $0xcd0] sm:$0xff]
    %v4199 = vld [vmem:[#allocation12 + $0xcd8] sm:$0xff]
    %v4200 = vld [vmem:[#allocation12 + $0xce0] sm:$0xff]
    %v4201 = vld [vmem:[#allocation12 + $0xce8] sm:$0xff]
    %v4202 = vld [vmem:[#allocation12 + $0xcf0] sm:$0xff]
    %v4203 = vld [vmem:[#allocation12 + $0xcf8] sm:$0xff]
    %v4204 = vld [vmem:[#allocation12 + $0xd00] sm:$0xff]
    %v4205 = vld [vmem:[#allocation12 + $0xd08] sm:$0xff]
    %v4206 = vld [vmem:[#allocation12 + $0xd10] sm:$0xff]
    %v4207 = vld [vmem:[#allocation12 + $0xd18] sm:$0xff]
    %v4208 = vld [vmem:[#allocation12 + $0xd20] sm:$0xff]
    %v4209 = vld [vmem:[#allocation12 + $0xd28] sm:$0xff]
    %v4210 = vld [vmem:[#allocation12 + $0xd30] sm:$0xff]
    %v4211 = vld [vmem:[#allocation12 + $0xd38] sm:$0xff]
    %v4212 = vld [vmem:[#allocation12 + $0xd40] sm:$0xff]
    %v4213 = vld [vmem:[#allocation12 + $0xd48] sm:$0xff]
    %v4214 = vld [vmem:[#allocation12 + $0xd50] sm:$0xff]
    %v4215 = vld [vmem:[#allocation12 + $0xd58] sm:$0xff]
    %v4216 = vld [vmem:[#allocation12 + $0xd60] sm:$0xff]
    %v4217 = vld [vmem:[#allocation12 + $0xd68] sm:$0xff]
    %v4218 = vld [vmem:[#allocation12 + $0xd70] sm:$0xff]
    %v4219 = vld [vmem:[#allocation12 + $0xd78] sm:$0xff]
    %v4220 = vld [vmem:[#allocation12 + $0xd80] sm:$0xff]
    %v4221 = vld [vmem:[#allocation12 + $0xd88] sm:$0xff]
    %v4222 = vld [vmem:[#allocation12 + $0xd90] sm:$0xff]
    %v4223 = vld [vmem:[#allocation12 + $0xd98] sm:$0xff]
    %v4224 = vld [vmem:[#allocation12 + $0xda0] sm:$0xff]
    %v4225 = vld [vmem:[#allocation12 + $0xda8] sm:$0xff]
    %v4226 = vld [vmem:[#allocation12 + $0xdb0] sm:$0xff]
    %v4227 = vld [vmem:[#allocation12 + $0xdb8] sm:$0xff]
    %v4228 = vld [vmem:[#allocation12 + $0xdc0] sm:$0xff]
    %v4229 = vld [vmem:[#allocation12 + $0xdc8] sm:$0xff]
    %v4230 = vld [vmem:[#allocation12 + $0xdd0] sm:$0xff]
    %v4231 = vld [vmem:[#allocation12 + $0xdd8] sm:$0xff]
    %v4232 = vld [vmem:[#allocation12 + $0xde0] sm:$0xff]
    %v4233 = vld [vmem:[#allocation12 + $0xde8] sm:$0xff]
    %v4234 = vld [vmem:[#allocation12 + $0xdf0] sm:$0xff]
    %v4235 = vld [vmem:[#allocation12 + $0xdf8] sm:$0xff]
    %v4236 = vld [vmem:[#allocation12 + $0xe00] sm:$0xff]
    %v4237 = vld [vmem:[#allocation12 + $0xe08] sm:$0xff]
    %v4238 = vld [vmem:[#allocation12 + $0xe10] sm:$0xff]
    %v4239 = vld [vmem:[#allocation12 + $0xe18] sm:$0xff]
    %v4240 = vld [vmem:[#allocation12 + $0xe20] sm:$0xff]
    %v4241 = vld [vmem:[#allocation12 + $0xe28] sm:$0xff]
    %v4242 = vld [vmem:[#allocation12 + $0xe30] sm:$0xff]
    %v4243 = vld [vmem:[#allocation12 + $0xe38] sm:$0xff]
    %v4244 = vld [vmem:[#allocation12 + $0xe40] sm:$0xff]
    %v4245 = vld [vmem:[#allocation12 + $0xe48] sm:$0xff]
    %v4246 = vld [vmem:[#allocation12 + $0xe50] sm:$0xff]
    %v4247 = vld [vmem:[#allocation12 + $0xe58] sm:$0xff]
    %v4248 = vld [vmem:[#allocation12 + $0xe60] sm:$0xff]
    %v4249 = vld [vmem:[#allocation12 + $0xe68] sm:$0xff]
    %v4250 = vld [vmem:[#allocation12 + $0xe70] sm:$0xff]
    %v4251 = vld [vmem:[#allocation12 + $0xe78] sm:$0xff]
    %v4252 = vld [vmem:[#allocation12 + $0xe80] sm:$0xff]
    %v4253 = vld [vmem:[#allocation12 + $0xe88] sm:$0xff]
    %v4254 = vld [vmem:[#allocation12 + $0xe90] sm:$0xff]
    %v4255 = vld [vmem:[#allocation12 + $0xe98] sm:$0xff]
    %v4256 = vld [vmem:[#allocation12 + $0xea0] sm:$0xff]
    %v4257 = vld [vmem:[#allocation12 + $0xea8] sm:$0xff]
    %v4258 = vld [vmem:[#allocation12 + $0xeb0] sm:$0xff]
    %v4259 = vld [vmem:[#allocation12 + $0xeb8] sm:$0xff]
    %v4260 = vld [vmem:[#allocation12 + $0xec0] sm:$0xff]
    %v4261 = vld [vmem:[#allocation12 + $0xec8] sm:$0xff]
    %v4262 = vld [vmem:[#allocation12 + $0xed0] sm:$0xff]
    %v4263 = vld [vmem:[#allocation12 + $0xed8] sm:$0xff]
    %v4264 = vld [vmem:[#allocation12 + $0xee0] sm:$0xff]
    %v4265 = vld [vmem:[#allocation12 + $0xee8] sm:$0xff]
    %v4266 = vld [vmem:[#allocation12 + $0xef0] sm:$0xff]
    %v4267 = vld [vmem:[#allocation12 + $0xef8] sm:$0xff]
    %v4268 = vld [vmem:[#allocation12 + $0xf00] sm:$0xff]
    %v4269 = vld [vmem:[#allocation12 + $0xf08] sm:$0xff]
    %v4270 = vld [vmem:[#allocation12 + $0xf10] sm:$0xff]
    %v4271 = vld [vmem:[#allocation12 + $0xf18] sm:$0xff]
    %v4272 = vld [vmem:[#allocation12 + $0xf20] sm:$0xff]
    %v4273 = vld [vmem:[#allocation12 + $0xf28] sm:$0xff]
    %v4274 = vld [vmem:[#allocation12 + $0xf30] sm:$0xff]
    %v4275 = vld [vmem:[#allocation12 + $0xf38] sm:$0xff]
    %v4276 = vld [vmem:[#allocation12 + $0xf40] sm:$0xff]
    %v4277 = vld [vmem:[#allocation12 + $0xf48] sm:$0xff]
    %v4278 = vld [vmem:[#allocation12 + $0xf50] sm:$0xff]
    %v4279 = vld [vmem:[#allocation12 + $0xf58] sm:$0xff]
    %v4280 = vld [vmem:[#allocation12 + $0xf60] sm:$0xff]
    %v4281 = vld [vmem:[#allocation12 + $0xf68] sm:$0xff]
    %v4282 = vld [vmem:[#allocation12 + $0xf70] sm:$0xff]
    %v4283 = vld [vmem:[#allocation12 + $0xf78] sm:$0xff]
    %v4284 = vld [vmem:[#allocation12 + $0xf80] sm:$0xff]
    %v4285 = vld [vmem:[#allocation12 + $0xf88] sm:$0xff]
    %v4286 = vld [vmem:[#allocation12 + $0xf90] sm:$0xff]
    %v4287 = vld [vmem:[#allocation12 + $0xf98] sm:$0xff]
    %v4288 = vld [vmem:[#allocation12 + $0xfa0] sm:$0xff]
    %v4289 = vld [vmem:[#allocation12 + $0xfa8] sm:$0xff]
    %v4290 = vld [vmem:[#allocation12 + $0xfb0] sm:$0xff]
    %v4291 = vld [vmem:[#allocation12 + $0xfb8] sm:$0xff]
    %v4292 = vld [vmem:[#allocation12 + $0xfc0] sm:$0xff]
    %v4293 = vld [vmem:[#allocation12 + $0xfc8] sm:$0xff]
    %v4294 = vld [vmem:[#allocation12 + $0xfd0] sm:$0xff]
    %v4295 = vld [vmem:[#allocation12 + $0xfd8] sm:$0xff]
    %v4296 = vld [vmem:[#allocation12 + $0xfe0] sm:$0xff]
    %v4297 = vld [vmem:[#allocation12 + $0xfe8] sm:$0xff]
    %v4298 = vld [vmem:[#allocation12 + $0xff0] sm:$0xff]
    %v4299 = vld [vmem:[#allocation12 + $0xff8] sm:$0xff]
    %v4300 = vld [vmem:[#allocation14] sm:$0xff]
    %v4302 = vlaneseq
    %v4303 = vshrl.u32 %v4302, 7
    %v4304 = vsub.s32 0, %v4303
    %v4305 = vrot.slane %v4300, %v4304
    %v4306 = vlaneseq
    %v4307 = vshrl.u32 %v4306, 7
    %v4308 = vsub.s32 1, %v4307
    %v4309 = vrot.slane %v4300, %v4308
    %v4310 = vlaneseq
    %v4311 = vshrl.u32 %v4310, 7
    %v4312 = vsub.s32 2, %v4311
    %v4313 = vrot.slane %v4300, %v4312
    %v4314 = vlaneseq
    %v4315 = vshrl.u32 %v4314, 7
    %v4316 = vsub.s32 3, %v4315
    %v4317 = vrot.slane %v4300, %v4316
    %v4318 = vlaneseq
    %v4319 = vshrl.u32 %v4318, 7
    %v4320 = vsub.s32 4, %v4319
    %v4321 = vrot.slane %v4300, %v4320
    %v4322 = vlaneseq
    %v4323 = vshrl.u32 %v4322, 7
    %v4324 = vsub.s32 5, %v4323
    %v4325 = vrot.slane %v4300, %v4324
    %v4326 = vlaneseq
    %v4327 = vshrl.u32 %v4326, 7
    %v4328 = vsub.s32 6, %v4327
    %v4329 = vrot.slane %v4300, %v4328
    %v4330 = vlaneseq
    %v4331 = vshrl.u32 %v4330, 7
    %v4332 = vsub.s32 7, %v4331
    %v4333 = vrot.slane %v4300, %v4332
    %v4854 = vunpack.c.l.b16 %v3788
    %v4855 = vunpack.c.h.b16 %v3788
    %v4856 = vunpack.c.l.b16 %v3789
    %v4857 = vunpack.c.h.b16 %v3789
    %v4858 = vunpack.c.l.b16 %v3790
    %v4859 = vunpack.c.h.b16 %v3790
    %v4860 = vunpack.c.l.b16 %v3791
    %v4861 = vunpack.c.h.b16 %v3791
    %v4862 = vunpack.c.l.b16 %v3792
    %v4863 = vunpack.c.h.b16 %v3792
    %v4864 = vunpack.c.l.b16 %v3793
    %v4865 = vunpack.c.h.b16 %v3793
    %v4866 = vunpack.c.l.b16 %v3794
    %v4867 = vunpack.c.h.b16 %v3794
    %v4868 = vunpack.c.l.b16 %v3795
    %v4869 = vunpack.c.h.b16 %v3795
    %v4870 = vunpack.c.l.b16 %v3796
    %v4871 = vunpack.c.h.b16 %v3796
    %v4872 = vunpack.c.l.b16 %v3797
    %v4873 = vunpack.c.h.b16 %v3797
    %v4874 = vunpack.c.l.b16 %v3798
    %v4875 = vunpack.c.h.b16 %v3798
    %v4876 = vunpack.c.l.b16 %v3799
    %v4877 = vunpack.c.h.b16 %v3799
    %v4878 = vunpack.c.l.b16 %v3800
    %v4879 = vunpack.c.h.b16 %v3800
    %v4880 = vunpack.c.l.b16 %v3801
    %v4881 = vunpack.c.h.b16 %v3801
    %v4882 = vunpack.c.l.b16 %v3802
    %v4883 = vunpack.c.h.b16 %v3802
    %v4884 = vunpack.c.l.b16 %v3803
    %v4885 = vunpack.c.h.b16 %v3803
    %v4886 = vunpack.c.l.b16 %v3804
    %v4887 = vunpack.c.h.b16 %v3804
    %v4888 = vunpack.c.l.b16 %v3805
    %v4889 = vunpack.c.h.b16 %v3805
    %v4890 = vunpack.c.l.b16 %v3806
    %v4891 = vunpack.c.h.b16 %v3806
    %v4892 = vunpack.c.l.b16 %v3807
    %v4893 = vunpack.c.h.b16 %v3807
    %v4894 = vunpack.c.l.b16 %v3808
    %v4895 = vunpack.c.h.b16 %v3808
    %v4896 = vunpack.c.l.b16 %v3809
    %v4897 = vunpack.c.h.b16 %v3809
    %v4898 = vunpack.c.l.b16 %v3810
    %v4899 = vunpack.c.h.b16 %v3810
    %v4900 = vunpack.c.l.b16 %v3811
    %v4901 = vunpack.c.h.b16 %v3811
    %v4902 = vunpack.c.l.b16 %v3812
    %v4903 = vunpack.c.h.b16 %v3812
    %v4904 = vunpack.c.l.b16 %v3813
    %v4905 = vunpack.c.h.b16 %v3813
    %v4906 = vunpack.c.l.b16 %v3814
    %v4907 = vunpack.c.h.b16 %v3814
    %v4908 = vunpack.c.l.b16 %v3815
    %v4909 = vunpack.c.h.b16 %v3815
    %v4910 = vunpack.c.l.b16 %v3816
    %v4911 = vunpack.c.h.b16 %v3816
    %v4912 = vunpack.c.l.b16 %v3817
    %v4913 = vunpack.c.h.b16 %v3817
    %v4914 = vunpack.c.l.b16 %v3818
    %v4915 = vunpack.c.h.b16 %v3818
    %v4916 = vunpack.c.l.b16 %v3819
    %v4917 = vunpack.c.h.b16 %v3819
    %v4918 = vunpack.c.l.b16 %v3820
    %v4919 = vunpack.c.h.b16 %v3820
    %v4920 = vunpack.c.l.b16 %v3821
    %v4921 = vunpack.c.h.b16 %v3821
    %v4922 = vunpack.c.l.b16 %v3822
    %v4923 = vunpack.c.h.b16 %v3822
    %v4924 = vunpack.c.l.b16 %v3823
    %v4925 = vunpack.c.h.b16 %v3823
    %v4926 = vunpack.c.l.b16 %v3824
    %v4927 = vunpack.c.h.b16 %v3824
    %v4928 = vunpack.c.l.b16 %v3825
    %v4929 = vunpack.c.h.b16 %v3825
    %v4930 = vunpack.c.l.b16 %v3826
    %v4931 = vunpack.c.h.b16 %v3826
    %v4932 = vunpack.c.l.b16 %v3827
    %v4933 = vunpack.c.h.b16 %v3827
    %v4934 = vunpack.c.l.b16 %v3828
    %v4935 = vunpack.c.h.b16 %v3828
    %v4936 = vunpack.c.l.b16 %v3829
    %v4937 = vunpack.c.h.b16 %v3829
    %v4938 = vunpack.c.l.b16 %v3830
    %v4939 = vunpack.c.h.b16 %v3830
    %v4940 = vunpack.c.l.b16 %v3831
    %v4941 = vunpack.c.h.b16 %v3831
    %v4942 = vunpack.c.l.b16 %v3832
    %v4943 = vunpack.c.h.b16 %v3832
    %v4944 = vunpack.c.l.b16 %v3833
    %v4945 = vunpack.c.h.b16 %v3833
    %v4946 = vunpack.c.l.b16 %v3834
    %v4947 = vunpack.c.h.b16 %v3834
    %v4948 = vunpack.c.l.b16 %v3835
    %v4949 = vunpack.c.h.b16 %v3835
    %v4950 = vunpack.c.l.b16 %v3836
    %v4951 = vunpack.c.h.b16 %v3836
    %v4952 = vunpack.c.l.b16 %v3837
    %v4953 = vunpack.c.h.b16 %v3837
    %v4954 = vunpack.c.l.b16 %v3838
    %v4955 = vunpack.c.h.b16 %v3838
    %v4956 = vunpack.c.l.b16 %v3839
    %v4957 = vunpack.c.h.b16 %v3839
    %v4958 = vunpack.c.l.b16 %v3840
    %v4959 = vunpack.c.h.b16 %v3840
    %v4960 = vunpack.c.l.b16 %v3841
    %v4961 = vunpack.c.h.b16 %v3841
    %v4962 = vunpack.c.l.b16 %v3842
    %v4963 = vunpack.c.h.b16 %v3842
    %v4964 = vunpack.c.l.b16 %v3843
    %v4965 = vunpack.c.h.b16 %v3843
    %v4966 = vunpack.c.l.b16 %v3844
    %v4967 = vunpack.c.h.b16 %v3844
    %v4968 = vunpack.c.l.b16 %v3845
    %v4969 = vunpack.c.h.b16 %v3845
    %v4970 = vunpack.c.l.b16 %v3846
    %v4971 = vunpack.c.h.b16 %v3846
    %v4972 = vunpack.c.l.b16 %v3847
    %v4973 = vunpack.c.h.b16 %v3847
    %v4974 = vunpack.c.l.b16 %v3848
    %v4975 = vunpack.c.h.b16 %v3848
    %v4976 = vunpack.c.l.b16 %v3849
    %v4977 = vunpack.c.h.b16 %v3849
    %v4978 = vunpack.c.l.b16 %v3850
    %v4979 = vunpack.c.h.b16 %v3850
    %v4980 = vunpack.c.l.b16 %v3851
    %v4981 = vunpack.c.h.b16 %v3851
    %v4982 = vunpack.c.l.b16 %v3852
    %v4983 = vunpack.c.h.b16 %v3852
    %v4984 = vunpack.c.l.b16 %v3853
    %v4985 = vunpack.c.h.b16 %v3853
    %v4986 = vunpack.c.l.b16 %v3854
    %v4987 = vunpack.c.h.b16 %v3854
    %v4988 = vunpack.c.l.b16 %v3855
    %v4989 = vunpack.c.h.b16 %v3855
    %v4990 = vunpack.c.l.b16 %v3856
    %v4991 = vunpack.c.h.b16 %v3856
    %v4992 = vunpack.c.l.b16 %v3857
    %v4993 = vunpack.c.h.b16 %v3857
    %v4994 = vunpack.c.l.b16 %v3858
    %v4995 = vunpack.c.h.b16 %v3858
    %v4996 = vunpack.c.l.b16 %v3859
    %v4997 = vunpack.c.h.b16 %v3859
    %v4998 = vunpack.c.l.b16 %v3860
    %v4999 = vunpack.c.h.b16 %v3860
    %v5000 = vunpack.c.l.b16 %v3861
    %v5001 = vunpack.c.h.b16 %v3861
    %v5002 = vunpack.c.l.b16 %v3862
    %v5003 = vunpack.c.h.b16 %v3862
    %v5004 = vunpack.c.l.b16 %v3863
    %v5005 = vunpack.c.h.b16 %v3863
    %v5006 = vunpack.c.l.b16 %v3864
    %v5007 = vunpack.c.h.b16 %v3864
    %v5008 = vunpack.c.l.b16 %v3865
    %v5009 = vunpack.c.h.b16 %v3865
    %v5010 = vunpack.c.l.b16 %v3866
    %v5011 = vunpack.c.h.b16 %v3866
    %v5012 = vunpack.c.l.b16 %v3867
    %v5013 = vunpack.c.h.b16 %v3867
    %v5014 = vunpack.c.l.b16 %v3868
    %v5015 = vunpack.c.h.b16 %v3868
    %v5016 = vunpack.c.l.b16 %v3869
    %v5017 = vunpack.c.h.b16 %v3869
    %v5018 = vunpack.c.l.b16 %v3870
    %v5019 = vunpack.c.h.b16 %v3870
    %v5020 = vunpack.c.l.b16 %v3871
    %v5021 = vunpack.c.h.b16 %v3871
    %v5022 = vunpack.c.l.b16 %v3872
    %v5023 = vunpack.c.h.b16 %v3872
    %v5024 = vunpack.c.l.b16 %v3873
    %v5025 = vunpack.c.h.b16 %v3873
    %v5026 = vunpack.c.l.b16 %v3874
    %v5027 = vunpack.c.h.b16 %v3874
    %v5028 = vunpack.c.l.b16 %v3875
    %v5029 = vunpack.c.h.b16 %v3875
    %v5030 = vunpack.c.l.b16 %v3876
    %v5031 = vunpack.c.h.b16 %v3876
    %v5032 = vunpack.c.l.b16 %v3877
    %v5033 = vunpack.c.h.b16 %v3877
    %v5034 = vunpack.c.l.b16 %v3878
    %v5035 = vunpack.c.h.b16 %v3878
    %v5036 = vunpack.c.l.b16 %v3879
    %v5037 = vunpack.c.h.b16 %v3879
    %v5038 = vunpack.c.l.b16 %v3880
    %v5039 = vunpack.c.h.b16 %v3880
    %v5040 = vunpack.c.l.b16 %v3881
    %v5041 = vunpack.c.h.b16 %v3881
    %v5042 = vunpack.c.l.b16 %v3882
    %v5043 = vunpack.c.h.b16 %v3882
    %v5044 = vunpack.c.l.b16 %v3883
    %v5045 = vunpack.c.h.b16 %v3883
    %v5046 = vunpack.c.l.b16 %v3884
    %v5047 = vunpack.c.h.b16 %v3884
    %v5048 = vunpack.c.l.b16 %v3885
    %v5049 = vunpack.c.h.b16 %v3885
    %v5050 = vunpack.c.l.b16 %v3886
    %v5051 = vunpack.c.h.b16 %v3886
    %v5052 = vunpack.c.l.b16 %v3887
    %v5053 = vunpack.c.h.b16 %v3887
    %v5054 = vunpack.c.l.b16 %v3888
    %v5055 = vunpack.c.h.b16 %v3888
    %v5056 = vunpack.c.l.b16 %v3889
    %v5057 = vunpack.c.h.b16 %v3889
    %v5058 = vunpack.c.l.b16 %v3890
    %v5059 = vunpack.c.h.b16 %v3890
    %v5060 = vunpack.c.l.b16 %v3891
    %v5061 = vunpack.c.h.b16 %v3891
    %v5062 = vunpack.c.l.b16 %v3892
    %v5063 = vunpack.c.h.b16 %v3892
    %v5064 = vunpack.c.l.b16 %v3893
    %v5065 = vunpack.c.h.b16 %v3893
    %v5066 = vunpack.c.l.b16 %v3894
    %v5067 = vunpack.c.h.b16 %v3894
    %v5068 = vunpack.c.l.b16 %v3895
    %v5069 = vunpack.c.h.b16 %v3895
    %v5070 = vunpack.c.l.b16 %v3896
    %v5071 = vunpack.c.h.b16 %v3896
    %v5072 = vunpack.c.l.b16 %v3897
    %v5073 = vunpack.c.h.b16 %v3897
    %v5074 = vunpack.c.l.b16 %v3898
    %v5075 = vunpack.c.h.b16 %v3898
    %v5076 = vunpack.c.l.b16 %v3899
    %v5077 = vunpack.c.h.b16 %v3899
    %v5078 = vunpack.c.l.b16 %v3900
    %v5079 = vunpack.c.h.b16 %v3900
    %v5080 = vunpack.c.l.b16 %v3901
    %v5081 = vunpack.c.h.b16 %v3901
    %v5082 = vunpack.c.l.b16 %v3902
    %v5083 = vunpack.c.h.b16 %v3902
    %v5084 = vunpack.c.l.b16 %v3903
    %v5085 = vunpack.c.h.b16 %v3903
    %v5086 = vunpack.c.l.b16 %v3904
    %v5087 = vunpack.c.h.b16 %v3904
    %v5088 = vunpack.c.l.b16 %v3905
    %v5089 = vunpack.c.h.b16 %v3905
    %v5090 = vunpack.c.l.b16 %v3906
    %v5091 = vunpack.c.h.b16 %v3906
    %v5092 = vunpack.c.l.b16 %v3907
    %v5093 = vunpack.c.h.b16 %v3907
    %v5094 = vunpack.c.l.b16 %v3908
    %v5095 = vunpack.c.h.b16 %v3908
    %v5096 = vunpack.c.l.b16 %v3909
    %v5097 = vunpack.c.h.b16 %v3909
    %v5098 = vunpack.c.l.b16 %v3910
    %v5099 = vunpack.c.h.b16 %v3910
    %v5100 = vunpack.c.l.b16 %v3911
    %v5101 = vunpack.c.h.b16 %v3911
    %v5102 = vunpack.c.l.b16 %v3912
    %v5103 = vunpack.c.h.b16 %v3912
    %v5104 = vunpack.c.l.b16 %v3913
    %v5105 = vunpack.c.h.b16 %v3913
    %v5106 = vunpack.c.l.b16 %v3914
    %v5107 = vunpack.c.h.b16 %v3914
    %v5108 = vunpack.c.l.b16 %v3915
    %v5109 = vunpack.c.h.b16 %v3915
    %v5110 = vunpack.c.l.b16 %v3916
    %v5111 = vunpack.c.h.b16 %v3916
    %v5112 = vunpack.c.l.b16 %v3917
    %v5113 = vunpack.c.h.b16 %v3917
    %v5114 = vunpack.c.l.b16 %v3918
    %v5115 = vunpack.c.h.b16 %v3918
    %v5116 = vunpack.c.l.b16 %v3919
    %v5117 = vunpack.c.h.b16 %v3919
    %v5118 = vunpack.c.l.b16 %v3920
    %v5119 = vunpack.c.h.b16 %v3920
    %v5120 = vunpack.c.l.b16 %v3921
    %v5121 = vunpack.c.h.b16 %v3921
    %v5122 = vunpack.c.l.b16 %v3922
    %v5123 = vunpack.c.h.b16 %v3922
    %v5124 = vunpack.c.l.b16 %v3923
    %v5125 = vunpack.c.h.b16 %v3923
    %v5126 = vunpack.c.l.b16 %v3924
    %v5127 = vunpack.c.h.b16 %v3924
    %v5128 = vunpack.c.l.b16 %v3925
    %v5129 = vunpack.c.h.b16 %v3925
    %v5130 = vunpack.c.l.b16 %v3926
    %v5131 = vunpack.c.h.b16 %v3926
    %v5132 = vunpack.c.l.b16 %v3927
    %v5133 = vunpack.c.h.b16 %v3927
    %v5134 = vunpack.c.l.b16 %v3928
    %v5135 = vunpack.c.h.b16 %v3928
    %v5136 = vunpack.c.l.b16 %v3929
    %v5137 = vunpack.c.h.b16 %v3929
    %v5138 = vunpack.c.l.b16 %v3930
    %v5139 = vunpack.c.h.b16 %v3930
    %v5140 = vunpack.c.l.b16 %v3931
    %v5141 = vunpack.c.h.b16 %v3931
    %v5142 = vunpack.c.l.b16 %v3932
    %v5143 = vunpack.c.h.b16 %v3932
    %v5144 = vunpack.c.l.b16 %v3933
    %v5145 = vunpack.c.h.b16 %v3933
    %v5146 = vunpack.c.l.b16 %v3934
    %v5147 = vunpack.c.h.b16 %v3934
    %v5148 = vunpack.c.l.b16 %v3935
    %v5149 = vunpack.c.h.b16 %v3935
    %v5150 = vunpack.c.l.b16 %v3936
    %v5151 = vunpack.c.h.b16 %v3936
    %v5152 = vunpack.c.l.b16 %v3937
    %v5153 = vunpack.c.h.b16 %v3937
    %v5154 = vunpack.c.l.b16 %v3938
    %v5155 = vunpack.c.h.b16 %v3938
    %v5156 = vunpack.c.l.b16 %v3939
    %v5157 = vunpack.c.h.b16 %v3939
    %v5158 = vunpack.c.l.b16 %v3940
    %v5159 = vunpack.c.h.b16 %v3940
    %v5160 = vunpack.c.l.b16 %v3941
    %v5161 = vunpack.c.h.b16 %v3941
    %v5162 = vunpack.c.l.b16 %v3942
    %v5163 = vunpack.c.h.b16 %v3942
    %v5164 = vunpack.c.l.b16 %v3943
    %v5165 = vunpack.c.h.b16 %v3943
    %v5166 = vunpack.c.l.b16 %v3944
    %v5167 = vunpack.c.h.b16 %v3944
    %v5168 = vunpack.c.l.b16 %v3945
    %v5169 = vunpack.c.h.b16 %v3945
    %v5170 = vunpack.c.l.b16 %v3946
    %v5171 = vunpack.c.h.b16 %v3946
    %v5172 = vunpack.c.l.b16 %v3947
    %v5173 = vunpack.c.h.b16 %v3947
    %v5174 = vunpack.c.l.b16 %v3948
    %v5175 = vunpack.c.h.b16 %v3948
    %v5176 = vunpack.c.l.b16 %v3949
    %v5177 = vunpack.c.h.b16 %v3949
    %v5178 = vunpack.c.l.b16 %v3950
    %v5179 = vunpack.c.h.b16 %v3950
    %v5180 = vunpack.c.l.b16 %v3951
    %v5181 = vunpack.c.h.b16 %v3951
    %v5182 = vunpack.c.l.b16 %v3952
    %v5183 = vunpack.c.h.b16 %v3952
    %v5184 = vunpack.c.l.b16 %v3953
    %v5185 = vunpack.c.h.b16 %v3953
    %v5186 = vunpack.c.l.b16 %v3954
    %v5187 = vunpack.c.h.b16 %v3954
    %v5188 = vunpack.c.l.b16 %v3955
    %v5189 = vunpack.c.h.b16 %v3955
    %v5190 = vunpack.c.l.b16 %v3956
    %v5191 = vunpack.c.h.b16 %v3956
    %v5192 = vunpack.c.l.b16 %v3957
    %v5193 = vunpack.c.h.b16 %v3957
    %v5194 = vunpack.c.l.b16 %v3958
    %v5195 = vunpack.c.h.b16 %v3958
    %v5196 = vunpack.c.l.b16 %v3959
    %v5197 = vunpack.c.h.b16 %v3959
    %v5198 = vunpack.c.l.b16 %v3960
    %v5199 = vunpack.c.h.b16 %v3960
    %v5200 = vunpack.c.l.b16 %v3961
    %v5201 = vunpack.c.h.b16 %v3961
    %v5202 = vunpack.c.l.b16 %v3962
    %v5203 = vunpack.c.h.b16 %v3962
    %v5204 = vunpack.c.l.b16 %v3963
    %v5205 = vunpack.c.h.b16 %v3963
    %v5206 = vunpack.c.l.b16 %v3964
    %v5207 = vunpack.c.h.b16 %v3964
    %v5208 = vunpack.c.l.b16 %v3965
    %v5209 = vunpack.c.h.b16 %v3965
    %v5210 = vunpack.c.l.b16 %v3966
    %v5211 = vunpack.c.h.b16 %v3966
    %v5212 = vunpack.c.l.b16 %v3967
    %v5213 = vunpack.c.h.b16 %v3967
    %v5214 = vunpack.c.l.b16 %v3968
    %v5215 = vunpack.c.h.b16 %v3968
    %v5216 = vunpack.c.l.b16 %v3969
    %v5217 = vunpack.c.h.b16 %v3969
    %v5218 = vunpack.c.l.b16 %v3970
    %v5219 = vunpack.c.h.b16 %v3970
    %v5220 = vunpack.c.l.b16 %v3971
    %v5221 = vunpack.c.h.b16 %v3971
    %v5222 = vunpack.c.l.b16 %v3972
    %v5223 = vunpack.c.h.b16 %v3972
    %v5224 = vunpack.c.l.b16 %v3973
    %v5225 = vunpack.c.h.b16 %v3973
    %v5226 = vunpack.c.l.b16 %v3974
    %v5227 = vunpack.c.h.b16 %v3974
    %v5228 = vunpack.c.l.b16 %v3975
    %v5229 = vunpack.c.h.b16 %v3975
    %v5230 = vunpack.c.l.b16 %v3976
    %v5231 = vunpack.c.h.b16 %v3976
    %v5232 = vunpack.c.l.b16 %v3977
    %v5233 = vunpack.c.h.b16 %v3977
    %v5234 = vunpack.c.l.b16 %v3978
    %v5235 = vunpack.c.h.b16 %v3978
    %v5236 = vunpack.c.l.b16 %v3979
    %v5237 = vunpack.c.h.b16 %v3979
    %v5238 = vunpack.c.l.b16 %v3980
    %v5239 = vunpack.c.h.b16 %v3980
    %v5240 = vunpack.c.l.b16 %v3981
    %v5241 = vunpack.c.h.b16 %v3981
    %v5242 = vunpack.c.l.b16 %v3982
    %v5243 = vunpack.c.h.b16 %v3982
    %v5244 = vunpack.c.l.b16 %v3983
    %v5245 = vunpack.c.h.b16 %v3983
    %v5246 = vunpack.c.l.b16 %v3984
    %v5247 = vunpack.c.h.b16 %v3984
    %v5248 = vunpack.c.l.b16 %v3985
    %v5249 = vunpack.c.h.b16 %v3985
    %v5250 = vunpack.c.l.b16 %v3986
    %v5251 = vunpack.c.h.b16 %v3986
    %v5252 = vunpack.c.l.b16 %v3987
    %v5253 = vunpack.c.h.b16 %v3987
    %v5254 = vunpack.c.l.b16 %v3988
    %v5255 = vunpack.c.h.b16 %v3988
    %v5256 = vunpack.c.l.b16 %v3989
    %v5257 = vunpack.c.h.b16 %v3989
    %v5258 = vunpack.c.l.b16 %v3990
    %v5259 = vunpack.c.h.b16 %v3990
    %v5260 = vunpack.c.l.b16 %v3991
    %v5261 = vunpack.c.h.b16 %v3991
    %v5262 = vunpack.c.l.b16 %v3992
    %v5263 = vunpack.c.h.b16 %v3992
    %v5264 = vunpack.c.l.b16 %v3993
    %v5265 = vunpack.c.h.b16 %v3993
    %v5266 = vunpack.c.l.b16 %v3994
    %v5267 = vunpack.c.h.b16 %v3994
    %v5268 = vunpack.c.l.b16 %v3995
    %v5269 = vunpack.c.h.b16 %v3995
    %v5270 = vunpack.c.l.b16 %v3996
    %v5271 = vunpack.c.h.b16 %v3996
    %v5272 = vunpack.c.l.b16 %v3997
    %v5273 = vunpack.c.h.b16 %v3997
    %v5274 = vunpack.c.l.b16 %v3998
    %v5275 = vunpack.c.h.b16 %v3998
    %v5276 = vunpack.c.l.b16 %v3999
    %v5277 = vunpack.c.h.b16 %v3999
    %v5278 = vunpack.c.l.b16 %v4000
    %v5279 = vunpack.c.h.b16 %v4000
    %v5280 = vunpack.c.l.b16 %v4001
    %v5281 = vunpack.c.h.b16 %v4001
    %v5282 = vunpack.c.l.b16 %v4002
    %v5283 = vunpack.c.h.b16 %v4002
    %v5284 = vunpack.c.l.b16 %v4003
    %v5285 = vunpack.c.h.b16 %v4003
    %v5286 = vunpack.c.l.b16 %v4004
    %v5287 = vunpack.c.h.b16 %v4004
    %v5288 = vunpack.c.l.b16 %v4005
    %v5289 = vunpack.c.h.b16 %v4005
    %v5290 = vunpack.c.l.b16 %v4006
    %v5291 = vunpack.c.h.b16 %v4006
    %v5292 = vunpack.c.l.b16 %v4007
    %v5293 = vunpack.c.h.b16 %v4007
    %v5294 = vunpack.c.l.b16 %v4008
    %v5295 = vunpack.c.h.b16 %v4008
    %v5296 = vunpack.c.l.b16 %v4009
    %v5297 = vunpack.c.h.b16 %v4009
    %v5298 = vunpack.c.l.b16 %v4010
    %v5299 = vunpack.c.h.b16 %v4010
    %v5300 = vunpack.c.l.b16 %v4011
    %v5301 = vunpack.c.h.b16 %v4011
    %v5302 = vunpack.c.l.b16 %v4012
    %v5303 = vunpack.c.h.b16 %v4012
    %v5304 = vunpack.c.l.b16 %v4013
    %v5305 = vunpack.c.h.b16 %v4013
    %v5306 = vunpack.c.l.b16 %v4014
    %v5307 = vunpack.c.h.b16 %v4014
    %v5308 = vunpack.c.l.b16 %v4015
    %v5309 = vunpack.c.h.b16 %v4015
    %v5310 = vunpack.c.l.b16 %v4016
    %v5311 = vunpack.c.h.b16 %v4016
    %v5312 = vunpack.c.l.b16 %v4017
    %v5313 = vunpack.c.h.b16 %v4017
    %v5314 = vunpack.c.l.b16 %v4018
    %v5315 = vunpack.c.h.b16 %v4018
    %v5316 = vunpack.c.l.b16 %v4019
    %v5317 = vunpack.c.h.b16 %v4019
    %v5318 = vunpack.c.l.b16 %v4020
    %v5319 = vunpack.c.h.b16 %v4020
    %v5320 = vunpack.c.l.b16 %v4021
    %v5321 = vunpack.c.h.b16 %v4021
    %v5322 = vunpack.c.l.b16 %v4022
    %v5323 = vunpack.c.h.b16 %v4022
    %v5324 = vunpack.c.l.b16 %v4023
    %v5325 = vunpack.c.h.b16 %v4023
    %v5326 = vunpack.c.l.b16 %v4024
    %v5327 = vunpack.c.h.b16 %v4024
    %v5328 = vunpack.c.l.b16 %v4025
    %v5329 = vunpack.c.h.b16 %v4025
    %v5330 = vunpack.c.l.b16 %v4026
    %v5331 = vunpack.c.h.b16 %v4026
    %v5332 = vunpack.c.l.b16 %v4027
    %v5333 = vunpack.c.h.b16 %v4027
    %v5334 = vunpack.c.l.b16 %v4028
    %v5335 = vunpack.c.h.b16 %v4028
    %v5336 = vunpack.c.l.b16 %v4029
    %v5337 = vunpack.c.h.b16 %v4029
    %v5338 = vunpack.c.l.b16 %v4030
    %v5339 = vunpack.c.h.b16 %v4030
    %v5340 = vunpack.c.l.b16 %v4031
    %v5341 = vunpack.c.h.b16 %v4031
    %v5342 = vunpack.c.l.b16 %v4032
    %v5343 = vunpack.c.h.b16 %v4032
    %v5344 = vunpack.c.l.b16 %v4033
    %v5345 = vunpack.c.h.b16 %v4033
    %v5346 = vunpack.c.l.b16 %v4034
    %v5347 = vunpack.c.h.b16 %v4034
    %v5348 = vunpack.c.l.b16 %v4035
    %v5349 = vunpack.c.h.b16 %v4035
    %v5350 = vunpack.c.l.b16 %v4036
    %v5351 = vunpack.c.h.b16 %v4036
    %v5352 = vunpack.c.l.b16 %v4037
    %v5353 = vunpack.c.h.b16 %v4037
    %v5354 = vunpack.c.l.b16 %v4038
    %v5355 = vunpack.c.h.b16 %v4038
    %v5356 = vunpack.c.l.b16 %v4039
    %v5357 = vunpack.c.h.b16 %v4039
    %v5358 = vunpack.c.l.b16 %v4040
    %v5359 = vunpack.c.h.b16 %v4040
    %v5360 = vunpack.c.l.b16 %v4041
    %v5361 = vunpack.c.h.b16 %v4041
    %v5362 = vunpack.c.l.b16 %v4042
    %v5363 = vunpack.c.h.b16 %v4042
    %v5364 = vunpack.c.l.b16 %v4043
    %v5365 = vunpack.c.h.b16 %v4043
    %v5366 = vunpack.c.l.b16 %v4044
    %v5367 = vunpack.c.h.b16 %v4044
    %v5368 = vunpack.c.l.b16 %v4045
    %v5369 = vunpack.c.h.b16 %v4045
    %v5370 = vunpack.c.l.b16 %v4046
    %v5371 = vunpack.c.h.b16 %v4046
    %v5372 = vunpack.c.l.b16 %v4047
    %v5373 = vunpack.c.h.b16 %v4047
    %v5374 = vunpack.c.l.b16 %v4048
    %v5375 = vunpack.c.h.b16 %v4048
    %v5376 = vunpack.c.l.b16 %v4049
    %v5377 = vunpack.c.h.b16 %v4049
    %v5378 = vunpack.c.l.b16 %v4050
    %v5379 = vunpack.c.h.b16 %v4050
    %v5380 = vunpack.c.l.b16 %v4051
    %v5381 = vunpack.c.h.b16 %v4051
    %v5382 = vunpack.c.l.b16 %v4052
    %v5383 = vunpack.c.h.b16 %v4052
    %v5384 = vunpack.c.l.b16 %v4053
    %v5385 = vunpack.c.h.b16 %v4053
    %v5386 = vunpack.c.l.b16 %v4054
    %v5387 = vunpack.c.h.b16 %v4054
    %v5388 = vunpack.c.l.b16 %v4055
    %v5389 = vunpack.c.h.b16 %v4055
    %v5390 = vunpack.c.l.b16 %v4056
    %v5391 = vunpack.c.h.b16 %v4056
    %v5392 = vunpack.c.l.b16 %v4057
    %v5393 = vunpack.c.h.b16 %v4057
    %v5394 = vunpack.c.l.b16 %v4058
    %v5395 = vunpack.c.h.b16 %v4058
    %v5396 = vunpack.c.l.b16 %v4059
    %v5397 = vunpack.c.h.b16 %v4059
    %v5398 = vunpack.c.l.b16 %v4060
    %v5399 = vunpack.c.h.b16 %v4060
    %v5400 = vunpack.c.l.b16 %v4061
    %v5401 = vunpack.c.h.b16 %v4061
    %v5402 = vunpack.c.l.b16 %v4062
    %v5403 = vunpack.c.h.b16 %v4062
    %v5404 = vunpack.c.l.b16 %v4063
    %v5405 = vunpack.c.h.b16 %v4063
    %v5406 = vunpack.c.l.b16 %v4064
    %v5407 = vunpack.c.h.b16 %v4064
    %v5408 = vunpack.c.l.b16 %v4065
    %v5409 = vunpack.c.h.b16 %v4065
    %v5410 = vunpack.c.l.b16 %v4066
    %v5411 = vunpack.c.h.b16 %v4066
    %v5412 = vunpack.c.l.b16 %v4067
    %v5413 = vunpack.c.h.b16 %v4067
    %v5414 = vunpack.c.l.b16 %v4068
    %v5415 = vunpack.c.h.b16 %v4068
    %v5416 = vunpack.c.l.b16 %v4069
    %v5417 = vunpack.c.h.b16 %v4069
    %v5418 = vunpack.c.l.b16 %v4070
    %v5419 = vunpack.c.h.b16 %v4070
    %v5420 = vunpack.c.l.b16 %v4071
    %v5421 = vunpack.c.h.b16 %v4071
    %v5422 = vunpack.c.l.b16 %v4072
    %v5423 = vunpack.c.h.b16 %v4072
    %v5424 = vunpack.c.l.b16 %v4073
    %v5425 = vunpack.c.h.b16 %v4073
    %v5426 = vunpack.c.l.b16 %v4074
    %v5427 = vunpack.c.h.b16 %v4074
    %v5428 = vunpack.c.l.b16 %v4075
    %v5429 = vunpack.c.h.b16 %v4075
    %v5430 = vunpack.c.l.b16 %v4076
    %v5431 = vunpack.c.h.b16 %v4076
    %v5432 = vunpack.c.l.b16 %v4077
    %v5433 = vunpack.c.h.b16 %v4077
    %v5434 = vunpack.c.l.b16 %v4078
    %v5435 = vunpack.c.h.b16 %v4078
    %v5436 = vunpack.c.l.b16 %v4079
    %v5437 = vunpack.c.h.b16 %v4079
    %v5438 = vunpack.c.l.b16 %v4080
    %v5439 = vunpack.c.h.b16 %v4080
    %v5440 = vunpack.c.l.b16 %v4081
    %v5441 = vunpack.c.h.b16 %v4081
    %v5442 = vunpack.c.l.b16 %v4082
    %v5443 = vunpack.c.h.b16 %v4082
    %v5444 = vunpack.c.l.b16 %v4083
    %v5445 = vunpack.c.h.b16 %v4083
    %v5446 = vunpack.c.l.b16 %v4084
    %v5447 = vunpack.c.h.b16 %v4084
    %v5448 = vunpack.c.l.b16 %v4085
    %v5449 = vunpack.c.h.b16 %v4085
    %v5450 = vunpack.c.l.b16 %v4086
    %v5451 = vunpack.c.h.b16 %v4086
    %v5452 = vunpack.c.l.b16 %v4087
    %v5453 = vunpack.c.h.b16 %v4087
    %v5454 = vunpack.c.l.b16 %v4088
    %v5455 = vunpack.c.h.b16 %v4088
    %v5456 = vunpack.c.l.b16 %v4089
    %v5457 = vunpack.c.h.b16 %v4089
    %v5458 = vunpack.c.l.b16 %v4090
    %v5459 = vunpack.c.h.b16 %v4090
    %v5460 = vunpack.c.l.b16 %v4091
    %v5461 = vunpack.c.h.b16 %v4091
    %v5462 = vunpack.c.l.b16 %v4092
    %v5463 = vunpack.c.h.b16 %v4092
    %v5464 = vunpack.c.l.b16 %v4093
    %v5465 = vunpack.c.h.b16 %v4093
    %v5466 = vunpack.c.l.b16 %v4094
    %v5467 = vunpack.c.h.b16 %v4094
    %v5468 = vunpack.c.l.b16 %v4095
    %v5469 = vunpack.c.h.b16 %v4095
    %v5470 = vunpack.c.l.b16 %v4096
    %v5471 = vunpack.c.h.b16 %v4096
    %v5472 = vunpack.c.l.b16 %v4097
    %v5473 = vunpack.c.h.b16 %v4097
    %v5474 = vunpack.c.l.b16 %v4098
    %v5475 = vunpack.c.h.b16 %v4098
    %v5476 = vunpack.c.l.b16 %v4099
    %v5477 = vunpack.c.h.b16 %v4099
    %v5478 = vunpack.c.l.b16 %v4100
    %v5479 = vunpack.c.h.b16 %v4100
    %v5480 = vunpack.c.l.b16 %v4101
    %v5481 = vunpack.c.h.b16 %v4101
    %v5482 = vunpack.c.l.b16 %v4102
    %v5483 = vunpack.c.h.b16 %v4102
    %v5484 = vunpack.c.l.b16 %v4103
    %v5485 = vunpack.c.h.b16 %v4103
    %v5486 = vunpack.c.l.b16 %v4104
    %v5487 = vunpack.c.h.b16 %v4104
    %v5488 = vunpack.c.l.b16 %v4105
    %v5489 = vunpack.c.h.b16 %v4105
    %v5490 = vunpack.c.l.b16 %v4106
    %v5491 = vunpack.c.h.b16 %v4106
    %v5492 = vunpack.c.l.b16 %v4107
    %v5493 = vunpack.c.h.b16 %v4107
    %v5494 = vunpack.c.l.b16 %v4108
    %v5495 = vunpack.c.h.b16 %v4108
    %v5496 = vunpack.c.l.b16 %v4109
    %v5497 = vunpack.c.h.b16 %v4109
    %v5498 = vunpack.c.l.b16 %v4110
    %v5499 = vunpack.c.h.b16 %v4110
    %v5500 = vunpack.c.l.b16 %v4111
    %v5501 = vunpack.c.h.b16 %v4111
    %v5502 = vunpack.c.l.b16 %v4112
    %v5503 = vunpack.c.h.b16 %v4112
    %v5504 = vunpack.c.l.b16 %v4113
    %v5505 = vunpack.c.h.b16 %v4113
    %v5506 = vunpack.c.l.b16 %v4114
    %v5507 = vunpack.c.h.b16 %v4114
    %v5508 = vunpack.c.l.b16 %v4115
    %v5509 = vunpack.c.h.b16 %v4115
    %v5510 = vunpack.c.l.b16 %v4116
    %v5511 = vunpack.c.h.b16 %v4116
    %v5512 = vunpack.c.l.b16 %v4117
    %v5513 = vunpack.c.h.b16 %v4117
    %v5514 = vunpack.c.l.b16 %v4118
    %v5515 = vunpack.c.h.b16 %v4118
    %v5516 = vunpack.c.l.b16 %v4119
    %v5517 = vunpack.c.h.b16 %v4119
    %v5518 = vunpack.c.l.b16 %v4120
    %v5519 = vunpack.c.h.b16 %v4120
    %v5520 = vunpack.c.l.b16 %v4121
    %v5521 = vunpack.c.h.b16 %v4121
    %v5522 = vunpack.c.l.b16 %v4122
    %v5523 = vunpack.c.h.b16 %v4122
    %v5524 = vunpack.c.l.b16 %v4123
    %v5525 = vunpack.c.h.b16 %v4123
    %v5526 = vunpack.c.l.b16 %v4124
    %v5527 = vunpack.c.h.b16 %v4124
    %v5528 = vunpack.c.l.b16 %v4125
    %v5529 = vunpack.c.h.b16 %v4125
    %v5530 = vunpack.c.l.b16 %v4126
    %v5531 = vunpack.c.h.b16 %v4126
    %v5532 = vunpack.c.l.b16 %v4127
    %v5533 = vunpack.c.h.b16 %v4127
    %v5534 = vunpack.c.l.b16 %v4128
    %v5535 = vunpack.c.h.b16 %v4128
    %v5536 = vunpack.c.l.b16 %v4129
    %v5537 = vunpack.c.h.b16 %v4129
    %v5538 = vunpack.c.l.b16 %v4130
    %v5539 = vunpack.c.h.b16 %v4130
    %v5540 = vunpack.c.l.b16 %v4131
    %v5541 = vunpack.c.h.b16 %v4131
    %v5542 = vunpack.c.l.b16 %v4132
    %v5543 = vunpack.c.h.b16 %v4132
    %v5544 = vunpack.c.l.b16 %v4133
    %v5545 = vunpack.c.h.b16 %v4133
    %v5546 = vunpack.c.l.b16 %v4134
    %v5547 = vunpack.c.h.b16 %v4134
    %v5548 = vunpack.c.l.b16 %v4135
    %v5549 = vunpack.c.h.b16 %v4135
    %v5550 = vunpack.c.l.b16 %v4136
    %v5551 = vunpack.c.h.b16 %v4136
    %v5552 = vunpack.c.l.b16 %v4137
    %v5553 = vunpack.c.h.b16 %v4137
    %v5554 = vunpack.c.l.b16 %v4138
    %v5555 = vunpack.c.h.b16 %v4138
    %v5556 = vunpack.c.l.b16 %v4139
    %v5557 = vunpack.c.h.b16 %v4139
    %v5558 = vunpack.c.l.b16 %v4140
    %v5559 = vunpack.c.h.b16 %v4140
    %v5560 = vunpack.c.l.b16 %v4141
    %v5561 = vunpack.c.h.b16 %v4141
    %v5562 = vunpack.c.l.b16 %v4142
    %v5563 = vunpack.c.h.b16 %v4142
    %v5564 = vunpack.c.l.b16 %v4143
    %v5565 = vunpack.c.h.b16 %v4143
    %v5566 = vunpack.c.l.b16 %v4144
    %v5567 = vunpack.c.h.b16 %v4144
    %v5568 = vunpack.c.l.b16 %v4145
    %v5569 = vunpack.c.h.b16 %v4145
    %v5570 = vunpack.c.l.b16 %v4146
    %v5571 = vunpack.c.h.b16 %v4146
    %v5572 = vunpack.c.l.b16 %v4147
    %v5573 = vunpack.c.h.b16 %v4147
    %v5574 = vunpack.c.l.b16 %v4148
    %v5575 = vunpack.c.h.b16 %v4148
    %v5576 = vunpack.c.l.b16 %v4149
    %v5577 = vunpack.c.h.b16 %v4149
    %v5578 = vunpack.c.l.b16 %v4150
    %v5579 = vunpack.c.h.b16 %v4150
    %v5580 = vunpack.c.l.b16 %v4151
    %v5581 = vunpack.c.h.b16 %v4151
    %v5582 = vunpack.c.l.b16 %v4152
    %v5583 = vunpack.c.h.b16 %v4152
    %v5584 = vunpack.c.l.b16 %v4153
    %v5585 = vunpack.c.h.b16 %v4153
    %v5586 = vunpack.c.l.b16 %v4154
    %v5587 = vunpack.c.h.b16 %v4154
    %v5588 = vunpack.c.l.b16 %v4155
    %v5589 = vunpack.c.h.b16 %v4155
    %v5590 = vunpack.c.l.b16 %v4156
    %v5591 = vunpack.c.h.b16 %v4156
    %v5592 = vunpack.c.l.b16 %v4157
    %v5593 = vunpack.c.h.b16 %v4157
    %v5594 = vunpack.c.l.b16 %v4158
    %v5595 = vunpack.c.h.b16 %v4158
    %v5596 = vunpack.c.l.b16 %v4159
    %v5597 = vunpack.c.h.b16 %v4159
    %v5598 = vunpack.c.l.b16 %v4160
    %v5599 = vunpack.c.h.b16 %v4160
    %v5600 = vunpack.c.l.b16 %v4161
    %v5601 = vunpack.c.h.b16 %v4161
    %v5602 = vunpack.c.l.b16 %v4162
    %v5603 = vunpack.c.h.b16 %v4162
    %v5604 = vunpack.c.l.b16 %v4163
    %v5605 = vunpack.c.h.b16 %v4163
    %v5606 = vunpack.c.l.b16 %v4164
    %v5607 = vunpack.c.h.b16 %v4164
    %v5608 = vunpack.c.l.b16 %v4165
    %v5609 = vunpack.c.h.b16 %v4165
    %v5610 = vunpack.c.l.b16 %v4166
    %v5611 = vunpack.c.h.b16 %v4166
    %v5612 = vunpack.c.l.b16 %v4167
    %v5613 = vunpack.c.h.b16 %v4167
    %v5614 = vunpack.c.l.b16 %v4168
    %v5615 = vunpack.c.h.b16 %v4168
    %v5616 = vunpack.c.l.b16 %v4169
    %v5617 = vunpack.c.h.b16 %v4169
    %v5618 = vunpack.c.l.b16 %v4170
    %v5619 = vunpack.c.h.b16 %v4170
    %v5620 = vunpack.c.l.b16 %v4171
    %v5621 = vunpack.c.h.b16 %v4171
    %v5622 = vunpack.c.l.b16 %v4172
    %v5623 = vunpack.c.h.b16 %v4172
    %v5624 = vunpack.c.l.b16 %v4173
    %v5625 = vunpack.c.h.b16 %v4173
    %v5626 = vunpack.c.l.b16 %v4174
    %v5627 = vunpack.c.h.b16 %v4174
    %v5628 = vunpack.c.l.b16 %v4175
    %v5629 = vunpack.c.h.b16 %v4175
    %v5630 = vunpack.c.l.b16 %v4176
    %v5631 = vunpack.c.h.b16 %v4176
    %v5632 = vunpack.c.l.b16 %v4177
    %v5633 = vunpack.c.h.b16 %v4177
    %v5634 = vunpack.c.l.b16 %v4178
    %v5635 = vunpack.c.h.b16 %v4178
    %v5636 = vunpack.c.l.b16 %v4179
    %v5637 = vunpack.c.h.b16 %v4179
    %v5638 = vunpack.c.l.b16 %v4180
    %v5639 = vunpack.c.h.b16 %v4180
    %v5640 = vunpack.c.l.b16 %v4181
    %v5641 = vunpack.c.h.b16 %v4181
    %v5642 = vunpack.c.l.b16 %v4182
    %v5643 = vunpack.c.h.b16 %v4182
    %v5644 = vunpack.c.l.b16 %v4183
    %v5645 = vunpack.c.h.b16 %v4183
    %v5646 = vunpack.c.l.b16 %v4184
    %v5647 = vunpack.c.h.b16 %v4184
    %v5648 = vunpack.c.l.b16 %v4185
    %v5649 = vunpack.c.h.b16 %v4185
    %v5650 = vunpack.c.l.b16 %v4186
    %v5651 = vunpack.c.h.b16 %v4186
    %v5652 = vunpack.c.l.b16 %v4187
    %v5653 = vunpack.c.h.b16 %v4187
    %v5654 = vunpack.c.l.b16 %v4188
    %v5655 = vunpack.c.h.b16 %v4188
    %v5656 = vunpack.c.l.b16 %v4189
    %v5657 = vunpack.c.h.b16 %v4189
    %v5658 = vunpack.c.l.b16 %v4190
    %v5659 = vunpack.c.h.b16 %v4190
    %v5660 = vunpack.c.l.b16 %v4191
    %v5661 = vunpack.c.h.b16 %v4191
    %v5662 = vunpack.c.l.b16 %v4192
    %v5663 = vunpack.c.h.b16 %v4192
    %v5664 = vunpack.c.l.b16 %v4193
    %v5665 = vunpack.c.h.b16 %v4193
    %v5666 = vunpack.c.l.b16 %v4194
    %v5667 = vunpack.c.h.b16 %v4194
    %v5668 = vunpack.c.l.b16 %v4195
    %v5669 = vunpack.c.h.b16 %v4195
    %v5670 = vunpack.c.l.b16 %v4196
    %v5671 = vunpack.c.h.b16 %v4196
    %v5672 = vunpack.c.l.b16 %v4197
    %v5673 = vunpack.c.h.b16 %v4197
    %v5674 = vunpack.c.l.b16 %v4198
    %v5675 = vunpack.c.h.b16 %v4198
    %v5676 = vunpack.c.l.b16 %v4199
    %v5677 = vunpack.c.h.b16 %v4199
    %v5678 = vunpack.c.l.b16 %v4200
    %v5679 = vunpack.c.h.b16 %v4200
    %v5680 = vunpack.c.l.b16 %v4201
    %v5681 = vunpack.c.h.b16 %v4201
    %v5682 = vunpack.c.l.b16 %v4202
    %v5683 = vunpack.c.h.b16 %v4202
    %v5684 = vunpack.c.l.b16 %v4203
    %v5685 = vunpack.c.h.b16 %v4203
    %v5686 = vunpack.c.l.b16 %v4204
    %v5687 = vunpack.c.h.b16 %v4204
    %v5688 = vunpack.c.l.b16 %v4205
    %v5689 = vunpack.c.h.b16 %v4205
    %v5690 = vunpack.c.l.b16 %v4206
    %v5691 = vunpack.c.h.b16 %v4206
    %v5692 = vunpack.c.l.b16 %v4207
    %v5693 = vunpack.c.h.b16 %v4207
    %v5694 = vunpack.c.l.b16 %v4208
    %v5695 = vunpack.c.h.b16 %v4208
    %v5696 = vunpack.c.l.b16 %v4209
    %v5697 = vunpack.c.h.b16 %v4209
    %v5698 = vunpack.c.l.b16 %v4210
    %v5699 = vunpack.c.h.b16 %v4210
    %v5700 = vunpack.c.l.b16 %v4211
    %v5701 = vunpack.c.h.b16 %v4211
    %v5702 = vunpack.c.l.b16 %v4212
    %v5703 = vunpack.c.h.b16 %v4212
    %v5704 = vunpack.c.l.b16 %v4213
    %v5705 = vunpack.c.h.b16 %v4213
    %v5706 = vunpack.c.l.b16 %v4214
    %v5707 = vunpack.c.h.b16 %v4214
    %v5708 = vunpack.c.l.b16 %v4215
    %v5709 = vunpack.c.h.b16 %v4215
    %v5710 = vunpack.c.l.b16 %v4216
    %v5711 = vunpack.c.h.b16 %v4216
    %v5712 = vunpack.c.l.b16 %v4217
    %v5713 = vunpack.c.h.b16 %v4217
    %v5714 = vunpack.c.l.b16 %v4218
    %v5715 = vunpack.c.h.b16 %v4218
    %v5716 = vunpack.c.l.b16 %v4219
    %v5717 = vunpack.c.h.b16 %v4219
    %v5718 = vunpack.c.l.b16 %v4220
    %v5719 = vunpack.c.h.b16 %v4220
    %v5720 = vunpack.c.l.b16 %v4221
    %v5721 = vunpack.c.h.b16 %v4221
    %v5722 = vunpack.c.l.b16 %v4222
    %v5723 = vunpack.c.h.b16 %v4222
    %v5724 = vunpack.c.l.b16 %v4223
    %v5725 = vunpack.c.h.b16 %v4223
    %v5726 = vunpack.c.l.b16 %v4224
    %v5727 = vunpack.c.h.b16 %v4224
    %v5728 = vunpack.c.l.b16 %v4225
    %v5729 = vunpack.c.h.b16 %v4225
    %v5730 = vunpack.c.l.b16 %v4226
    %v5731 = vunpack.c.h.b16 %v4226
    %v5732 = vunpack.c.l.b16 %v4227
    %v5733 = vunpack.c.h.b16 %v4227
    %v5734 = vunpack.c.l.b16 %v4228
    %v5735 = vunpack.c.h.b16 %v4228
    %v5736 = vunpack.c.l.b16 %v4229
    %v5737 = vunpack.c.h.b16 %v4229
    %v5738 = vunpack.c.l.b16 %v4230
    %v5739 = vunpack.c.h.b16 %v4230
    %v5740 = vunpack.c.l.b16 %v4231
    %v5741 = vunpack.c.h.b16 %v4231
    %v5742 = vunpack.c.l.b16 %v4232
    %v5743 = vunpack.c.h.b16 %v4232
    %v5744 = vunpack.c.l.b16 %v4233
    %v5745 = vunpack.c.h.b16 %v4233
    %v5746 = vunpack.c.l.b16 %v4234
    %v5747 = vunpack.c.h.b16 %v4234
    %v5748 = vunpack.c.l.b16 %v4235
    %v5749 = vunpack.c.h.b16 %v4235
    %v5750 = vunpack.c.l.b16 %v4236
    %v5751 = vunpack.c.h.b16 %v4236
    %v5752 = vunpack.c.l.b16 %v4237
    %v5753 = vunpack.c.h.b16 %v4237
    %v5754 = vunpack.c.l.b16 %v4238
    %v5755 = vunpack.c.h.b16 %v4238
    %v5756 = vunpack.c.l.b16 %v4239
    %v5757 = vunpack.c.h.b16 %v4239
    %v5758 = vunpack.c.l.b16 %v4240
    %v5759 = vunpack.c.h.b16 %v4240
    %v5760 = vunpack.c.l.b16 %v4241
    %v5761 = vunpack.c.h.b16 %v4241
    %v5762 = vunpack.c.l.b16 %v4242
    %v5763 = vunpack.c.h.b16 %v4242
    %v5764 = vunpack.c.l.b16 %v4243
    %v5765 = vunpack.c.h.b16 %v4243
    %v5766 = vunpack.c.l.b16 %v4244
    %v5767 = vunpack.c.h.b16 %v4244
    %v5768 = vunpack.c.l.b16 %v4245
    %v5769 = vunpack.c.h.b16 %v4245
    %v5770 = vunpack.c.l.b16 %v4246
    %v5771 = vunpack.c.h.b16 %v4246
    %v5772 = vunpack.c.l.b16 %v4247
    %v5773 = vunpack.c.h.b16 %v4247
    %v5774 = vunpack.c.l.b16 %v4248
    %v5775 = vunpack.c.h.b16 %v4248
    %v5776 = vunpack.c.l.b16 %v4249
    %v5777 = vunpack.c.h.b16 %v4249
    %v5778 = vunpack.c.l.b16 %v4250
    %v5779 = vunpack.c.h.b16 %v4250
    %v5780 = vunpack.c.l.b16 %v4251
    %v5781 = vunpack.c.h.b16 %v4251
    %v5782 = vunpack.c.l.b16 %v4252
    %v5783 = vunpack.c.h.b16 %v4252
    %v5784 = vunpack.c.l.b16 %v4253
    %v5785 = vunpack.c.h.b16 %v4253
    %v5786 = vunpack.c.l.b16 %v4254
    %v5787 = vunpack.c.h.b16 %v4254
    %v5788 = vunpack.c.l.b16 %v4255
    %v5789 = vunpack.c.h.b16 %v4255
    %v5790 = vunpack.c.l.b16 %v4256
    %v5791 = vunpack.c.h.b16 %v4256
    %v5792 = vunpack.c.l.b16 %v4257
    %v5793 = vunpack.c.h.b16 %v4257
    %v5794 = vunpack.c.l.b16 %v4258
    %v5795 = vunpack.c.h.b16 %v4258
    %v5796 = vunpack.c.l.b16 %v4259
    %v5797 = vunpack.c.h.b16 %v4259
    %v5798 = vunpack.c.l.b16 %v4260
    %v5799 = vunpack.c.h.b16 %v4260
    %v5800 = vunpack.c.l.b16 %v4261
    %v5801 = vunpack.c.h.b16 %v4261
    %v5802 = vunpack.c.l.b16 %v4262
    %v5803 = vunpack.c.h.b16 %v4262
    %v5804 = vunpack.c.l.b16 %v4263
    %v5805 = vunpack.c.h.b16 %v4263
    %v5806 = vunpack.c.l.b16 %v4264
    %v5807 = vunpack.c.h.b16 %v4264
    %v5808 = vunpack.c.l.b16 %v4265
    %v5809 = vunpack.c.h.b16 %v4265
    %v5810 = vunpack.c.l.b16 %v4266
    %v5811 = vunpack.c.h.b16 %v4266
    %v5812 = vunpack.c.l.b16 %v4267
    %v5813 = vunpack.c.h.b16 %v4267
    %v5814 = vunpack.c.l.b16 %v4268
    %v5815 = vunpack.c.h.b16 %v4268
    %v5816 = vunpack.c.l.b16 %v4269
    %v5817 = vunpack.c.h.b16 %v4269
    %v5818 = vunpack.c.l.b16 %v4270
    %v5819 = vunpack.c.h.b16 %v4270
    %v5820 = vunpack.c.l.b16 %v4271
    %v5821 = vunpack.c.h.b16 %v4271
    %v5822 = vunpack.c.l.b16 %v4272
    %v5823 = vunpack.c.h.b16 %v4272
    %v5824 = vunpack.c.l.b16 %v4273
    %v5825 = vunpack.c.h.b16 %v4273
    %v5826 = vunpack.c.l.b16 %v4274
    %v5827 = vunpack.c.h.b16 %v4274
    %v5828 = vunpack.c.l.b16 %v4275
    %v5829 = vunpack.c.h.b16 %v4275
    %v5830 = vunpack.c.l.b16 %v4276
    %v5831 = vunpack.c.h.b16 %v4276
    %v5832 = vunpack.c.l.b16 %v4277
    %v5833 = vunpack.c.h.b16 %v4277
    %v5834 = vunpack.c.l.b16 %v4278
    %v5835 = vunpack.c.h.b16 %v4278
    %v5836 = vunpack.c.l.b16 %v4279
    %v5837 = vunpack.c.h.b16 %v4279
    %v5838 = vunpack.c.l.b16 %v4280
    %v5839 = vunpack.c.h.b16 %v4280
    %v5840 = vunpack.c.l.b16 %v4281
    %v5841 = vunpack.c.h.b16 %v4281
    %v5842 = vunpack.c.l.b16 %v4282
    %v5843 = vunpack.c.h.b16 %v4282
    %v5844 = vunpack.c.l.b16 %v4283
    %v5845 = vunpack.c.h.b16 %v4283
    %v5846 = vunpack.c.l.b16 %v4284
    %v5847 = vunpack.c.h.b16 %v4284
    %v5848 = vunpack.c.l.b16 %v4285
    %v5849 = vunpack.c.h.b16 %v4285
    %v5850 = vunpack.c.l.b16 %v4286
    %v5851 = vunpack.c.h.b16 %v4286
    %v5852 = vunpack.c.l.b16 %v4287
    %v5853 = vunpack.c.h.b16 %v4287
    %v5854 = vunpack.c.l.b16 %v4288
    %v5855 = vunpack.c.h.b16 %v4288
    %v5856 = vunpack.c.l.b16 %v4289
    %v5857 = vunpack.c.h.b16 %v4289
    %v5858 = vunpack.c.l.b16 %v4290
    %v5859 = vunpack.c.h.b16 %v4290
    %v5860 = vunpack.c.l.b16 %v4291
    %v5861 = vunpack.c.h.b16 %v4291
    %v5862 = vunpack.c.l.b16 %v4292
    %v5863 = vunpack.c.h.b16 %v4292
    %v5864 = vunpack.c.l.b16 %v4293
    %v5865 = vunpack.c.h.b16 %v4293
    %v5866 = vunpack.c.l.b16 %v4294
    %v5867 = vunpack.c.h.b16 %v4294
    %v5868 = vunpack.c.l.b16 %v4295
    %v5869 = vunpack.c.h.b16 %v4295
    %v5870 = vunpack.c.l.b16 %v4296
    %v5871 = vunpack.c.h.b16 %v4296
    %v5872 = vunpack.c.l.b16 %v4297
    %v5873 = vunpack.c.h.b16 %v4297
    %v5874 = vunpack.c.l.b16 %v4298
    %v5875 = vunpack.c.h.b16 %v4298
    %v5876 = vunpack.c.l.b16 %v4299
    %v5877 = vunpack.c.h.b16 %v4299
    %v5878 = vpack.c.b16 %v4862, %v4854
    %v5879 = vpack.c.b16 %v4863, %v4855
    %v5880 = vpack.c.b16 %v4864, %v4856
    %v5881 = vpack.c.b16 %v4865, %v4857
    %v5882 = vpack.c.b16 %v4866, %v4858
    %v5883 = vpack.c.b16 %v4867, %v4859
    %v5884 = vpack.c.b16 %v4868, %v4860
    %v5885 = vpack.c.b16 %v4869, %v4861
    %v5886 = vpack.c.b16 %v4878, %v4870
    %v5887 = vpack.c.b16 %v4879, %v4871
    %v5888 = vpack.c.b16 %v4880, %v4872
    %v5889 = vpack.c.b16 %v4881, %v4873
    %v5890 = vpack.c.b16 %v4882, %v4874
    %v5891 = vpack.c.b16 %v4883, %v4875
    %v5892 = vpack.c.b16 %v4884, %v4876
    %v5893 = vpack.c.b16 %v4885, %v4877
    %v5894 = vpack.c.b16 %v4894, %v4886
    %v5895 = vpack.c.b16 %v4895, %v4887
    %v5896 = vpack.c.b16 %v4896, %v4888
    %v5897 = vpack.c.b16 %v4897, %v4889
    %v5898 = vpack.c.b16 %v4898, %v4890
    %v5899 = vpack.c.b16 %v4899, %v4891
    %v5900 = vpack.c.b16 %v4900, %v4892
    %v5901 = vpack.c.b16 %v4901, %v4893
    %v5902 = vpack.c.b16 %v4910, %v4902
    %v5903 = vpack.c.b16 %v4911, %v4903
    %v5904 = vpack.c.b16 %v4912, %v4904
    %v5905 = vpack.c.b16 %v4913, %v4905
    %v5906 = vpack.c.b16 %v4914, %v4906
    %v5907 = vpack.c.b16 %v4915, %v4907
    %v5908 = vpack.c.b16 %v4916, %v4908
    %v5909 = vpack.c.b16 %v4917, %v4909
    %v5910 = vpack.c.b16 %v4926, %v4918
    %v5911 = vpack.c.b16 %v4927, %v4919
    %v5912 = vpack.c.b16 %v4928, %v4920
    %v5913 = vpack.c.b16 %v4929, %v4921
    %v5914 = vpack.c.b16 %v4930, %v4922
    %v5915 = vpack.c.b16 %v4931, %v4923
    %v5916 = vpack.c.b16 %v4932, %v4924
    %v5917 = vpack.c.b16 %v4933, %v4925
    %v5918 = vpack.c.b16 %v4942, %v4934
    %v5919 = vpack.c.b16 %v4943, %v4935
    %v5920 = vpack.c.b16 %v4944, %v4936
    %v5921 = vpack.c.b16 %v4945, %v4937
    %v5922 = vpack.c.b16 %v4946, %v4938
    %v5923 = vpack.c.b16 %v4947, %v4939
    %v5924 = vpack.c.b16 %v4948, %v4940
    %v5925 = vpack.c.b16 %v4949, %v4941
    %v5926 = vpack.c.b16 %v4958, %v4950
    %v5927 = vpack.c.b16 %v4959, %v4951
    %v5928 = vpack.c.b16 %v4960, %v4952
    %v5929 = vpack.c.b16 %v4961, %v4953
    %v5930 = vpack.c.b16 %v4962, %v4954
    %v5931 = vpack.c.b16 %v4963, %v4955
    %v5932 = vpack.c.b16 %v4964, %v4956
    %v5933 = vpack.c.b16 %v4965, %v4957
    %v5934 = vpack.c.b16 %v4974, %v4966
    %v5935 = vpack.c.b16 %v4975, %v4967
    %v5936 = vpack.c.b16 %v4976, %v4968
    %v5937 = vpack.c.b16 %v4977, %v4969
    %v5938 = vpack.c.b16 %v4978, %v4970
    %v5939 = vpack.c.b16 %v4979, %v4971
    %v5940 = vpack.c.b16 %v4980, %v4972
    %v5941 = vpack.c.b16 %v4981, %v4973
    %v5942 = vpack.c.b16 %v4990, %v4982
    %v5943 = vpack.c.b16 %v4991, %v4983
    %v5944 = vpack.c.b16 %v4992, %v4984
    %v5945 = vpack.c.b16 %v4993, %v4985
    %v5946 = vpack.c.b16 %v4994, %v4986
    %v5947 = vpack.c.b16 %v4995, %v4987
    %v5948 = vpack.c.b16 %v4996, %v4988
    %v5949 = vpack.c.b16 %v4997, %v4989
    %v5950 = vpack.c.b16 %v5006, %v4998
    %v5951 = vpack.c.b16 %v5007, %v4999
    %v5952 = vpack.c.b16 %v5008, %v5000
    %v5953 = vpack.c.b16 %v5009, %v5001
    %v5954 = vpack.c.b16 %v5010, %v5002
    %v5955 = vpack.c.b16 %v5011, %v5003
    %v5956 = vpack.c.b16 %v5012, %v5004
    %v5957 = vpack.c.b16 %v5013, %v5005
    %v5958 = vpack.c.b16 %v5022, %v5014
    %v5959 = vpack.c.b16 %v5023, %v5015
    %v5960 = vpack.c.b16 %v5024, %v5016
    %v5961 = vpack.c.b16 %v5025, %v5017
    %v5962 = vpack.c.b16 %v5026, %v5018
    %v5963 = vpack.c.b16 %v5027, %v5019
    %v5964 = vpack.c.b16 %v5028, %v5020
    %v5965 = vpack.c.b16 %v5029, %v5021
    %v5966 = vpack.c.b16 %v5038, %v5030
    %v5967 = vpack.c.b16 %v5039, %v5031
    %v5968 = vpack.c.b16 %v5040, %v5032
    %v5969 = vpack.c.b16 %v5041, %v5033
    %v5970 = vpack.c.b16 %v5042, %v5034
    %v5971 = vpack.c.b16 %v5043, %v5035
    %v5972 = vpack.c.b16 %v5044, %v5036
    %v5973 = vpack.c.b16 %v5045, %v5037
    %v5974 = vpack.c.b16 %v5054, %v5046
    %v5975 = vpack.c.b16 %v5055, %v5047
    %v5976 = vpack.c.b16 %v5056, %v5048
    %v5977 = vpack.c.b16 %v5057, %v5049
    %v5978 = vpack.c.b16 %v5058, %v5050
    %v5979 = vpack.c.b16 %v5059, %v5051
    %v5980 = vpack.c.b16 %v5060, %v5052
    %v5981 = vpack.c.b16 %v5061, %v5053
    %v5982 = vpack.c.b16 %v5070, %v5062
    %v5983 = vpack.c.b16 %v5071, %v5063
    %v5984 = vpack.c.b16 %v5072, %v5064
    %v5985 = vpack.c.b16 %v5073, %v5065
    %v5986 = vpack.c.b16 %v5074, %v5066
    %v5987 = vpack.c.b16 %v5075, %v5067
    %v5988 = vpack.c.b16 %v5076, %v5068
    %v5989 = vpack.c.b16 %v5077, %v5069
    %v5990 = vpack.c.b16 %v5086, %v5078
    %v5991 = vpack.c.b16 %v5087, %v5079
    %v5992 = vpack.c.b16 %v5088, %v5080
    %v5993 = vpack.c.b16 %v5089, %v5081
    %v5994 = vpack.c.b16 %v5090, %v5082
    %v5995 = vpack.c.b16 %v5091, %v5083
    %v5996 = vpack.c.b16 %v5092, %v5084
    %v5997 = vpack.c.b16 %v5093, %v5085
    %v5998 = vpack.c.b16 %v5102, %v5094
    %v5999 = vpack.c.b16 %v5103, %v5095
    %v6000 = vpack.c.b16 %v5104, %v5096
    %v6001 = vpack.c.b16 %v5105, %v5097
    %v6002 = vpack.c.b16 %v5106, %v5098
    %v6003 = vpack.c.b16 %v5107, %v5099
    %v6004 = vpack.c.b16 %v5108, %v5100
    %v6005 = vpack.c.b16 %v5109, %v5101
    %v6006 = vpack.c.b16 %v5118, %v5110
    %v6007 = vpack.c.b16 %v5119, %v5111
    %v6008 = vpack.c.b16 %v5120, %v5112
    %v6009 = vpack.c.b16 %v5121, %v5113
    %v6010 = vpack.c.b16 %v5122, %v5114
    %v6011 = vpack.c.b16 %v5123, %v5115
    %v6012 = vpack.c.b16 %v5124, %v5116
    %v6013 = vpack.c.b16 %v5125, %v5117
    %v6014 = vpack.c.b16 %v5134, %v5126
    %v6015 = vpack.c.b16 %v5135, %v5127
    %v6016 = vpack.c.b16 %v5136, %v5128
    %v6017 = vpack.c.b16 %v5137, %v5129
    %v6018 = vpack.c.b16 %v5138, %v5130
    %v6019 = vpack.c.b16 %v5139, %v5131
    %v6020 = vpack.c.b16 %v5140, %v5132
    %v6021 = vpack.c.b16 %v5141, %v5133
    %v6022 = vpack.c.b16 %v5150, %v5142
    %v6023 = vpack.c.b16 %v5151, %v5143
    %v6024 = vpack.c.b16 %v5152, %v5144
    %v6025 = vpack.c.b16 %v5153, %v5145
    %v6026 = vpack.c.b16 %v5154, %v5146
    %v6027 = vpack.c.b16 %v5155, %v5147
    %v6028 = vpack.c.b16 %v5156, %v5148
    %v6029 = vpack.c.b16 %v5157, %v5149
    %v6030 = vpack.c.b16 %v5166, %v5158
    %v6031 = vpack.c.b16 %v5167, %v5159
    %v6032 = vpack.c.b16 %v5168, %v5160
    %v6033 = vpack.c.b16 %v5169, %v5161
    %v6034 = vpack.c.b16 %v5170, %v5162
    %v6035 = vpack.c.b16 %v5171, %v5163
    %v6036 = vpack.c.b16 %v5172, %v5164
    %v6037 = vpack.c.b16 %v5173, %v5165
    %v6038 = vpack.c.b16 %v5182, %v5174
    %v6039 = vpack.c.b16 %v5183, %v5175
    %v6040 = vpack.c.b16 %v5184, %v5176
    %v6041 = vpack.c.b16 %v5185, %v5177
    %v6042 = vpack.c.b16 %v5186, %v5178
    %v6043 = vpack.c.b16 %v5187, %v5179
    %v6044 = vpack.c.b16 %v5188, %v5180
    %v6045 = vpack.c.b16 %v5189, %v5181
    %v6046 = vpack.c.b16 %v5198, %v5190
    %v6047 = vpack.c.b16 %v5199, %v5191
    %v6048 = vpack.c.b16 %v5200, %v5192
    %v6049 = vpack.c.b16 %v5201, %v5193
    %v6050 = vpack.c.b16 %v5202, %v5194
    %v6051 = vpack.c.b16 %v5203, %v5195
    %v6052 = vpack.c.b16 %v5204, %v5196
    %v6053 = vpack.c.b16 %v5205, %v5197
    %v6054 = vpack.c.b16 %v5214, %v5206
    %v6055 = vpack.c.b16 %v5215, %v5207
    %v6056 = vpack.c.b16 %v5216, %v5208
    %v6057 = vpack.c.b16 %v5217, %v5209
    %v6058 = vpack.c.b16 %v5218, %v5210
    %v6059 = vpack.c.b16 %v5219, %v5211
    %v6060 = vpack.c.b16 %v5220, %v5212
    %v6061 = vpack.c.b16 %v5221, %v5213
    %v6062 = vpack.c.b16 %v5230, %v5222
    %v6063 = vpack.c.b16 %v5231, %v5223
    %v6064 = vpack.c.b16 %v5232, %v5224
    %v6065 = vpack.c.b16 %v5233, %v5225
    %v6066 = vpack.c.b16 %v5234, %v5226
    %v6067 = vpack.c.b16 %v5235, %v5227
    %v6068 = vpack.c.b16 %v5236, %v5228
    %v6069 = vpack.c.b16 %v5237, %v5229
    %v6070 = vpack.c.b16 %v5246, %v5238
    %v6071 = vpack.c.b16 %v5247, %v5239
    %v6072 = vpack.c.b16 %v5248, %v5240
    %v6073 = vpack.c.b16 %v5249, %v5241
    %v6074 = vpack.c.b16 %v5250, %v5242
    %v6075 = vpack.c.b16 %v5251, %v5243
    %v6076 = vpack.c.b16 %v5252, %v5244
    %v6077 = vpack.c.b16 %v5253, %v5245
    %v6078 = vpack.c.b16 %v5262, %v5254
    %v6079 = vpack.c.b16 %v5263, %v5255
    %v6080 = vpack.c.b16 %v5264, %v5256
    %v6081 = vpack.c.b16 %v5265, %v5257
    %v6082 = vpack.c.b16 %v5266, %v5258
    %v6083 = vpack.c.b16 %v5267, %v5259
    %v6084 = vpack.c.b16 %v5268, %v5260
    %v6085 = vpack.c.b16 %v5269, %v5261
    %v6086 = vpack.c.b16 %v5278, %v5270
    %v6087 = vpack.c.b16 %v5279, %v5271
    %v6088 = vpack.c.b16 %v5280, %v5272
    %v6089 = vpack.c.b16 %v5281, %v5273
    %v6090 = vpack.c.b16 %v5282, %v5274
    %v6091 = vpack.c.b16 %v5283, %v5275
    %v6092 = vpack.c.b16 %v5284, %v5276
    %v6093 = vpack.c.b16 %v5285, %v5277
    %v6094 = vpack.c.b16 %v5294, %v5286
    %v6095 = vpack.c.b16 %v5295, %v5287
    %v6096 = vpack.c.b16 %v5296, %v5288
    %v6097 = vpack.c.b16 %v5297, %v5289
    %v6098 = vpack.c.b16 %v5298, %v5290
    %v6099 = vpack.c.b16 %v5299, %v5291
    %v6100 = vpack.c.b16 %v5300, %v5292
    %v6101 = vpack.c.b16 %v5301, %v5293
    %v6102 = vpack.c.b16 %v5310, %v5302
    %v6103 = vpack.c.b16 %v5311, %v5303
    %v6104 = vpack.c.b16 %v5312, %v5304
    %v6105 = vpack.c.b16 %v5313, %v5305
    %v6106 = vpack.c.b16 %v5314, %v5306
    %v6107 = vpack.c.b16 %v5315, %v5307
    %v6108 = vpack.c.b16 %v5316, %v5308
    %v6109 = vpack.c.b16 %v5317, %v5309
    %v6110 = vpack.c.b16 %v5326, %v5318
    %v6111 = vpack.c.b16 %v5327, %v5319
    %v6112 = vpack.c.b16 %v5328, %v5320
    %v6113 = vpack.c.b16 %v5329, %v5321
    %v6114 = vpack.c.b16 %v5330, %v5322
    %v6115 = vpack.c.b16 %v5331, %v5323
    %v6116 = vpack.c.b16 %v5332, %v5324
    %v6117 = vpack.c.b16 %v5333, %v5325
    %v6118 = vpack.c.b16 %v5342, %v5334
    %v6119 = vpack.c.b16 %v5343, %v5335
    %v6120 = vpack.c.b16 %v5344, %v5336
    %v6121 = vpack.c.b16 %v5345, %v5337
    %v6122 = vpack.c.b16 %v5346, %v5338
    %v6123 = vpack.c.b16 %v5347, %v5339
    %v6124 = vpack.c.b16 %v5348, %v5340
    %v6125 = vpack.c.b16 %v5349, %v5341
    %v6126 = vpack.c.b16 %v5358, %v5350
    %v6127 = vpack.c.b16 %v5359, %v5351
    %v6128 = vpack.c.b16 %v5360, %v5352
    %v6129 = vpack.c.b16 %v5361, %v5353
    %v6130 = vpack.c.b16 %v5362, %v5354
    %v6131 = vpack.c.b16 %v5363, %v5355
    %v6132 = vpack.c.b16 %v5364, %v5356
    %v6133 = vpack.c.b16 %v5365, %v5357
    %v6134 = vpack.c.b16 %v5374, %v5366
    %v6135 = vpack.c.b16 %v5375, %v5367
    %v6136 = vpack.c.b16 %v5376, %v5368
    %v6137 = vpack.c.b16 %v5377, %v5369
    %v6138 = vpack.c.b16 %v5378, %v5370
    %v6139 = vpack.c.b16 %v5379, %v5371
    %v6140 = vpack.c.b16 %v5380, %v5372
    %v6141 = vpack.c.b16 %v5381, %v5373
    %v6142 = vpack.c.b16 %v5390, %v5382
    %v6143 = vpack.c.b16 %v5391, %v5383
    %v6144 = vpack.c.b16 %v5392, %v5384
    %v6145 = vpack.c.b16 %v5393, %v5385
    %v6146 = vpack.c.b16 %v5394, %v5386
    %v6147 = vpack.c.b16 %v5395, %v5387
    %v6148 = vpack.c.b16 %v5396, %v5388
    %v6149 = vpack.c.b16 %v5397, %v5389
    %v6150 = vpack.c.b16 %v5406, %v5398
    %v6151 = vpack.c.b16 %v5407, %v5399
    %v6152 = vpack.c.b16 %v5408, %v5400
    %v6153 = vpack.c.b16 %v5409, %v5401
    %v6154 = vpack.c.b16 %v5410, %v5402
    %v6155 = vpack.c.b16 %v5411, %v5403
    %v6156 = vpack.c.b16 %v5412, %v5404
    %v6157 = vpack.c.b16 %v5413, %v5405
    %v6158 = vpack.c.b16 %v5422, %v5414
    %v6159 = vpack.c.b16 %v5423, %v5415
    %v6160 = vpack.c.b16 %v5424, %v5416
    %v6161 = vpack.c.b16 %v5425, %v5417
    %v6162 = vpack.c.b16 %v5426, %v5418
    %v6163 = vpack.c.b16 %v5427, %v5419
    %v6164 = vpack.c.b16 %v5428, %v5420
    %v6165 = vpack.c.b16 %v5429, %v5421
    %v6166 = vpack.c.b16 %v5438, %v5430
    %v6167 = vpack.c.b16 %v5439, %v5431
    %v6168 = vpack.c.b16 %v5440, %v5432
    %v6169 = vpack.c.b16 %v5441, %v5433
    %v6170 = vpack.c.b16 %v5442, %v5434
    %v6171 = vpack.c.b16 %v5443, %v5435
    %v6172 = vpack.c.b16 %v5444, %v5436
    %v6173 = vpack.c.b16 %v5445, %v5437
    %v6174 = vpack.c.b16 %v5454, %v5446
    %v6175 = vpack.c.b16 %v5455, %v5447
    %v6176 = vpack.c.b16 %v5456, %v5448
    %v6177 = vpack.c.b16 %v5457, %v5449
    %v6178 = vpack.c.b16 %v5458, %v5450
    %v6179 = vpack.c.b16 %v5459, %v5451
    %v6180 = vpack.c.b16 %v5460, %v5452
    %v6181 = vpack.c.b16 %v5461, %v5453
    %v6182 = vpack.c.b16 %v5470, %v5462
    %v6183 = vpack.c.b16 %v5471, %v5463
    %v6184 = vpack.c.b16 %v5472, %v5464
    %v6185 = vpack.c.b16 %v5473, %v5465
    %v6186 = vpack.c.b16 %v5474, %v5466
    %v6187 = vpack.c.b16 %v5475, %v5467
    %v6188 = vpack.c.b16 %v5476, %v5468
    %v6189 = vpack.c.b16 %v5477, %v5469
    %v6190 = vpack.c.b16 %v5486, %v5478
    %v6191 = vpack.c.b16 %v5487, %v5479
    %v6192 = vpack.c.b16 %v5488, %v5480
    %v6193 = vpack.c.b16 %v5489, %v5481
    %v6194 = vpack.c.b16 %v5490, %v5482
    %v6195 = vpack.c.b16 %v5491, %v5483
    %v6196 = vpack.c.b16 %v5492, %v5484
    %v6197 = vpack.c.b16 %v5493, %v5485
    %v6198 = vpack.c.b16 %v5502, %v5494
    %v6199 = vpack.c.b16 %v5503, %v5495
    %v6200 = vpack.c.b16 %v5504, %v5496
    %v6201 = vpack.c.b16 %v5505, %v5497
    %v6202 = vpack.c.b16 %v5506, %v5498
    %v6203 = vpack.c.b16 %v5507, %v5499
    %v6204 = vpack.c.b16 %v5508, %v5500
    %v6205 = vpack.c.b16 %v5509, %v5501
    %v6206 = vpack.c.b16 %v5518, %v5510
    %v6207 = vpack.c.b16 %v5519, %v5511
    %v6208 = vpack.c.b16 %v5520, %v5512
    %v6209 = vpack.c.b16 %v5521, %v5513
    %v6210 = vpack.c.b16 %v5522, %v5514
    %v6211 = vpack.c.b16 %v5523, %v5515
    %v6212 = vpack.c.b16 %v5524, %v5516
    %v6213 = vpack.c.b16 %v5525, %v5517
    %v6214 = vpack.c.b16 %v5534, %v5526
    %v6215 = vpack.c.b16 %v5535, %v5527
    %v6216 = vpack.c.b16 %v5536, %v5528
    %v6217 = vpack.c.b16 %v5537, %v5529
    %v6218 = vpack.c.b16 %v5538, %v5530
    %v6219 = vpack.c.b16 %v5539, %v5531
    %v6220 = vpack.c.b16 %v5540, %v5532
    %v6221 = vpack.c.b16 %v5541, %v5533
    %v6222 = vpack.c.b16 %v5550, %v5542
    %v6223 = vpack.c.b16 %v5551, %v5543
    %v6224 = vpack.c.b16 %v5552, %v5544
    %v6225 = vpack.c.b16 %v5553, %v5545
    %v6226 = vpack.c.b16 %v5554, %v5546
    %v6227 = vpack.c.b16 %v5555, %v5547
    %v6228 = vpack.c.b16 %v5556, %v5548
    %v6229 = vpack.c.b16 %v5557, %v5549
    %v6230 = vpack.c.b16 %v5566, %v5558
    %v6231 = vpack.c.b16 %v5567, %v5559
    %v6232 = vpack.c.b16 %v5568, %v5560
    %v6233 = vpack.c.b16 %v5569, %v5561
    %v6234 = vpack.c.b16 %v5570, %v5562
    %v6235 = vpack.c.b16 %v5571, %v5563
    %v6236 = vpack.c.b16 %v5572, %v5564
    %v6237 = vpack.c.b16 %v5573, %v5565
    %v6238 = vpack.c.b16 %v5582, %v5574
    %v6239 = vpack.c.b16 %v5583, %v5575
    %v6240 = vpack.c.b16 %v5584, %v5576
    %v6241 = vpack.c.b16 %v5585, %v5577
    %v6242 = vpack.c.b16 %v5586, %v5578
    %v6243 = vpack.c.b16 %v5587, %v5579
    %v6244 = vpack.c.b16 %v5588, %v5580
    %v6245 = vpack.c.b16 %v5589, %v5581
    %v6246 = vpack.c.b16 %v5598, %v5590
    %v6247 = vpack.c.b16 %v5599, %v5591
    %v6248 = vpack.c.b16 %v5600, %v5592
    %v6249 = vpack.c.b16 %v5601, %v5593
    %v6250 = vpack.c.b16 %v5602, %v5594
    %v6251 = vpack.c.b16 %v5603, %v5595
    %v6252 = vpack.c.b16 %v5604, %v5596
    %v6253 = vpack.c.b16 %v5605, %v5597
    %v6254 = vpack.c.b16 %v5614, %v5606
    %v6255 = vpack.c.b16 %v5615, %v5607
    %v6256 = vpack.c.b16 %v5616, %v5608
    %v6257 = vpack.c.b16 %v5617, %v5609
    %v6258 = vpack.c.b16 %v5618, %v5610
    %v6259 = vpack.c.b16 %v5619, %v5611
    %v6260 = vpack.c.b16 %v5620, %v5612
    %v6261 = vpack.c.b16 %v5621, %v5613
    %v6262 = vpack.c.b16 %v5630, %v5622
    %v6263 = vpack.c.b16 %v5631, %v5623
    %v6264 = vpack.c.b16 %v5632, %v5624
    %v6265 = vpack.c.b16 %v5633, %v5625
    %v6266 = vpack.c.b16 %v5634, %v5626
    %v6267 = vpack.c.b16 %v5635, %v5627
    %v6268 = vpack.c.b16 %v5636, %v5628
    %v6269 = vpack.c.b16 %v5637, %v5629
    %v6270 = vpack.c.b16 %v5646, %v5638
    %v6271 = vpack.c.b16 %v5647, %v5639
    %v6272 = vpack.c.b16 %v5648, %v5640
    %v6273 = vpack.c.b16 %v5649, %v5641
    %v6274 = vpack.c.b16 %v5650, %v5642
    %v6275 = vpack.c.b16 %v5651, %v5643
    %v6276 = vpack.c.b16 %v5652, %v5644
    %v6277 = vpack.c.b16 %v5653, %v5645
    %v6278 = vpack.c.b16 %v5662, %v5654
    %v6279 = vpack.c.b16 %v5663, %v5655
    %v6280 = vpack.c.b16 %v5664, %v5656
    %v6281 = vpack.c.b16 %v5665, %v5657
    %v6282 = vpack.c.b16 %v5666, %v5658
    %v6283 = vpack.c.b16 %v5667, %v5659
    %v6284 = vpack.c.b16 %v5668, %v5660
    %v6285 = vpack.c.b16 %v5669, %v5661
    %v6286 = vpack.c.b16 %v5678, %v5670
    %v6287 = vpack.c.b16 %v5679, %v5671
    %v6288 = vpack.c.b16 %v5680, %v5672
    %v6289 = vpack.c.b16 %v5681, %v5673
    %v6290 = vpack.c.b16 %v5682, %v5674
    %v6291 = vpack.c.b16 %v5683, %v5675
    %v6292 = vpack.c.b16 %v5684, %v5676
    %v6293 = vpack.c.b16 %v5685, %v5677
    %v6294 = vpack.c.b16 %v5694, %v5686
    %v6295 = vpack.c.b16 %v5695, %v5687
    %v6296 = vpack.c.b16 %v5696, %v5688
    %v6297 = vpack.c.b16 %v5697, %v5689
    %v6298 = vpack.c.b16 %v5698, %v5690
    %v6299 = vpack.c.b16 %v5699, %v5691
    %v6300 = vpack.c.b16 %v5700, %v5692
    %v6301 = vpack.c.b16 %v5701, %v5693
    %v6302 = vpack.c.b16 %v5710, %v5702
    %v6303 = vpack.c.b16 %v5711, %v5703
    %v6304 = vpack.c.b16 %v5712, %v5704
    %v6305 = vpack.c.b16 %v5713, %v5705
    %v6306 = vpack.c.b16 %v5714, %v5706
    %v6307 = vpack.c.b16 %v5715, %v5707
    %v6308 = vpack.c.b16 %v5716, %v5708
    %v6309 = vpack.c.b16 %v5717, %v5709
    %v6310 = vpack.c.b16 %v5726, %v5718
    %v6311 = vpack.c.b16 %v5727, %v5719
    %v6312 = vpack.c.b16 %v5728, %v5720
    %v6313 = vpack.c.b16 %v5729, %v5721
    %v6314 = vpack.c.b16 %v5730, %v5722
    %v6315 = vpack.c.b16 %v5731, %v5723
    %v6316 = vpack.c.b16 %v5732, %v5724
    %v6317 = vpack.c.b16 %v5733, %v5725
    %v6318 = vpack.c.b16 %v5742, %v5734
    %v6319 = vpack.c.b16 %v5743, %v5735
    %v6320 = vpack.c.b16 %v5744, %v5736
    %v6321 = vpack.c.b16 %v5745, %v5737
    %v6322 = vpack.c.b16 %v5746, %v5738
    %v6323 = vpack.c.b16 %v5747, %v5739
    %v6324 = vpack.c.b16 %v5748, %v5740
    %v6325 = vpack.c.b16 %v5749, %v5741
    %v6326 = vpack.c.b16 %v5758, %v5750
    %v6327 = vpack.c.b16 %v5759, %v5751
    %v6328 = vpack.c.b16 %v5760, %v5752
    %v6329 = vpack.c.b16 %v5761, %v5753
    %v6330 = vpack.c.b16 %v5762, %v5754
    %v6331 = vpack.c.b16 %v5763, %v5755
    %v6332 = vpack.c.b16 %v5764, %v5756
    %v6333 = vpack.c.b16 %v5765, %v5757
    %v6334 = vpack.c.b16 %v5774, %v5766
    %v6335 = vpack.c.b16 %v5775, %v5767
    %v6336 = vpack.c.b16 %v5776, %v5768
    %v6337 = vpack.c.b16 %v5777, %v5769
    %v6338 = vpack.c.b16 %v5778, %v5770
    %v6339 = vpack.c.b16 %v5779, %v5771
    %v6340 = vpack.c.b16 %v5780, %v5772
    %v6341 = vpack.c.b16 %v5781, %v5773
    %v6342 = vpack.c.b16 %v5790, %v5782
    %v6343 = vpack.c.b16 %v5791, %v5783
    %v6344 = vpack.c.b16 %v5792, %v5784
    %v6345 = vpack.c.b16 %v5793, %v5785
    %v6346 = vpack.c.b16 %v5794, %v5786
    %v6347 = vpack.c.b16 %v5795, %v5787
    %v6348 = vpack.c.b16 %v5796, %v5788
    %v6349 = vpack.c.b16 %v5797, %v5789
    %v6350 = vpack.c.b16 %v5806, %v5798
    %v6351 = vpack.c.b16 %v5807, %v5799
    %v6352 = vpack.c.b16 %v5808, %v5800
    %v6353 = vpack.c.b16 %v5809, %v5801
    %v6354 = vpack.c.b16 %v5810, %v5802
    %v6355 = vpack.c.b16 %v5811, %v5803
    %v6356 = vpack.c.b16 %v5812, %v5804
    %v6357 = vpack.c.b16 %v5813, %v5805
    %v6358 = vpack.c.b16 %v5822, %v5814
    %v6359 = vpack.c.b16 %v5823, %v5815
    %v6360 = vpack.c.b16 %v5824, %v5816
    %v6361 = vpack.c.b16 %v5825, %v5817
    %v6362 = vpack.c.b16 %v5826, %v5818
    %v6363 = vpack.c.b16 %v5827, %v5819
    %v6364 = vpack.c.b16 %v5828, %v5820
    %v6365 = vpack.c.b16 %v5829, %v5821
    %v6366 = vpack.c.b16 %v5838, %v5830
    %v6367 = vpack.c.b16 %v5839, %v5831
    %v6368 = vpack.c.b16 %v5840, %v5832
    %v6369 = vpack.c.b16 %v5841, %v5833
    %v6370 = vpack.c.b16 %v5842, %v5834
    %v6371 = vpack.c.b16 %v5843, %v5835
    %v6372 = vpack.c.b16 %v5844, %v5836
    %v6373 = vpack.c.b16 %v5845, %v5837
    %v6374 = vpack.c.b16 %v5854, %v5846
    %v6375 = vpack.c.b16 %v5855, %v5847
    %v6376 = vpack.c.b16 %v5856, %v5848
    %v6377 = vpack.c.b16 %v5857, %v5849
    %v6378 = vpack.c.b16 %v5858, %v5850
    %v6379 = vpack.c.b16 %v5859, %v5851
    %v6380 = vpack.c.b16 %v5860, %v5852
    %v6381 = vpack.c.b16 %v5861, %v5853
    %v6382 = vpack.c.b16 %v5870, %v5862
    %v6383 = vpack.c.b16 %v5871, %v5863
    %v6384 = vpack.c.b16 %v5872, %v5864
    %v6385 = vpack.c.b16 %v5873, %v5865
    %v6386 = vpack.c.b16 %v5874, %v5866
    %v6387 = vpack.c.b16 %v5875, %v5867
    %v6388 = vpack.c.b16 %v5876, %v5868
    %v6389 = vpack.c.b16 %v5877, %v5869
    %6902 = vmatprep.subr.bf16.mxu0 %v5935
    %6903 = vmatpush1.bf16.msra.mxu0 %v5934
    %6904 = vmatprep.subr.bf16.mxu0 %v5927
    %6905 = vmatpush1.bf16.msra.mxu0 %v5926
    %6906 = vmatprep.subr.bf16.mxu0 %v5919
    %6907 = vmatpush1.bf16.msra.mxu0 %v5918
    %6908 = vmatprep.subr.bf16.mxu0 %v5911
    %6909 = vmatpush1.bf16.msra.mxu0 %v5910
    %6910 = vmatprep.subr.bf16.mxu0 %v5903
    %6911 = vmatpush1.bf16.msra.mxu0 %v5902
    %6912 = vmatprep.subr.bf16.mxu0 %v5895
    %6913 = vmatpush1.bf16.msra.mxu0 %v5894
    %6914 = vmatprep.subr.bf16.mxu0 %v5887
    %6915 = vmatpush1.bf16.msra.mxu0 %v5886
    %6916 = vmatprep.subr.bf16.mxu0 %v5879
    %6917 = vmatpush1.bf16.msra.mxu0 %v5878
    %6918 = vmatprep.subr.bf16.mxu0 %v5999
    %6919 = vmatpush2.bf16.msra.mxu0 %v5998
    %6920 = vmatprep.subr.bf16.mxu0 %v5991
    %6921 = vmatpush2.bf16.msra.mxu0 %v5990
    %6922 = vmatprep.subr.bf16.mxu0 %v5983
    %6923 = vmatpush2.bf16.msra.mxu0 %v5982
    %6924 = vmatprep.subr.bf16.mxu0 %v5975
    %6925 = vmatpush2.bf16.msra.mxu0 %v5974
    %6926 = vmatprep.subr.bf16.mxu0 %v5967
    %6927 = vmatpush2.bf16.msra.mxu0 %v5966
    %6928 = vmatprep.subr.bf16.mxu0 %v5959
    %6929 = vmatpush2.bf16.msra.mxu0 %v5958
    %6930 = vmatprep.subr.bf16.mxu0 %v5951
    %6931 = vmatpush2.bf16.msra.mxu0 %v5950
    %6932 = vmatprep.subr.bf16.mxu0 %v5943
    %6933 = vmatpush2.bf16.msra.mxu0 %v5942
    %6934 = vmatprep.mubr.bf16.mxu0 %v3781
    %6935 = vmatmul.mubr.bf16.gmra.mxu0 %v3780
    %v6936 = vpop.f32.mrf.mxu0
    %v6937 = vadd.f32 %v4305, %v6936
    %v6938 = vpop.f32.mrf.mxu0
    %v6939 = vadd.f32 %v4309, %v6938
    %v6940 = vpop.f32.mrf.mxu0
    %v6941 = vpop.f32.mrf.mxu0
    %6942 = vdwg.mxu0
    %6943 = vmatprep.subr.bf16.mxu0 %v6063
    %6944 = vmatpush1.bf16.msra.mxu0 %v6062
    %6945 = vmatprep.subr.bf16.mxu0 %v6055
    %6946 = vmatpush1.bf16.msra.mxu0 %v6054
    %6947 = vmatprep.subr.bf16.mxu0 %v6047
    %6948 = vmatpush1.bf16.msra.mxu0 %v6046
    %6949 = vmatprep.subr.bf16.mxu0 %v6039
    %6950 = vmatpush1.bf16.msra.mxu0 %v6038
    %6951 = vmatprep.subr.bf16.mxu0 %v6031
    %6952 = vmatpush1.bf16.msra.mxu0 %v6030
    %6953 = vmatprep.subr.bf16.mxu0 %v6023
    %6954 = vmatpush1.bf16.msra.mxu0 %v6022
    %6955 = vmatprep.subr.bf16.mxu0 %v6015
    %6956 = vmatpush1.bf16.msra.mxu0 %v6014
    %6957 = vmatprep.subr.bf16.mxu0 %v6007
    %6958 = vmatpush1.bf16.msra.mxu0 %v6006
    %6959 = vmatprep.subr.bf16.mxu0 %v6127
    %6960 = vmatpush2.bf16.msra.mxu0 %v6126
    %6961 = vmatprep.subr.bf16.mxu0 %v6119
    %6962 = vmatpush2.bf16.msra.mxu0 %v6118
    %6963 = vmatprep.subr.bf16.mxu0 %v6111
    %6964 = vmatpush2.bf16.msra.mxu0 %v6110
    %6965 = vmatprep.subr.bf16.mxu0 %v6103
    %6966 = vmatpush2.bf16.msra.mxu0 %v6102
    %6967 = vmatprep.subr.bf16.mxu0 %v6095
    %6968 = vmatpush2.bf16.msra.mxu0 %v6094
    %6969 = vmatprep.subr.bf16.mxu0 %v6087
    %6970 = vmatpush2.bf16.msra.mxu0 %v6086
    %6971 = vmatprep.subr.bf16.mxu0 %v6079
    %6972 = vmatpush2.bf16.msra.mxu0 %v6078
    %6973 = vmatprep.subr.bf16.mxu0 %v6071
    %6974 = vmatpush2.bf16.msra.mxu0 %v6070
    %6975 = vmatprep.mubr.bf16.mxu0 %v3783
    %6976 = vmatmul.mubr.bf16.gmra.mxu0 %v3782
    %v6977 = vpop.f32.mrf.mxu0
    %v6978 = vadd.f32 %v6937, %v6977
    %v6979 = vpop.f32.mrf.mxu0
    %v6980 = vadd.f32 %v6939, %v6979
    %v6981 = vpop.f32.mrf.mxu0
    %v6982 = vpop.f32.mrf.mxu0
    %6983 = vdwg.mxu0
    %6984 = vmatprep.subr.bf16.mxu0 %v6191
    %6985 = vmatpush1.bf16.msra.mxu0 %v6190
    %6986 = vmatprep.subr.bf16.mxu0 %v6183
    %6987 = vmatpush1.bf16.msra.mxu0 %v6182
    %6988 = vmatprep.subr.bf16.mxu0 %v6175
    %6989 = vmatpush1.bf16.msra.mxu0 %v6174
    %6990 = vmatprep.subr.bf16.mxu0 %v6167
    %6991 = vmatpush1.bf16.msra.mxu0 %v6166
    %6992 = vmatprep.subr.bf16.mxu0 %v6159
    %6993 = vmatpush1.bf16.msra.mxu0 %v6158
    %6994 = vmatprep.subr.bf16.mxu0 %v6151
    %6995 = vmatpush1.bf16.msra.mxu0 %v6150
    %6996 = vmatprep.subr.bf16.mxu0 %v6143
    %6997 = vmatpush1.bf16.msra.mxu0 %v6142
    %6998 = vmatprep.subr.bf16.mxu0 %v6135
    %6999 = vmatpush1.bf16.msra.mxu0 %v6134
    %7000 = vmatprep.subr.bf16.mxu0 %v6255
    %7001 = vmatpush2.bf16.msra.mxu0 %v6254
    %7002 = vmatprep.subr.bf16.mxu0 %v6247
    %7003 = vmatpush2.bf16.msra.mxu0 %v6246
    %7004 = vmatprep.subr.bf16.mxu0 %v6239
    %7005 = vmatpush2.bf16.msra.mxu0 %v6238
    %7006 = vmatprep.subr.bf16.mxu0 %v6231
    %7007 = vmatpush2.bf16.msra.mxu0 %v6230
    %7008 = vmatprep.subr.bf16.mxu0 %v6223
    %7009 = vmatpush2.bf16.msra.mxu0 %v6222
    %7010 = vmatprep.subr.bf16.mxu0 %v6215
    %7011 = vmatpush2.bf16.msra.mxu0 %v6214
    %7012 = vmatprep.subr.bf16.mxu0 %v6207
    %7013 = vmatpush2.bf16.msra.mxu0 %v6206
    %7014 = vmatprep.subr.bf16.mxu0 %v6199
    %7015 = vmatpush2.bf16.msra.mxu0 %v6198
    %7016 = vmatprep.mubr.bf16.mxu0 %v3785
    %7017 = vmatmul.mubr.bf16.gmra.mxu0 %v3784
    %v7018 = vpop.f32.mrf.mxu0
    %v7019 = vadd.f32 %v6978, %v7018
    %v7020 = vpop.f32.mrf.mxu0
    %v7021 = vadd.f32 %v6980, %v7020
    %v7022 = vpop.f32.mrf.mxu0
    %v7023 = vpop.f32.mrf.mxu0
    %7024 = vdwg.mxu0
    %7025 = vmatprep.subr.bf16.mxu0 %v6319
    %7026 = vmatpush1.bf16.msra.mxu0 %v6318
    %7027 = vmatprep.subr.bf16.mxu0 %v6311
    %7028 = vmatpush1.bf16.msra.mxu0 %v6310
    %7029 = vmatprep.subr.bf16.mxu0 %v6303
    %7030 = vmatpush1.bf16.msra.mxu0 %v6302
    %7031 = vmatprep.subr.bf16.mxu0 %v6295
    %7032 = vmatpush1.bf16.msra.mxu0 %v6294
    %7033 = vmatprep.subr.bf16.mxu0 %v6287
    %7034 = vmatpush1.bf16.msra.mxu0 %v6286
    %7035 = vmatprep.subr.bf16.mxu0 %v6279
    %7036 = vmatpush1.bf16.msra.mxu0 %v6278
    %7037 = vmatprep.subr.bf16.mxu0 %v6271
    %7038 = vmatpush1.bf16.msra.mxu0 %v6270
    %7039 = vmatprep.subr.bf16.mxu0 %v6263
    %7040 = vmatpush1.bf16.msra.mxu0 %v6262
    %7041 = vmatprep.subr.bf16.mxu0 %v6383
    %7042 = vmatpush2.bf16.msra.mxu0 %v6382
    %7043 = vmatprep.subr.bf16.mxu0 %v6375
    %7044 = vmatpush2.bf16.msra.mxu0 %v6374
    %7045 = vmatprep.subr.bf16.mxu0 %v6367
    %7046 = vmatpush2.bf16.msra.mxu0 %v6366
    %7047 = vmatprep.subr.bf16.mxu0 %v6359
    %7048 = vmatpush2.bf16.msra.mxu0 %v6358
    %7049 = vmatprep.subr.bf16.mxu0 %v6351
    %7050 = vmatpush2.bf16.msra.mxu0 %v6350
    %7051 = vmatprep.subr.bf16.mxu0 %v6343
    %7052 = vmatpush2.bf16.msra.mxu0 %v6342
    %7053 = vmatprep.subr.bf16.mxu0 %v6335
    %7054 = vmatpush2.bf16.msra.mxu0 %v6334
    %7055 = vmatprep.subr.bf16.mxu0 %v6327
    %7056 = vmatpush2.bf16.msra.mxu0 %v6326
    %7057 = vmatprep.mubr.bf16.mxu0 %v3787
    %7058 = vmatmul.mubr.bf16.gmra.mxu0 %v3786
    %v7059 = vpop.f32.mrf.mxu0
    %v7060 = vadd.f32 %v7019, %v7059
    %v7061 = vpop.f32.mrf.mxu0
    %v7062 = vadd.f32 %v7021, %v7061
    %v7063 = vpop.f32.mrf.mxu0
    %v7064 = vpop.f32.mrf.mxu0
    %7065 = vdwg.mxu0
    %7066 = vmatprep.subr.bf16.mxu0 %v5937
    %7067 = vmatpush1.bf16.msra.mxu0 %v5936
    %7068 = vmatprep.subr.bf16.mxu0 %v5929
    %7069 = vmatpush1.bf16.msra.mxu0 %v5928
    %7070 = vmatprep.subr.bf16.mxu0 %v5921
    %7071 = vmatpush1.bf16.msra.mxu0 %v5920
    %7072 = vmatprep.subr.bf16.mxu0 %v5913
    %7073 = vmatpush1.bf16.msra.mxu0 %v5912
    %7074 = vmatprep.subr.bf16.mxu0 %v5905
    %7075 = vmatpush1.bf16.msra.mxu0 %v5904
    %7076 = vmatprep.subr.bf16.mxu0 %v5897
    %7077 = vmatpush1.bf16.msra.mxu0 %v5896
    %7078 = vmatprep.subr.bf16.mxu0 %v5889
    %7079 = vmatpush1.bf16.msra.mxu0 %v5888
    %7080 = vmatprep.subr.bf16.mxu0 %v5881
    %7081 = vmatpush1.bf16.msra.mxu0 %v5880
    %7082 = vmatprep.subr.bf16.mxu0 %v6001
    %7083 = vmatpush2.bf16.msra.mxu0 %v6000
    %7084 = vmatprep.subr.bf16.mxu0 %v5993
    %7085 = vmatpush2.bf16.msra.mxu0 %v5992
    %7086 = vmatprep.subr.bf16.mxu0 %v5985
    %7087 = vmatpush2.bf16.msra.mxu0 %v5984
    %7088 = vmatprep.subr.bf16.mxu0 %v5977
    %7089 = vmatpush2.bf16.msra.mxu0 %v5976
    %7090 = vmatprep.subr.bf16.mxu0 %v5969
    %7091 = vmatpush2.bf16.msra.mxu0 %v5968
    %7092 = vmatprep.subr.bf16.mxu0 %v5961
    %7093 = vmatpush2.bf16.msra.mxu0 %v5960
    %7094 = vmatprep.subr.bf16.mxu0 %v5953
    %7095 = vmatpush2.bf16.msra.mxu0 %v5952
    %7096 = vmatprep.subr.bf16.mxu0 %v5945
    %7097 = vmatpush2.bf16.msra.mxu0 %v5944
    %7098 = vmatprep.mubr.bf16.mxu0 %v3781
    %7099 = vmatmul.mubr.bf16.gmra.mxu0 %v3780
    %v7100 = vpop.f32.mrf.mxu0
    %v7101 = vadd.f32 %v4313, %v7100
    %v7102 = vpop.f32.mrf.mxu0
    %v7103 = vadd.f32 %v4317, %v7102
    %v7104 = vpop.f32.mrf.mxu0
    %v7105 = vpop.f32.mrf.mxu0
    %7106 = vdwg.mxu0
    %7107 = vmatprep.subr.bf16.mxu0 %v6065
    %7108 = vmatpush1.bf16.msra.mxu0 %v6064
    %7109 = vmatprep.subr.bf16.mxu0 %v6057
    %7110 = vmatpush1.bf16.msra.mxu0 %v6056
    %7111 = vmatprep.subr.bf16.mxu0 %v6049
    %7112 = vmatpush1.bf16.msra.mxu0 %v6048
    %7113 = vmatprep.subr.bf16.mxu0 %v6041
    %7114 = vmatpush1.bf16.msra.mxu0 %v6040
    %7115 = vmatprep.subr.bf16.mxu0 %v6033
    %7116 = vmatpush1.bf16.msra.mxu0 %v6032
    %7117 = vmatprep.subr.bf16.mxu0 %v6025
    %7118 = vmatpush1.bf16.msra.mxu0 %v6024
    %7119 = vmatprep.subr.bf16.mxu0 %v6017
    %7120 = vmatpush1.bf16.msra.mxu0 %v6016
    %7121 = vmatprep.subr.bf16.mxu0 %v6009
    %7122 = vmatpush1.bf16.msra.mxu0 %v6008
    %7123 = vmatprep.subr.bf16.mxu0 %v6129
    %7124 = vmatpush2.bf16.msra.mxu0 %v6128
    %7125 = vmatprep.subr.bf16.mxu0 %v6121
    %7126 = vmatpush2.bf16.msra.mxu0 %v6120
    %7127 = vmatprep.subr.bf16.mxu0 %v6113
    %7128 = vmatpush2.bf16.msra.mxu0 %v6112
    %7129 = vmatprep.subr.bf16.mxu0 %v6105
    %7130 = vmatpush2.bf16.msra.mxu0 %v6104
    %7131 = vmatprep.subr.bf16.mxu0 %v6097
    %7132 = vmatpush2.bf16.msra.mxu0 %v6096
    %7133 = vmatprep.subr.bf16.mxu0 %v6089
    %7134 = vmatpush2.bf16.msra.mxu0 %v6088
    %7135 = vmatprep.subr.bf16.mxu0 %v6081
    %7136 = vmatpush2.bf16.msra.mxu0 %v6080
    %7137 = vmatprep.subr.bf16.mxu0 %v6073
    %7138 = vmatpush2.bf16.msra.mxu0 %v6072
    %7139 = vmatprep.mubr.bf16.mxu0 %v3783
    %7140 = vmatmul.mubr.bf16.gmra.mxu0 %v3782
    %v7141 = vpop.f32.mrf.mxu0
    %v7142 = vadd.f32 %v7101, %v7141
    %v7143 = vpop.f32.mrf.mxu0
    %v7144 = vadd.f32 %v7103, %v7143
    %v7145 = vpop.f32.mrf.mxu0
    %v7146 = vpop.f32.mrf.mxu0
    %7147 = vdwg.mxu0
    %7148 = vmatprep.subr.bf16.mxu0 %v6193
    %7149 = vmatpush1.bf16.msra.mxu0 %v6192
    %7150 = vmatprep.subr.bf16.mxu0 %v6185
    %7151 = vmatpush1.bf16.msra.mxu0 %v6184
    %7152 = vmatprep.subr.bf16.mxu0 %v6177
    %7153 = vmatpush1.bf16.msra.mxu0 %v6176
    %7154 = vmatprep.subr.bf16.mxu0 %v6169
    %7155 = vmatpush1.bf16.msra.mxu0 %v6168
    %7156 = vmatprep.subr.bf16.mxu0 %v6161
    %7157 = vmatpush1.bf16.msra.mxu0 %v6160
    %7158 = vmatprep.subr.bf16.mxu0 %v6153
    %7159 = vmatpush1.bf16.msra.mxu0 %v6152
    %7160 = vmatprep.subr.bf16.mxu0 %v6145
    %7161 = vmatpush1.bf16.msra.mxu0 %v6144
    %7162 = vmatprep.subr.bf16.mxu0 %v6137
    %7163 = vmatpush1.bf16.msra.mxu0 %v6136
    %7164 = vmatprep.subr.bf16.mxu0 %v6257
    %7165 = vmatpush2.bf16.msra.mxu0 %v6256
    %7166 = vmatprep.subr.bf16.mxu0 %v6249
    %7167 = vmatpush2.bf16.msra.mxu0 %v6248
    %7168 = vmatprep.subr.bf16.mxu0 %v6241
    %7169 = vmatpush2.bf16.msra.mxu0 %v6240
    %7170 = vmatprep.subr.bf16.mxu0 %v6233
    %7171 = vmatpush2.bf16.msra.mxu0 %v6232
    %7172 = vmatprep.subr.bf16.mxu0 %v6225
    %7173 = vmatpush2.bf16.msra.mxu0 %v6224
    %7174 = vmatprep.subr.bf16.mxu0 %v6217
    %7175 = vmatpush2.bf16.msra.mxu0 %v6216
    %7176 = vmatprep.subr.bf16.mxu0 %v6209
    %7177 = vmatpush2.bf16.msra.mxu0 %v6208
    %7178 = vmatprep.subr.bf16.mxu0 %v6201
    %7179 = vmatpush2.bf16.msra.mxu0 %v6200
    %7180 = vmatprep.mubr.bf16.mxu0 %v3785
    %7181 = vmatmul.mubr.bf16.gmra.mxu0 %v3784
    %v7182 = vpop.f32.mrf.mxu0
    %v7183 = vadd.f32 %v7142, %v7182
    %v7184 = vpop.f32.mrf.mxu0
    %v7185 = vadd.f32 %v7144, %v7184
    %v7186 = vpop.f32.mrf.mxu0
    %v7187 = vpop.f32.mrf.mxu0
    %7188 = vdwg.mxu0
    %7189 = vmatprep.subr.bf16.mxu0 %v6321
    %7190 = vmatpush1.bf16.msra.mxu0 %v6320
    %7191 = vmatprep.subr.bf16.mxu0 %v6313
    %7192 = vmatpush1.bf16.msra.mxu0 %v6312
    %7193 = vmatprep.subr.bf16.mxu0 %v6305
    %7194 = vmatpush1.bf16.msra.mxu0 %v6304
    %7195 = vmatprep.subr.bf16.mxu0 %v6297
    %7196 = vmatpush1.bf16.msra.mxu0 %v6296
    %7197 = vmatprep.subr.bf16.mxu0 %v6289
    %7198 = vmatpush1.bf16.msra.mxu0 %v6288
    %7199 = vmatprep.subr.bf16.mxu0 %v6281
    %7200 = vmatpush1.bf16.msra.mxu0 %v6280
    %7201 = vmatprep.subr.bf16.mxu0 %v6273
    %7202 = vmatpush1.bf16.msra.mxu0 %v6272
    %7203 = vmatprep.subr.bf16.mxu0 %v6265
    %7204 = vmatpush1.bf16.msra.mxu0 %v6264
    %7205 = vmatprep.subr.bf16.mxu0 %v6385
    %7206 = vmatpush2.bf16.msra.mxu0 %v6384
    %7207 = vmatprep.subr.bf16.mxu0 %v6377
    %7208 = vmatpush2.bf16.msra.mxu0 %v6376
    %7209 = vmatprep.subr.bf16.mxu0 %v6369
    %7210 = vmatpush2.bf16.msra.mxu0 %v6368
    %7211 = vmatprep.subr.bf16.mxu0 %v6361
    %7212 = vmatpush2.bf16.msra.mxu0 %v6360
    %7213 = vmatprep.subr.bf16.mxu0 %v6353
    %7214 = vmatpush2.bf16.msra.mxu0 %v6352
    %7215 = vmatprep.subr.bf16.mxu0 %v6345
    %7216 = vmatpush2.bf16.msra.mxu0 %v6344
    %7217 = vmatprep.subr.bf16.mxu0 %v6337
    %7218 = vmatpush2.bf16.msra.mxu0 %v6336
    %7219 = vmatprep.subr.bf16.mxu0 %v6329
    %7220 = vmatpush2.bf16.msra.mxu0 %v6328
    %7221 = vmatprep.mubr.bf16.mxu0 %v3787
    %7222 = vmatmul.mubr.bf16.gmra.mxu0 %v3786
    %v7223 = vpop.f32.mrf.mxu0
    %v7224 = vadd.f32 %v7183, %v7223
    %v7225 = vpop.f32.mrf.mxu0
    %v7226 = vadd.f32 %v7185, %v7225
    %v7227 = vpop.f32.mrf.mxu0
    %v7228 = vpop.f32.mrf.mxu0
    %7229 = vdwg.mxu0
    %7230 = vmatprep.subr.bf16.mxu0 %v5939
    %7231 = vmatpush1.bf16.msra.mxu0 %v5938
    %7232 = vmatprep.subr.bf16.mxu0 %v5931
    %7233 = vmatpush1.bf16.msra.mxu0 %v5930
    %7234 = vmatprep.subr.bf16.mxu0 %v5923
    %7235 = vmatpush1.bf16.msra.mxu0 %v5922
    %7236 = vmatprep.subr.bf16.mxu0 %v5915
    %7237 = vmatpush1.bf16.msra.mxu0 %v5914
    %7238 = vmatprep.subr.bf16.mxu0 %v5907
    %7239 = vmatpush1.bf16.msra.mxu0 %v5906
    %7240 = vmatprep.subr.bf16.mxu0 %v5899
    %7241 = vmatpush1.bf16.msra.mxu0 %v5898
    %7242 = vmatprep.subr.bf16.mxu0 %v5891
    %7243 = vmatpush1.bf16.msra.mxu0 %v5890
    %7244 = vmatprep.subr.bf16.mxu0 %v5883
    %7245 = vmatpush1.bf16.msra.mxu0 %v5882
    %7246 = vmatprep.subr.bf16.mxu0 %v6003
    %7247 = vmatpush2.bf16.msra.mxu0 %v6002
    %7248 = vmatprep.subr.bf16.mxu0 %v5995
    %7249 = vmatpush2.bf16.msra.mxu0 %v5994
    %7250 = vmatprep.subr.bf16.mxu0 %v5987
    %7251 = vmatpush2.bf16.msra.mxu0 %v5986
    %7252 = vmatprep.subr.bf16.mxu0 %v5979
    %7253 = vmatpush2.bf16.msra.mxu0 %v5978
    %7254 = vmatprep.subr.bf16.mxu0 %v5971
    %7255 = vmatpush2.bf16.msra.mxu0 %v5970
    %7256 = vmatprep.subr.bf16.mxu0 %v5963
    %7257 = vmatpush2.bf16.msra.mxu0 %v5962
    %7258 = vmatprep.subr.bf16.mxu0 %v5955
    %7259 = vmatpush2.bf16.msra.mxu0 %v5954
    %7260 = vmatprep.subr.bf16.mxu0 %v5947
    %7261 = vmatpush2.bf16.msra.mxu0 %v5946
    %7262 = vmatprep.mubr.bf16.mxu0 %v3781
    %7263 = vmatmul.mubr.bf16.gmra.mxu0 %v3780
    %v7264 = vpop.f32.mrf.mxu0
    %v7265 = vadd.f32 %v4321, %v7264
    %v7266 = vpop.f32.mrf.mxu0
    %v7267 = vadd.f32 %v4325, %v7266
    %v7268 = vpop.f32.mrf.mxu0
    %v7269 = vpop.f32.mrf.mxu0
    %7270 = vdwg.mxu0
    %7271 = vmatprep.subr.bf16.mxu0 %v6067
    %7272 = vmatpush1.bf16.msra.mxu0 %v6066
    %7273 = vmatprep.subr.bf16.mxu0 %v6059
    %7274 = vmatpush1.bf16.msra.mxu0 %v6058
    %7275 = vmatprep.subr.bf16.mxu0 %v6051
    %7276 = vmatpush1.bf16.msra.mxu0 %v6050
    %7277 = vmatprep.subr.bf16.mxu0 %v6043
    %7278 = vmatpush1.bf16.msra.mxu0 %v6042
    %7279 = vmatprep.subr.bf16.mxu0 %v6035
    %7280 = vmatpush1.bf16.msra.mxu0 %v6034
    %7281 = vmatprep.subr.bf16.mxu0 %v6027
    %7282 = vmatpush1.bf16.msra.mxu0 %v6026
    %7283 = vmatprep.subr.bf16.mxu0 %v6019
    %7284 = vmatpush1.bf16.msra.mxu0 %v6018
    %7285 = vmatprep.subr.bf16.mxu0 %v6011
    %7286 = vmatpush1.bf16.msra.mxu0 %v6010
    %7287 = vmatprep.subr.bf16.mxu0 %v6131
    %7288 = vmatpush2.bf16.msra.mxu0 %v6130
    %7289 = vmatprep.subr.bf16.mxu0 %v6123
    %7290 = vmatpush2.bf16.msra.mxu0 %v6122
    %7291 = vmatprep.subr.bf16.mxu0 %v6115
    %7292 = vmatpush2.bf16.msra.mxu0 %v6114
    %7293 = vmatprep.subr.bf16.mxu0 %v6107
    %7294 = vmatpush2.bf16.msra.mxu0 %v6106
    %7295 = vmatprep.subr.bf16.mxu0 %v6099
    %7296 = vmatpush2.bf16.msra.mxu0 %v6098
    %7297 = vmatprep.subr.bf16.mxu0 %v6091
    %7298 = vmatpush2.bf16.msra.mxu0 %v6090
    %7299 = vmatprep.subr.bf16.mxu0 %v6083
    %7300 = vmatpush2.bf16.msra.mxu0 %v6082
    %7301 = vmatprep.subr.bf16.mxu0 %v6075
    %7302 = vmatpush2.bf16.msra.mxu0 %v6074
    %7303 = vmatprep.mubr.bf16.mxu0 %v3783
    %7304 = vmatmul.mubr.bf16.gmra.mxu0 %v3782
    %v7305 = vpop.f32.mrf.mxu0
    %v7306 = vadd.f32 %v7265, %v7305
    %v7307 = vpop.f32.mrf.mxu0
    %v7308 = vadd.f32 %v7267, %v7307
    %v7309 = vpop.f32.mrf.mxu0
    %v7310 = vpop.f32.mrf.mxu0
    %7311 = vdwg.mxu0
    %7312 = vmatprep.subr.bf16.mxu0 %v6195
    %7313 = vmatpush1.bf16.msra.mxu0 %v6194
    %7314 = vmatprep.subr.bf16.mxu0 %v6187
    %7315 = vmatpush1.bf16.msra.mxu0 %v6186
    %7316 = vmatprep.subr.bf16.mxu0 %v6179
    %7317 = vmatpush1.bf16.msra.mxu0 %v6178
    %7318 = vmatprep.subr.bf16.mxu0 %v6171
    %7319 = vmatpush1.bf16.msra.mxu0 %v6170
    %7320 = vmatprep.subr.bf16.mxu0 %v6163
    %7321 = vmatpush1.bf16.msra.mxu0 %v6162
    %7322 = vmatprep.subr.bf16.mxu0 %v6155
    %7323 = vmatpush1.bf16.msra.mxu0 %v6154
    %7324 = vmatprep.subr.bf16.mxu0 %v6147
    %7325 = vmatpush1.bf16.msra.mxu0 %v6146
    %7326 = vmatprep.subr.bf16.mxu0 %v6139
    %7327 = vmatpush1.bf16.msra.mxu0 %v6138
    %7328 = vmatprep.subr.bf16.mxu0 %v6259
    %7329 = vmatpush2.bf16.msra.mxu0 %v6258
    %7330 = vmatprep.subr.bf16.mxu0 %v6251
    %7331 = vmatpush2.bf16.msra.mxu0 %v6250
    %7332 = vmatprep.subr.bf16.mxu0 %v6243
    %7333 = vmatpush2.bf16.msra.mxu0 %v6242
    %7334 = vmatprep.subr.bf16.mxu0 %v6235
    %7335 = vmatpush2.bf16.msra.mxu0 %v6234
    %7336 = vmatprep.subr.bf16.mxu0 %v6227
    %7337 = vmatpush2.bf16.msra.mxu0 %v6226
    %7338 = vmatprep.subr.bf16.mxu0 %v6219
    %7339 = vmatpush2.bf16.msra.mxu0 %v6218
    %7340 = vmatprep.subr.bf16.mxu0 %v6211
    %7341 = vmatpush2.bf16.msra.mxu0 %v6210
    %7342 = vmatprep.subr.bf16.mxu0 %v6203
    %7343 = vmatpush2.bf16.msra.mxu0 %v6202
    %7344 = vmatprep.mubr.bf16.mxu0 %v3785
    %7345 = vmatmul.mubr.bf16.gmra.mxu0 %v3784
    %v7346 = vpop.f32.mrf.mxu0
    %v7347 = vadd.f32 %v7306, %v7346
    %v7348 = vpop.f32.mrf.mxu0
    %v7349 = vadd.f32 %v7308, %v7348
    %v7350 = vpop.f32.mrf.mxu0
    %v7351 = vpop.f32.mrf.mxu0
    %7352 = vdwg.mxu0
    %7353 = vmatprep.subr.bf16.mxu0 %v6323
    %7354 = vmatpush1.bf16.msra.mxu0 %v6322
    %7355 = vmatprep.subr.bf16.mxu0 %v6315
    %7356 = vmatpush1.bf16.msra.mxu0 %v6314
    %7357 = vmatprep.subr.bf16.mxu0 %v6307
    %7358 = vmatpush1.bf16.msra.mxu0 %v6306
    %7359 = vmatprep.subr.bf16.mxu0 %v6299
    %7360 = vmatpush1.bf16.msra.mxu0 %v6298
    %7361 = vmatprep.subr.bf16.mxu0 %v6291
    %7362 = vmatpush1.bf16.msra.mxu0 %v6290
    %7363 = vmatprep.subr.bf16.mxu0 %v6283
    %7364 = vmatpush1.bf16.msra.mxu0 %v6282
    %7365 = vmatprep.subr.bf16.mxu0 %v6275
    %7366 = vmatpush1.bf16.msra.mxu0 %v6274
    %7367 = vmatprep.subr.bf16.mxu0 %v6267
    %7368 = vmatpush1.bf16.msra.mxu0 %v6266
    %7369 = vmatprep.subr.bf16.mxu0 %v6387
    %7370 = vmatpush2.bf16.msra.mxu0 %v6386
    %7371 = vmatprep.subr.bf16.mxu0 %v6379
    %7372 = vmatpush2.bf16.msra.mxu0 %v6378
    %7373 = vmatprep.subr.bf16.mxu0 %v6371
    %7374 = vmatpush2.bf16.msra.mxu0 %v6370
    %7375 = vmatprep.subr.bf16.mxu0 %v6363
    %7376 = vmatpush2.bf16.msra.mxu0 %v6362
    %7377 = vmatprep.subr.bf16.mxu0 %v6355
    %7378 = vmatpush2.bf16.msra.mxu0 %v6354
    %7379 = vmatprep.subr.bf16.mxu0 %v6347
    %7380 = vmatpush2.bf16.msra.mxu0 %v6346
    %7381 = vmatprep.subr.bf16.mxu0 %v6339
    %7382 = vmatpush2.bf16.msra.mxu0 %v6338
    %7383 = vmatprep.subr.bf16.mxu0 %v6331
    %7384 = vmatpush2.bf16.msra.mxu0 %v6330
    %7385 = vmatprep.mubr.bf16.mxu0 %v3787
    %7386 = vmatmul.mubr.bf16.gmra.mxu0 %v3786
    %v7387 = vpop.f32.mrf.mxu0
    %v7388 = vadd.f32 %v7347, %v7387
    %v7389 = vpop.f32.mrf.mxu0
    %v7390 = vadd.f32 %v7349, %v7389
    %v7391 = vpop.f32.mrf.mxu0
    %v7392 = vpop.f32.mrf.mxu0
    %7393 = vdwg.mxu0
    %7394 = vmatprep.subr.bf16.mxu0 %v5941
    %7395 = vmatpush1.bf16.msra.mxu0 %v5940
    %7396 = vmatprep.subr.bf16.mxu0 %v5933
    %7397 = vmatpush1.bf16.msra.mxu0 %v5932
    %7398 = vmatprep.subr.bf16.mxu0 %v5925
    %7399 = vmatpush1.bf16.msra.mxu0 %v5924
    %7400 = vmatprep.subr.bf16.mxu0 %v5917
    %7401 = vmatpush1.bf16.msra.mxu0 %v5916
    %7402 = vmatprep.subr.bf16.mxu0 %v5909
    %7403 = vmatpush1.bf16.msra.mxu0 %v5908
    %7404 = vmatprep.subr.bf16.mxu0 %v5901
    %7405 = vmatpush1.bf16.msra.mxu0 %v5900
    %7406 = vmatprep.subr.bf16.mxu0 %v5893
    %7407 = vmatpush1.bf16.msra.mxu0 %v5892
    %7408 = vmatprep.subr.bf16.mxu0 %v5885
    %7409 = vmatpush1.bf16.msra.mxu0 %v5884
    %7410 = vmatprep.subr.bf16.mxu0 %v6005
    %7411 = vmatpush2.bf16.msra.mxu0 %v6004
    %7412 = vmatprep.subr.bf16.mxu0 %v5997
    %7413 = vmatpush2.bf16.msra.mxu0 %v5996
    %7414 = vmatprep.subr.bf16.mxu0 %v5989
    %7415 = vmatpush2.bf16.msra.mxu0 %v5988
    %7416 = vmatprep.subr.bf16.mxu0 %v5981
    %7417 = vmatpush2.bf16.msra.mxu0 %v5980
    %7418 = vmatprep.subr.bf16.mxu0 %v5973
    %7419 = vmatpush2.bf16.msra.mxu0 %v5972
    %7420 = vmatprep.subr.bf16.mxu0 %v5965
    %7421 = vmatpush2.bf16.msra.mxu0 %v5964
    %7422 = vmatprep.subr.bf16.mxu0 %v5957
    %7423 = vmatpush2.bf16.msra.mxu0 %v5956
    %7424 = vmatprep.subr.bf16.mxu0 %v5949
    %7425 = vmatpush2.bf16.msra.mxu0 %v5948
    %7426 = vmatprep.mubr.bf16.mxu0 %v3781
    %7427 = vmatmul.mubr.bf16.gmra.mxu0 %v3780
    %v7428 = vpop.f32.mrf.mxu0
    %v7429 = vadd.f32 %v4329, %v7428
    %v7430 = vpop.f32.mrf.mxu0
    %v7431 = vadd.f32 %v4333, %v7430
    %v7432 = vpop.f32.mrf.mxu0
    %v7433 = vpop.f32.mrf.mxu0
    %7434 = vdwg.mxu0
    %7435 = vmatprep.subr.bf16.mxu0 %v6069
    %7436 = vmatpush1.bf16.msra.mxu0 %v6068
    %7437 = vmatprep.subr.bf16.mxu0 %v6061
    %7438 = vmatpush1.bf16.msra.mxu0 %v6060
    %7439 = vmatprep.subr.bf16.mxu0 %v6053
    %7440 = vmatpush1.bf16.msra.mxu0 %v6052
    %7441 = vmatprep.subr.bf16.mxu0 %v6045
    %7442 = vmatpush1.bf16.msra.mxu0 %v6044
    %7443 = vmatprep.subr.bf16.mxu0 %v6037
    %7444 = vmatpush1.bf16.msra.mxu0 %v6036
    %7445 = vmatprep.subr.bf16.mxu0 %v6029
    %7446 = vmatpush1.bf16.msra.mxu0 %v6028
    %7447 = vmatprep.subr.bf16.mxu0 %v6021
    %7448 = vmatpush1.bf16.msra.mxu0 %v6020
    %7449 = vmatprep.subr.bf16.mxu0 %v6013
    %7450 = vmatpush1.bf16.msra.mxu0 %v6012
    %7451 = vmatprep.subr.bf16.mxu0 %v6133
    %7452 = vmatpush2.bf16.msra.mxu0 %v6132
    %7453 = vmatprep.subr.bf16.mxu0 %v6125
    %7454 = vmatpush2.bf16.msra.mxu0 %v6124
    %7455 = vmatprep.subr.bf16.mxu0 %v6117
    %7456 = vmatpush2.bf16.msra.mxu0 %v6116
    %7457 = vmatprep.subr.bf16.mxu0 %v6109
    %7458 = vmatpush2.bf16.msra.mxu0 %v6108
    %7459 = vmatprep.subr.bf16.mxu0 %v6101
    %7460 = vmatpush2.bf16.msra.mxu0 %v6100
    %7461 = vmatprep.subr.bf16.mxu0 %v6093
    %7462 = vmatpush2.bf16.msra.mxu0 %v6092
    %7463 = vmatprep.subr.bf16.mxu0 %v6085
    %7464 = vmatpush2.bf16.msra.mxu0 %v6084
    %7465 = vmatprep.subr.bf16.mxu0 %v6077
    %7466 = vmatpush2.bf16.msra.mxu0 %v6076
    %7467 = vmatprep.mubr.bf16.mxu0 %v3783
    %7468 = vmatmul.mubr.bf16.gmra.mxu0 %v3782
    %v7469 = vpop.f32.mrf.mxu0
    %v7470 = vadd.f32 %v7429, %v7469
    %v7471 = vpop.f32.mrf.mxu0
    %v7472 = vadd.f32 %v7431, %v7471
    %v7473 = vpop.f32.mrf.mxu0
    %v7474 = vpop.f32.mrf.mxu0
    %7475 = vdwg.mxu0
    %7476 = vmatprep.subr.bf16.mxu0 %v6197
    %7477 = vmatpush1.bf16.msra.mxu0 %v6196
    %7478 = vmatprep.subr.bf16.mxu0 %v6189
    %7479 = vmatpush1.bf16.msra.mxu0 %v6188
    %7480 = vmatprep.subr.bf16.mxu0 %v6181
    %7481 = vmatpush1.bf16.msra.mxu0 %v6180
    %7482 = vmatprep.subr.bf16.mxu0 %v6173
    %7483 = vmatpush1.bf16.msra.mxu0 %v6172
    %7484 = vmatprep.subr.bf16.mxu0 %v6165
    %7485 = vmatpush1.bf16.msra.mxu0 %v6164
    %7486 = vmatprep.subr.bf16.mxu0 %v6157
    %7487 = vmatpush1.bf16.msra.mxu0 %v6156
    %7488 = vmatprep.subr.bf16.mxu0 %v6149
    %7489 = vmatpush1.bf16.msra.mxu0 %v6148
    %7490 = vmatprep.subr.bf16.mxu0 %v6141
    %7491 = vmatpush1.bf16.msra.mxu0 %v6140
    %7492 = vmatprep.subr.bf16.mxu0 %v6261
    %7493 = vmatpush2.bf16.msra.mxu0 %v6260
    %7494 = vmatprep.subr.bf16.mxu0 %v6253
    %7495 = vmatpush2.bf16.msra.mxu0 %v6252
    %7496 = vmatprep.subr.bf16.mxu0 %v6245
    %7497 = vmatpush2.bf16.msra.mxu0 %v6244
    %7498 = vmatprep.subr.bf16.mxu0 %v6237
    %7499 = vmatpush2.bf16.msra.mxu0 %v6236
    %7500 = vmatprep.subr.bf16.mxu0 %v6229
    %7501 = vmatpush2.bf16.msra.mxu0 %v6228
    %7502 = vmatprep.subr.bf16.mxu0 %v6221
    %7503 = vmatpush2.bf16.msra.mxu0 %v6220
    %7504 = vmatprep.subr.bf16.mxu0 %v6213
    %7505 = vmatpush2.bf16.msra.mxu0 %v6212
    %7506 = vmatprep.subr.bf16.mxu0 %v6205
    %7507 = vmatpush2.bf16.msra.mxu0 %v6204
    %7508 = vmatprep.mubr.bf16.mxu0 %v3785
    %7509 = vmatmul.mubr.bf16.gmra.mxu0 %v3784
    %v7510 = vpop.f32.mrf.mxu0
    %v7511 = vadd.f32 %v7470, %v7510
    %v7512 = vpop.f32.mrf.mxu0
    %v7513 = vadd.f32 %v7472, %v7512
    %v7514 = vpop.f32.mrf.mxu0
    %v7515 = vpop.f32.mrf.mxu0
    %7516 = vdwg.mxu0
    %7517 = vmatprep.subr.bf16.mxu0 %v6325
    %7518 = vmatpush1.bf16.msra.mxu0 %v6324
    %7519 = vmatprep.subr.bf16.mxu0 %v6317
    %7520 = vmatpush1.bf16.msra.mxu0 %v6316
    %7521 = vmatprep.subr.bf16.mxu0 %v6309
    %7522 = vmatpush1.bf16.msra.mxu0 %v6308
    %7523 = vmatprep.subr.bf16.mxu0 %v6301
    %7524 = vmatpush1.bf16.msra.mxu0 %v6300
    %7525 = vmatprep.subr.bf16.mxu0 %v6293
    %7526 = vmatpush1.bf16.msra.mxu0 %v6292
    %7527 = vmatprep.subr.bf16.mxu0 %v6285
    %7528 = vmatpush1.bf16.msra.mxu0 %v6284
    %7529 = vmatprep.subr.bf16.mxu0 %v6277
    %7530 = vmatpush1.bf16.msra.mxu0 %v6276
    %7531 = vmatprep.subr.bf16.mxu0 %v6269
    %7532 = vmatpush1.bf16.msra.mxu0 %v6268
    %7533 = vmatprep.subr.bf16.mxu0 %v6389
    %7534 = vmatpush2.bf16.msra.mxu0 %v6388
    %7535 = vmatprep.subr.bf16.mxu0 %v6381
    %7536 = vmatpush2.bf16.msra.mxu0 %v6380
    %7537 = vmatprep.subr.bf16.mxu0 %v6373
    %7538 = vmatpush2.bf16.msra.mxu0 %v6372
    %7539 = vmatprep.subr.bf16.mxu0 %v6365
    %7540 = vmatpush2.bf16.msra.mxu0 %v6364
    %7541 = vmatprep.subr.bf16.mxu0 %v6357
    %7542 = vmatpush2.bf16.msra.mxu0 %v6356
    %7543 = vmatprep.subr.bf16.mxu0 %v6349
    %7544 = vmatpush2.bf16.msra.mxu0 %v6348
    %7545 = vmatprep.subr.bf16.mxu0 %v6341
    %7546 = vmatpush2.bf16.msra.mxu0 %v6340
    %7547 = vmatprep.subr.bf16.mxu0 %v6333
    %7548 = vmatpush2.bf16.msra.mxu0 %v6332
    %7549 = vmatprep.mubr.bf16.mxu0 %v3787
    %7550 = vmatmul.mubr.bf16.gmra.mxu0 %v3786
    %v7551 = vpop.f32.mrf.mxu0
    %v7552 = vadd.f32 %v7511, %v7551
    %v7553 = vpop.f32.mrf.mxu0
    %v7554 = vadd.f32 %v7513, %v7553
    %v7555 = vpop.f32.mrf.mxu0
    %v7556 = vpop.f32.mrf.mxu0
    %7557 = vdwg.mxu0
    %v7558 = vmax.f32 %v7060, 0.0
    %v7559 = vmax.f32 %v7062, 0.0
    %v7560 = vmax.f32 %v7224, 0.0
    %v7561 = vmax.f32 %v7226, 0.0
    %v7562 = vmax.f32 %v7388, 0.0
    %v7563 = vmax.f32 %v7390, 0.0
    %v7564 = vmax.f32 %v7552, 0.0
    %v7565 = vmax.f32 %v7554, 0.0
    %v7566 = vpack.c.bf16 %v7558, %v7558
    %v7567 = vpack.c.bf16 %v7559, %v7559
    %v7568 = vpack.c.bf16 %v7560, %v7560
    %v7569 = vpack.c.bf16 %v7561, %v7561
    %v7570 = vpack.c.bf16 %v7562, %v7562
    %v7571 = vpack.c.bf16 %v7563, %v7563
    %v7572 = vpack.c.bf16 %v7564, %v7564
    %v7573 = vpack.c.bf16 %v7565, %v7565
    %v7574 = vld [vmem:[#allocation15] sm:$0xff]
    %v7575 = vld [vmem:[#allocation15 + $0x8] sm:$0xff]
    %v7576 = vld [vmem:[#allocation15 + $0x10] sm:$0xff]
    %v7577 = vld [vmem:[#allocation15 + $0x18] sm:$0xff]
    %v7578 = vld [vmem:[#allocation15 + $0x20] sm:$0xff]
    %v7579 = vld [vmem:[#allocation15 + $0x28] sm:$0xff]
    %v7580 = vld [vmem:[#allocation15 + $0x30] sm:$0xff]
    %v7581 = vld [vmem:[#allocation15 + $0x38] sm:$0xff]
    %v7582 = vld [vmem:[#allocation15 + $0x40] sm:$0xff]
    %v7583 = vld [vmem:[#allocation15 + $0x48] sm:$0xff]
    %v7584 = vld [vmem:[#allocation15 + $0x50] sm:$0xff]
    %v7585 = vld [vmem:[#allocation15 + $0x58] sm:$0xff]
    %v7586 = vld [vmem:[#allocation15 + $0x60] sm:$0xff]
    %v7587 = vld [vmem:[#allocation15 + $0x68] sm:$0xff]
    %v7588 = vld [vmem:[#allocation15 + $0x70] sm:$0xff]
    %v7589 = vld [vmem:[#allocation15 + $0x78] sm:$0xff]
    %v7590 = vld [vmem:[#allocation15 + $0x80] sm:$0xff]
    %v7591 = vld [vmem:[#allocation15 + $0x88] sm:$0xff]
    %v7592 = vld [vmem:[#allocation15 + $0x90] sm:$0xff]
    %v7593 = vld [vmem:[#allocation15 + $0x98] sm:$0xff]
    %v7594 = vld [vmem:[#allocation15 + $0xa0] sm:$0xff]
    %v7595 = vld [vmem:[#allocation15 + $0xa8] sm:$0xff]
    %v7596 = vld [vmem:[#allocation15 + $0xb0] sm:$0xff]
    %v7597 = vld [vmem:[#allocation15 + $0xb8] sm:$0xff]
    %v7598 = vld [vmem:[#allocation15 + $0xc0] sm:$0xff]
    %v7599 = vld [vmem:[#allocation15 + $0xc8] sm:$0xff]
    %v7600 = vld [vmem:[#allocation15 + $0xd0] sm:$0xff]
    %v7601 = vld [vmem:[#allocation15 + $0xd8] sm:$0xff]
    %v7602 = vld [vmem:[#allocation15 + $0xe0] sm:$0xff]
    %v7603 = vld [vmem:[#allocation15 + $0xe8] sm:$0xff]
    %v7604 = vld [vmem:[#allocation15 + $0xf0] sm:$0xff]
    %v7605 = vld [vmem:[#allocation15 + $0xf8] sm:$0xff]
    %v7606 = vld [vmem:[#allocation15 + $0x100] sm:$0xff]
    %v7607 = vld [vmem:[#allocation15 + $0x108] sm:$0xff]
    %v7608 = vld [vmem:[#allocation15 + $0x110] sm:$0xff]
    %v7609 = vld [vmem:[#allocation15 + $0x118] sm:$0xff]
    %v7610 = vld [vmem:[#allocation15 + $0x120] sm:$0xff]
    %v7611 = vld [vmem:[#allocation15 + $0x128] sm:$0xff]
    %v7612 = vld [vmem:[#allocation15 + $0x130] sm:$0xff]
    %v7613 = vld [vmem:[#allocation15 + $0x138] sm:$0xff]
    %v7614 = vld [vmem:[#allocation15 + $0x140] sm:$0xff]
    %v7615 = vld [vmem:[#allocation15 + $0x148] sm:$0xff]
    %v7616 = vld [vmem:[#allocation15 + $0x150] sm:$0xff]
    %v7617 = vld [vmem:[#allocation15 + $0x158] sm:$0xff]
    %v7618 = vld [vmem:[#allocation15 + $0x160] sm:$0xff]
    %v7619 = vld [vmem:[#allocation15 + $0x168] sm:$0xff]
    %v7620 = vld [vmem:[#allocation15 + $0x170] sm:$0xff]
    %v7621 = vld [vmem:[#allocation15 + $0x178] sm:$0xff]
    %v7622 = vld [vmem:[#allocation15 + $0x180] sm:$0xff]
    %v7623 = vld [vmem:[#allocation15 + $0x188] sm:$0xff]
    %v7624 = vld [vmem:[#allocation15 + $0x190] sm:$0xff]
    %v7625 = vld [vmem:[#allocation15 + $0x198] sm:$0xff]
    %v7626 = vld [vmem:[#allocation15 + $0x1a0] sm:$0xff]
    %v7627 = vld [vmem:[#allocation15 + $0x1a8] sm:$0xff]
    %v7628 = vld [vmem:[#allocation15 + $0x1b0] sm:$0xff]
    %v7629 = vld [vmem:[#allocation15 + $0x1b8] sm:$0xff]
    %v7630 = vld [vmem:[#allocation15 + $0x1c0] sm:$0xff]
    %v7631 = vld [vmem:[#allocation15 + $0x1c8] sm:$0xff]
    %v7632 = vld [vmem:[#allocation15 + $0x1d0] sm:$0xff]
    %v7633 = vld [vmem:[#allocation15 + $0x1d8] sm:$0xff]
    %v7634 = vld [vmem:[#allocation15 + $0x1e0] sm:$0xff]
    %v7635 = vld [vmem:[#allocation15 + $0x1e8] sm:$0xff]
    %v7636 = vld [vmem:[#allocation15 + $0x1f0] sm:$0xff]
    %v7637 = vld [vmem:[#allocation15 + $0x1f8] sm:$0xff]
    %v7638 = vld [vmem:[#allocation15 + $0x200] sm:$0xff]
    %v7639 = vld [vmem:[#allocation15 + $0x208] sm:$0xff]
    %v7640 = vld [vmem:[#allocation15 + $0x210] sm:$0xff]
    %v7641 = vld [vmem:[#allocation15 + $0x218] sm:$0xff]
    %v7642 = vld [vmem:[#allocation15 + $0x220] sm:$0xff]
    %v7643 = vld [vmem:[#allocation15 + $0x228] sm:$0xff]
    %v7644 = vld [vmem:[#allocation15 + $0x230] sm:$0xff]
    %v7645 = vld [vmem:[#allocation15 + $0x238] sm:$0xff]
    %v7646 = vld [vmem:[#allocation15 + $0x240] sm:$0xff]
    %v7647 = vld [vmem:[#allocation15 + $0x248] sm:$0xff]
    %v7648 = vld [vmem:[#allocation15 + $0x250] sm:$0xff]
    %v7649 = vld [vmem:[#allocation15 + $0x258] sm:$0xff]
    %v7650 = vld [vmem:[#allocation15 + $0x260] sm:$0xff]
    %v7651 = vld [vmem:[#allocation15 + $0x268] sm:$0xff]
    %v7652 = vld [vmem:[#allocation15 + $0x270] sm:$0xff]
    %v7653 = vld [vmem:[#allocation15 + $0x278] sm:$0xff]
    %v7654 = vld [vmem:[#allocation15 + $0x280] sm:$0xff]
    %v7655 = vld [vmem:[#allocation15 + $0x288] sm:$0xff]
    %v7656 = vld [vmem:[#allocation15 + $0x290] sm:$0xff]
    %v7657 = vld [vmem:[#allocation15 + $0x298] sm:$0xff]
    %v7658 = vld [vmem:[#allocation15 + $0x2a0] sm:$0xff]
    %v7659 = vld [vmem:[#allocation15 + $0x2a8] sm:$0xff]
    %v7660 = vld [vmem:[#allocation15 + $0x2b0] sm:$0xff]
    %v7661 = vld [vmem:[#allocation15 + $0x2b8] sm:$0xff]
    %v7662 = vld [vmem:[#allocation15 + $0x2c0] sm:$0xff]
    %v7663 = vld [vmem:[#allocation15 + $0x2c8] sm:$0xff]
    %v7664 = vld [vmem:[#allocation15 + $0x2d0] sm:$0xff]
    %v7665 = vld [vmem:[#allocation15 + $0x2d8] sm:$0xff]
    %v7666 = vld [vmem:[#allocation15 + $0x2e0] sm:$0xff]
    %v7667 = vld [vmem:[#allocation15 + $0x2e8] sm:$0xff]
    %v7668 = vld [vmem:[#allocation15 + $0x2f0] sm:$0xff]
    %v7669 = vld [vmem:[#allocation15 + $0x2f8] sm:$0xff]
    %v7670 = vld [vmem:[#allocation15 + $0x300] sm:$0xff]
    %v7671 = vld [vmem:[#allocation15 + $0x308] sm:$0xff]
    %v7672 = vld [vmem:[#allocation15 + $0x310] sm:$0xff]
    %v7673 = vld [vmem:[#allocation15 + $0x318] sm:$0xff]
    %v7674 = vld [vmem:[#allocation15 + $0x320] sm:$0xff]
    %v7675 = vld [vmem:[#allocation15 + $0x328] sm:$0xff]
    %v7676 = vld [vmem:[#allocation15 + $0x330] sm:$0xff]
    %v7677 = vld [vmem:[#allocation15 + $0x338] sm:$0xff]
    %v7678 = vld [vmem:[#allocation15 + $0x340] sm:$0xff]
    %v7679 = vld [vmem:[#allocation15 + $0x348] sm:$0xff]
    %v7680 = vld [vmem:[#allocation15 + $0x350] sm:$0xff]
    %v7681 = vld [vmem:[#allocation15 + $0x358] sm:$0xff]
    %v7682 = vld [vmem:[#allocation15 + $0x360] sm:$0xff]
    %v7683 = vld [vmem:[#allocation15 + $0x368] sm:$0xff]
    %v7684 = vld [vmem:[#allocation15 + $0x370] sm:$0xff]
    %v7685 = vld [vmem:[#allocation15 + $0x378] sm:$0xff]
    %v7686 = vld [vmem:[#allocation15 + $0x380] sm:$0xff]
    %v7687 = vld [vmem:[#allocation15 + $0x388] sm:$0xff]
    %v7688 = vld [vmem:[#allocation15 + $0x390] sm:$0xff]
    %v7689 = vld [vmem:[#allocation15 + $0x398] sm:$0xff]
    %v7690 = vld [vmem:[#allocation15 + $0x3a0] sm:$0xff]
    %v7691 = vld [vmem:[#allocation15 + $0x3a8] sm:$0xff]
    %v7692 = vld [vmem:[#allocation15 + $0x3b0] sm:$0xff]
    %v7693 = vld [vmem:[#allocation15 + $0x3b8] sm:$0xff]
    %v7694 = vld [vmem:[#allocation15 + $0x3c0] sm:$0xff]
    %v7695 = vld [vmem:[#allocation15 + $0x3c8] sm:$0xff]
    %v7696 = vld [vmem:[#allocation15 + $0x3d0] sm:$0xff]
    %v7697 = vld [vmem:[#allocation15 + $0x3d8] sm:$0xff]
    %v7698 = vld [vmem:[#allocation15 + $0x3e0] sm:$0xff]
    %v7699 = vld [vmem:[#allocation15 + $0x3e8] sm:$0xff]
    %v7700 = vld [vmem:[#allocation15 + $0x3f0] sm:$0xff]
    %v7701 = vld [vmem:[#allocation15 + $0x3f8] sm:$0xff]
    %v7702 = vld [vmem:[#allocation15 + $0x400] sm:$0xff]
    %v7703 = vld [vmem:[#allocation15 + $0x408] sm:$0xff]
    %v7704 = vld [vmem:[#allocation15 + $0x410] sm:$0xff]
    %v7705 = vld [vmem:[#allocation15 + $0x418] sm:$0xff]
    %v7706 = vld [vmem:[#allocation15 + $0x420] sm:$0xff]
    %v7707 = vld [vmem:[#allocation15 + $0x428] sm:$0xff]
    %v7708 = vld [vmem:[#allocation15 + $0x430] sm:$0xff]
    %v7709 = vld [vmem:[#allocation15 + $0x438] sm:$0xff]
    %v7710 = vld [vmem:[#allocation15 + $0x440] sm:$0xff]
    %v7711 = vld [vmem:[#allocation15 + $0x448] sm:$0xff]
    %v7712 = vld [vmem:[#allocation15 + $0x450] sm:$0xff]
    %v7713 = vld [vmem:[#allocation15 + $0x458] sm:$0xff]
    %v7714 = vld [vmem:[#allocation15 + $0x460] sm:$0xff]
    %v7715 = vld [vmem:[#allocation15 + $0x468] sm:$0xff]
    %v7716 = vld [vmem:[#allocation15 + $0x470] sm:$0xff]
    %v7717 = vld [vmem:[#allocation15 + $0x478] sm:$0xff]
    %v7718 = vld [vmem:[#allocation15 + $0x480] sm:$0xff]
    %v7719 = vld [vmem:[#allocation15 + $0x488] sm:$0xff]
    %v7720 = vld [vmem:[#allocation15 + $0x490] sm:$0xff]
    %v7721 = vld [vmem:[#allocation15 + $0x498] sm:$0xff]
    %v7722 = vld [vmem:[#allocation15 + $0x4a0] sm:$0xff]
    %v7723 = vld [vmem:[#allocation15 + $0x4a8] sm:$0xff]
    %v7724 = vld [vmem:[#allocation15 + $0x4b0] sm:$0xff]
    %v7725 = vld [vmem:[#allocation15 + $0x4b8] sm:$0xff]
    %v7726 = vld [vmem:[#allocation15 + $0x4c0] sm:$0xff]
    %v7727 = vld [vmem:[#allocation15 + $0x4c8] sm:$0xff]
    %v7728 = vld [vmem:[#allocation15 + $0x4d0] sm:$0xff]
    %v7729 = vld [vmem:[#allocation15 + $0x4d8] sm:$0xff]
    %v7730 = vld [vmem:[#allocation15 + $0x4e0] sm:$0xff]
    %v7731 = vld [vmem:[#allocation15 + $0x4e8] sm:$0xff]
    %v7732 = vld [vmem:[#allocation15 + $0x4f0] sm:$0xff]
    %v7733 = vld [vmem:[#allocation15 + $0x4f8] sm:$0xff]
    %v7734 = vld [vmem:[#allocation15 + $0x500] sm:$0xff]
    %v7735 = vld [vmem:[#allocation15 + $0x508] sm:$0xff]
    %v7736 = vld [vmem:[#allocation15 + $0x510] sm:$0xff]
    %v7737 = vld [vmem:[#allocation15 + $0x518] sm:$0xff]
    %v7738 = vld [vmem:[#allocation15 + $0x520] sm:$0xff]
    %v7739 = vld [vmem:[#allocation15 + $0x528] sm:$0xff]
    %v7740 = vld [vmem:[#allocation15 + $0x530] sm:$0xff]
    %v7741 = vld [vmem:[#allocation15 + $0x538] sm:$0xff]
    %v7742 = vld [vmem:[#allocation15 + $0x540] sm:$0xff]
    %v7743 = vld [vmem:[#allocation15 + $0x548] sm:$0xff]
    %v7744 = vld [vmem:[#allocation15 + $0x550] sm:$0xff]
    %v7745 = vld [vmem:[#allocation15 + $0x558] sm:$0xff]
    %v7746 = vld [vmem:[#allocation15 + $0x560] sm:$0xff]
    %v7747 = vld [vmem:[#allocation15 + $0x568] sm:$0xff]
    %v7748 = vld [vmem:[#allocation15 + $0x570] sm:$0xff]
    %v7749 = vld [vmem:[#allocation15 + $0x578] sm:$0xff]
    %v7750 = vld [vmem:[#allocation15 + $0x580] sm:$0xff]
    %v7751 = vld [vmem:[#allocation15 + $0x588] sm:$0xff]
    %v7752 = vld [vmem:[#allocation15 + $0x590] sm:$0xff]
    %v7753 = vld [vmem:[#allocation15 + $0x598] sm:$0xff]
    %v7754 = vld [vmem:[#allocation15 + $0x5a0] sm:$0xff]
    %v7755 = vld [vmem:[#allocation15 + $0x5a8] sm:$0xff]
    %v7756 = vld [vmem:[#allocation15 + $0x5b0] sm:$0xff]
    %v7757 = vld [vmem:[#allocation15 + $0x5b8] sm:$0xff]
    %v7758 = vld [vmem:[#allocation15 + $0x5c0] sm:$0xff]
    %v7759 = vld [vmem:[#allocation15 + $0x5c8] sm:$0xff]
    %v7760 = vld [vmem:[#allocation15 + $0x5d0] sm:$0xff]
    %v7761 = vld [vmem:[#allocation15 + $0x5d8] sm:$0xff]
    %v7762 = vld [vmem:[#allocation15 + $0x5e0] sm:$0xff]
    %v7763 = vld [vmem:[#allocation15 + $0x5e8] sm:$0xff]
    %v7764 = vld [vmem:[#allocation15 + $0x5f0] sm:$0xff]
    %v7765 = vld [vmem:[#allocation15 + $0x5f8] sm:$0xff]
    %v7766 = vld [vmem:[#allocation15 + $0x600] sm:$0xff]
    %v7767 = vld [vmem:[#allocation15 + $0x608] sm:$0xff]
    %v7768 = vld [vmem:[#allocation15 + $0x610] sm:$0xff]
    %v7769 = vld [vmem:[#allocation15 + $0x618] sm:$0xff]
    %v7770 = vld [vmem:[#allocation15 + $0x620] sm:$0xff]
    %v7771 = vld [vmem:[#allocation15 + $0x628] sm:$0xff]
    %v7772 = vld [vmem:[#allocation15 + $0x630] sm:$0xff]
    %v7773 = vld [vmem:[#allocation15 + $0x638] sm:$0xff]
    %v7774 = vld [vmem:[#allocation15 + $0x640] sm:$0xff]
    %v7775 = vld [vmem:[#allocation15 + $0x648] sm:$0xff]
    %v7776 = vld [vmem:[#allocation15 + $0x650] sm:$0xff]
    %v7777 = vld [vmem:[#allocation15 + $0x658] sm:$0xff]
    %v7778 = vld [vmem:[#allocation15 + $0x660] sm:$0xff]
    %v7779 = vld [vmem:[#allocation15 + $0x668] sm:$0xff]
    %v7780 = vld [vmem:[#allocation15 + $0x670] sm:$0xff]
    %v7781 = vld [vmem:[#allocation15 + $0x678] sm:$0xff]
    %v7782 = vld [vmem:[#allocation15 + $0x680] sm:$0xff]
    %v7783 = vld [vmem:[#allocation15 + $0x688] sm:$0xff]
    %v7784 = vld [vmem:[#allocation15 + $0x690] sm:$0xff]
    %v7785 = vld [vmem:[#allocation15 + $0x698] sm:$0xff]
    %v7786 = vld [vmem:[#allocation15 + $0x6a0] sm:$0xff]
    %v7787 = vld [vmem:[#allocation15 + $0x6a8] sm:$0xff]
    %v7788 = vld [vmem:[#allocation15 + $0x6b0] sm:$0xff]
    %v7789 = vld [vmem:[#allocation15 + $0x6b8] sm:$0xff]
    %v7790 = vld [vmem:[#allocation15 + $0x6c0] sm:$0xff]
    %v7791 = vld [vmem:[#allocation15 + $0x6c8] sm:$0xff]
    %v7792 = vld [vmem:[#allocation15 + $0x6d0] sm:$0xff]
    %v7793 = vld [vmem:[#allocation15 + $0x6d8] sm:$0xff]
    %v7794 = vld [vmem:[#allocation15 + $0x6e0] sm:$0xff]
    %v7795 = vld [vmem:[#allocation15 + $0x6e8] sm:$0xff]
    %v7796 = vld [vmem:[#allocation15 + $0x6f0] sm:$0xff]
    %v7797 = vld [vmem:[#allocation15 + $0x6f8] sm:$0xff]
    %v7798 = vld [vmem:[#allocation15 + $0x700] sm:$0xff]
    %v7799 = vld [vmem:[#allocation15 + $0x708] sm:$0xff]
    %v7800 = vld [vmem:[#allocation15 + $0x710] sm:$0xff]
    %v7801 = vld [vmem:[#allocation15 + $0x718] sm:$0xff]
    %v7802 = vld [vmem:[#allocation15 + $0x720] sm:$0xff]
    %v7803 = vld [vmem:[#allocation15 + $0x728] sm:$0xff]
    %v7804 = vld [vmem:[#allocation15 + $0x730] sm:$0xff]
    %v7805 = vld [vmem:[#allocation15 + $0x738] sm:$0xff]
    %v7806 = vld [vmem:[#allocation15 + $0x740] sm:$0xff]
    %v7807 = vld [vmem:[#allocation15 + $0x748] sm:$0xff]
    %v7808 = vld [vmem:[#allocation15 + $0x750] sm:$0xff]
    %v7809 = vld [vmem:[#allocation15 + $0x758] sm:$0xff]
    %v7810 = vld [vmem:[#allocation15 + $0x760] sm:$0xff]
    %v7811 = vld [vmem:[#allocation15 + $0x768] sm:$0xff]
    %v7812 = vld [vmem:[#allocation15 + $0x770] sm:$0xff]
    %v7813 = vld [vmem:[#allocation15 + $0x778] sm:$0xff]
    %v7814 = vld [vmem:[#allocation15 + $0x780] sm:$0xff]
    %v7815 = vld [vmem:[#allocation15 + $0x788] sm:$0xff]
    %v7816 = vld [vmem:[#allocation15 + $0x790] sm:$0xff]
    %v7817 = vld [vmem:[#allocation15 + $0x798] sm:$0xff]
    %v7818 = vld [vmem:[#allocation15 + $0x7a0] sm:$0xff]
    %v7819 = vld [vmem:[#allocation15 + $0x7a8] sm:$0xff]
    %v7820 = vld [vmem:[#allocation15 + $0x7b0] sm:$0xff]
    %v7821 = vld [vmem:[#allocation15 + $0x7b8] sm:$0xff]
    %v7822 = vld [vmem:[#allocation15 + $0x7c0] sm:$0xff]
    %v7823 = vld [vmem:[#allocation15 + $0x7c8] sm:$0xff]
    %v7824 = vld [vmem:[#allocation15 + $0x7d0] sm:$0xff]
    %v7825 = vld [vmem:[#allocation15 + $0x7d8] sm:$0xff]
    %v7826 = vld [vmem:[#allocation15 + $0x7e0] sm:$0xff]
    %v7827 = vld [vmem:[#allocation15 + $0x7e8] sm:$0xff]
    %v7828 = vld [vmem:[#allocation15 + $0x7f0] sm:$0xff]
    %v7829 = vld [vmem:[#allocation15 + $0x7f8] sm:$0xff]
    %v7830 = vld [vmem:[#allocation17] sm:$0xf]
    %v7832 = vlaneseq
    %v7833 = vshrl.u32 %v7832, 7
    %v7834 = vsub.s32 0, %v7833
    %v7835 = vrot.slane %v7830, %v7834
    %v7836 = vlaneseq
    %v7837 = vshrl.u32 %v7836, 7
    %v7838 = vsub.s32 1, %v7837
    %v7839 = vrot.slane %v7830, %v7838
    %v7840 = vlaneseq
    %v7841 = vshrl.u32 %v7840, 7
    %v7842 = vsub.s32 2, %v7841
    %v7843 = vrot.slane %v7830, %v7842
    %v7844 = vlaneseq
    %v7845 = vshrl.u32 %v7844, 7
    %v7846 = vsub.s32 3, %v7845
    %v7847 = vrot.slane %v7830, %v7846
    %v8108 = vunpack.c.l.b16 %v7574
    %v8109 = vunpack.c.h.b16 %v7574
    %v8110 = vunpack.c.l.b16 %v7575
    %v8111 = vunpack.c.h.b16 %v7575
    %v8112 = vunpack.c.l.b16 %v7576
    %v8113 = vunpack.c.h.b16 %v7576
    %v8114 = vunpack.c.l.b16 %v7577
    %v8115 = vunpack.c.h.b16 %v7577
    %v8116 = vunpack.c.l.b16 %v7578
    %v8117 = vunpack.c.h.b16 %v7578
    %v8118 = vunpack.c.l.b16 %v7579
    %v8119 = vunpack.c.h.b16 %v7579
    %v8120 = vunpack.c.l.b16 %v7580
    %v8121 = vunpack.c.h.b16 %v7580
    %v8122 = vunpack.c.l.b16 %v7581
    %v8123 = vunpack.c.h.b16 %v7581
    %v8124 = vunpack.c.l.b16 %v7582
    %v8125 = vunpack.c.h.b16 %v7582
    %v8126 = vunpack.c.l.b16 %v7583
    %v8127 = vunpack.c.h.b16 %v7583
    %v8128 = vunpack.c.l.b16 %v7584
    %v8129 = vunpack.c.h.b16 %v7584
    %v8130 = vunpack.c.l.b16 %v7585
    %v8131 = vunpack.c.h.b16 %v7585
    %v8132 = vunpack.c.l.b16 %v7586
    %v8133 = vunpack.c.h.b16 %v7586
    %v8134 = vunpack.c.l.b16 %v7587
    %v8135 = vunpack.c.h.b16 %v7587
    %v8136 = vunpack.c.l.b16 %v7588
    %v8137 = vunpack.c.h.b16 %v7588
    %v8138 = vunpack.c.l.b16 %v7589
    %v8139 = vunpack.c.h.b16 %v7589
    %v8140 = vunpack.c.l.b16 %v7590
    %v8141 = vunpack.c.h.b16 %v7590
    %v8142 = vunpack.c.l.b16 %v7591
    %v8143 = vunpack.c.h.b16 %v7591
    %v8144 = vunpack.c.l.b16 %v7592
    %v8145 = vunpack.c.h.b16 %v7592
    %v8146 = vunpack.c.l.b16 %v7593
    %v8147 = vunpack.c.h.b16 %v7593
    %v8148 = vunpack.c.l.b16 %v7594
    %v8149 = vunpack.c.h.b16 %v7594
    %v8150 = vunpack.c.l.b16 %v7595
    %v8151 = vunpack.c.h.b16 %v7595
    %v8152 = vunpack.c.l.b16 %v7596
    %v8153 = vunpack.c.h.b16 %v7596
    %v8154 = vunpack.c.l.b16 %v7597
    %v8155 = vunpack.c.h.b16 %v7597
    %v8156 = vunpack.c.l.b16 %v7598
    %v8157 = vunpack.c.h.b16 %v7598
    %v8158 = vunpack.c.l.b16 %v7599
    %v8159 = vunpack.c.h.b16 %v7599
    %v8160 = vunpack.c.l.b16 %v7600
    %v8161 = vunpack.c.h.b16 %v7600
    %v8162 = vunpack.c.l.b16 %v7601
    %v8163 = vunpack.c.h.b16 %v7601
    %v8164 = vunpack.c.l.b16 %v7602
    %v8165 = vunpack.c.h.b16 %v7602
    %v8166 = vunpack.c.l.b16 %v7603
    %v8167 = vunpack.c.h.b16 %v7603
    %v8168 = vunpack.c.l.b16 %v7604
    %v8169 = vunpack.c.h.b16 %v7604
    %v8170 = vunpack.c.l.b16 %v7605
    %v8171 = vunpack.c.h.b16 %v7605
    %v8172 = vunpack.c.l.b16 %v7606
    %v8173 = vunpack.c.h.b16 %v7606
    %v8174 = vunpack.c.l.b16 %v7607
    %v8175 = vunpack.c.h.b16 %v7607
    %v8176 = vunpack.c.l.b16 %v7608
    %v8177 = vunpack.c.h.b16 %v7608
    %v8178 = vunpack.c.l.b16 %v7609
    %v8179 = vunpack.c.h.b16 %v7609
    %v8180 = vunpack.c.l.b16 %v7610
    %v8181 = vunpack.c.h.b16 %v7610
    %v8182 = vunpack.c.l.b16 %v7611
    %v8183 = vunpack.c.h.b16 %v7611
    %v8184 = vunpack.c.l.b16 %v7612
    %v8185 = vunpack.c.h.b16 %v7612
    %v8186 = vunpack.c.l.b16 %v7613
    %v8187 = vunpack.c.h.b16 %v7613
    %v8188 = vunpack.c.l.b16 %v7614
    %v8189 = vunpack.c.h.b16 %v7614
    %v8190 = vunpack.c.l.b16 %v7615
    %v8191 = vunpack.c.h.b16 %v7615
    %v8192 = vunpack.c.l.b16 %v7616
    %v8193 = vunpack.c.h.b16 %v7616
    %v8194 = vunpack.c.l.b16 %v7617
    %v8195 = vunpack.c.h.b16 %v7617
    %v8196 = vunpack.c.l.b16 %v7618
    %v8197 = vunpack.c.h.b16 %v7618
    %v8198 = vunpack.c.l.b16 %v7619
    %v8199 = vunpack.c.h.b16 %v7619
    %v8200 = vunpack.c.l.b16 %v7620
    %v8201 = vunpack.c.h.b16 %v7620
    %v8202 = vunpack.c.l.b16 %v7621
    %v8203 = vunpack.c.h.b16 %v7621
    %v8204 = vunpack.c.l.b16 %v7622
    %v8205 = vunpack.c.h.b16 %v7622
    %v8206 = vunpack.c.l.b16 %v7623
    %v8207 = vunpack.c.h.b16 %v7623
    %v8208 = vunpack.c.l.b16 %v7624
    %v8209 = vunpack.c.h.b16 %v7624
    %v8210 = vunpack.c.l.b16 %v7625
    %v8211 = vunpack.c.h.b16 %v7625
    %v8212 = vunpack.c.l.b16 %v7626
    %v8213 = vunpack.c.h.b16 %v7626
    %v8214 = vunpack.c.l.b16 %v7627
    %v8215 = vunpack.c.h.b16 %v7627
    %v8216 = vunpack.c.l.b16 %v7628
    %v8217 = vunpack.c.h.b16 %v7628
    %v8218 = vunpack.c.l.b16 %v7629
    %v8219 = vunpack.c.h.b16 %v7629
    %v8220 = vunpack.c.l.b16 %v7630
    %v8221 = vunpack.c.h.b16 %v7630
    %v8222 = vunpack.c.l.b16 %v7631
    %v8223 = vunpack.c.h.b16 %v7631
    %v8224 = vunpack.c.l.b16 %v7632
    %v8225 = vunpack.c.h.b16 %v7632
    %v8226 = vunpack.c.l.b16 %v7633
    %v8227 = vunpack.c.h.b16 %v7633
    %v8228 = vunpack.c.l.b16 %v7634
    %v8229 = vunpack.c.h.b16 %v7634
    %v8230 = vunpack.c.l.b16 %v7635
    %v8231 = vunpack.c.h.b16 %v7635
    %v8232 = vunpack.c.l.b16 %v7636
    %v8233 = vunpack.c.h.b16 %v7636
    %v8234 = vunpack.c.l.b16 %v7637
    %v8235 = vunpack.c.h.b16 %v7637
    %v8236 = vunpack.c.l.b16 %v7638
    %v8237 = vunpack.c.h.b16 %v7638
    %v8238 = vunpack.c.l.b16 %v7639
    %v8239 = vunpack.c.h.b16 %v7639
    %v8240 = vunpack.c.l.b16 %v7640
    %v8241 = vunpack.c.h.b16 %v7640
    %v8242 = vunpack.c.l.b16 %v7641
    %v8243 = vunpack.c.h.b16 %v7641
    %v8244 = vunpack.c.l.b16 %v7642
    %v8245 = vunpack.c.h.b16 %v7642
    %v8246 = vunpack.c.l.b16 %v7643
    %v8247 = vunpack.c.h.b16 %v7643
    %v8248 = vunpack.c.l.b16 %v7644
    %v8249 = vunpack.c.h.b16 %v7644
    %v8250 = vunpack.c.l.b16 %v7645
    %v8251 = vunpack.c.h.b16 %v7645
    %v8252 = vunpack.c.l.b16 %v7646
    %v8253 = vunpack.c.h.b16 %v7646
    %v8254 = vunpack.c.l.b16 %v7647
    %v8255 = vunpack.c.h.b16 %v7647
    %v8256 = vunpack.c.l.b16 %v7648
    %v8257 = vunpack.c.h.b16 %v7648
    %v8258 = vunpack.c.l.b16 %v7649
    %v8259 = vunpack.c.h.b16 %v7649
    %v8260 = vunpack.c.l.b16 %v7650
    %v8261 = vunpack.c.h.b16 %v7650
    %v8262 = vunpack.c.l.b16 %v7651
    %v8263 = vunpack.c.h.b16 %v7651
    %v8264 = vunpack.c.l.b16 %v7652
    %v8265 = vunpack.c.h.b16 %v7652
    %v8266 = vunpack.c.l.b16 %v7653
    %v8267 = vunpack.c.h.b16 %v7653
    %v8268 = vunpack.c.l.b16 %v7654
    %v8269 = vunpack.c.h.b16 %v7654
    %v8270 = vunpack.c.l.b16 %v7655
    %v8271 = vunpack.c.h.b16 %v7655
    %v8272 = vunpack.c.l.b16 %v7656
    %v8273 = vunpack.c.h.b16 %v7656
    %v8274 = vunpack.c.l.b16 %v7657
    %v8275 = vunpack.c.h.b16 %v7657
    %v8276 = vunpack.c.l.b16 %v7658
    %v8277 = vunpack.c.h.b16 %v7658
    %v8278 = vunpack.c.l.b16 %v7659
    %v8279 = vunpack.c.h.b16 %v7659
    %v8280 = vunpack.c.l.b16 %v7660
    %v8281 = vunpack.c.h.b16 %v7660
    %v8282 = vunpack.c.l.b16 %v7661
    %v8283 = vunpack.c.h.b16 %v7661
    %v8284 = vunpack.c.l.b16 %v7662
    %v8285 = vunpack.c.h.b16 %v7662
    %v8286 = vunpack.c.l.b16 %v7663
    %v8287 = vunpack.c.h.b16 %v7663
    %v8288 = vunpack.c.l.b16 %v7664
    %v8289 = vunpack.c.h.b16 %v7664
    %v8290 = vunpack.c.l.b16 %v7665
    %v8291 = vunpack.c.h.b16 %v7665
    %v8292 = vunpack.c.l.b16 %v7666
    %v8293 = vunpack.c.h.b16 %v7666
    %v8294 = vunpack.c.l.b16 %v7667
    %v8295 = vunpack.c.h.b16 %v7667
    %v8296 = vunpack.c.l.b16 %v7668
    %v8297 = vunpack.c.h.b16 %v7668
    %v8298 = vunpack.c.l.b16 %v7669
    %v8299 = vunpack.c.h.b16 %v7669
    %v8300 = vunpack.c.l.b16 %v7670
    %v8301 = vunpack.c.h.b16 %v7670
    %v8302 = vunpack.c.l.b16 %v7671
    %v8303 = vunpack.c.h.b16 %v7671
    %v8304 = vunpack.c.l.b16 %v7672
    %v8305 = vunpack.c.h.b16 %v7672
    %v8306 = vunpack.c.l.b16 %v7673
    %v8307 = vunpack.c.h.b16 %v7673
    %v8308 = vunpack.c.l.b16 %v7674
    %v8309 = vunpack.c.h.b16 %v7674
    %v8310 = vunpack.c.l.b16 %v7675
    %v8311 = vunpack.c.h.b16 %v7675
    %v8312 = vunpack.c.l.b16 %v7676
    %v8313 = vunpack.c.h.b16 %v7676
    %v8314 = vunpack.c.l.b16 %v7677
    %v8315 = vunpack.c.h.b16 %v7677
    %v8316 = vunpack.c.l.b16 %v7678
    %v8317 = vunpack.c.h.b16 %v7678
    %v8318 = vunpack.c.l.b16 %v7679
    %v8319 = vunpack.c.h.b16 %v7679
    %v8320 = vunpack.c.l.b16 %v7680
    %v8321 = vunpack.c.h.b16 %v7680
    %v8322 = vunpack.c.l.b16 %v7681
    %v8323 = vunpack.c.h.b16 %v7681
    %v8324 = vunpack.c.l.b16 %v7682
    %v8325 = vunpack.c.h.b16 %v7682
    %v8326 = vunpack.c.l.b16 %v7683
    %v8327 = vunpack.c.h.b16 %v7683
    %v8328 = vunpack.c.l.b16 %v7684
    %v8329 = vunpack.c.h.b16 %v7684
    %v8330 = vunpack.c.l.b16 %v7685
    %v8331 = vunpack.c.h.b16 %v7685
    %v8332 = vunpack.c.l.b16 %v7686
    %v8333 = vunpack.c.h.b16 %v7686
    %v8334 = vunpack.c.l.b16 %v7687
    %v8335 = vunpack.c.h.b16 %v7687
    %v8336 = vunpack.c.l.b16 %v7688
    %v8337 = vunpack.c.h.b16 %v7688
    %v8338 = vunpack.c.l.b16 %v7689
    %v8339 = vunpack.c.h.b16 %v7689
    %v8340 = vunpack.c.l.b16 %v7690
    %v8341 = vunpack.c.h.b16 %v7690
    %v8342 = vunpack.c.l.b16 %v7691
    %v8343 = vunpack.c.h.b16 %v7691
    %v8344 = vunpack.c.l.b16 %v7692
    %v8345 = vunpack.c.h.b16 %v7692
    %v8346 = vunpack.c.l.b16 %v7693
    %v8347 = vunpack.c.h.b16 %v7693
    %v8348 = vunpack.c.l.b16 %v7694
    %v8349 = vunpack.c.h.b16 %v7694
    %v8350 = vunpack.c.l.b16 %v7695
    %v8351 = vunpack.c.h.b16 %v7695
    %v8352 = vunpack.c.l.b16 %v7696
    %v8353 = vunpack.c.h.b16 %v7696
    %v8354 = vunpack.c.l.b16 %v7697
    %v8355 = vunpack.c.h.b16 %v7697
    %v8356 = vunpack.c.l.b16 %v7698
    %v8357 = vunpack.c.h.b16 %v7698
    %v8358 = vunpack.c.l.b16 %v7699
    %v8359 = vunpack.c.h.b16 %v7699
    %v8360 = vunpack.c.l.b16 %v7700
    %v8361 = vunpack.c.h.b16 %v7700
    %v8362 = vunpack.c.l.b16 %v7701
    %v8363 = vunpack.c.h.b16 %v7701
    %v8364 = vunpack.c.l.b16 %v7702
    %v8365 = vunpack.c.h.b16 %v7702
    %v8366 = vunpack.c.l.b16 %v7703
    %v8367 = vunpack.c.h.b16 %v7703
    %v8368 = vunpack.c.l.b16 %v7704
    %v8369 = vunpack.c.h.b16 %v7704
    %v8370 = vunpack.c.l.b16 %v7705
    %v8371 = vunpack.c.h.b16 %v7705
    %v8372 = vunpack.c.l.b16 %v7706
    %v8373 = vunpack.c.h.b16 %v7706
    %v8374 = vunpack.c.l.b16 %v7707
    %v8375 = vunpack.c.h.b16 %v7707
    %v8376 = vunpack.c.l.b16 %v7708
    %v8377 = vunpack.c.h.b16 %v7708
    %v8378 = vunpack.c.l.b16 %v7709
    %v8379 = vunpack.c.h.b16 %v7709
    %v8380 = vunpack.c.l.b16 %v7710
    %v8381 = vunpack.c.h.b16 %v7710
    %v8382 = vunpack.c.l.b16 %v7711
    %v8383 = vunpack.c.h.b16 %v7711
    %v8384 = vunpack.c.l.b16 %v7712
    %v8385 = vunpack.c.h.b16 %v7712
    %v8386 = vunpack.c.l.b16 %v7713
    %v8387 = vunpack.c.h.b16 %v7713
    %v8388 = vunpack.c.l.b16 %v7714
    %v8389 = vunpack.c.h.b16 %v7714
    %v8390 = vunpack.c.l.b16 %v7715
    %v8391 = vunpack.c.h.b16 %v7715
    %v8392 = vunpack.c.l.b16 %v7716
    %v8393 = vunpack.c.h.b16 %v7716
    %v8394 = vunpack.c.l.b16 %v7717
    %v8395 = vunpack.c.h.b16 %v7717
    %v8396 = vunpack.c.l.b16 %v7718
    %v8397 = vunpack.c.h.b16 %v7718
    %v8398 = vunpack.c.l.b16 %v7719
    %v8399 = vunpack.c.h.b16 %v7719
    %v8400 = vunpack.c.l.b16 %v7720
    %v8401 = vunpack.c.h.b16 %v7720
    %v8402 = vunpack.c.l.b16 %v7721
    %v8403 = vunpack.c.h.b16 %v7721
    %v8404 = vunpack.c.l.b16 %v7722
    %v8405 = vunpack.c.h.b16 %v7722
    %v8406 = vunpack.c.l.b16 %v7723
    %v8407 = vunpack.c.h.b16 %v7723
    %v8408 = vunpack.c.l.b16 %v7724
    %v8409 = vunpack.c.h.b16 %v7724
    %v8410 = vunpack.c.l.b16 %v7725
    %v8411 = vunpack.c.h.b16 %v7725
    %v8412 = vunpack.c.l.b16 %v7726
    %v8413 = vunpack.c.h.b16 %v7726
    %v8414 = vunpack.c.l.b16 %v7727
    %v8415 = vunpack.c.h.b16 %v7727
    %v8416 = vunpack.c.l.b16 %v7728
    %v8417 = vunpack.c.h.b16 %v7728
    %v8418 = vunpack.c.l.b16 %v7729
    %v8419 = vunpack.c.h.b16 %v7729
    %v8420 = vunpack.c.l.b16 %v7730
    %v8421 = vunpack.c.h.b16 %v7730
    %v8422 = vunpack.c.l.b16 %v7731
    %v8423 = vunpack.c.h.b16 %v7731
    %v8424 = vunpack.c.l.b16 %v7732
    %v8425 = vunpack.c.h.b16 %v7732
    %v8426 = vunpack.c.l.b16 %v7733
    %v8427 = vunpack.c.h.b16 %v7733
    %v8428 = vunpack.c.l.b16 %v7734
    %v8429 = vunpack.c.h.b16 %v7734
    %v8430 = vunpack.c.l.b16 %v7735
    %v8431 = vunpack.c.h.b16 %v7735
    %v8432 = vunpack.c.l.b16 %v7736
    %v8433 = vunpack.c.h.b16 %v7736
    %v8434 = vunpack.c.l.b16 %v7737
    %v8435 = vunpack.c.h.b16 %v7737
    %v8436 = vunpack.c.l.b16 %v7738
    %v8437 = vunpack.c.h.b16 %v7738
    %v8438 = vunpack.c.l.b16 %v7739
    %v8439 = vunpack.c.h.b16 %v7739
    %v8440 = vunpack.c.l.b16 %v7740
    %v8441 = vunpack.c.h.b16 %v7740
    %v8442 = vunpack.c.l.b16 %v7741
    %v8443 = vunpack.c.h.b16 %v7741
    %v8444 = vunpack.c.l.b16 %v7742
    %v8445 = vunpack.c.h.b16 %v7742
    %v8446 = vunpack.c.l.b16 %v7743
    %v8447 = vunpack.c.h.b16 %v7743
    %v8448 = vunpack.c.l.b16 %v7744
    %v8449 = vunpack.c.h.b16 %v7744
    %v8450 = vunpack.c.l.b16 %v7745
    %v8451 = vunpack.c.h.b16 %v7745
    %v8452 = vunpack.c.l.b16 %v7746
    %v8453 = vunpack.c.h.b16 %v7746
    %v8454 = vunpack.c.l.b16 %v7747
    %v8455 = vunpack.c.h.b16 %v7747
    %v8456 = vunpack.c.l.b16 %v7748
    %v8457 = vunpack.c.h.b16 %v7748
    %v8458 = vunpack.c.l.b16 %v7749
    %v8459 = vunpack.c.h.b16 %v7749
    %v8460 = vunpack.c.l.b16 %v7750
    %v8461 = vunpack.c.h.b16 %v7750
    %v8462 = vunpack.c.l.b16 %v7751
    %v8463 = vunpack.c.h.b16 %v7751
    %v8464 = vunpack.c.l.b16 %v7752
    %v8465 = vunpack.c.h.b16 %v7752
    %v8466 = vunpack.c.l.b16 %v7753
    %v8467 = vunpack.c.h.b16 %v7753
    %v8468 = vunpack.c.l.b16 %v7754
    %v8469 = vunpack.c.h.b16 %v7754
    %v8470 = vunpack.c.l.b16 %v7755
    %v8471 = vunpack.c.h.b16 %v7755
    %v8472 = vunpack.c.l.b16 %v7756
    %v8473 = vunpack.c.h.b16 %v7756
    %v8474 = vunpack.c.l.b16 %v7757
    %v8475 = vunpack.c.h.b16 %v7757
    %v8476 = vunpack.c.l.b16 %v7758
    %v8477 = vunpack.c.h.b16 %v7758
    %v8478 = vunpack.c.l.b16 %v7759
    %v8479 = vunpack.c.h.b16 %v7759
    %v8480 = vunpack.c.l.b16 %v7760
    %v8481 = vunpack.c.h.b16 %v7760
    %v8482 = vunpack.c.l.b16 %v7761
    %v8483 = vunpack.c.h.b16 %v7761
    %v8484 = vunpack.c.l.b16 %v7762
    %v8485 = vunpack.c.h.b16 %v7762
    %v8486 = vunpack.c.l.b16 %v7763
    %v8487 = vunpack.c.h.b16 %v7763
    %v8488 = vunpack.c.l.b16 %v7764
    %v8489 = vunpack.c.h.b16 %v7764
    %v8490 = vunpack.c.l.b16 %v7765
    %v8491 = vunpack.c.h.b16 %v7765
    %v8492 = vunpack.c.l.b16 %v7766
    %v8493 = vunpack.c.h.b16 %v7766
    %v8494 = vunpack.c.l.b16 %v7767
    %v8495 = vunpack.c.h.b16 %v7767
    %v8496 = vunpack.c.l.b16 %v7768
    %v8497 = vunpack.c.h.b16 %v7768
    %v8498 = vunpack.c.l.b16 %v7769
    %v8499 = vunpack.c.h.b16 %v7769
    %v8500 = vunpack.c.l.b16 %v7770
    %v8501 = vunpack.c.h.b16 %v7770
    %v8502 = vunpack.c.l.b16 %v7771
    %v8503 = vunpack.c.h.b16 %v7771
    %v8504 = vunpack.c.l.b16 %v7772
    %v8505 = vunpack.c.h.b16 %v7772
    %v8506 = vunpack.c.l.b16 %v7773
    %v8507 = vunpack.c.h.b16 %v7773
    %v8508 = vunpack.c.l.b16 %v7774
    %v8509 = vunpack.c.h.b16 %v7774
    %v8510 = vunpack.c.l.b16 %v7775
    %v8511 = vunpack.c.h.b16 %v7775
    %v8512 = vunpack.c.l.b16 %v7776
    %v8513 = vunpack.c.h.b16 %v7776
    %v8514 = vunpack.c.l.b16 %v7777
    %v8515 = vunpack.c.h.b16 %v7777
    %v8516 = vunpack.c.l.b16 %v7778
    %v8517 = vunpack.c.h.b16 %v7778
    %v8518 = vunpack.c.l.b16 %v7779
    %v8519 = vunpack.c.h.b16 %v7779
    %v8520 = vunpack.c.l.b16 %v7780
    %v8521 = vunpack.c.h.b16 %v7780
    %v8522 = vunpack.c.l.b16 %v7781
    %v8523 = vunpack.c.h.b16 %v7781
    %v8524 = vunpack.c.l.b16 %v7782
    %v8525 = vunpack.c.h.b16 %v7782
    %v8526 = vunpack.c.l.b16 %v7783
    %v8527 = vunpack.c.h.b16 %v7783
    %v8528 = vunpack.c.l.b16 %v7784
    %v8529 = vunpack.c.h.b16 %v7784
    %v8530 = vunpack.c.l.b16 %v7785
    %v8531 = vunpack.c.h.b16 %v7785
    %v8532 = vunpack.c.l.b16 %v7786
    %v8533 = vunpack.c.h.b16 %v7786
    %v8534 = vunpack.c.l.b16 %v7787
    %v8535 = vunpack.c.h.b16 %v7787
    %v8536 = vunpack.c.l.b16 %v7788
    %v8537 = vunpack.c.h.b16 %v7788
    %v8538 = vunpack.c.l.b16 %v7789
    %v8539 = vunpack.c.h.b16 %v7789
    %v8540 = vunpack.c.l.b16 %v7790
    %v8541 = vunpack.c.h.b16 %v7790
    %v8542 = vunpack.c.l.b16 %v7791
    %v8543 = vunpack.c.h.b16 %v7791
    %v8544 = vunpack.c.l.b16 %v7792
    %v8545 = vunpack.c.h.b16 %v7792
    %v8546 = vunpack.c.l.b16 %v7793
    %v8547 = vunpack.c.h.b16 %v7793
    %v8548 = vunpack.c.l.b16 %v7794
    %v8549 = vunpack.c.h.b16 %v7794
    %v8550 = vunpack.c.l.b16 %v7795
    %v8551 = vunpack.c.h.b16 %v7795
    %v8552 = vunpack.c.l.b16 %v7796
    %v8553 = vunpack.c.h.b16 %v7796
    %v8554 = vunpack.c.l.b16 %v7797
    %v8555 = vunpack.c.h.b16 %v7797
    %v8556 = vunpack.c.l.b16 %v7798
    %v8557 = vunpack.c.h.b16 %v7798
    %v8558 = vunpack.c.l.b16 %v7799
    %v8559 = vunpack.c.h.b16 %v7799
    %v8560 = vunpack.c.l.b16 %v7800
    %v8561 = vunpack.c.h.b16 %v7800
    %v8562 = vunpack.c.l.b16 %v7801
    %v8563 = vunpack.c.h.b16 %v7801
    %v8564 = vunpack.c.l.b16 %v7802
    %v8565 = vunpack.c.h.b16 %v7802
    %v8566 = vunpack.c.l.b16 %v7803
    %v8567 = vunpack.c.h.b16 %v7803
    %v8568 = vunpack.c.l.b16 %v7804
    %v8569 = vunpack.c.h.b16 %v7804
    %v8570 = vunpack.c.l.b16 %v7805
    %v8571 = vunpack.c.h.b16 %v7805
    %v8572 = vunpack.c.l.b16 %v7806
    %v8573 = vunpack.c.h.b16 %v7806
    %v8574 = vunpack.c.l.b16 %v7807
    %v8575 = vunpack.c.h.b16 %v7807
    %v8576 = vunpack.c.l.b16 %v7808
    %v8577 = vunpack.c.h.b16 %v7808
    %v8578 = vunpack.c.l.b16 %v7809
    %v8579 = vunpack.c.h.b16 %v7809
    %v8580 = vunpack.c.l.b16 %v7810
    %v8581 = vunpack.c.h.b16 %v7810
    %v8582 = vunpack.c.l.b16 %v7811
    %v8583 = vunpack.c.h.b16 %v7811
    %v8584 = vunpack.c.l.b16 %v7812
    %v8585 = vunpack.c.h.b16 %v7812
    %v8586 = vunpack.c.l.b16 %v7813
    %v8587 = vunpack.c.h.b16 %v7813
    %v8588 = vunpack.c.l.b16 %v7814
    %v8589 = vunpack.c.h.b16 %v7814
    %v8590 = vunpack.c.l.b16 %v7815
    %v8591 = vunpack.c.h.b16 %v7815
    %v8592 = vunpack.c.l.b16 %v7816
    %v8593 = vunpack.c.h.b16 %v7816
    %v8594 = vunpack.c.l.b16 %v7817
    %v8595 = vunpack.c.h.b16 %v7817
    %v8596 = vunpack.c.l.b16 %v7818
    %v8597 = vunpack.c.h.b16 %v7818
    %v8598 = vunpack.c.l.b16 %v7819
    %v8599 = vunpack.c.h.b16 %v7819
    %v8600 = vunpack.c.l.b16 %v7820
    %v8601 = vunpack.c.h.b16 %v7820
    %v8602 = vunpack.c.l.b16 %v7821
    %v8603 = vunpack.c.h.b16 %v7821
    %v8604 = vunpack.c.l.b16 %v7822
    %v8605 = vunpack.c.h.b16 %v7822
    %v8606 = vunpack.c.l.b16 %v7823
    %v8607 = vunpack.c.h.b16 %v7823
    %v8608 = vunpack.c.l.b16 %v7824
    %v8609 = vunpack.c.h.b16 %v7824
    %v8610 = vunpack.c.l.b16 %v7825
    %v8611 = vunpack.c.h.b16 %v7825
    %v8612 = vunpack.c.l.b16 %v7826
    %v8613 = vunpack.c.h.b16 %v7826
    %v8614 = vunpack.c.l.b16 %v7827
    %v8615 = vunpack.c.h.b16 %v7827
    %v8616 = vunpack.c.l.b16 %v7828
    %v8617 = vunpack.c.h.b16 %v7828
    %v8618 = vunpack.c.l.b16 %v7829
    %v8619 = vunpack.c.h.b16 %v7829
    %v8620 = vpack.c.b16 %v8112, %v8108
    %v8621 = vpack.c.b16 %v8113, %v8109
    %v8622 = vpack.c.b16 %v8114, %v8110
    %v8623 = vpack.c.b16 %v8115, %v8111
    %v8624 = vpack.c.b16 %v8120, %v8116
    %v8625 = vpack.c.b16 %v8121, %v8117
    %v8626 = vpack.c.b16 %v8122, %v8118
    %v8627 = vpack.c.b16 %v8123, %v8119
    %v8628 = vpack.c.b16 %v8128, %v8124
    %v8629 = vpack.c.b16 %v8129, %v8125
    %v8630 = vpack.c.b16 %v8130, %v8126
    %v8631 = vpack.c.b16 %v8131, %v8127
    %v8632 = vpack.c.b16 %v8136, %v8132
    %v8633 = vpack.c.b16 %v8137, %v8133
    %v8634 = vpack.c.b16 %v8138, %v8134
    %v8635 = vpack.c.b16 %v8139, %v8135
    %v8636 = vpack.c.b16 %v8144, %v8140
    %v8637 = vpack.c.b16 %v8145, %v8141
    %v8638 = vpack.c.b16 %v8146, %v8142
    %v8639 = vpack.c.b16 %v8147, %v8143
    %v8640 = vpack.c.b16 %v8152, %v8148
    %v8641 = vpack.c.b16 %v8153, %v8149
    %v8642 = vpack.c.b16 %v8154, %v8150
    %v8643 = vpack.c.b16 %v8155, %v8151
    %v8644 = vpack.c.b16 %v8160, %v8156
    %v8645 = vpack.c.b16 %v8161, %v8157
    %v8646 = vpack.c.b16 %v8162, %v8158
    %v8647 = vpack.c.b16 %v8163, %v8159
    %v8648 = vpack.c.b16 %v8168, %v8164
    %v8649 = vpack.c.b16 %v8169, %v8165
    %v8650 = vpack.c.b16 %v8170, %v8166
    %v8651 = vpack.c.b16 %v8171, %v8167
    %v8652 = vpack.c.b16 %v8176, %v8172
    %v8653 = vpack.c.b16 %v8177, %v8173
    %v8654 = vpack.c.b16 %v8178, %v8174
    %v8655 = vpack.c.b16 %v8179, %v8175
    %v8656 = vpack.c.b16 %v8184, %v8180
    %v8657 = vpack.c.b16 %v8185, %v8181
    %v8658 = vpack.c.b16 %v8186, %v8182
    %v8659 = vpack.c.b16 %v8187, %v8183
    %v8660 = vpack.c.b16 %v8192, %v8188
    %v8661 = vpack.c.b16 %v8193, %v8189
    %v8662 = vpack.c.b16 %v8194, %v8190
    %v8663 = vpack.c.b16 %v8195, %v8191
    %v8664 = vpack.c.b16 %v8200, %v8196
    %v8665 = vpack.c.b16 %v8201, %v8197
    %v8666 = vpack.c.b16 %v8202, %v8198
    %v8667 = vpack.c.b16 %v8203, %v8199
    %v8668 = vpack.c.b16 %v8208, %v8204
    %v8669 = vpack.c.b16 %v8209, %v8205
    %v8670 = vpack.c.b16 %v8210, %v8206
    %v8671 = vpack.c.b16 %v8211, %v8207
    %v8672 = vpack.c.b16 %v8216, %v8212
    %v8673 = vpack.c.b16 %v8217, %v8213
    %v8674 = vpack.c.b16 %v8218, %v8214
    %v8675 = vpack.c.b16 %v8219, %v8215
    %v8676 = vpack.c.b16 %v8224, %v8220
    %v8677 = vpack.c.b16 %v8225, %v8221
    %v8678 = vpack.c.b16 %v8226, %v8222
    %v8679 = vpack.c.b16 %v8227, %v8223
    %v8680 = vpack.c.b16 %v8232, %v8228
    %v8681 = vpack.c.b16 %v8233, %v8229
    %v8682 = vpack.c.b16 %v8234, %v8230
    %v8683 = vpack.c.b16 %v8235, %v8231
    %v8684 = vpack.c.b16 %v8240, %v8236
    %v8685 = vpack.c.b16 %v8241, %v8237
    %v8686 = vpack.c.b16 %v8242, %v8238
    %v8687 = vpack.c.b16 %v8243, %v8239
    %v8688 = vpack.c.b16 %v8248, %v8244
    %v8689 = vpack.c.b16 %v8249, %v8245
    %v8690 = vpack.c.b16 %v8250, %v8246
    %v8691 = vpack.c.b16 %v8251, %v8247
    %v8692 = vpack.c.b16 %v8256, %v8252
    %v8693 = vpack.c.b16 %v8257, %v8253
    %v8694 = vpack.c.b16 %v8258, %v8254
    %v8695 = vpack.c.b16 %v8259, %v8255
    %v8696 = vpack.c.b16 %v8264, %v8260
    %v8697 = vpack.c.b16 %v8265, %v8261
    %v8698 = vpack.c.b16 %v8266, %v8262
    %v8699 = vpack.c.b16 %v8267, %v8263
    %v8700 = vpack.c.b16 %v8272, %v8268
    %v8701 = vpack.c.b16 %v8273, %v8269
    %v8702 = vpack.c.b16 %v8274, %v8270
    %v8703 = vpack.c.b16 %v8275, %v8271
    %v8704 = vpack.c.b16 %v8280, %v8276
    %v8705 = vpack.c.b16 %v8281, %v8277
    %v8706 = vpack.c.b16 %v8282, %v8278
    %v8707 = vpack.c.b16 %v8283, %v8279
    %v8708 = vpack.c.b16 %v8288, %v8284
    %v8709 = vpack.c.b16 %v8289, %v8285
    %v8710 = vpack.c.b16 %v8290, %v8286
    %v8711 = vpack.c.b16 %v8291, %v8287
    %v8712 = vpack.c.b16 %v8296, %v8292
    %v8713 = vpack.c.b16 %v8297, %v8293
    %v8714 = vpack.c.b16 %v8298, %v8294
    %v8715 = vpack.c.b16 %v8299, %v8295
    %v8716 = vpack.c.b16 %v8304, %v8300
    %v8717 = vpack.c.b16 %v8305, %v8301
    %v8718 = vpack.c.b16 %v8306, %v8302
    %v8719 = vpack.c.b16 %v8307, %v8303
    %v8720 = vpack.c.b16 %v8312, %v8308
    %v8721 = vpack.c.b16 %v8313, %v8309
    %v8722 = vpack.c.b16 %v8314, %v8310
    %v8723 = vpack.c.b16 %v8315, %v8311
    %v8724 = vpack.c.b16 %v8320, %v8316
    %v8725 = vpack.c.b16 %v8321, %v8317
    %v8726 = vpack.c.b16 %v8322, %v8318
    %v8727 = vpack.c.b16 %v8323, %v8319
    %v8728 = vpack.c.b16 %v8328, %v8324
    %v8729 = vpack.c.b16 %v8329, %v8325
    %v8730 = vpack.c.b16 %v8330, %v8326
    %v8731 = vpack.c.b16 %v8331, %v8327
    %v8732 = vpack.c.b16 %v8336, %v8332
    %v8733 = vpack.c.b16 %v8337, %v8333
    %v8734 = vpack.c.b16 %v8338, %v8334
    %v8735 = vpack.c.b16 %v8339, %v8335
    %v8736 = vpack.c.b16 %v8344, %v8340
    %v8737 = vpack.c.b16 %v8345, %v8341
    %v8738 = vpack.c.b16 %v8346, %v8342
    %v8739 = vpack.c.b16 %v8347, %v8343
    %v8740 = vpack.c.b16 %v8352, %v8348
    %v8741 = vpack.c.b16 %v8353, %v8349
    %v8742 = vpack.c.b16 %v8354, %v8350
    %v8743 = vpack.c.b16 %v8355, %v8351
    %v8744 = vpack.c.b16 %v8360, %v8356
    %v8745 = vpack.c.b16 %v8361, %v8357
    %v8746 = vpack.c.b16 %v8362, %v8358
    %v8747 = vpack.c.b16 %v8363, %v8359
    %v8748 = vpack.c.b16 %v8368, %v8364
    %v8749 = vpack.c.b16 %v8369, %v8365
    %v8750 = vpack.c.b16 %v8370, %v8366
    %v8751 = vpack.c.b16 %v8371, %v8367
    %v8752 = vpack.c.b16 %v8376, %v8372
    %v8753 = vpack.c.b16 %v8377, %v8373
    %v8754 = vpack.c.b16 %v8378, %v8374
    %v8755 = vpack.c.b16 %v8379, %v8375
    %v8756 = vpack.c.b16 %v8384, %v8380
    %v8757 = vpack.c.b16 %v8385, %v8381
    %v8758 = vpack.c.b16 %v8386, %v8382
    %v8759 = vpack.c.b16 %v8387, %v8383
    %v8760 = vpack.c.b16 %v8392, %v8388
    %v8761 = vpack.c.b16 %v8393, %v8389
    %v8762 = vpack.c.b16 %v8394, %v8390
    %v8763 = vpack.c.b16 %v8395, %v8391
    %v8764 = vpack.c.b16 %v8400, %v8396
    %v8765 = vpack.c.b16 %v8401, %v8397
    %v8766 = vpack.c.b16 %v8402, %v8398
    %v8767 = vpack.c.b16 %v8403, %v8399
    %v8768 = vpack.c.b16 %v8408, %v8404
    %v8769 = vpack.c.b16 %v8409, %v8405
    %v8770 = vpack.c.b16 %v8410, %v8406
    %v8771 = vpack.c.b16 %v8411, %v8407
    %v8772 = vpack.c.b16 %v8416, %v8412
    %v8773 = vpack.c.b16 %v8417, %v8413
    %v8774 = vpack.c.b16 %v8418, %v8414
    %v8775 = vpack.c.b16 %v8419, %v8415
    %v8776 = vpack.c.b16 %v8424, %v8420
    %v8777 = vpack.c.b16 %v8425, %v8421
    %v8778 = vpack.c.b16 %v8426, %v8422
    %v8779 = vpack.c.b16 %v8427, %v8423
    %v8780 = vpack.c.b16 %v8432, %v8428
    %v8781 = vpack.c.b16 %v8433, %v8429
    %v8782 = vpack.c.b16 %v8434, %v8430
    %v8783 = vpack.c.b16 %v8435, %v8431
    %v8784 = vpack.c.b16 %v8440, %v8436
    %v8785 = vpack.c.b16 %v8441, %v8437
    %v8786 = vpack.c.b16 %v8442, %v8438
    %v8787 = vpack.c.b16 %v8443, %v8439
    %v8788 = vpack.c.b16 %v8448, %v8444
    %v8789 = vpack.c.b16 %v8449, %v8445
    %v8790 = vpack.c.b16 %v8450, %v8446
    %v8791 = vpack.c.b16 %v8451, %v8447
    %v8792 = vpack.c.b16 %v8456, %v8452
    %v8793 = vpack.c.b16 %v8457, %v8453
    %v8794 = vpack.c.b16 %v8458, %v8454
    %v8795 = vpack.c.b16 %v8459, %v8455
    %v8796 = vpack.c.b16 %v8464, %v8460
    %v8797 = vpack.c.b16 %v8465, %v8461
    %v8798 = vpack.c.b16 %v8466, %v8462
    %v8799 = vpack.c.b16 %v8467, %v8463
    %v8800 = vpack.c.b16 %v8472, %v8468
    %v8801 = vpack.c.b16 %v8473, %v8469
    %v8802 = vpack.c.b16 %v8474, %v8470
    %v8803 = vpack.c.b16 %v8475, %v8471
    %v8804 = vpack.c.b16 %v8480, %v8476
    %v8805 = vpack.c.b16 %v8481, %v8477
    %v8806 = vpack.c.b16 %v8482, %v8478
    %v8807 = vpack.c.b16 %v8483, %v8479
    %v8808 = vpack.c.b16 %v8488, %v8484
    %v8809 = vpack.c.b16 %v8489, %v8485
    %v8810 = vpack.c.b16 %v8490, %v8486
    %v8811 = vpack.c.b16 %v8491, %v8487
    %v8812 = vpack.c.b16 %v8496, %v8492
    %v8813 = vpack.c.b16 %v8497, %v8493
    %v8814 = vpack.c.b16 %v8498, %v8494
    %v8815 = vpack.c.b16 %v8499, %v8495
    %v8816 = vpack.c.b16 %v8504, %v8500
    %v8817 = vpack.c.b16 %v8505, %v8501
    %v8818 = vpack.c.b16 %v8506, %v8502
    %v8819 = vpack.c.b16 %v8507, %v8503
    %v8820 = vpack.c.b16 %v8512, %v8508
    %v8821 = vpack.c.b16 %v8513, %v8509
    %v8822 = vpack.c.b16 %v8514, %v8510
    %v8823 = vpack.c.b16 %v8515, %v8511
    %v8824 = vpack.c.b16 %v8520, %v8516
    %v8825 = vpack.c.b16 %v8521, %v8517
    %v8826 = vpack.c.b16 %v8522, %v8518
    %v8827 = vpack.c.b16 %v8523, %v8519
    %v8828 = vpack.c.b16 %v8528, %v8524
    %v8829 = vpack.c.b16 %v8529, %v8525
    %v8830 = vpack.c.b16 %v8530, %v8526
    %v8831 = vpack.c.b16 %v8531, %v8527
    %v8832 = vpack.c.b16 %v8536, %v8532
    %v8833 = vpack.c.b16 %v8537, %v8533
    %v8834 = vpack.c.b16 %v8538, %v8534
    %v8835 = vpack.c.b16 %v8539, %v8535
    %v8836 = vpack.c.b16 %v8544, %v8540
    %v8837 = vpack.c.b16 %v8545, %v8541
    %v8838 = vpack.c.b16 %v8546, %v8542
    %v8839 = vpack.c.b16 %v8547, %v8543
    %v8840 = vpack.c.b16 %v8552, %v8548
    %v8841 = vpack.c.b16 %v8553, %v8549
    %v8842 = vpack.c.b16 %v8554, %v8550
    %v8843 = vpack.c.b16 %v8555, %v8551
    %v8844 = vpack.c.b16 %v8560, %v8556
    %v8845 = vpack.c.b16 %v8561, %v8557
    %v8846 = vpack.c.b16 %v8562, %v8558
    %v8847 = vpack.c.b16 %v8563, %v8559
    %v8848 = vpack.c.b16 %v8568, %v8564
    %v8849 = vpack.c.b16 %v8569, %v8565
    %v8850 = vpack.c.b16 %v8570, %v8566
    %v8851 = vpack.c.b16 %v8571, %v8567
    %v8852 = vpack.c.b16 %v8576, %v8572
    %v8853 = vpack.c.b16 %v8577, %v8573
    %v8854 = vpack.c.b16 %v8578, %v8574
    %v8855 = vpack.c.b16 %v8579, %v8575
    %v8856 = vpack.c.b16 %v8584, %v8580
    %v8857 = vpack.c.b16 %v8585, %v8581
    %v8858 = vpack.c.b16 %v8586, %v8582
    %v8859 = vpack.c.b16 %v8587, %v8583
    %v8860 = vpack.c.b16 %v8592, %v8588
    %v8861 = vpack.c.b16 %v8593, %v8589
    %v8862 = vpack.c.b16 %v8594, %v8590
    %v8863 = vpack.c.b16 %v8595, %v8591
    %v8864 = vpack.c.b16 %v8600, %v8596
    %v8865 = vpack.c.b16 %v8601, %v8597
    %v8866 = vpack.c.b16 %v8602, %v8598
    %v8867 = vpack.c.b16 %v8603, %v8599
    %v8868 = vpack.c.b16 %v8608, %v8604
    %v8869 = vpack.c.b16 %v8609, %v8605
    %v8870 = vpack.c.b16 %v8610, %v8606
    %v8871 = vpack.c.b16 %v8611, %v8607
    %v8872 = vpack.c.b16 %v8616, %v8612
    %v8873 = vpack.c.b16 %v8617, %v8613
    %v8874 = vpack.c.b16 %v8618, %v8614
    %v8875 = vpack.c.b16 %v8619, %v8615
    %9132 = vmatprep.subr.bf16.mxu0 %v8649
    %9133 = vmatpush1.bf16.msra.mxu0 %v8648
    %9134 = vmatprep.subr.bf16.mxu0 %v8645
    %9135 = vmatpush1.bf16.msra.mxu0 %v8644
    %9136 = vmatprep.subr.bf16.mxu0 %v8641
    %9137 = vmatpush1.bf16.msra.mxu0 %v8640
    %9138 = vmatprep.subr.bf16.mxu0 %v8637
    %9139 = vmatpush1.bf16.msra.mxu0 %v8636
    %9140 = vmatprep.subr.bf16.mxu0 %v8633
    %9141 = vmatpush1.bf16.msra.mxu0 %v8632
    %9142 = vmatprep.subr.bf16.mxu0 %v8629
    %9143 = vmatpush1.bf16.msra.mxu0 %v8628
    %9144 = vmatprep.subr.bf16.mxu0 %v8625
    %9145 = vmatpush1.bf16.msra.mxu0 %v8624
    %9146 = vmatprep.subr.bf16.mxu0 %v8621
    %9147 = vmatpush1.bf16.msra.mxu0 %v8620
    %9148 = vmatprep.subr.bf16.mxu0 %v8681
    %9149 = vmatpush2.bf16.msra.mxu0 %v8680
    %9150 = vmatprep.subr.bf16.mxu0 %v8677
    %9151 = vmatpush2.bf16.msra.mxu0 %v8676
    %9152 = vmatprep.subr.bf16.mxu0 %v8673
    %9153 = vmatpush2.bf16.msra.mxu0 %v8672
    %9154 = vmatprep.subr.bf16.mxu0 %v8669
    %9155 = vmatpush2.bf16.msra.mxu0 %v8668
    %9156 = vmatprep.subr.bf16.mxu0 %v8665
    %9157 = vmatpush2.bf16.msra.mxu0 %v8664
    %9158 = vmatprep.subr.bf16.mxu0 %v8661
    %9159 = vmatpush2.bf16.msra.mxu0 %v8660
    %9160 = vmatprep.subr.bf16.mxu0 %v8657
    %9161 = vmatpush2.bf16.msra.mxu0 %v8656
    %9162 = vmatprep.subr.bf16.mxu0 %v8653
    %9163 = vmatpush2.bf16.msra.mxu0 %v8652
    %9164 = vmatprep.mubr.bf16.mxu0 %v7567
    %9165 = vmatmul.mubr.bf16.gmra.mxu0 %v7566
    %v9166 = vpop.f32.mrf.mxu0
    %v9167 = vadd.f32 %v7835, %v9166
    %v9168 = vpop.f32.mrf.mxu0
    %v9169 = vadd.f32 %v7839, %v9168
    %v9170 = vpop.f32.mrf.mxu0
    %v9171 = vpop.f32.mrf.mxu0
    %9172 = vdwg.mxu0
    %9173 = vmatprep.subr.bf16.mxu0 %v8713
    %9174 = vmatpush1.bf16.msra.mxu0 %v8712
    %9175 = vmatprep.subr.bf16.mxu0 %v8709
    %9176 = vmatpush1.bf16.msra.mxu0 %v8708
    %9177 = vmatprep.subr.bf16.mxu0 %v8705
    %9178 = vmatpush1.bf16.msra.mxu0 %v8704
    %9179 = vmatprep.subr.bf16.mxu0 %v8701
    %9180 = vmatpush1.bf16.msra.mxu0 %v8700
    %9181 = vmatprep.subr.bf16.mxu0 %v8697
    %9182 = vmatpush1.bf16.msra.mxu0 %v8696
    %9183 = vmatprep.subr.bf16.mxu0 %v8693
    %9184 = vmatpush1.bf16.msra.mxu0 %v8692
    %9185 = vmatprep.subr.bf16.mxu0 %v8689
    %9186 = vmatpush1.bf16.msra.mxu0 %v8688
    %9187 = vmatprep.subr.bf16.mxu0 %v8685
    %9188 = vmatpush1.bf16.msra.mxu0 %v8684
    %9189 = vmatprep.subr.bf16.mxu0 %v8745
    %9190 = vmatpush2.bf16.msra.mxu0 %v8744
    %9191 = vmatprep.subr.bf16.mxu0 %v8741
    %9192 = vmatpush2.bf16.msra.mxu0 %v8740
    %9193 = vmatprep.subr.bf16.mxu0 %v8737
    %9194 = vmatpush2.bf16.msra.mxu0 %v8736
    %9195 = vmatprep.subr.bf16.mxu0 %v8733
    %9196 = vmatpush2.bf16.msra.mxu0 %v8732
    %9197 = vmatprep.subr.bf16.mxu0 %v8729
    %9198 = vmatpush2.bf16.msra.mxu0 %v8728
    %9199 = vmatprep.subr.bf16.mxu0 %v8725
    %9200 = vmatpush2.bf16.msra.mxu0 %v8724
    %9201 = vmatprep.subr.bf16.mxu0 %v8721
    %9202 = vmatpush2.bf16.msra.mxu0 %v8720
    %9203 = vmatprep.subr.bf16.mxu0 %v8717
    %9204 = vmatpush2.bf16.msra.mxu0 %v8716
    %9205 = vmatprep.mubr.bf16.mxu0 %v7569
    %9206 = vmatmul.mubr.bf16.gmra.mxu0 %v7568
    %v9207 = vpop.f32.mrf.mxu0
    %v9208 = vadd.f32 %v9167, %v9207
    %v9209 = vpop.f32.mrf.mxu0
    %v9210 = vadd.f32 %v9169, %v9209
    %v9211 = vpop.f32.mrf.mxu0
    %v9212 = vpop.f32.mrf.mxu0
    %9213 = vdwg.mxu0
    %9214 = vmatprep.subr.bf16.mxu0 %v8777
    %9215 = vmatpush1.bf16.msra.mxu0 %v8776
    %9216 = vmatprep.subr.bf16.mxu0 %v8773
    %9217 = vmatpush1.bf16.msra.mxu0 %v8772
    %9218 = vmatprep.subr.bf16.mxu0 %v8769
    %9219 = vmatpush1.bf16.msra.mxu0 %v8768
    %9220 = vmatprep.subr.bf16.mxu0 %v8765
    %9221 = vmatpush1.bf16.msra.mxu0 %v8764
    %9222 = vmatprep.subr.bf16.mxu0 %v8761
    %9223 = vmatpush1.bf16.msra.mxu0 %v8760
    %9224 = vmatprep.subr.bf16.mxu0 %v8757
    %9225 = vmatpush1.bf16.msra.mxu0 %v8756
    %9226 = vmatprep.subr.bf16.mxu0 %v8753
    %9227 = vmatpush1.bf16.msra.mxu0 %v8752
    %9228 = vmatprep.subr.bf16.mxu0 %v8749
    %9229 = vmatpush1.bf16.msra.mxu0 %v8748
    %9230 = vmatprep.subr.bf16.mxu0 %v8809
    %9231 = vmatpush2.bf16.msra.mxu0 %v8808
    %9232 = vmatprep.subr.bf16.mxu0 %v8805
    %9233 = vmatpush2.bf16.msra.mxu0 %v8804
    %9234 = vmatprep.subr.bf16.mxu0 %v8801
    %9235 = vmatpush2.bf16.msra.mxu0 %v8800
    %9236 = vmatprep.subr.bf16.mxu0 %v8797
    %9237 = vmatpush2.bf16.msra.mxu0 %v8796
    %9238 = vmatprep.subr.bf16.mxu0 %v8793
    %9239 = vmatpush2.bf16.msra.mxu0 %v8792
    %9240 = vmatprep.subr.bf16.mxu0 %v8789
    %9241 = vmatpush2.bf16.msra.mxu0 %v8788
    %9242 = vmatprep.subr.bf16.mxu0 %v8785
    %9243 = vmatpush2.bf16.msra.mxu0 %v8784
    %9244 = vmatprep.subr.bf16.mxu0 %v8781
    %9245 = vmatpush2.bf16.msra.mxu0 %v8780
    %9246 = vmatprep.mubr.bf16.mxu0 %v7571
    %9247 = vmatmul.mubr.bf16.gmra.mxu0 %v7570
    %v9248 = vpop.f32.mrf.mxu0
    %v9249 = vadd.f32 %v9208, %v9248
    %v9250 = vpop.f32.mrf.mxu0
    %v9251 = vadd.f32 %v9210, %v9250
    %v9252 = vpop.f32.mrf.mxu0
    %v9253 = vpop.f32.mrf.mxu0
    %9254 = vdwg.mxu0
    %9255 = vmatprep.subr.bf16.mxu0 %v8841
    %9256 = vmatpush1.bf16.msra.mxu0 %v8840
    %9257 = vmatprep.subr.bf16.mxu0 %v8837
    %9258 = vmatpush1.bf16.msra.mxu0 %v8836
    %9259 = vmatprep.subr.bf16.mxu0 %v8833
    %9260 = vmatpush1.bf16.msra.mxu0 %v8832
    %9261 = vmatprep.subr.bf16.mxu0 %v8829
    %9262 = vmatpush1.bf16.msra.mxu0 %v8828
    %9263 = vmatprep.subr.bf16.mxu0 %v8825
    %9264 = vmatpush1.bf16.msra.mxu0 %v8824
    %9265 = vmatprep.subr.bf16.mxu0 %v8821
    %9266 = vmatpush1.bf16.msra.mxu0 %v8820
    %9267 = vmatprep.subr.bf16.mxu0 %v8817
    %9268 = vmatpush1.bf16.msra.mxu0 %v8816
    %9269 = vmatprep.subr.bf16.mxu0 %v8813
    %9270 = vmatpush1.bf16.msra.mxu0 %v8812
    %9271 = vmatprep.subr.bf16.mxu0 %v8873
    %9272 = vmatpush2.bf16.msra.mxu0 %v8872
    %9273 = vmatprep.subr.bf16.mxu0 %v8869
    %9274 = vmatpush2.bf16.msra.mxu0 %v8868
    %9275 = vmatprep.subr.bf16.mxu0 %v8865
    %9276 = vmatpush2.bf16.msra.mxu0 %v8864
    %9277 = vmatprep.subr.bf16.mxu0 %v8861
    %9278 = vmatpush2.bf16.msra.mxu0 %v8860
    %9279 = vmatprep.subr.bf16.mxu0 %v8857
    %9280 = vmatpush2.bf16.msra.mxu0 %v8856
    %9281 = vmatprep.subr.bf16.mxu0 %v8853
    %9282 = vmatpush2.bf16.msra.mxu0 %v8852
    %9283 = vmatprep.subr.bf16.mxu0 %v8849
    %9284 = vmatpush2.bf16.msra.mxu0 %v8848
    %9285 = vmatprep.subr.bf16.mxu0 %v8845
    %9286 = vmatpush2.bf16.msra.mxu0 %v8844
    %9287 = vmatprep.mubr.bf16.mxu0 %v7573
    %9288 = vmatmul.mubr.bf16.gmra.mxu0 %v7572
    %v9289 = vpop.f32.mrf.mxu0
    %v9290 = vadd.f32 %v9249, %v9289
    %v9291 = vpop.f32.mrf.mxu0
    %v9292 = vadd.f32 %v9251, %v9291
    %v9293 = vpop.f32.mrf.mxu0
    %v9294 = vpop.f32.mrf.mxu0
    %9295 = vdwg.mxu0
    %9296 = vmatprep.subr.bf16.mxu0 %v8651
    %9297 = vmatpush1.bf16.msra.mxu0 %v8650
    %9298 = vmatprep.subr.bf16.mxu0 %v8647
    %9299 = vmatpush1.bf16.msra.mxu0 %v8646
    %9300 = vmatprep.subr.bf16.mxu0 %v8643
    %9301 = vmatpush1.bf16.msra.mxu0 %v8642
    %9302 = vmatprep.subr.bf16.mxu0 %v8639
    %9303 = vmatpush1.bf16.msra.mxu0 %v8638
    %9304 = vmatprep.subr.bf16.mxu0 %v8635
    %9305 = vmatpush1.bf16.msra.mxu0 %v8634
    %9306 = vmatprep.subr.bf16.mxu0 %v8631
    %9307 = vmatpush1.bf16.msra.mxu0 %v8630
    %9308 = vmatprep.subr.bf16.mxu0 %v8627
    %9309 = vmatpush1.bf16.msra.mxu0 %v8626
    %9310 = vmatprep.subr.bf16.mxu0 %v8623
    %9311 = vmatpush1.bf16.msra.mxu0 %v8622
    %9312 = vmatprep.subr.bf16.mxu0 %v8683
    %9313 = vmatpush2.bf16.msra.mxu0 %v8682
    %9314 = vmatprep.subr.bf16.mxu0 %v8679
    %9315 = vmatpush2.bf16.msra.mxu0 %v8678
    %9316 = vmatprep.subr.bf16.mxu0 %v8675
    %9317 = vmatpush2.bf16.msra.mxu0 %v8674
    %9318 = vmatprep.subr.bf16.mxu0 %v8671
    %9319 = vmatpush2.bf16.msra.mxu0 %v8670
    %9320 = vmatprep.subr.bf16.mxu0 %v8667
    %9321 = vmatpush2.bf16.msra.mxu0 %v8666
    %9322 = vmatprep.subr.bf16.mxu0 %v8663
    %9323 = vmatpush2.bf16.msra.mxu0 %v8662
    %9324 = vmatprep.subr.bf16.mxu0 %v8659
    %9325 = vmatpush2.bf16.msra.mxu0 %v8658
    %9326 = vmatprep.subr.bf16.mxu0 %v8655
    %9327 = vmatpush2.bf16.msra.mxu0 %v8654
    %9328 = vmatprep.mubr.bf16.mxu0 %v7567
    %9329 = vmatmul.mubr.bf16.gmra.mxu0 %v7566
    %v9330 = vpop.f32.mrf.mxu0
    %v9331 = vadd.f32 %v7843, %v9330
    %v9332 = vpop.f32.mrf.mxu0
    %v9333 = vadd.f32 %v7847, %v9332
    %v9334 = vpop.f32.mrf.mxu0
    %v9335 = vpop.f32.mrf.mxu0
    %9336 = vdwg.mxu0
    %9337 = vmatprep.subr.bf16.mxu0 %v8715
    %9338 = vmatpush1.bf16.msra.mxu0 %v8714
    %9339 = vmatprep.subr.bf16.mxu0 %v8711
    %9340 = vmatpush1.bf16.msra.mxu0 %v8710
    %9341 = vmatprep.subr.bf16.mxu0 %v8707
    %9342 = vmatpush1.bf16.msra.mxu0 %v8706
    %9343 = vmatprep.subr.bf16.mxu0 %v8703
    %9344 = vmatpush1.bf16.msra.mxu0 %v8702
    %9345 = vmatprep.subr.bf16.mxu0 %v8699
    %9346 = vmatpush1.bf16.msra.mxu0 %v8698
    %9347 = vmatprep.subr.bf16.mxu0 %v8695
    %9348 = vmatpush1.bf16.msra.mxu0 %v8694
    %9349 = vmatprep.subr.bf16.mxu0 %v8691
    %9350 = vmatpush1.bf16.msra.mxu0 %v8690
    %9351 = vmatprep.subr.bf16.mxu0 %v8687
    %9352 = vmatpush1.bf16.msra.mxu0 %v8686
    %9353 = vmatprep.subr.bf16.mxu0 %v8747
    %9354 = vmatpush2.bf16.msra.mxu0 %v8746
    %9355 = vmatprep.subr.bf16.mxu0 %v8743
    %9356 = vmatpush2.bf16.msra.mxu0 %v8742
    %9357 = vmatprep.subr.bf16.mxu0 %v8739
    %9358 = vmatpush2.bf16.msra.mxu0 %v8738
    %9359 = vmatprep.subr.bf16.mxu0 %v8735
    %9360 = vmatpush2.bf16.msra.mxu0 %v8734
    %9361 = vmatprep.subr.bf16.mxu0 %v8731
    %9362 = vmatpush2.bf16.msra.mxu0 %v8730
    %9363 = vmatprep.subr.bf16.mxu0 %v8727
    %9364 = vmatpush2.bf16.msra.mxu0 %v8726
    %9365 = vmatprep.subr.bf16.mxu0 %v8723
    %9366 = vmatpush2.bf16.msra.mxu0 %v8722
    %9367 = vmatprep.subr.bf16.mxu0 %v8719
    %9368 = vmatpush2.bf16.msra.mxu0 %v8718
    %9369 = vmatprep.mubr.bf16.mxu0 %v7569
    %9370 = vmatmul.mubr.bf16.gmra.mxu0 %v7568
    %v9371 = vpop.f32.mrf.mxu0
    %v9372 = vadd.f32 %v9331, %v9371
    %v9373 = vpop.f32.mrf.mxu0
    %v9374 = vadd.f32 %v9333, %v9373
    %v9375 = vpop.f32.mrf.mxu0
    %v9376 = vpop.f32.mrf.mxu0
    %9377 = vdwg.mxu0
    %9378 = vmatprep.subr.bf16.mxu0 %v8779
    %9379 = vmatpush1.bf16.msra.mxu0 %v8778
    %9380 = vmatprep.subr.bf16.mxu0 %v8775
    %9381 = vmatpush1.bf16.msra.mxu0 %v8774
    %9382 = vmatprep.subr.bf16.mxu0 %v8771
    %9383 = vmatpush1.bf16.msra.mxu0 %v8770
    %9384 = vmatprep.subr.bf16.mxu0 %v8767
    %9385 = vmatpush1.bf16.msra.mxu0 %v8766
    %9386 = vmatprep.subr.bf16.mxu0 %v8763
    %9387 = vmatpush1.bf16.msra.mxu0 %v8762
    %9388 = vmatprep.subr.bf16.mxu0 %v8759
    %9389 = vmatpush1.bf16.msra.mxu0 %v8758
    %9390 = vmatprep.subr.bf16.mxu0 %v8755
    %9391 = vmatpush1.bf16.msra.mxu0 %v8754
    %9392 = vmatprep.subr.bf16.mxu0 %v8751
    %9393 = vmatpush1.bf16.msra.mxu0 %v8750
    %9394 = vmatprep.subr.bf16.mxu0 %v8811
    %9395 = vmatpush2.bf16.msra.mxu0 %v8810
    %9396 = vmatprep.subr.bf16.mxu0 %v8807
    %9397 = vmatpush2.bf16.msra.mxu0 %v8806
    %9398 = vmatprep.subr.bf16.mxu0 %v8803
    %9399 = vmatpush2.bf16.msra.mxu0 %v8802
    %9400 = vmatprep.subr.bf16.mxu0 %v8799
    %9401 = vmatpush2.bf16.msra.mxu0 %v8798
    %9402 = vmatprep.subr.bf16.mxu0 %v8795
    %9403 = vmatpush2.bf16.msra.mxu0 %v8794
    %9404 = vmatprep.subr.bf16.mxu0 %v8791
    %9405 = vmatpush2.bf16.msra.mxu0 %v8790
    %9406 = vmatprep.subr.bf16.mxu0 %v8787
    %9407 = vmatpush2.bf16.msra.mxu0 %v8786
    %9408 = vmatprep.subr.bf16.mxu0 %v8783
    %9409 = vmatpush2.bf16.msra.mxu0 %v8782
    %9410 = vmatprep.mubr.bf16.mxu0 %v7571
    %9411 = vmatmul.mubr.bf16.gmra.mxu0 %v7570
    %v9412 = vpop.f32.mrf.mxu0
    %v9413 = vadd.f32 %v9372, %v9412
    %v9414 = vpop.f32.mrf.mxu0
    %v9415 = vadd.f32 %v9374, %v9414
    %v9416 = vpop.f32.mrf.mxu0
    %v9417 = vpop.f32.mrf.mxu0
    %9418 = vdwg.mxu0
    %9419 = vmatprep.subr.bf16.mxu0 %v8843
    %9420 = vmatpush1.bf16.msra.mxu0 %v8842
    %9421 = vmatprep.subr.bf16.mxu0 %v8839
    %9422 = vmatpush1.bf16.msra.mxu0 %v8838
    %9423 = vmatprep.subr.bf16.mxu0 %v8835
    %9424 = vmatpush1.bf16.msra.mxu0 %v8834
    %9425 = vmatprep.subr.bf16.mxu0 %v8831
    %9426 = vmatpush1.bf16.msra.mxu0 %v8830
    %9427 = vmatprep.subr.bf16.mxu0 %v8827
    %9428 = vmatpush1.bf16.msra.mxu0 %v8826
    %9429 = vmatprep.subr.bf16.mxu0 %v8823
    %9430 = vmatpush1.bf16.msra.mxu0 %v8822
    %9431 = vmatprep.subr.bf16.mxu0 %v8819
    %9432 = vmatpush1.bf16.msra.mxu0 %v8818
    %9433 = vmatprep.subr.bf16.mxu0 %v8815
    %9434 = vmatpush1.bf16.msra.mxu0 %v8814
    %9435 = vmatprep.subr.bf16.mxu0 %v8875
    %9436 = vmatpush2.bf16.msra.mxu0 %v8874
    %9437 = vmatprep.subr.bf16.mxu0 %v8871
    %9438 = vmatpush2.bf16.msra.mxu0 %v8870
    %9439 = vmatprep.subr.bf16.mxu0 %v8867
    %9440 = vmatpush2.bf16.msra.mxu0 %v8866
    %9441 = vmatprep.subr.bf16.mxu0 %v8863
    %9442 = vmatpush2.bf16.msra.mxu0 %v8862
    %9443 = vmatprep.subr.bf16.mxu0 %v8859
    %9444 = vmatpush2.bf16.msra.mxu0 %v8858
    %9445 = vmatprep.subr.bf16.mxu0 %v8855
    %9446 = vmatpush2.bf16.msra.mxu0 %v8854
    %9447 = vmatprep.subr.bf16.mxu0 %v8851
    %9448 = vmatpush2.bf16.msra.mxu0 %v8850
    %9449 = vmatprep.subr.bf16.mxu0 %v8847
    %9450 = vmatpush2.bf16.msra.mxu0 %v8846
    %9451 = vmatprep.mubr.bf16.mxu0 %v7573
    %9452 = vmatmul.mubr.bf16.gmra.mxu0 %v7572
    %v9453 = vpop.f32.mrf.mxu0
    %v9454 = vadd.f32 %v9413, %v9453
    %v9455 = vpop.f32.mrf.mxu0
    %v9456 = vadd.f32 %v9415, %v9455
    %v9457 = vpop.f32.mrf.mxu0
    %v9458 = vpop.f32.mrf.mxu0
    %9459 = vdwg.mxu0
    %v9460 = vsub.f32 %v9454, 5.0
    %v9461 = vsub.f32 %v9456, 5.0
    %v9462 = vmax.f32 %v9460, 0.0
    %v9463 = vmax.f32 %v9461, 0.0
    %v9464 = vand.u32 2147483647, %v9460
    %v9465 = vand.u32 2147483647, %v9461
    %v9466 = vsub.f32 0.0, %v9464
    %v9467 = vsub.f32 0.0, %v9465
    %v9468 = vmul.f32 %v9466, 1.442695
    %v9469 = vpow.pop %v9468
    %v9470 = vmul.f32 %v9467, 1.442695
    %v9471 = vpow.pop %v9470
    %v9472 = vadd.f32 %v9469, 1.0
    %v9473 = vlog2.pop %v9472
    %v9474 = vmul.f32 %v9473, 0.6931472
    %v9475 = vmul.f32 -0.5, %v9469
    %v9476 = vadd.f32 %v9475, 1.0
    %v9477 = vmul.f32 %v9476, %v9469
    %v9478 = vand.u32 2147483647, %v9469
    %vm9479 = vcmp.lt.f32.partialorder %v9478, 0.0004427343
    %v9480 = vsel %vm9479, %v9477, %v9474
    %v9481 = vadd.f32 %v9471, 1.0
    %v9482 = vlog2.pop %v9481
    %v9483 = vmul.f32 %v9482, 0.6931472
    %v9484 = vmul.f32 -0.5, %v9471
    %v9485 = vadd.f32 %v9484, 1.0
    %v9486 = vmul.f32 %v9485, %v9471
    %v9487 = vand.u32 2147483647, %v9471
    %vm9488 = vcmp.lt.f32.partialorder %v9487, 0.0004427343
    %v9489 = vsel %vm9488, %v9486, %v9483
    %v9490 = vadd.f32 %v9462, %v9480
    %v9491 = vadd.f32 %v9463, %v9489
    %v9492 = vld [vmem:[#allocation20] sm:$0xf]
    %v9495 = vcombine.low %v9490, %v9491
    %v9497 = vunpack.c.l.s4 1983009808
    %v9498 = vunpack.c.0.s8 %v9497
    %v9499 = vlaneseq
    %v9500 = vshrl.u32 %v9499, 7
    %v9501 = vsub.s32 %v9498, %v9500
    %v9502 = vrot.slane %v9495, %v9501
    %v9504 = vmul.f32 %v9492, %v9502
    %v9507 = vunpack.c.l.s4 1983009808
    %v9508 = vunpack.c.0.s8 %v9507
    %v9509 = vlaneseq
    %v9510 = vshrl.u32 %v9509, 7
    %v9511 = vsub.s32 %v9508, %v9510
    %v9512 = vrot.slane %v9504, %v9511
    %v9513 = vcombine.high %v9512, %v9512
    %v9516 = vadd.f32 %v9290, %v9512
    %v9517 = vadd.f32 %v9292, %v9513
    %v9518 = vld [vmem:[#allocation18] sm:$0x3]
    %v9520 = vlaneseq
    %v9521 = vshrl.u32 %v9520, 7
    %v9522 = vsub.s32 0, %v9521
    %v9523 = vrot.slane %v9518, %v9522
    %v9524 = vlaneseq
    %v9525 = vshrl.u32 %v9524, 7
    %v9526 = vsub.s32 1, %v9525
    %v9527 = vrot.slane %v9518, %v9526
    %v9530 = vmul.f32 %v9516, %v9523
    %v9531 = vmul.f32 %v9517, %v9527
    %vm9532 = vcmask 1041408
    %v9533 = vsel %vm9532, %v9530, 0.0
    %v9534 = vsel %vm9532, %v9531, 0.0
    %v9535 = vadd.f32 %v9533, %v9534
    %9536 = vadd.xlane.f32.xlu0 %v9535
    %v9537 = vpop.xlane.xlu0 %9536
    %v9538 = vld [vmem:[#allocation2] sm:$0x1]
    %v9540 = vlaneseq
    %v9541 = vshrl.u32 %v9540, 7
    %v9542 = vsub.s32 0, %v9541
    %v9543 = vrot.slane %v9538, %v9542
    %v9545 = vadd.f32 %v9537, %v9543
    %v9548 = vcombine.low %v9290, %v9292
    %v9550 = vunpack.c.l.s4 1983009808
    %v9551 = vunpack.c.0.s8 %v9550
    %v9552 = vlaneseq
    %v9553 = vshrl.u32 %v9552, 7
    %v9554 = vsub.s32 %v9551, %v9553
    %v9555 = vrot.slane %v9548, %v9554
    %9557 = vst [vmem:[#allocation21] sm:$0xf] %v9555
    %9558 = vst [vmem:[#allocation22] sm:$0xf] %v9502
    %vm9559 = vcmask 1024
    %9560 = vst.msk [vmem:[%s14] sm:$0x3] %vm9559, %v9545
    // Predicated region
    $region94: #{tpu_custom_call.1} parent=1 // pred_check
      _
    $region95: #{tpu_custom_call.1} parent=1 // pred_check_branch
      %9562 = sbr.rel (0) target = $region97
    $region96: #{tpu_custom_call.1} parent=1 // pred_region
      %s9564 = ssub.s32 64, 64
      %9565 = vsyncadd [#allocation5], %s9564
      %s9567 = sshll.u32 [#allocation21], 4
      %s9568 = int_to_ptr.vmem [resolvable:$true] %s9567
      %9570 = dma.vmem_to_hbm [thread:$0]  %s9568, 64, %s12, [#allocation5]
    $region97: #{tpu_custom_call.1} parent=1 // pred_fallthru
      _
    // Predicated region
    $region98: #{tpu_custom_call.1} parent=1 // pred_check
      _
    $region99: #{tpu_custom_call.1} parent=1 // pred_check_branch
      %9572 = sbr.rel (0) target = $region101
    $region100: #{tpu_custom_call.1} parent=1 // pred_region
      %s9574 = ssub.s32 64, 64
      %9575 = vsyncadd [#allocation23], %s9574
      %s9577 = sshll.u32 [#allocation22], 4
      %s9578 = int_to_ptr.vmem [resolvable:$true] %s9577
      %9580 = dma.vmem_to_hbm [thread:$0]  %s9578, 64, %s13, [#allocation23]
    $region101: #{tpu_custom_call.1} parent=1 // pred_fallthru
      _
    // Predicated region
    $region102: #{tpu_custom_call.1} parent=1 // pred_check
      _
    $region103: #{tpu_custom_call.1} parent=1 // pred_check_branch
      %9582 = sbr.rel (0) target = $region105
    $region104: #{tpu_custom_call.1} parent=1 // pred_region
      _
    $region105: #{tpu_custom_call.1} parent=1 // pred_fallthru
      _
    // Predicated region
    $region106: #{tpu_custom_call.1} parent=1 // pred_check
      _
    $region107: #{tpu_custom_call.1} parent=1 // pred_check_branch
      %9584 = sbr.rel (0) target = $region109
    $region108: #{tpu_custom_call.1} parent=1 // pred_region
      %9585 = dma.done [#allocation5], 64
    $region109: #{tpu_custom_call.1} parent=1 // pred_fallthru
      _
    // Predicated region
    $region110: #{tpu_custom_call.1} parent=1 // pred_check
      _
    $region111: #{tpu_custom_call.1} parent=1 // pred_check_branch
      %9587 = sbr.rel (0) target = $region113
    $region112: #{tpu_custom_call.1} parent=1 // pred_region
      %9588 = dma.done [#allocation23], 64
    $region113: #{tpu_custom_call.1} parent=1 // pred_fallthru
      _
    // Predicated region
    $region114: #{tpu_custom_call.1} parent=1 // pred_check
      _
    $region115: #{tpu_custom_call.1} parent=1 // pred_check_branch
      %9590 = sbr.rel (0) target = $region117
    $region116: #{tpu_custom_call.1} parent=1 // pred_region
      _
    $region117: #{tpu_custom_call.1} parent=1 // pred_fallthru
      _
    %9591 = vsyncpa [#allocation4], 1
    %9592 = vsyncpa [#allocation7], 1
    %9593 = vsyncpa [#allocation10], 1
    %9594 = vsyncpa [#allocation13], 1
    %9595 = vsyncpa [#allocation16], 1
    %9596 = vsyncpa [#allocation19], 1
    %9597 = vsyncpa [#allocation5], 1
    %9598 = vsyncpa [#allocation23], 1

</llo_original>
